<compile_context>
chip_gen: v6e
topology: v6e:2x2x1
jax: 0.10.0
libtpu: 0.0.40
codegen_flags: <defaults>
</compile_context>

<pallas_src>
import functools

import jax
import jax.numpy as jnp
import numpy as np
from jax import lax
from jax.experimental import pallas as pl
from jax.experimental.pallas import tpu as pltpu


# Above the default scoped limit on every generation (v5e 16 MiB, v6e/v7x
# 32 MiB) and below physical VMEM everywhere (v7x has only 64 MiB per TC).
_VMEM_LIMIT_BYTES = 48 * 1024 * 1024


def _round_up(x, m):
    return ((x + m - 1) // m) * m


def _pick_time_chunk(T, bp, hp, kin_max, budget_bytes=12 * 1024 * 1024, cap=64):
    """Largest time chunk whose per-grid-step VMEM footprint fits the budget."""
    cap = max(1, min(cap, T))
    best = 1
    for tc in range(1, cap + 1):
        rows = tc * bp
        est = (2 * rows * kin_max * 2               # x chunk, bf16, double-buffered
               + rows * 4 * hp * 4                  # gate scratch, f32
               + 2 * rows * hp * 2                  # seq-out chunk, bf16, double-buffered
               + 2 * (kin_max + hp) * 4 * hp * 2    # W_in + W_hh blocks, bf16, dbl-buf
               + 3 * bp * hp * 4)                   # h / c scratch + h-sum block
        if est <= budget_bytes:
            best = tc
    return best


# ----------------------------------------------------------------------------
# Fused bidirectional LSTM layer kernel.
#   grid = (2 directions [parallel], nc time chunks [arbitrary])
#   Per grid step:
#     1) gate pre-activations for the whole chunk: x @ W_in + b  (MXU)
#     2) unrolled recurrence over the chunk's timesteps (h @ W_hh on MXU,
#        gate math on VPU/EUP), carrying h/c in VMEM scratch
#     3) per-direction running h-sum accumulated into an output block
#   Optional sequence output is written lane-concatenated: fwd -> [0:Hp],
#   bwd -> [Hp:2Hp] of a (Tp, Bp, 2Hp) bf16 tensor (next layer's input).
# ----------------------------------------------------------------------------
def _fused_bilstm_kernel(x_ref, w_in_ref, b_ref, whh_ref, *rest,
                         tc, hp, nc, t_real, write_seq, unroll):
    if write_seq:
        out_ref, sum_ref, g_sc, h_sc, c_sc = rest
    else:
        out_ref = None
        sum_ref, g_sc, h_sc, c_sc = rest

    d = pl.program_id(0)            # 0 = forward, 1 = backward
    c = pl.program_id(1)            # per-direction time-chunk counter

    @pl.when(c == 0)
    def _():
        h_sc[...] = jnp.zeros_like(h_sc)
        c_sc[...] = jnp.zeros_like(c_sc)
        sum_ref[...] = jnp.zeros_like(sum_ref)

    bp = h_sc.shape[0]
    kin = x_ref.shape[-1]

    # Chunk input projection on the MXU (hidden behind the latency-bound
    # recurrence): gates_pre = x @ W_in + b for all tc timesteps at once.
    x2d = x_ref[...].reshape(tc * bp, kin)
    g2d = jnp.dot(x2d, w_in_ref[...], preferred_element_type=jnp.float32) + b_ref[...]
    g_sc[...] = g2d.reshape(tc, bp, 4 * hp)

    blk = c + d * (nc - 1 - 2 * c)          # fwd chunks ascend, bwd descend
    t0 = blk * tc
    masked = (nc * tc != t_real)            # static: padded time tail present?

    def step(i, carry):
        h, cell, acc = carry
        li = i + d * (tc - 1 - 2 * i)       # fwd: i ; bwd: tc-1-i
        gates = g_sc[li] + jnp.dot(h.astype(jnp.bfloat16), whh_ref[...],
                                   preferred_element_type=jnp.float32)
        # PyTorch gate order i, f, g, o — slices are lane aligned (hp % 128 == 0)
        ig = jax.nn.sigmoid(gates[:, 0 * hp:1 * hp])
        fg = jax.nn.sigmoid(gates[:, 1 * hp:2 * hp])
        gg = jnp.tanh(gates[:, 2 * hp:3 * hp])
        og = jax.nn.sigmoid(gates[:, 3 * hp:4 * hp])
        c_new = fg * cell + ig * gg
        h_new = og * jnp.tanh(c_new)
        if masked:
            # skip state update / pool accumulation for padded timesteps
            m = jnp.where(t0 + li < t_real, 1.0, 0.0).astype(jnp.float32)
            h_out = h + m * (h_new - h)
            c_out = cell + m * (c_new - cell)
            acc = acc + m * h_new
        else:
            h_out, c_out = h_new, c_new
            acc = acc + h_new
        if write_seq:
            out_ref[li] = h_out.astype(out_ref.dtype)
        return h_out, c_out, acc

    init = (h_sc[...], c_sc[...], jnp.zeros_like(h_sc[...]))
    h, cell, acc = lax.fori_loop(0, tc, step, init, unroll=unroll)
    h_sc[...] = h
    c_sc[...] = cell
    sum_ref[...] = sum_ref[...] + acc


def bilstm_fused_layer(x, w_in, bias, w_hh, *, tc, t_real, write_seq):
    # x:    (Tp, Bp, Kin)    bf16   (Kin = embedding dim or 2*Hp for stacked layers)
    # w_in: (2, Kin, 4*Hp)   bf16
    # bias: (2, 1, 4*Hp)     f32    (b_ih + b_hh, gate-padded)
    # w_hh: (2, Hp, 4*Hp)    bf16
    Tp, bp, kin = x.shape
    hp = w_hh.shape[1]
    nc = Tp // tc

    def tblock(d, c):                       # fwd chunks ascend, bwd descend
        return c + d * (nc - 1 - 2 * c)

    in_specs = [
        pl.BlockSpec((tc, bp, kin), lambda d, c: (tblock(d, c), 0, 0)),
        pl.BlockSpec((pl.Squeezed(), kin, 4 * hp), lambda d, c: (d, 0, 0)),
        pl.BlockSpec((pl.Squeezed(), 1, 4 * hp), lambda d, c: (d, 0, 0)),
        pl.BlockSpec((pl.Squeezed(), hp, 4 * hp), lambda d, c: (d, 0, 0)),
    ]
    sum_shape = jax.ShapeDtypeStruct((2, bp, hp), jnp.float32)
    sum_spec = pl.BlockSpec((pl.Squeezed(), bp, hp), lambda d, c: (d, 0, 0))
    if write_seq:
        # forward writes lanes [0:Hp], backward lanes [Hp:2Hp] of one tensor,
        # so the next layer's input is already K-concatenated (single K=2Hp dot).
        out_shape = (jax.ShapeDtypeStruct((Tp, bp, 2 * hp), jnp.bfloat16), sum_shape)
        out_specs = (pl.BlockSpec((tc, bp, hp), lambda d, c: (tblock(d, c), 0, d)),
                     sum_spec)
    else:
        out_shape = sum_shape
        out_specs = sum_spec

    kernel = functools.partial(
        _fused_bilstm_kernel, tc=tc, hp=hp, nc=nc, t_real=t_real,
        write_seq=write_seq, unroll=min(tc, 8))

    res = pl.pallas_call(
        kernel,
        out_shape=out_shape,
        grid_spec=pltpu.PrefetchScalarGridSpec(
            num_scalar_prefetch=0,
            grid=(2, nc),
            in_specs=in_specs,
            out_specs=out_specs,
            scratch_shapes=[
                pltpu.VMEM((tc, bp, 4 * hp), jnp.float32),   # gate chunk
                pltpu.VMEM((bp, hp), jnp.float32),           # h carry
                pltpu.VMEM((bp, hp), jnp.float32),           # c carry
            ]),
        compiler_params=pltpu.CompilerParams(
            dimension_semantics=("parallel", "arbitrary"),
            vmem_limit_bytes=_VMEM_LIMIT_BYTES),
    )(x, w_in, bias, w_hh)

    if write_seq:
        return res          # (seq_out, h_sum)
    return None, res        # last layer: only h_sum


# ----------------------------------------------------------------------------
# Head: mean-pool (from pre-accumulated per-direction sums) + Linear.
# ----------------------------------------------------------------------------
def _head_kernel(sum_ref, w_ref, b_ref, out_ref, *, inv_t):
    doc_f = (sum_ref[0] * inv_t).astype(jnp.bfloat16)
    doc_b = (sum_ref[1] * inv_t).astype(jnp.bfloat16)
    out_ref[...] = (
        jnp.dot(doc_f, w_ref[0], preferred_element_type=jnp.float32)
        + jnp.dot(doc_b, w_ref[1], preferred_element_type=jnp.float32)
        + b_ref[...]
    )


def head_pallas(h_sum, fc_w_t, fc_b2d, *, inv_t):
    bp = h_sum.shape[1]
    c = fc_w_t.shape[-1]
    return pl.pallas_call(
        functools.partial(_head_kernel, inv_t=inv_t),
        out_shape=jax.ShapeDtypeStruct((bp, c), jnp.float32),
        in_specs=[pl.BlockSpec(memory_space=pltpu.MemorySpace.VMEM)] * 3,
        out_specs=pl.BlockSpec(memory_space=pltpu.MemorySpace.VMEM),
    )(h_sum, fc_w_t, fc_b2d)


# ----------------------------------------------------------------------------
# One-time parameter preparation: transpose / pad / bf16-cast.  Gate columns
# are padded per-gate so slices land on lane boundaries; padding is exact
# (padded hidden lanes stay zero through the LSTM).  Stacked-layer W_ih is
# laid out as (2*Hp, 4*Hp) to match the lane-concatenated layer output.
# ----------------------------------------------------------------------------
def prepare_params(params):
    lstm = params["lstm"]
    H = lstm[0][0]["w_hh"].shape[1]
    Hp = _round_up(H, 128)

    def pad_gate_cols(w):
        parts = []
        for k in range(4):
            p = w[..., k * H:(k + 1) * H]
            pad = [(0, 0)] * (p.ndim - 1) + [(0, Hp - H)]
            parts.append(jnp.pad(p, pad))
        return jnp.concatenate(parts, axis=-1)

    w_in_layers, bias_layers, w_hh_layers = [], [], []
    for layer_idx, layer in enumerate(lstm):
        w_in_dirs, b_dirs, w_hh_dirs = [], [], []
        for p in layer:                                       # fwd, bwd
            w_ih_t = pad_gate_cols(jnp.transpose(p["w_ih"]))  # (D_in, 4Hp)
            if layer_idx == 0:
                w_in = w_ih_t                                 # (Din, 4Hp)
            else:
                # stacked-layer input is [h_fwd | h_bwd], each half padded to Hp
                w_f = jnp.pad(w_ih_t[0:H], ((0, Hp - H), (0, 0)))
                w_b = jnp.pad(w_ih_t[H:2 * H], ((0, Hp - H), (0, 0)))
                w_in = jnp.concatenate([w_f, w_b], axis=0)    # (2Hp, 4Hp)
            w_in_dirs.append(w_in.astype(jnp.bfloat16))

            b = pad_gate_cols(p["b_ih"] + p["b_hh"])[None, :]  # (1, 4Hp)
            b_dirs.append(b.astype(jnp.float32))

            w_hh_t = pad_gate_cols(jnp.transpose(p["w_hh"]))   # (H, 4Hp)
            w_hh_t = jnp.pad(w_hh_t, ((0, Hp - H), (0, 0)))    # (Hp, 4Hp)
            w_hh_dirs.append(w_hh_t.astype(jnp.bfloat16))

        w_in_layers.append(jnp.stack(w_in_dirs, axis=0))   # (2, Kin, 4Hp)
        bias_layers.append(jnp.stack(b_dirs, axis=0))      # (2, 1, 4Hp)
        w_hh_layers.append(jnp.stack(w_hh_dirs, axis=0))   # (2, Hp, 4Hp)

    fc_w = params["fc_w"]                                  # (C, 2H)
    wf = jnp.pad(jnp.transpose(fc_w[:, 0:H]), ((0, Hp - H), (0, 0)))
    wb = jnp.pad(jnp.transpose(fc_w[:, H:2 * H]), ((0, Hp - H), (0, 0)))
    return {
        "embedding": params["embedding"].astype(jnp.bfloat16),
        "w_in": w_in_layers,
        "bias": bias_layers,
        "w_hh": w_hh_layers,
        "fc_w_t": jnp.stack([wf, wb], axis=0).astype(jnp.bfloat16),  # (2, Hp, C)
        "fc_b2d": params["fc_b"][None, :].astype(jnp.float32),       # (1, C)
    }


# ----------------------------------------------------------------------------
# Full forward pass (matches DocumentClassifier.forward semantics).
# ----------------------------------------------------------------------------
def document_classifier_forward(input_ids, prep, *, max_time_chunk=None):
    B, T = input_ids.shape
    Hp = prep["w_hh"][0].shape[1]
    num_layers = len(prep["w_hh"])
    Din = prep["embedding"].shape[1]
    Bp = _round_up(B, 16)                     # bf16 native sublane tile is 16
    kin_max = max(Din, 2 * Hp)
    cap = 64 if max_time_chunk is None else max_time_chunk
    tc = _pick_time_chunk(T, Bp, Hp, kin_max, cap=cap)
    Tp = _round_up(T, tc)

    ids = input_ids
    if Bp != B:
        ids = jnp.pad(ids, ((0, Bp - B), (0, 0)))

    # TODO(synk): embedding gather stays in plain JAX (jnp.take); a fused
    # Pallas scalar-prefetch row gather would remove one HBM pass over x.
    x = jnp.take(prep["embedding"], ids.T, axis=0)           # (T, Bp, Din) bf16
    if Tp != T:
        x = jnp.pad(x, ((0, Tp - T), (0, 0), (0, 0)))        # tail masked in-kernel

    h_sum = None
    for l in range(num_layers):
        write_seq = (l + 1 < num_layers)      # last layer: only h-sum is needed
        x, h_sum = bilstm_fused_layer(x, prep["w_in"][l], prep["bias"][l],
                                      prep["w_hh"][l], tc=tc, t_real=T,
                                      write_seq=write_seq)

    logits = head_pallas(h_sum, prep["fc_w_t"], prep["fc_b2d"], inv_t=1.0 / T)
    return logits[:B]                                        # (batch, num_classes)


# ----------------------------------------------------------------------------
# Pure-JAX reference (f32, lax.scan LSTM) for correctness checking.
# ----------------------------------------------------------------------------
def _lstm_ref_dir(x_seq, w_ih, w_hh, b_ih, b_hh, reverse):
    H = w_hh.shape[1]
    B = x_seq.shape[1]
    xs = x_seq[::-1] if reverse else x_seq
    hi = jax.lax.Precision.HIGHEST

    def step(carry, x):
        h, c = carry
        gates = (jnp.dot(x, w_ih.T, precision=hi)
                 + jnp.dot(h, w_hh.T, precision=hi) + b_ih + b_hh)
        i = jax.nn.sigmoid(gates[:, 0 * H:1 * H])
        f = jax.nn.sigmoid(gates[:, 1 * H:2 * H])
        g = jnp.tanh(gates[:, 2 * H:3 * H])
        o = jax.nn.sigmoid(gates[:, 3 * H:4 * H])
        c = f * c + i * g
        h = o * jnp.tanh(c)
        return (h, c), h

    init = (jnp.zeros((B, H), jnp.float32), jnp.zeros((B, H), jnp.float32))
    _, ys = jax.lax.scan(step, init, xs)
    return ys[::-1] if reverse else ys


def document_classifier_reference(input_ids, params):
    x = jnp.take(params["embedding"], input_ids.T, axis=0).astype(jnp.float32)
    h = x
    for layer_params in params["lstm"]:
        outs = []
        for direction, reverse in ((0, False), (1, True)):
            p = layer_params[direction]
            outs.append(_lstm_ref_dir(h, p["w_ih"], p["w_hh"], p["b_ih"], p["b_hh"], reverse))
        h = jnp.concatenate(outs, axis=-1)
    doc = jnp.mean(h, axis=0)
    return jnp.dot(doc, params["fc_w"].T, precision=jax.lax.Precision.HIGHEST) + params["fc_b"]


# ----------------------------------------------------------------------------
# Deterministic parameter init (shapes match nn.Embedding / nn.LSTM / nn.Linear).
# ----------------------------------------------------------------------------
def init_params(key, vocab_size, input_dim, hidden_dim, num_layers, num_classes,
                bidirectional=True):
    num_dirs = 2 if bidirectional else 1
    k_emb, k_lstm, k_fc = jax.random.split(key, 3)
    params = {"embedding": jax.random.normal(k_emb, (vocab_size, input_dim), jnp.float32)}

    stdv = 1.0 / np.sqrt(hidden_dim)
    lstm_layers = []
    lkeys = jax.random.split(k_lstm, num_layers * num_dirs)
    for layer in range(num_layers):
        d_in = input_dim if layer == 0 else num_dirs * hidden_dim
        dirs = []
        for d in range(num_dirs):
            kk = jax.random.split(lkeys[layer * num_dirs + d], 4)
            dirs.append({
                "w_ih": jax.random.uniform(kk[0], (4 * hidden_dim, d_in), jnp.float32, -stdv, stdv),
                "w_hh": jax.random.uniform(kk[1], (4 * hidden_dim, hidden_dim), jnp.float32, -stdv, stdv),
                "b_ih": jax.random.uniform(kk[2], (4 * hidden_dim,), jnp.float32, -stdv, stdv),
                "b_hh": jax.random.uniform(kk[3], (4 * hidden_dim,), jnp.float32, -stdv, stdv),
            })
        lstm_layers.append(dirs)
    params["lstm"] = lstm_layers

    fan_in = num_dirs * hidden_dim
    bound = 1.0 / np.sqrt(fan_in)
    kw, kb = jax.random.split(k_fc)
    params["fc_w"] = jax.random.uniform(kw, (num_classes, fan_in), jnp.float32, -bound, bound)
    params["fc_b"] = jax.random.uniform(kb, (num_classes,), jnp.float32, -bound, bound)
    return params


if __name__ == "__main__":
    def check(batch, seq, hidden_dim, num_layers, num_classes, vocab_size,
              input_dim, max_time_chunk=None):
        key = jax.random.PRNGKey(0)
        k_ids, k_params = jax.random.split(key)
        input_ids = jax.random.randint(k_ids, (batch, seq), 0, vocab_size, dtype=jnp.int32)
        params = init_params(k_params, vocab_size, input_dim, hidden_dim,
                             num_layers, num_classes, bidirectional=True)
        prep = prepare_params(params)            # one-time transpose/pad/bf16 cast
        fwd = jax.jit(functools.partial(document_classifier_forward,
                                        max_time_chunk=max_time_chunk))
        logits = fwd(input_ids, prep)
        jax.block_until_ready(logits)
        assert logits.shape == (batch, num_classes)
        ref = document_classifier_reference(input_ids, params)
        # bf16 MXU matmuls with f32 accumulation vs f32-HIGHEST reference.
        np.testing.assert_allclose(np.asarray(logits), np.asarray(ref),
                                   rtol=2e-2, atol=2e-2)

    # base case: T fits in one time chunk (no tail masking)
    check(batch=4, seq=8, hidden_dim=32, num_layers=2, num_classes=5,
          vocab_size=64, input_dim=32)
    # non-divisor T exercises the padded-tail masking path (time chunk forced to 4)
    check(batch=3, seq=11, hidden_dim=32, num_layers=2, num_classes=5,
          vocab_size=64, input_dim=32, max_time_chunk=4)

    print("KERNEL_OK")
</pallas_src>

<mosaic_0001>
module attributes {stable_mosaic.version = 11 : i64} {
  func.func @_fused_bilstm_kernel(%arg0: i32, %arg1: i32, %arg2: memref<8x16x32xbf16, #tpu.memory_space<vmem>>, %arg3: memref<1x32x512xbf16, #tpu.memory_space<vmem>>, %arg4: memref<1x1x512xf32, #tpu.memory_space<vmem>>, %arg5: memref<1x128x512xbf16, #tpu.memory_space<vmem>>, %arg6: memref<8x16x128xbf16, #tpu.memory_space<vmem>>, %arg7: memref<1x16x128xf32, #tpu.memory_space<vmem>>, %arg8: memref<8x16x512xf32, #tpu.memory_space<vmem>>, %arg9: memref<16x128xf32, #tpu.memory_space<vmem>>, %arg10: memref<16x128xf32, #tpu.memory_space<vmem>>) attributes {dimension_semantics = [#tpu.dimension_semantics<parallel>, #tpu.dimension_semantics<arbitrary>], iteration_bounds = array<i64: 2, 1>, scalar_prefetch = 0 : i64, scratch_operands = 3 : i64, tpu.core_type = #tpu.core_type<tc>, window_params = [{transform_indices = @transform_0, window_bounds = array<i64: 8, 16, 32>}, {transform_indices = @transform_1, window_bounds = array<i64: 1, 32, 512>}, {transform_indices = @transform_2, window_bounds = array<i64: 1, 1, 512>}, {transform_indices = @transform_3, window_bounds = array<i64: 1, 128, 512>}, {transform_indices = @transform_4, window_bounds = array<i64: 8, 16, 128>}, {transform_indices = @transform_5, window_bounds = array<i64: 1, 16, 128>}]} {
    %c0_i32 = arith.constant 0 : i32
    %0 = arith.cmpi eq, %arg1, %c0_i32 : i32
    %1 = arith.extui %0 : i1 to i32
    %c0_i32_0 = arith.constant 0 : i32
    %2 = arith.cmpi ne, %1, %c0_i32_0 : i32
    scf.if %2 {
      %cst_132 = arith.constant 0.000000e+00 : f32
      %369 = vector.broadcast %cst_132 : f32 to vector<16x128xf32>
      %c0_133 = arith.constant 0 : index
      %c0_134 = arith.constant 0 : index
      %370 = vector.load %arg9[%c0_133, %c0_134] : memref<16x128xf32, #tpu.memory_space<vmem>>, vector<16x128xf32>
      tpu.vector_store %arg9[%c0_133, %c0_134], %369 {strides = array<i32>} : memref<16x128xf32, #tpu.memory_space<vmem>>, vector<16x128xf32>,
      %cst_135 = arith.constant 0.000000e+00 : f32
      %371 = vector.broadcast %cst_135 : f32 to vector<16x128xf32>
      %c0_136 = arith.constant 0 : index
      %c0_137 = arith.constant 0 : index
      %372 = vector.load %arg10[%c0_136, %c0_137] : memref<16x128xf32, #tpu.memory_space<vmem>>, vector<16x128xf32>
      tpu.vector_store %arg10[%c0_136, %c0_137], %371 {strides = array<i32>} : memref<16x128xf32, #tpu.memory_space<vmem>>, vector<16x128xf32>,
      %cst_138 = arith.constant 0.000000e+00 : f32
      %373 = vector.broadcast %cst_138 : f32 to vector<16x128xf32>
      %c0_139 = arith.constant 0 : index
      %c0_140 = arith.constant 0 : index
      %c0_141 = arith.constant 0 : index
      %374 = vector.load %arg7[%c0_139, %c0_140, %c0_141] : memref<1x16x128xf32, #tpu.memory_space<vmem>>, vector<1x16x128xf32>
      %375 = vector.shape_cast %374 : vector<1x16x128xf32> to vector<16x128xf32>
      %376 = vector.shape_cast %373 : vector<16x128xf32> to vector<1x16x128xf32>
      tpu.vector_store %arg7[%c0_139, %c0_140, %c0_141], %376 {strides = array<i32>} : memref<1x16x128xf32, #tpu.memory_space<vmem>>, vector<1x16x128xf32>,
    } else {
    }
    %c0 = arith.constant 0 : index
    %c0_1 = arith.constant 0 : index
    %c0_2 = arith.constant 0 : index
    %3 = vector.load %arg2[%c0, %c0_1, %c0_2] : memref<8x16x32xbf16, #tpu.memory_space<vmem>>, vector<8x16x32xbf16>
    %4 = vector.shape_cast %3 : vector<8x16x32xbf16> to vector<128x32xbf16>
    %c0_3 = arith.constant 0 : index
    %c0_4 = arith.constant 0 : index
    %c0_5 = arith.constant 0 : index
    %5 = vector.load %arg3[%c0_3, %c0_4, %c0_5] : memref<1x32x512xbf16, #tpu.memory_space<vmem>>, vector<1x32x512xbf16>
    %6 = vector.shape_cast %5 : vector<1x32x512xbf16> to vector<32x512xbf16>
    %cst = arith.constant dense<0.000000e+00> : vector<128x512xf32>
    %7 = tpu.matmul %4, %6, %cst {dimension_numbers = #tpu.dot_dimension_numbers<[1], [0], [0], [1], [0, 0, 1, 1], [], []>} : vector<128x32xbf16>, vector<32x512xbf16>, vector<128x512xf32> -> vector<128x512xf32>
    %c0_6 = arith.constant 0 : index
    %c0_7 = arith.constant 0 : index
    %c0_8 = arith.constant 0 : index
    %8 = vector.load %arg4[%c0_6, %c0_7, %c0_8] : memref<1x1x512xf32, #tpu.memory_space<vmem>>, vector<1x1x512xf32>
    %9 = vector.shape_cast %8 : vector<1x1x512xf32> to vector<1x512xf32>
    %10 = vector.broadcast %9 : vector<1x512xf32> to vector<128x512xf32>
    %11 = arith.addf %7, %10 : vector<128x512xf32>
    %12 = vector.shape_cast %11 : vector<128x512xf32> to vector<8x16x512xf32>
    %c0_9 = arith.constant 0 : index
    %c0_10 = arith.constant 0 : index
    %c0_11 = arith.constant 0 : index
    %13 = vector.load %arg8[%c0_9, %c0_10, %c0_11] : memref<8x16x512xf32, #tpu.memory_space<vmem>>, vector<8x16x512xf32>
    tpu.vector_store %arg8[%c0_9, %c0_10, %c0_11], %12 {strides = array<i32>} : memref<8x16x512xf32, #tpu.memory_space<vmem>>, vector<8x16x512xf32>,
    %c0_12 = arith.constant 0 : index
    %c0_13 = arith.constant 0 : index
    %14 = vector.load %arg9[%c0_12, %c0_13] : memref<16x128xf32, #tpu.memory_space<vmem>>, vector<16x128xf32>
    %c0_14 = arith.constant 0 : index
    %c0_15 = arith.constant 0 : index
    %15 = vector.load %arg10[%c0_14, %c0_15] : memref<16x128xf32, #tpu.memory_space<vmem>>, vector<16x128xf32>
    %cst_16 = arith.constant 0.000000e+00 : f32
    %16 = vector.broadcast %cst_16 : f32 to vector<16x128xf32>
    %c0_i32_17 = arith.constant 0 : i32
    %c2_i32 = arith.constant 2 : i32
    %17 = arith.muli %c2_i32, %c0_i32_17 : i32
    %c7_i32 = arith.constant 7 : i32
    %18 = arith.subi %c7_i32, %17 : i32
    %19 = arith.muli %arg0, %18 : i32
    %20 = arith.addi %c0_i32_17, %19 : i32
    %21 = arith.index_cast %20 : i32 to index
    %c0_18 = arith.constant 0 : index
    %c0_19 = arith.constant 0 : index
    %22 = vector.load %arg8[%21, %c0_18, %c0_19] : memref<8x16x512xf32, #tpu.memory_space<vmem>>, vector<1x16x512xf32>
    %23 = vector.shape_cast %22 : vector<1x16x512xf32> to vector<16x512xf32>
    %24 = arith.truncf %14 : vector<16x128xf32> to vector<16x128xbf16>
    %c0_20 = arith.constant 0 : index
    %c0_21 = arith.constant 0 : index
    %c0_22 = arith.constant 0 : index
    %25 = vector.load %arg5[%c0_20, %c0_21, %c0_22] : memref<1x128x512xbf16, #tpu.memory_space<vmem>>, vector<1x128x512xbf16>
    %26 = vector.shape_cast %25 : vector<1x128x512xbf16> to vector<128x512xbf16>
    %cst_23 = arith.constant dense<0.000000e+00> : vector<16x512xf32>
    %27 = tpu.matmul %24, %26, %cst_23 {dimension_numbers = #tpu.dot_dimension_numbers<[1], [0], [0], [1], [0, 0, 1, 1], [], []>} : vector<16x128xbf16>, vector<128x512xbf16>, vector<16x512xf32> -> vector<16x512xf32>
    %28 = arith.addf %23, %27 : vector<16x512xf32>
    %29 = vector.extract_strided_slice %28 {offsets = [0, 0], sizes = [16, 128], strides = [1, 1]} : vector<16x512xf32> to vector<16x128xf32>
    %30 = arith.negf %29 : vector<16x128xf32>
    %31 = math.exp %30 : vector<16x128xf32>
    %cst_24 = arith.constant 1.000000e+00 : f32
    %32 = vector.broadcast %cst_24 : f32 to vector<16x128xf32>
    %33 = arith.addf %32, %31 : vector<16x128xf32>
    %34 = arith.divf %32, %33 : vector<16x128xf32>
    %35 = vector.extract_strided_slice %28 {offsets = [0, 128], sizes = [16, 128], strides = [1, 1]} : vector<16x512xf32> to vector<16x128xf32>
    %36 = arith.negf %35 : vector<16x128xf32>
    %37 = math.exp %36 : vector<16x128xf32>
    %cst_25 = arith.constant 1.000000e+00 : f32
    %38 = vector.broadcast %cst_25 : f32 to vector<16x128xf32>
    %39 = arith.addf %38, %37 : vector<16x128xf32>
    %40 = arith.divf %38, %39 : vector<16x128xf32>
    %41 = vector.extract_strided_slice %28 {offsets = [0, 256], sizes = [16, 128], strides = [1, 1]} : vector<16x512xf32> to vector<16x128xf32>
    %42 = math.tanh %41 : vector<16x128xf32>
    %43 = vector.extract_strided_slice %28 {offsets = [0, 384], sizes = [16, 128], strides = [1, 1]} : vector<16x512xf32> to vector<16x128xf32>
    %44 = arith.negf %43 : vector<16x128xf32>
    %45 = math.exp %44 : vector<16x128xf32>
    %cst_26 = arith.constant 1.000000e+00 : f32
    %46 = vector.broadcast %cst_26 : f32 to vector<16x128xf32>
    %47 = arith.addf %46, %45 : vector<16x128xf32>
    %48 = arith.divf %46, %47 : vector<16x128xf32>
    %49 = arith.mulf %40, %15 : vector<16x128xf32>
    %50 = arith.mulf %34, %42 : vector<16x128xf32>
    %51 = arith.addf %49, %50 : vector<16x128xf32>
    %52 = math.tanh %51 : vector<16x128xf32>
    %53 = arith.mulf %48, %52 : vector<16x128xf32>
    %54 = arith.addf %16, %53 : vector<16x128xf32>
    %55 = arith.truncf %53 : vector<16x128xf32> to vector<16x128xbf16>
    %56 = arith.index_cast %20 : i32 to index
    %c0_27 = arith.constant 0 : index
    %c0_28 = arith.constant 0 : index
    %57 = vector.load %arg6[%56, %c0_27, %c0_28] : memref<8x16x128xbf16, #tpu.memory_space<vmem>>, vector<1x16x128xbf16>
    %58 = vector.shape_cast %57 : vector<1x16x128xbf16> to vector<16x128xbf16>
    %59 = vector.shape_cast %55 : vector<16x128xbf16> to vector<1x16x128xbf16>
    tpu.vector_store %arg6[%56, %c0_27, %c0_28], %59 {strides = array<i32>} : memref<8x16x128xbf16, #tpu.memory_space<vmem>>, vector<1x16x128xbf16>,
    %c1_i32 = arith.constant 1 : i32
    %c2_i32_29 = arith.constant 2 : i32
    %60 = arith.muli %c2_i32_29, %c1_i32 : i32
    %c7_i32_30 = arith.constant 7 : i32
    %61 = arith.subi %c7_i32_30, %60 : i32
    %62 = arith.muli %arg0, %61 : i32
    %63 = arith.addi %c1_i32, %62 : i32
    %64 = arith.index_cast %63 : i32 to index
    %c0_31 = arith.constant 0 : index
    %c0_32 = arith.constant 0 : index
    %65 = vector.load %arg8[%64, %c0_31, %c0_32] : memref<8x16x512xf32, #tpu.memory_space<vmem>>, vector<1x16x512xf32>
    %66 = vector.shape_cast %65 : vector<1x16x512xf32> to vector<16x512xf32>
    %67 = arith.truncf %53 : vector<16x128xf32> to vector<16x128xbf16>
    %c0_33 = arith.constant 0 : index
    %c0_34 = arith.constant 0 : index
    %c0_35 = arith.constant 0 : index
    %68 = vector.load %arg5[%c0_33, %c0_34, %c0_35] : memref<1x128x512xbf16, #tpu.memory_space<vmem>>, vector<1x128x512xbf16>
    %69 = vector.shape_cast %68 : vector<1x128x512xbf16> to vector<128x512xbf16>
    %cst_36 = arith.constant dense<0.000000e+00> : vector<16x512xf32>
    %70 = tpu.matmul %67, %69, %cst_36 {dimension_numbers = #tpu.dot_dimension_numbers<[1], [0], [0], [1], [0, 0, 1, 1], [], []>} : vector<16x128xbf16>, vector<128x512xbf16>, vector<16x512xf32> -> vector<16x512xf32>
    %71 = arith.addf %66, %70 : vector<16x512xf32>
    %72 = vector.extract_strided_slice %71 {offsets = [0, 0], sizes = [16, 128], strides = [1, 1]} : vector<16x512xf32> to vector<16x128xf32>
    %73 = arith.negf %72 : vector<16x128xf32>
    %74 = math.exp %73 : vector<16x128xf32>
    %cst_37 = arith.constant 1.000000e+00 : f32
    %75 = vector.broadcast %cst_37 : f32 to vector<16x128xf32>
    %76 = arith.addf %75, %74 : vector<16x128xf32>
    %77 = arith.divf %75, %76 : vector<16x128xf32>
    %78 = vector.extract_strided_slice %71 {offsets = [0, 128], sizes = [16, 128], strides = [1, 1]} : vector<16x512xf32> to vector<16x128xf32>
    %79 = arith.negf %78 : vector<16x128xf32>
    %80 = math.exp %79 : vector<16x128xf32>
    %cst_38 = arith.constant 1.000000e+00 : f32
    %81 = vector.broadcast %cst_38 : f32 to vector<16x128xf32>
    %82 = arith.addf %81, %80 : vector<16x128xf32>
    %83 = arith.divf %81, %82 : vector<16x128xf32>
    %84 = vector.extract_strided_slice %71 {offsets = [0, 256], sizes = [16, 128], strides = [1, 1]} : vector<16x512xf32> to vector<16x128xf32>
    %85 = math.tanh %84 : vector<16x128xf32>
    %86 = vector.extract_strided_slice %71 {offsets = [0, 384], sizes = [16, 128], strides = [1, 1]} : vector<16x512xf32> to vector<16x128xf32>
    %87 = arith.negf %86 : vector<16x128xf32>
    %88 = math.exp %87 : vector<16x128xf32>
    %cst_39 = arith.constant 1.000000e+00 : f32
    %89 = vector.broadcast %cst_39 : f32 to vector<16x128xf32>
    %90 = arith.addf %89, %88 : vector<16x128xf32>
    %91 = arith.divf %89, %90 : vector<16x128xf32>
    %92 = arith.mulf %83, %51 : vector<16x128xf32>
    %93 = arith.mulf %77, %85 : vector<16x128xf32>
    %94 = arith.addf %92, %93 : vector<16x128xf32>
    %95 = math.tanh %94 : vector<16x128xf32>
    %96 = arith.mulf %91, %95 : vector<16x128xf32>
    %97 = arith.addf %54, %96 : vector<16x128xf32>
    %98 = arith.truncf %96 : vector<16x128xf32> to vector<16x128xbf16>
    %99 = arith.index_cast %63 : i32 to index
    %c0_40 = arith.constant 0 : index
    %c0_41 = arith.constant 0 : index
    %100 = vector.load %arg6[%99, %c0_40, %c0_41] : memref<8x16x128xbf16, #tpu.memory_space<vmem>>, vector<1x16x128xbf16>
    %101 = vector.shape_cast %100 : vector<1x16x128xbf16> to vector<16x128xbf16>
    %102 = vector.shape_cast %98 : vector<16x128xbf16> to vector<1x16x128xbf16>
    tpu.vector_store %arg6[%99, %c0_40, %c0_41], %102 {strides = array<i32>} : memref<8x16x128xbf16, #tpu.memory_space<vmem>>, vector<1x16x128xbf16>,
    %c2_i32_42 = arith.constant 2 : i32
    %c2_i32_43 = arith.constant 2 : i32
    %103 = arith.muli %c2_i32_43, %c2_i32_42 : i32
    %c7_i32_44 = arith.constant 7 : i32
    %104 = arith.subi %c7_i32_44, %103 : i32
    %105 = arith.muli %arg0, %104 : i32
    %106 = arith.addi %c2_i32_42, %105 : i32
    %107 = arith.index_cast %106 : i32 to index
    %c0_45 = arith.constant 0 : index
    %c0_46 = arith.constant 0 : index
    %108 = vector.load %arg8[%107, %c0_45, %c0_46] : memref<8x16x512xf32, #tpu.memory_space<vmem>>, vector<1x16x512xf32>
    %109 = vector.shape_cast %108 : vector<1x16x512xf32> to vector<16x512xf32>
    %110 = arith.truncf %96 : vector<16x128xf32> to vector<16x128xbf16>
    %c0_47 = arith.constant 0 : index
    %c0_48 = arith.constant 0 : index
    %c0_49 = arith.constant 0 : index
    %111 = vector.load %arg5[%c0_47, %c0_48, %c0_49] : memref<1x128x512xbf16, #tpu.memory_space<vmem>>, vector<1x128x512xbf16>
    %112 = vector.shape_cast %111 : vector<1x128x512xbf16> to vector<128x512xbf16>
    %cst_50 = arith.constant dense<0.000000e+00> : vector<16x512xf32>
    %113 = tpu.matmul %110, %112, %cst_50 {dimension_numbers = #tpu.dot_dimension_numbers<[1], [0], [0], [1], [0, 0, 1, 1], [], []>} : vector<16x128xbf16>, vector<128x512xbf16>, vector<16x512xf32> -> vector<16x512xf32>
    %114 = arith.addf %109, %113 : vector<16x512xf32>
    %115 = vector.extract_strided_slice %114 {offsets = [0, 0], sizes = [16, 128], strides = [1, 1]} : vector<16x512xf32> to vector<16x128xf32>
    %116 = arith.negf %115 : vector<16x128xf32>
    %117 = math.exp %116 : vector<16x128xf32>
    %cst_51 = arith.constant 1.000000e+00 : f32
    %118 = vector.broadcast %cst_51 : f32 to vector<16x128xf32>
    %119 = arith.addf %118, %117 : vector<16x128xf32>
    %120 = arith.divf %118, %119 : vector<16x128xf32>
    %121 = vector.extract_strided_slice %114 {offsets = [0, 128], sizes = [16, 128], strides = [1, 1]} : vector<16x512xf32> to vector<16x128xf32>
    %122 = arith.negf %121 : vector<16x128xf32>
    %123 = math.exp %122 : vector<16x128xf32>
    %cst_52 = arith.constant 1.000000e+00 : f32
    %124 = vector.broadcast %cst_52 : f32 to vector<16x128xf32>
    %125 = arith.addf %124, %123 : vector<16x128xf32>
    %126 = arith.divf %124, %125 : vector<16x128xf32>
    %127 = vector.extract_strided_slice %114 {offsets = [0, 256], sizes = [16, 128], strides = [1, 1]} : vector<16x512xf32> to vector<16x128xf32>
    %128 = math.tanh %127 : vector<16x128xf32>
    %129 = vector.extract_strided_slice %114 {offsets = [0, 384], sizes = [16, 128], strides = [1, 1]} : vector<16x512xf32> to vector<16x128xf32>
    %130 = arith.negf %129 : vector<16x128xf32>
    %131 = math.exp %130 : vector<16x128xf32>
    %cst_53 = arith.constant 1.000000e+00 : f32
    %132 = vector.broadcast %cst_53 : f32 to vector<16x128xf32>
    %133 = arith.addf %132, %131 : vector<16x128xf32>
    %134 = arith.divf %132, %133 : vector<16x128xf32>
    %135 = arith.mulf %126, %94 : vector<16x128xf32>
    %136 = arith.mulf %120, %128 : vector<16x128xf32>
    %137 = arith.addf %135, %136 : vector<16x128xf32>
    %138 = math.tanh %137 : vector<16x128xf32>
    %139 = arith.mulf %134, %138 : vector<16x128xf32>
    %140 = arith.addf %97, %139 : vector<16x128xf32>
    %141 = arith.truncf %139 : vector<16x128xf32> to vector<16x128xbf16>
    %142 = arith.index_cast %106 : i32 to index
    %c0_54 = arith.constant 0 : index
    %c0_55 = arith.constant 0 : index
    %143 = vector.load %arg6[%142, %c0_54, %c0_55] : memref<8x16x128xbf16, #tpu.memory_space<vmem>>, vector<1x16x128xbf16>
    %144 = vector.shape_cast %143 : vector<1x16x128xbf16> to vector<16x128xbf16>
    %145 = vector.shape_cast %141 : vector<16x128xbf16> to vector<1x16x128xbf16>
    tpu.vector_store %arg6[%142, %c0_54, %c0_55], %145 {strides = array<i32>} : memref<8x16x128xbf16, #tpu.memory_space<vmem>>, vector<1x16x128xbf16>,
    %c3_i32 = arith.constant 3 : i32
    %c2_i32_56 = arith.constant 2 : i32
    %146 = arith.muli %c2_i32_56, %c3_i32 : i32
    %c7_i32_57 = arith.constant 7 : i32
    %147 = arith.subi %c7_i32_57, %146 : i32
    %148 = arith.muli %arg0, %147 : i32
    %149 = arith.addi %c3_i32, %148 : i32
    %150 = arith.index_cast %149 : i32 to index
    %c0_58 = arith.constant 0 : index
    %c0_59 = arith.constant 0 : index
    %151 = vector.load %arg8[%150, %c0_58, %c0_59] : memref<8x16x512xf32, #tpu.memory_space<vmem>>, vector<1x16x512xf32>
    %152 = vector.shape_cast %151 : vector<1x16x512xf32> to vector<16x512xf32>
    %153 = arith.truncf %139 : vector<16x128xf32> to vector<16x128xbf16>
    %c0_60 = arith.constant 0 : index
    %c0_61 = arith.constant 0 : index
    %c0_62 = arith.constant 0 : index
    %154 = vector.load %arg5[%c0_60, %c0_61, %c0_62] : memref<1x128x512xbf16, #tpu.memory_space<vmem>>, vector<1x128x512xbf16>
    %155 = vector.shape_cast %154 : vector<1x128x512xbf16> to vector<128x512xbf16>
    %cst_63 = arith.constant dense<0.000000e+00> : vector<16x512xf32>
    %156 = tpu.matmul %153, %155, %cst_63 {dimension_numbers = #tpu.dot_dimension_numbers<[1], [0], [0], [1], [0, 0, 1, 1], [], []>} : vector<16x128xbf16>, vector<128x512xbf16>, vector<16x512xf32> -> vector<16x512xf32>
    %157 = arith.addf %152, %156 : vector<16x512xf32>
    %158 = vector.extract_strided_slice %157 {offsets = [0, 0], sizes = [16, 128], strides = [1, 1]} : vector<16x512xf32> to vector<16x128xf32>
    %159 = arith.negf %158 : vector<16x128xf32>
    %160 = math.exp %159 : vector<16x128xf32>
    %cst_64 = arith.constant 1.000000e+00 : f32
    %161 = vector.broadcast %cst_64 : f32 to vector<16x128xf32>
    %162 = arith.addf %161, %160 : vector<16x128xf32>
    %163 = arith.divf %161, %162 : vector<16x128xf32>
    %164 = vector.extract_strided_slice %157 {offsets = [0, 128], sizes = [16, 128], strides = [1, 1]} : vector<16x512xf32> to vector<16x128xf32>
    %165 = arith.negf %164 : vector<16x128xf32>
    %166 = math.exp %165 : vector<16x128xf32>
    %cst_65 = arith.constant 1.000000e+00 : f32
    %167 = vector.broadcast %cst_65 : f32 to vector<16x128xf32>
    %168 = arith.addf %167, %166 : vector<16x128xf32>
    %169 = arith.divf %167, %168 : vector<16x128xf32>
    %170 = vector.extract_strided_slice %157 {offsets = [0, 256], sizes = [16, 128], strides = [1, 1]} : vector<16x512xf32> to vector<16x128xf32>
    %171 = math.tanh %170 : vector<16x128xf32>
    %172 = vector.extract_strided_slice %157 {offsets = [0, 384], sizes = [16, 128], strides = [1, 1]} : vector<16x512xf32> to vector<16x128xf32>
    %173 = arith.negf %172 : vector<16x128xf32>
    %174 = math.exp %173 : vector<16x128xf32>
    %cst_66 = arith.constant 1.000000e+00 : f32
    %175 = vector.broadcast %cst_66 : f32 to vector<16x128xf32>
    %176 = arith.addf %175, %174 : vector<16x128xf32>
    %177 = arith.divf %175, %176 : vector<16x128xf32>
    %178 = arith.mulf %169, %137 : vector<16x128xf32>
    %179 = arith.mulf %163, %171 : vector<16x128xf32>
    %180 = arith.addf %178, %179 : vector<16x128xf32>
    %181 = math.tanh %180 : vector<16x128xf32>
    %182 = arith.mulf %177, %181 : vector<16x128xf32>
    %183 = arith.addf %140, %182 : vector<16x128xf32>
    %184 = arith.truncf %182 : vector<16x128xf32> to vector<16x128xbf16>
    %185 = arith.index_cast %149 : i32 to index
    %c0_67 = arith.constant 0 : index
    %c0_68 = arith.constant 0 : index
    %186 = vector.load %arg6[%185, %c0_67, %c0_68] : memref<8x16x128xbf16, #tpu.memory_space<vmem>>, vector<1x16x128xbf16>
    %187 = vector.shape_cast %186 : vector<1x16x128xbf16> to vector<16x128xbf16>
    %188 = vector.shape_cast %184 : vector<16x128xbf16> to vector<1x16x128xbf16>
    tpu.vector_store %arg6[%185, %c0_67, %c0_68], %188 {strides = array<i32>} : memref<8x16x128xbf16, #tpu.memory_space<vmem>>, vector<1x16x128xbf16>,
    %c4_i32 = arith.constant 4 : i32
    %c2_i32_69 = arith.constant 2 : i32
    %189 = arith.muli %c2_i32_69, %c4_i32 : i32
    %c7_i32_70 = arith.constant 7 : i32
    %190 = arith.subi %c7_i32_70, %189 : i32
    %191 = arith.muli %arg0, %190 : i32
    %192 = arith.addi %c4_i32, %191 : i32
    %193 = arith.index_cast %192 : i32 to index
    %c0_71 = arith.constant 0 : index
    %c0_72 = arith.constant 0 : index
    %194 = vector.load %arg8[%193, %c0_71, %c0_72] : memref<8x16x512xf32, #tpu.memory_space<vmem>>, vector<1x16x512xf32>
    %195 = vector.shape_cast %194 : vector<1x16x512xf32> to vector<16x512xf32>
    %196 = arith.truncf %182 : vector<16x128xf32> to vector<16x128xbf16>
    %c0_73 = arith.constant 0 : index
    %c0_74 = arith.constant 0 : index
    %c0_75 = arith.constant 0 : index
    %197 = vector.load %arg5[%c0_73, %c0_74, %c0_75] : memref<1x128x512xbf16, #tpu.memory_space<vmem>>, vector<1x128x512xbf16>
    %198 = vector.shape_cast %197 : vector<1x128x512xbf16> to vector<128x512xbf16>
    %cst_76 = arith.constant dense<0.000000e+00> : vector<16x512xf32>
    %199 = tpu.matmul %196, %198, %cst_76 {dimension_numbers = #tpu.dot_dimension_numbers<[1], [0], [0], [1], [0, 0, 1, 1], [], []>} : vector<16x128xbf16>, vector<128x512xbf16>, vector<16x512xf32> -> vector<16x512xf32>
    %200 = arith.addf %195, %199 : vector<16x512xf32>
    %201 = vector.extract_strided_slice %200 {offsets = [0, 0], sizes = [16, 128], strides = [1, 1]} : vector<16x512xf32> to vector<16x128xf32>
    %202 = arith.negf %201 : vector<16x128xf32>
    %203 = math.exp %202 : vector<16x128xf32>
    %cst_77 = arith.constant 1.000000e+00 : f32
    %204 = vector.broadcast %cst_77 : f32 to vector<16x128xf32>
    %205 = arith.addf %204, %203 : vector<16x128xf32>
    %206 = arith.divf %204, %205 : vector<16x128xf32>
    %207 = vector.extract_strided_slice %200 {offsets = [0, 128], sizes = [16, 128], strides = [1, 1]} : vector<16x512xf32> to vector<16x128xf32>
    %208 = arith.negf %207 : vector<16x128xf32>
    %209 = math.exp %208 : vector<16x128xf32>
    %cst_78 = arith.constant 1.000000e+00 : f32
    %210 = vector.broadcast %cst_78 : f32 to vector<16x128xf32>
    %211 = arith.addf %210, %209 : vector<16x128xf32>
    %212 = arith.divf %210, %211 : vector<16x128xf32>
    %213 = vector.extract_strided_slice %200 {offsets = [0, 256], sizes = [16, 128], strides = [1, 1]} : vector<16x512xf32> to vector<16x128xf32>
    %214 = math.tanh %213 : vector<16x128xf32>
    %215 = vector.extract_strided_slice %200 {offsets = [0, 384], sizes = [16, 128], strides = [1, 1]} : vector<16x512xf32> to vector<16x128xf32>
    %216 = arith.negf %215 : vector<16x128xf32>
    %217 = math.exp %216 : vector<16x128xf32>
    %cst_79 = arith.constant 1.000000e+00 : f32
    %218 = vector.broadcast %cst_79 : f32 to vector<16x128xf32>
    %219 = arith.addf %218, %217 : vector<16x128xf32>
    %220 = arith.divf %218, %219 : vector<16x128xf32>
    %221 = arith.mulf %212, %180 : vector<16x128xf32>
    %222 = arith.mulf %206, %214 : vector<16x128xf32>
    %223 = arith.addf %221, %222 : vector<16x128xf32>
    %224 = math.tanh %223 : vector<16x128xf32>
    %225 = arith.mulf %220, %224 : vector<16x128xf32>
    %226 = arith.addf %183, %225 : vector<16x128xf32>
    %227 = arith.truncf %225 : vector<16x128xf32> to vector<16x128xbf16>
    %228 = arith.index_cast %192 : i32 to index
    %c0_80 = arith.constant 0 : index
    %c0_81 = arith.constant 0 : index
    %229 = vector.load %arg6[%228, %c0_80, %c0_81] : memref<8x16x128xbf16, #tpu.memory_space<vmem>>, vector<1x16x128xbf16>
    %230 = vector.shape_cast %229 : vector<1x16x128xbf16> to vector<16x128xbf16>
    %231 = vector.shape_cast %227 : vector<16x128xbf16> to vector<1x16x128xbf16>
    tpu.vector_store %arg6[%228, %c0_80, %c0_81], %231 {strides = array<i32>} : memref<8x16x128xbf16, #tpu.memory_space<vmem>>, vector<1x16x128xbf16>,
    %c5_i32 = arith.constant 5 : i32
    %c2_i32_82 = arith.constant 2 : i32
    %232 = arith.muli %c2_i32_82, %c5_i32 : i32
    %c7_i32_83 = arith.constant 7 : i32
    %233 = arith.subi %c7_i32_83, %232 : i32
    %234 = arith.muli %arg0, %233 : i32
    %235 = arith.addi %c5_i32, %234 : i32
    %236 = arith.index_cast %235 : i32 to index
    %c0_84 = arith.constant 0 : index
    %c0_85 = arith.constant 0 : index
    %237 = vector.load %arg8[%236, %c0_84, %c0_85] : memref<8x16x512xf32, #tpu.memory_space<vmem>>, vector<1x16x512xf32>
    %238 = vector.shape_cast %237 : vector<1x16x512xf32> to vector<16x512xf32>
    %239 = arith.truncf %225 : vector<16x128xf32> to vector<16x128xbf16>
    %c0_86 = arith.constant 0 : index
    %c0_87 = arith.constant 0 : index
    %c0_88 = arith.constant 0 : index
    %240 = vector.load %arg5[%c0_86, %c0_87, %c0_88] : memref<1x128x512xbf16, #tpu.memory_space<vmem>>, vector<1x128x512xbf16>
    %241 = vector.shape_cast %240 : vector<1x128x512xbf16> to vector<128x512xbf16>
    %cst_89 = arith.constant dense<0.000000e+00> : vector<16x512xf32>
    %242 = tpu.matmul %239, %241, %cst_89 {dimension_numbers = #tpu.dot_dimension_numbers<[1], [0], [0], [1], [0, 0, 1, 1], [], []>} : vector<16x128xbf16>, vector<128x512xbf16>, vector<16x512xf32> -> vector<16x512xf32>
    %243 = arith.addf %238, %242 : vector<16x512xf32>
    %244 = vector.extract_strided_slice %243 {offsets = [0, 0], sizes = [16, 128], strides = [1, 1]} : vector<16x512xf32> to vector<16x128xf32>
    %245 = arith.negf %244 : vector<16x128xf32>
    %246 = math.exp %245 : vector<16x128xf32>
    %cst_90 = arith.constant 1.000000e+00 : f32
    %247 = vector.broadcast %cst_90 : f32 to vector<16x128xf32>
    %248 = arith.addf %247, %246 : vector<16x128xf32>
    %249 = arith.divf %247, %248 : vector<16x128xf32>
    %250 = vector.extract_strided_slice %243 {offsets = [0, 128], sizes = [16, 128], strides = [1, 1]} : vector<16x512xf32> to vector<16x128xf32>
    %251 = arith.negf %250 : vector<16x128xf32>
    %252 = math.exp %251 : vector<16x128xf32>
    %cst_91 = arith.constant 1.000000e+00 : f32
    %253 = vector.broadcast %cst_91 : f32 to vector<16x128xf32>
    %254 = arith.addf %253, %252 : vector<16x128xf32>
    %255 = arith.divf %253, %254 : vector<16x128xf32>
    %256 = vector.extract_strided_slice %243 {offsets = [0, 256], sizes = [16, 128], strides = [1, 1]} : vector<16x512xf32> to vector<16x128xf32>
    %257 = math.tanh %256 : vector<16x128xf32>
    %258 = vector.extract_strided_slice %243 {offsets = [0, 384], sizes = [16, 128], strides = [1, 1]} : vector<16x512xf32> to vector<16x128xf32>
    %259 = arith.negf %258 : vector<16x128xf32>
    %260 = math.exp %259 : vector<16x128xf32>
    %cst_92 = arith.constant 1.000000e+00 : f32
    %261 = vector.broadcast %cst_92 : f32 to vector<16x128xf32>
    %262 = arith.addf %261, %260 : vector<16x128xf32>
    %263 = arith.divf %261, %262 : vector<16x128xf32>
    %264 = arith.mulf %255, %223 : vector<16x128xf32>
    %265 = arith.mulf %249, %257 : vector<16x128xf32>
    %266 = arith.addf %264, %265 : vector<16x128xf32>
    %267 = math.tanh %266 : vector<16x128xf32>
    %268 = arith.mulf %263, %267 : vector<16x128xf32>
    %269 = arith.addf %226, %268 : vector<16x128xf32>
    %270 = arith.truncf %268 : vector<16x128xf32> to vector<16x128xbf16>
    %271 = arith.index_cast %235 : i32 to index
    %c0_93 = arith.constant 0 : index
    %c0_94 = arith.constant 0 : index
    %272 = vector.load %arg6[%271, %c0_93, %c0_94] : memref<8x16x128xbf16, #tpu.memory_space<vmem>>, vector<1x16x128xbf16>
    %273 = vector.shape_cast %272 : vector<1x16x128xbf16> to vector<16x128xbf16>
    %274 = vector.shape_cast %270 : vector<16x128xbf16> to vector<1x16x128xbf16>
    tpu.vector_store %arg6[%271, %c0_93, %c0_94], %274 {strides = array<i32>} : memref<8x16x128xbf16, #tpu.memory_space<vmem>>, vector<1x16x128xbf16>,
    %c6_i32 = arith.constant 6 : i32
    %c2_i32_95 = arith.constant 2 : i32
    %275 = arith.muli %c2_i32_95, %c6_i32 : i32
    %c7_i32_96 = arith.constant 7 : i32
    %276 = arith.subi %c7_i32_96, %275 : i32
    %277 = arith.muli %arg0, %276 : i32
    %278 = arith.addi %c6_i32, %277 : i32
    %279 = arith.index_cast %278 : i32 to index
    %c0_97 = arith.constant 0 : index
    %c0_98 = arith.constant 0 : index
    %280 = vector.load %arg8[%279, %c0_97, %c0_98] : memref<8x16x512xf32, #tpu.memory_space<vmem>>, vector<1x16x512xf32>
    %281 = vector.shape_cast %280 : vector<1x16x512xf32> to vector<16x512xf32>
    %282 = arith.truncf %268 : vector<16x128xf32> to vector<16x128xbf16>
    %c0_99 = arith.constant 0 : index
    %c0_100 = arith.constant 0 : index
    %c0_101 = arith.constant 0 : index
    %283 = vector.load %arg5[%c0_99, %c0_100, %c0_101] : memref<1x128x512xbf16, #tpu.memory_space<vmem>>, vector<1x128x512xbf16>
    %284 = vector.shape_cast %283 : vector<1x128x512xbf16> to vector<128x512xbf16>
    %cst_102 = arith.constant dense<0.000000e+00> : vector<16x512xf32>
    %285 = tpu.matmul %282, %284, %cst_102 {dimension_numbers = #tpu.dot_dimension_numbers<[1], [0], [0], [1], [0, 0, 1, 1], [], []>} : vector<16x128xbf16>, vector<128x512xbf16>, vector<16x512xf32> -> vector<16x512xf32>
    %286 = arith.addf %281, %285 : vector<16x512xf32>
    %287 = vector.extract_strided_slice %286 {offsets = [0, 0], sizes = [16, 128], strides = [1, 1]} : vector<16x512xf32> to vector<16x128xf32>
    %288 = arith.negf %287 : vector<16x128xf32>
    %289 = math.exp %288 : vector<16x128xf32>
    %cst_103 = arith.constant 1.000000e+00 : f32
    %290 = vector.broadcast %cst_103 : f32 to vector<16x128xf32>
    %291 = arith.addf %290, %289 : vector<16x128xf32>
    %292 = arith.divf %290, %291 : vector<16x128xf32>
    %293 = vector.extract_strided_slice %286 {offsets = [0, 128], sizes = [16, 128], strides = [1, 1]} : vector<16x512xf32> to vector<16x128xf32>
    %294 = arith.negf %293 : vector<16x128xf32>
    %295 = math.exp %294 : vector<16x128xf32>
    %cst_104 = arith.constant 1.000000e+00 : f32
    %296 = vector.broadcast %cst_104 : f32 to vector<16x128xf32>
    %297 = arith.addf %296, %295 : vector<16x128xf32>
    %298 = arith.divf %296, %297 : vector<16x128xf32>
    %299 = vector.extract_strided_slice %286 {offsets = [0, 256], sizes = [16, 128], strides = [1, 1]} : vector<16x512xf32> to vector<16x128xf32>
    %300 = math.tanh %299 : vector<16x128xf32>
    %301 = vector.extract_strided_slice %286 {offsets = [0, 384], sizes = [16, 128], strides = [1, 1]} : vector<16x512xf32> to vector<16x128xf32>
    %302 = arith.negf %301 : vector<16x128xf32>
    %303 = math.exp %302 : vector<16x128xf32>
    %cst_105 = arith.constant 1.000000e+00 : f32
    %304 = vector.broadcast %cst_105 : f32 to vector<16x128xf32>
    %305 = arith.addf %304, %303 : vector<16x128xf32>
    %306 = arith.divf %304, %305 : vector<16x128xf32>
    %307 = arith.mulf %298, %266 : vector<16x128xf32>
    %308 = arith.mulf %292, %300 : vector<16x128xf32>
    %309 = arith.addf %307, %308 : vector<16x128xf32>
    %310 = math.tanh %309 : vector<16x128xf32>
    %311 = arith.mulf %306, %310 : vector<16x128xf32>
    %312 = arith.addf %269, %311 : vector<16x128xf32>
    %313 = arith.truncf %311 : vector<16x128xf32> to vector<16x128xbf16>
    %314 = arith.index_cast %278 : i32 to index
    %c0_106 = arith.constant 0 : index
    %c0_107 = arith.constant 0 : index
    %315 = vector.load %arg6[%314, %c0_106, %c0_107] : memref<8x16x128xbf16, #tpu.memory_space<vmem>>, vector<1x16x128xbf16>
    %316 = vector.shape_cast %315 : vector<1x16x128xbf16> to vector<16x128xbf16>
    %317 = vector.shape_cast %313 : vector<16x128xbf16> to vector<1x16x128xbf16>
    tpu.vector_store %arg6[%314, %c0_106, %c0_107], %317 {strides = array<i32>} : memref<8x16x128xbf16, #tpu.memory_space<vmem>>, vector<1x16x128xbf16>,
    %c7_i32_108 = arith.constant 7 : i32
    %c2_i32_109 = arith.constant 2 : i32
    %318 = arith.muli %c2_i32_109, %c7_i32_108 : i32
    %c7_i32_110 = arith.constant 7 : i32
    %319 = arith.subi %c7_i32_110, %318 : i32
    %320 = arith.muli %arg0, %319 : i32
    %321 = arith.addi %c7_i32_108, %320 : i32
    %322 = arith.index_cast %321 : i32 to index
    %c0_111 = arith.constant 0 : index
    %c0_112 = arith.constant 0 : index
    %323 = vector.load %arg8[%322, %c0_111, %c0_112] : memref<8x16x512xf32, #tpu.memory_space<vmem>>, vector<1x16x512xf32>
    %324 = vector.shape_cast %323 : vector<1x16x512xf32> to vector<16x512xf32>
    %325 = arith.truncf %311 : vector<16x128xf32> to vector<16x128xbf16>
    %c0_113 = arith.constant 0 : index
    %c0_114 = arith.constant 0 : index
    %c0_115 = arith.constant 0 : index
    %326 = vector.load %arg5[%c0_113, %c0_114, %c0_115] : memref<1x128x512xbf16, #tpu.memory_space<vmem>>, vector<1x128x512xbf16>
    %327 = vector.shape_cast %326 : vector<1x128x512xbf16> to vector<128x512xbf16>
    %cst_116 = arith.constant dense<0.000000e+00> : vector<16x512xf32>
    %328 = tpu.matmul %325, %327, %cst_116 {dimension_numbers = #tpu.dot_dimension_numbers<[1], [0], [0], [1], [0, 0, 1, 1], [], []>} : vector<16x128xbf16>, vector<128x512xbf16>, vector<16x512xf32> -> vector<16x512xf32>
    %329 = arith.addf %324, %328 : vector<16x512xf32>
    %330 = vector.extract_strided_slice %329 {offsets = [0, 0], sizes = [16, 128], strides = [1, 1]} : vector<16x512xf32> to vector<16x128xf32>
    %331 = arith.negf %330 : vector<16x128xf32>
    %332 = math.exp %331 : vector<16x128xf32>
    %cst_117 = arith.constant 1.000000e+00 : f32
    %333 = vector.broadcast %cst_117 : f32 to vector<16x128xf32>
    %334 = arith.addf %333, %332 : vector<16x128xf32>
    %335 = arith.divf %333, %334 : vector<16x128xf32>
    %336 = vector.extract_strided_slice %329 {offsets = [0, 128], sizes = [16, 128], strides = [1, 1]} : vector<16x512xf32> to vector<16x128xf32>
    %337 = arith.negf %336 : vector<16x128xf32>
    %338 = math.exp %337 : vector<16x128xf32>
    %cst_118 = arith.constant 1.000000e+00 : f32
    %339 = vector.broadcast %cst_118 : f32 to vector<16x128xf32>
    %340 = arith.addf %339, %338 : vector<16x128xf32>
    %341 = arith.divf %339, %340 : vector<16x128xf32>
    %342 = vector.extract_strided_slice %329 {offsets = [0, 256], sizes = [16, 128], strides = [1, 1]} : vector<16x512xf32> to vector<16x128xf32>
    %343 = math.tanh %342 : vector<16x128xf32>
    %344 = vector.extract_strided_slice %329 {offsets = [0, 384], sizes = [16, 128], strides = [1, 1]} : vector<16x512xf32> to vector<16x128xf32>
    %345 = arith.negf %344 : vector<16x128xf32>
    %346 = math.exp %345 : vector<16x128xf32>
    %cst_119 = arith.constant 1.000000e+00 : f32
    %347 = vector.broadcast %cst_119 : f32 to vector<16x128xf32>
    %348 = arith.addf %347, %346 : vector<16x128xf32>
    %349 = arith.divf %347, %348 : vector<16x128xf32>
    %350 = arith.mulf %341, %309 : vector<16x128xf32>
    %351 = arith.mulf %335, %343 : vector<16x128xf32>
    %352 = arith.addf %350, %351 : vector<16x128xf32>
    %353 = math.tanh %352 : vector<16x128xf32>
    %354 = arith.mulf %349, %353 : vector<16x128xf32>
    %355 = arith.addf %312, %354 : vector<16x128xf32>
    %356 = arith.truncf %354 : vector<16x128xf32> to vector<16x128xbf16>
    %357 = arith.index_cast %321 : i32 to index
    %c0_120 = arith.constant 0 : index
    %c0_121 = arith.constant 0 : index
    %358 = vector.load %arg6[%357, %c0_120, %c0_121] : memref<8x16x128xbf16, #tpu.memory_space<vmem>>, vector<1x16x128xbf16>
    %359 = vector.shape_cast %358 : vector<1x16x128xbf16> to vector<16x128xbf16>
    %360 = vector.shape_cast %356 : vector<16x128xbf16> to vector<1x16x128xbf16>
    tpu.vector_store %arg6[%357, %c0_120, %c0_121], %360 {strides = array<i32>} : memref<8x16x128xbf16, #tpu.memory_space<vmem>>, vector<1x16x128xbf16>,
    %c8_i32 = arith.constant 8 : i32
    %c0_122 = arith.constant 0 : index
    %c0_123 = arith.constant 0 : index
    %361 = vector.load %arg9[%c0_122, %c0_123] : memref<16x128xf32, #tpu.memory_space<vmem>>, vector<16x128xf32>
    tpu.vector_store %arg9[%c0_122, %c0_123], %354 {strides = array<i32>} : memref<16x128xf32, #tpu.memory_space<vmem>>, vector<16x128xf32>,
    %c0_124 = arith.constant 0 : index
    %c0_125 = arith.constant 0 : index
    %362 = vector.load %arg10[%c0_124, %c0_125] : memref<16x128xf32, #tpu.memory_space<vmem>>, vector<16x128xf32>
    tpu.vector_store %arg10[%c0_124, %c0_125], %352 {strides = array<i32>} : memref<16x128xf32, #tpu.memory_space<vmem>>, vector<16x128xf32>,
    %c0_126 = arith.constant 0 : index
    %c0_127 = arith.constant 0 : index
    %c0_128 = arith.constant 0 : index
    %363 = vector.load %arg7[%c0_126, %c0_127, %c0_128] : memref<1x16x128xf32, #tpu.memory_space<vmem>>, vector<1x16x128xf32>
    %364 = vector.shape_cast %363 : vector<1x16x128xf32> to vector<16x128xf32>
    %365 = arith.addf %364, %355 : vector<16x128xf32>
    %c0_129 = arith.constant 0 : index
    %c0_130 = arith.constant 0 : index
    %c0_131 = arith.constant 0 : index
    %366 = vector.load %arg7[%c0_129, %c0_130, %c0_131] : memref<1x16x128xf32, #tpu.memory_space<vmem>>, vector<1x16x128xf32>
    %367 = vector.shape_cast %366 : vector<1x16x128xf32> to vector<16x128xf32>
    %368 = vector.shape_cast %365 : vector<16x128xf32> to vector<1x16x128xf32>
    tpu.vector_store %arg7[%c0_129, %c0_130, %c0_131], %368 {strides = array<i32>} : memref<1x16x128xf32, #tpu.memory_space<vmem>>, vector<1x16x128xf32>,
    return
  }
  func.func @transform_0(%arg0: i32, %arg1: i32) -> (i32, i32, i32) {
    %c2_i32 = arith.constant 2 : i32
    %0 = arith.muli %c2_i32, %arg1 : i32
    %c0_i32 = arith.constant 0 : i32
    %1 = arith.subi %c0_i32, %0 : i32
    %2 = arith.muli %arg0, %1 : i32
    %3 = arith.addi %arg1, %2 : i32
    %c0_i32_0 = arith.constant 0 : i32
    %c0_i32_1 = arith.constant 0 : i32
    %c0_i32_2 = arith.constant 0 : i32
    return %3, %c0_i32_0, %c0_i32_1 : i32, i32, i32
  }
  func.func @transform_1(%arg0: i32, %arg1: i32) -> (i32, i32, i32) {
    %c0_i32 = arith.constant 0 : i32
    %c0_i32_0 = arith.constant 0 : i32
    %c0_i32_1 = arith.constant 0 : i32
    return %arg0, %c0_i32, %c0_i32_0 : i32, i32, i32
  }
  func.func @transform_2(%arg0: i32, %arg1: i32) -> (i32, i32, i32) {
    %c0_i32 = arith.constant 0 : i32
    %c0_i32_0 = arith.constant 0 : i32
    %c0_i32_1 = arith.constant 0 : i32
    return %arg0, %c0_i32, %c0_i32_0 : i32, i32, i32
  }
  func.func @transform_3(%arg0: i32, %arg1: i32) -> (i32, i32, i32) {
    %c0_i32 = arith.constant 0 : i32
    %c0_i32_0 = arith.constant 0 : i32
    %c0_i32_1 = arith.constant 0 : i32
    return %arg0, %c0_i32, %c0_i32_0 : i32, i32, i32
  }
  func.func @transform_4(%arg0: i32, %arg1: i32) -> (i32, i32, i32) {
    %c2_i32 = arith.constant 2 : i32
    %0 = arith.muli %c2_i32, %arg1 : i32
    %c0_i32 = arith.constant 0 : i32
    %1 = arith.subi %c0_i32, %0 : i32
    %2 = arith.muli %arg0, %1 : i32
    %3 = arith.addi %arg1, %2 : i32
    %c0_i32_0 = arith.constant 0 : i32
    %c0_i32_1 = arith.constant 0 : i32
    return %3, %c0_i32_0, %arg0 : i32, i32, i32
  }
  func.func @transform_5(%arg0: i32, %arg1: i32) -> (i32, i32, i32) {
    %c0_i32 = arith.constant 0 : i32
    %c0_i32_0 = arith.constant 0 : i32
    %c0_i32_1 = arith.constant 0 : i32
    return %arg0, %c0_i32, %c0_i32_0 : i32, i32, i32
  }
}

module attributes {stable_mosaic.version = 11 : i64} {
  func.func @_fused_bilstm_kernel(%arg0: i32, %arg1: i32, %arg2: memref<8x16x256xbf16, #tpu.memory_space<vmem>>, %arg3: memref<1x256x512xbf16, #tpu.memory_space<vmem>>, %arg4: memref<1x1x512xf32, #tpu.memory_space<vmem>>, %arg5: memref<1x128x512xbf16, #tpu.memory_space<vmem>>, %arg6: memref<1x16x128xf32, #tpu.memory_space<vmem>>, %arg7: memref<8x16x512xf32, #tpu.memory_space<vmem>>, %arg8: memref<16x128xf32, #tpu.memory_space<vmem>>, %arg9: memref<16x128xf32, #tpu.memory_space<vmem>>) attributes {dimension_semantics = [#tpu.dimension_semantics<parallel>, #tpu.dimension_semantics<arbitrary>], iteration_bounds = array<i64: 2, 1>, scalar_prefetch = 0 : i64, scratch_operands = 3 : i64, tpu.core_type = #tpu.core_type<tc>, window_params = [{transform_indices = @transform_0, window_bounds = array<i64: 8, 16, 256>}, {transform_indices = @transform_1, window_bounds = array<i64: 1, 256, 512>}, {transform_indices = @transform_2, window_bounds = array<i64: 1, 1, 512>}, {transform_indices = @transform_3, window_bounds = array<i64: 1, 128, 512>}, {transform_indices = @transform_4, window_bounds = array<i64: 1, 16, 128>}]} {
    %c0_i32 = arith.constant 0 : i32
    %0 = arith.cmpi eq, %arg1, %c0_i32 : i32
    %1 = arith.extui %0 : i1 to i32
    %c0_i32_0 = arith.constant 0 : i32
    %2 = arith.cmpi ne, %1, %c0_i32_0 : i32
    scf.if %2 {
      %cst_116 = arith.constant 0.000000e+00 : f32
      %329 = vector.broadcast %cst_116 : f32 to vector<16x128xf32>
      %c0_117 = arith.constant 0 : index
      %c0_118 = arith.constant 0 : index
      %330 = vector.load %arg8[%c0_117, %c0_118] : memref<16x128xf32, #tpu.memory_space<vmem>>, vector<16x128xf32>
      tpu.vector_store %arg8[%c0_117, %c0_118], %329 {strides = array<i32>} : memref<16x128xf32, #tpu.memory_space<vmem>>, vector<16x128xf32>,
      %cst_119 = arith.constant 0.000000e+00 : f32
      %331 = vector.broadcast %cst_119 : f32 to vector<16x128xf32>
      %c0_120 = arith.constant 0 : index
      %c0_121 = arith.constant 0 : index
      %332 = vector.load %arg9[%c0_120, %c0_121] : memref<16x128xf32, #tpu.memory_space<vmem>>, vector<16x128xf32>
      tpu.vector_store %arg9[%c0_120, %c0_121], %331 {strides = array<i32>} : memref<16x128xf32, #tpu.memory_space<vmem>>, vector<16x128xf32>,
      %cst_122 = arith.constant 0.000000e+00 : f32
      %333 = vector.broadcast %cst_122 : f32 to vector<16x128xf32>
      %c0_123 = arith.constant 0 : index
      %c0_124 = arith.constant 0 : index
      %c0_125 = arith.constant 0 : index
      %334 = vector.load %arg6[%c0_123, %c0_124, %c0_125] : memref<1x16x128xf32, #tpu.memory_space<vmem>>, vector<1x16x128xf32>
      %335 = vector.shape_cast %334 : vector<1x16x128xf32> to vector<16x128xf32>
      %336 = vector.shape_cast %333 : vector<16x128xf32> to vector<1x16x128xf32>
      tpu.vector_store %arg6[%c0_123, %c0_124, %c0_125], %336 {strides = array<i32>} : memref<1x16x128xf32, #tpu.memory_space<vmem>>, vector<1x16x128xf32>,
    } else {
    }
    %c0 = arith.constant 0 : index
    %c0_1 = arith.constant 0 : index
    %c0_2 = arith.constant 0 : index
    %3 = vector.load %arg2[%c0, %c0_1, %c0_2] : memref<8x16x256xbf16, #tpu.memory_space<vmem>>, vector<8x16x256xbf16>
    %4 = vector.shape_cast %3 : vector<8x16x256xbf16> to vector<128x256xbf16>
    %c0_3 = arith.constant 0 : index
    %c0_4 = arith.constant 0 : index
    %c0_5 = arith.constant 0 : index
    %5 = vector.load %arg3[%c0_3, %c0_4, %c0_5] : memref<1x256x512xbf16, #tpu.memory_space<vmem>>, vector<1x256x512xbf16>
    %6 = vector.shape_cast %5 : vector<1x256x512xbf16> to vector<256x512xbf16>
    %cst = arith.constant dense<0.000000e+00> : vector<128x512xf32>
    %7 = tpu.matmul %4, %6, %cst {dimension_numbers = #tpu.dot_dimension_numbers<[1], [0], [0], [1], [0, 0, 1, 1], [], []>} : vector<128x256xbf16>, vector<256x512xbf16>, vector<128x512xf32> -> vector<128x512xf32>
    %c0_6 = arith.constant 0 : index
    %c0_7 = arith.constant 0 : index
    %c0_8 = arith.constant 0 : index
    %8 = vector.load %arg4[%c0_6, %c0_7, %c0_8] : memref<1x1x512xf32, #tpu.memory_space<vmem>>, vector<1x1x512xf32>
    %9 = vector.shape_cast %8 : vector<1x1x512xf32> to vector<1x512xf32>
    %10 = vector.broadcast %9 : vector<1x512xf32> to vector<128x512xf32>
    %11 = arith.addf %7, %10 : vector<128x512xf32>
    %12 = vector.shape_cast %11 : vector<128x512xf32> to vector<8x16x512xf32>
    %c0_9 = arith.constant 0 : index
    %c0_10 = arith.constant 0 : index
    %c0_11 = arith.constant 0 : index
    %13 = vector.load %arg7[%c0_9, %c0_10, %c0_11] : memref<8x16x512xf32, #tpu.memory_space<vmem>>, vector<8x16x512xf32>
    tpu.vector_store %arg7[%c0_9, %c0_10, %c0_11], %12 {strides = array<i32>} : memref<8x16x512xf32, #tpu.memory_space<vmem>>, vector<8x16x512xf32>,
    %c0_12 = arith.constant 0 : index
    %c0_13 = arith.constant 0 : index
    %14 = vector.load %arg8[%c0_12, %c0_13] : memref<16x128xf32, #tpu.memory_space<vmem>>, vector<16x128xf32>
    %c0_14 = arith.constant 0 : index
    %c0_15 = arith.constant 0 : index
    %15 = vector.load %arg9[%c0_14, %c0_15] : memref<16x128xf32, #tpu.memory_space<vmem>>, vector<16x128xf32>
    %cst_16 = arith.constant 0.000000e+00 : f32
    %16 = vector.broadcast %cst_16 : f32 to vector<16x128xf32>
    %c0_i32_17 = arith.constant 0 : i32
    %c2_i32 = arith.constant 2 : i32
    %17 = arith.muli %c2_i32, %c0_i32_17 : i32
    %c7_i32 = arith.constant 7 : i32
    %18 = arith.subi %c7_i32, %17 : i32
    %19 = arith.muli %arg0, %18 : i32
    %20 = arith.addi %c0_i32_17, %19 : i32
    %21 = arith.index_cast %20 : i32 to index
    %c0_18 = arith.constant 0 : index
    %c0_19 = arith.constant 0 : index
    %22 = vector.load %arg7[%21, %c0_18, %c0_19] : memref<8x16x512xf32, #tpu.memory_space<vmem>>, vector<1x16x512xf32>
    %23 = vector.shape_cast %22 : vector<1x16x512xf32> to vector<16x512xf32>
    %24 = arith.truncf %14 : vector<16x128xf32> to vector<16x128xbf16>
    %c0_20 = arith.constant 0 : index
    %c0_21 = arith.constant 0 : index
    %c0_22 = arith.constant 0 : index
    %25 = vector.load %arg5[%c0_20, %c0_21, %c0_22] : memref<1x128x512xbf16, #tpu.memory_space<vmem>>, vector<1x128x512xbf16>
    %26 = vector.shape_cast %25 : vector<1x128x512xbf16> to vector<128x512xbf16>
    %cst_23 = arith.constant dense<0.000000e+00> : vector<16x512xf32>
    %27 = tpu.matmul %24, %26, %cst_23 {dimension_numbers = #tpu.dot_dimension_numbers<[1], [0], [0], [1], [0, 0, 1, 1], [], []>} : vector<16x128xbf16>, vector<128x512xbf16>, vector<16x512xf32> -> vector<16x512xf32>
    %28 = arith.addf %23, %27 : vector<16x512xf32>
    %29 = vector.extract_strided_slice %28 {offsets = [0, 0], sizes = [16, 128], strides = [1, 1]} : vector<16x512xf32> to vector<16x128xf32>
    %30 = arith.negf %29 : vector<16x128xf32>
    %31 = math.exp %30 : vector<16x128xf32>
    %cst_24 = arith.constant 1.000000e+00 : f32
    %32 = vector.broadcast %cst_24 : f32 to vector<16x128xf32>
    %33 = arith.addf %32, %31 : vector<16x128xf32>
    %34 = arith.divf %32, %33 : vector<16x128xf32>
    %35 = vector.extract_strided_slice %28 {offsets = [0, 128], sizes = [16, 128], strides = [1, 1]} : vector<16x512xf32> to vector<16x128xf32>
    %36 = arith.negf %35 : vector<16x128xf32>
    %37 = math.exp %36 : vector<16x128xf32>
    %cst_25 = arith.constant 1.000000e+00 : f32
    %38 = vector.broadcast %cst_25 : f32 to vector<16x128xf32>
    %39 = arith.addf %38, %37 : vector<16x128xf32>
    %40 = arith.divf %38, %39 : vector<16x128xf32>
    %41 = vector.extract_strided_slice %28 {offsets = [0, 256], sizes = [16, 128], strides = [1, 1]} : vector<16x512xf32> to vector<16x128xf32>
    %42 = math.tanh %41 : vector<16x128xf32>
    %43 = vector.extract_strided_slice %28 {offsets = [0, 384], sizes = [16, 128], strides = [1, 1]} : vector<16x512xf32> to vector<16x128xf32>
    %44 = arith.negf %43 : vector<16x128xf32>
    %45 = math.exp %44 : vector<16x128xf32>
    %cst_26 = arith.constant 1.000000e+00 : f32
    %46 = vector.broadcast %cst_26 : f32 to vector<16x128xf32>
    %47 = arith.addf %46, %45 : vector<16x128xf32>
    %48 = arith.divf %46, %47 : vector<16x128xf32>
    %49 = arith.mulf %40, %15 : vector<16x128xf32>
    %50 = arith.mulf %34, %42 : vector<16x128xf32>
    %51 = arith.addf %49, %50 : vector<16x128xf32>
    %52 = math.tanh %51 : vector<16x128xf32>
    %53 = arith.mulf %48, %52 : vector<16x128xf32>
    %54 = arith.addf %16, %53 : vector<16x128xf32>
    %c1_i32 = arith.constant 1 : i32
    %c2_i32_27 = arith.constant 2 : i32
    %55 = arith.muli %c2_i32_27, %c1_i32 : i32
    %c7_i32_28 = arith.constant 7 : i32
    %56 = arith.subi %c7_i32_28, %55 : i32
    %57 = arith.muli %arg0, %56 : i32
    %58 = arith.addi %c1_i32, %57 : i32
    %59 = arith.index_cast %58 : i32 to index
    %c0_29 = arith.constant 0 : index
    %c0_30 = arith.constant 0 : index
    %60 = vector.load %arg7[%59, %c0_29, %c0_30] : memref<8x16x512xf32, #tpu.memory_space<vmem>>, vector<1x16x512xf32>
    %61 = vector.shape_cast %60 : vector<1x16x512xf32> to vector<16x512xf32>
    %62 = arith.truncf %53 : vector<16x128xf32> to vector<16x128xbf16>
    %c0_31 = arith.constant 0 : index
    %c0_32 = arith.constant 0 : index
    %c0_33 = arith.constant 0 : index
    %63 = vector.load %arg5[%c0_31, %c0_32, %c0_33] : memref<1x128x512xbf16, #tpu.memory_space<vmem>>, vector<1x128x512xbf16>
    %64 = vector.shape_cast %63 : vector<1x128x512xbf16> to vector<128x512xbf16>
    %cst_34 = arith.constant dense<0.000000e+00> : vector<16x512xf32>
    %65 = tpu.matmul %62, %64, %cst_34 {dimension_numbers = #tpu.dot_dimension_numbers<[1], [0], [0], [1], [0, 0, 1, 1], [], []>} : vector<16x128xbf16>, vector<128x512xbf16>, vector<16x512xf32> -> vector<16x512xf32>
    %66 = arith.addf %61, %65 : vector<16x512xf32>
    %67 = vector.extract_strided_slice %66 {offsets = [0, 0], sizes = [16, 128], strides = [1, 1]} : vector<16x512xf32> to vector<16x128xf32>
    %68 = arith.negf %67 : vector<16x128xf32>
    %69 = math.exp %68 : vector<16x128xf32>
    %cst_35 = arith.constant 1.000000e+00 : f32
    %70 = vector.broadcast %cst_35 : f32 to vector<16x128xf32>
    %71 = arith.addf %70, %69 : vector<16x128xf32>
    %72 = arith.divf %70, %71 : vector<16x128xf32>
    %73 = vector.extract_strided_slice %66 {offsets = [0, 128], sizes = [16, 128], strides = [1, 1]} : vector<16x512xf32> to vector<16x128xf32>
    %74 = arith.negf %73 : vector<16x128xf32>
    %75 = math.exp %74 : vector<16x128xf32>
    %cst_36 = arith.constant 1.000000e+00 : f32
    %76 = vector.broadcast %cst_36 : f32 to vector<16x128xf32>
    %77 = arith.addf %76, %75 : vector<16x128xf32>
    %78 = arith.divf %76, %77 : vector<16x128xf32>
    %79 = vector.extract_strided_slice %66 {offsets = [0, 256], sizes = [16, 128], strides = [1, 1]} : vector<16x512xf32> to vector<16x128xf32>
    %80 = math.tanh %79 : vector<16x128xf32>
    %81 = vector.extract_strided_slice %66 {offsets = [0, 384], sizes = [16, 128], strides = [1, 1]} : vector<16x512xf32> to vector<16x128xf32>
    %82 = arith.negf %81 : vector<16x128xf32>
    %83 = math.exp %82 : vector<16x128xf32>
    %cst_37 = arith.constant 1.000000e+00 : f32
    %84 = vector.broadcast %cst_37 : f32 to vector<16x128xf32>
    %85 = arith.addf %84, %83 : vector<16x128xf32>
    %86 = arith.divf %84, %85 : vector<16x128xf32>
    %87 = arith.mulf %78, %51 : vector<16x128xf32>
    %88 = arith.mulf %72, %80 : vector<16x128xf32>
    %89 = arith.addf %87, %88 : vector<16x128xf32>
    %90 = math.tanh %89 : vector<16x128xf32>
    %91 = arith.mulf %86, %90 : vector<16x128xf32>
    %92 = arith.addf %54, %91 : vector<16x128xf32>
    %c2_i32_38 = arith.constant 2 : i32
    %c2_i32_39 = arith.constant 2 : i32
    %93 = arith.muli %c2_i32_39, %c2_i32_38 : i32
    %c7_i32_40 = arith.constant 7 : i32
    %94 = arith.subi %c7_i32_40, %93 : i32
    %95 = arith.muli %arg0, %94 : i32
    %96 = arith.addi %c2_i32_38, %95 : i32
    %97 = arith.index_cast %96 : i32 to index
    %c0_41 = arith.constant 0 : index
    %c0_42 = arith.constant 0 : index
    %98 = vector.load %arg7[%97, %c0_41, %c0_42] : memref<8x16x512xf32, #tpu.memory_space<vmem>>, vector<1x16x512xf32>
    %99 = vector.shape_cast %98 : vector<1x16x512xf32> to vector<16x512xf32>
    %100 = arith.truncf %91 : vector<16x128xf32> to vector<16x128xbf16>
    %c0_43 = arith.constant 0 : index
    %c0_44 = arith.constant 0 : index
    %c0_45 = arith.constant 0 : index
    %101 = vector.load %arg5[%c0_43, %c0_44, %c0_45] : memref<1x128x512xbf16, #tpu.memory_space<vmem>>, vector<1x128x512xbf16>
    %102 = vector.shape_cast %101 : vector<1x128x512xbf16> to vector<128x512xbf16>
    %cst_46 = arith.constant dense<0.000000e+00> : vector<16x512xf32>
    %103 = tpu.matmul %100, %102, %cst_46 {dimension_numbers = #tpu.dot_dimension_numbers<[1], [0], [0], [1], [0, 0, 1, 1], [], []>} : vector<16x128xbf16>, vector<128x512xbf16>, vector<16x512xf32> -> vector<16x512xf32>
    %104 = arith.addf %99, %103 : vector<16x512xf32>
    %105 = vector.extract_strided_slice %104 {offsets = [0, 0], sizes = [16, 128], strides = [1, 1]} : vector<16x512xf32> to vector<16x128xf32>
    %106 = arith.negf %105 : vector<16x128xf32>
    %107 = math.exp %106 : vector<16x128xf32>
    %cst_47 = arith.constant 1.000000e+00 : f32
    %108 = vector.broadcast %cst_47 : f32 to vector<16x128xf32>
    %109 = arith.addf %108, %107 : vector<16x128xf32>
    %110 = arith.divf %108, %109 : vector<16x128xf32>
    %111 = vector.extract_strided_slice %104 {offsets = [0, 128], sizes = [16, 128], strides = [1, 1]} : vector<16x512xf32> to vector<16x128xf32>
    %112 = arith.negf %111 : vector<16x128xf32>
    %113 = math.exp %112 : vector<16x128xf32>
    %cst_48 = arith.constant 1.000000e+00 : f32
    %114 = vector.broadcast %cst_48 : f32 to vector<16x128xf32>
    %115 = arith.addf %114, %113 : vector<16x128xf32>
    %116 = arith.divf %114, %115 : vector<16x128xf32>
    %117 = vector.extract_strided_slice %104 {offsets = [0, 256], sizes = [16, 128], strides = [1, 1]} : vector<16x512xf32> to vector<16x128xf32>
    %118 = math.tanh %117 : vector<16x128xf32>
    %119 = vector.extract_strided_slice %104 {offsets = [0, 384], sizes = [16, 128], strides = [1, 1]} : vector<16x512xf32> to vector<16x128xf32>
    %120 = arith.negf %119 : vector<16x128xf32>
    %121 = math.exp %120 : vector<16x128xf32>
    %cst_49 = arith.constant 1.000000e+00 : f32
    %122 = vector.broadcast %cst_49 : f32 to vector<16x128xf32>
    %123 = arith.addf %122, %121 : vector<16x128xf32>
    %124 = arith.divf %122, %123 : vector<16x128xf32>
    %125 = arith.mulf %116, %89 : vector<16x128xf32>
    %126 = arith.mulf %110, %118 : vector<16x128xf32>
    %127 = arith.addf %125, %126 : vector<16x128xf32>
    %128 = math.tanh %127 : vector<16x128xf32>
    %129 = arith.mulf %124, %128 : vector<16x128xf32>
    %130 = arith.addf %92, %129 : vector<16x128xf32>
    %c3_i32 = arith.constant 3 : i32
    %c2_i32_50 = arith.constant 2 : i32
    %131 = arith.muli %c2_i32_50, %c3_i32 : i32
    %c7_i32_51 = arith.constant 7 : i32
    %132 = arith.subi %c7_i32_51, %131 : i32
    %133 = arith.muli %arg0, %132 : i32
    %134 = arith.addi %c3_i32, %133 : i32
    %135 = arith.index_cast %134 : i32 to index
    %c0_52 = arith.constant 0 : index
    %c0_53 = arith.constant 0 : index
    %136 = vector.load %arg7[%135, %c0_52, %c0_53] : memref<8x16x512xf32, #tpu.memory_space<vmem>>, vector<1x16x512xf32>
    %137 = vector.shape_cast %136 : vector<1x16x512xf32> to vector<16x512xf32>
    %138 = arith.truncf %129 : vector<16x128xf32> to vector<16x128xbf16>
    %c0_54 = arith.constant 0 : index
    %c0_55 = arith.constant 0 : index
    %c0_56 = arith.constant 0 : index
    %139 = vector.load %arg5[%c0_54, %c0_55, %c0_56] : memref<1x128x512xbf16, #tpu.memory_space<vmem>>, vector<1x128x512xbf16>
    %140 = vector.shape_cast %139 : vector<1x128x512xbf16> to vector<128x512xbf16>
    %cst_57 = arith.constant dense<0.000000e+00> : vector<16x512xf32>
    %141 = tpu.matmul %138, %140, %cst_57 {dimension_numbers = #tpu.dot_dimension_numbers<[1], [0], [0], [1], [0, 0, 1, 1], [], []>} : vector<16x128xbf16>, vector<128x512xbf16>, vector<16x512xf32> -> vector<16x512xf32>
    %142 = arith.addf %137, %141 : vector<16x512xf32>
    %143 = vector.extract_strided_slice %142 {offsets = [0, 0], sizes = [16, 128], strides = [1, 1]} : vector<16x512xf32> to vector<16x128xf32>
    %144 = arith.negf %143 : vector<16x128xf32>
    %145 = math.exp %144 : vector<16x128xf32>
    %cst_58 = arith.constant 1.000000e+00 : f32
    %146 = vector.broadcast %cst_58 : f32 to vector<16x128xf32>
    %147 = arith.addf %146, %145 : vector<16x128xf32>
    %148 = arith.divf %146, %147 : vector<16x128xf32>
    %149 = vector.extract_strided_slice %142 {offsets = [0, 128], sizes = [16, 128], strides = [1, 1]} : vector<16x512xf32> to vector<16x128xf32>
    %150 = arith.negf %149 : vector<16x128xf32>
    %151 = math.exp %150 : vector<16x128xf32>
    %cst_59 = arith.constant 1.000000e+00 : f32
    %152 = vector.broadcast %cst_59 : f32 to vector<16x128xf32>
    %153 = arith.addf %152, %151 : vector<16x128xf32>
    %154 = arith.divf %152, %153 : vector<16x128xf32>
    %155 = vector.extract_strided_slice %142 {offsets = [0, 256], sizes = [16, 128], strides = [1, 1]} : vector<16x512xf32> to vector<16x128xf32>
    %156 = math.tanh %155 : vector<16x128xf32>
    %157 = vector.extract_strided_slice %142 {offsets = [0, 384], sizes = [16, 128], strides = [1, 1]} : vector<16x512xf32> to vector<16x128xf32>
    %158 = arith.negf %157 : vector<16x128xf32>
    %159 = math.exp %158 : vector<16x128xf32>
    %cst_60 = arith.constant 1.000000e+00 : f32
    %160 = vector.broadcast %cst_60 : f32 to vector<16x128xf32>
    %161 = arith.addf %160, %159 : vector<16x128xf32>
    %162 = arith.divf %160, %161 : vector<16x128xf32>
    %163 = arith.mulf %154, %127 : vector<16x128xf32>
    %164 = arith.mulf %148, %156 : vector<16x128xf32>
    %165 = arith.addf %163, %164 : vector<16x128xf32>
    %166 = math.tanh %165 : vector<16x128xf32>
    %167 = arith.mulf %162, %166 : vector<16x128xf32>
    %168 = arith.addf %130, %167 : vector<16x128xf32>
    %c4_i32 = arith.constant 4 : i32
    %c2_i32_61 = arith.constant 2 : i32
    %169 = arith.muli %c2_i32_61, %c4_i32 : i32
    %c7_i32_62 = arith.constant 7 : i32
    %170 = arith.subi %c7_i32_62, %169 : i32
    %171 = arith.muli %arg0, %170 : i32
    %172 = arith.addi %c4_i32, %171 : i32
    %173 = arith.index_cast %172 : i32 to index
    %c0_63 = arith.constant 0 : index
    %c0_64 = arith.constant 0 : index
    %174 = vector.load %arg7[%173, %c0_63, %c0_64] : memref<8x16x512xf32, #tpu.memory_space<vmem>>, vector<1x16x512xf32>
    %175 = vector.shape_cast %174 : vector<1x16x512xf32> to vector<16x512xf32>
    %176 = arith.truncf %167 : vector<16x128xf32> to vector<16x128xbf16>
    %c0_65 = arith.constant 0 : index
    %c0_66 = arith.constant 0 : index
    %c0_67 = arith.constant 0 : index
    %177 = vector.load %arg5[%c0_65, %c0_66, %c0_67] : memref<1x128x512xbf16, #tpu.memory_space<vmem>>, vector<1x128x512xbf16>
    %178 = vector.shape_cast %177 : vector<1x128x512xbf16> to vector<128x512xbf16>
    %cst_68 = arith.constant dense<0.000000e+00> : vector<16x512xf32>
    %179 = tpu.matmul %176, %178, %cst_68 {dimension_numbers = #tpu.dot_dimension_numbers<[1], [0], [0], [1], [0, 0, 1, 1], [], []>} : vector<16x128xbf16>, vector<128x512xbf16>, vector<16x512xf32> -> vector<16x512xf32>
    %180 = arith.addf %175, %179 : vector<16x512xf32>
    %181 = vector.extract_strided_slice %180 {offsets = [0, 0], sizes = [16, 128], strides = [1, 1]} : vector<16x512xf32> to vector<16x128xf32>
    %182 = arith.negf %181 : vector<16x128xf32>
    %183 = math.exp %182 : vector<16x128xf32>
    %cst_69 = arith.constant 1.000000e+00 : f32
    %184 = vector.broadcast %cst_69 : f32 to vector<16x128xf32>
    %185 = arith.addf %184, %183 : vector<16x128xf32>
    %186 = arith.divf %184, %185 : vector<16x128xf32>
    %187 = vector.extract_strided_slice %180 {offsets = [0, 128], sizes = [16, 128], strides = [1, 1]} : vector<16x512xf32> to vector<16x128xf32>
    %188 = arith.negf %187 : vector<16x128xf32>
    %189 = math.exp %188 : vector<16x128xf32>
    %cst_70 = arith.constant 1.000000e+00 : f32
    %190 = vector.broadcast %cst_70 : f32 to vector<16x128xf32>
    %191 = arith.addf %190, %189 : vector<16x128xf32>
    %192 = arith.divf %190, %191 : vector<16x128xf32>
    %193 = vector.extract_strided_slice %180 {offsets = [0, 256], sizes = [16, 128], strides = [1, 1]} : vector<16x512xf32> to vector<16x128xf32>
    %194 = math.tanh %193 : vector<16x128xf32>
    %195 = vector.extract_strided_slice %180 {offsets = [0, 384], sizes = [16, 128], strides = [1, 1]} : vector<16x512xf32> to vector<16x128xf32>
    %196 = arith.negf %195 : vector<16x128xf32>
    %197 = math.exp %196 : vector<16x128xf32>
    %cst_71 = arith.constant 1.000000e+00 : f32
    %198 = vector.broadcast %cst_71 : f32 to vector<16x128xf32>
    %199 = arith.addf %198, %197 : vector<16x128xf32>
    %200 = arith.divf %198, %199 : vector<16x128xf32>
    %201 = arith.mulf %192, %165 : vector<16x128xf32>
    %202 = arith.mulf %186, %194 : vector<16x128xf32>
    %203 = arith.addf %201, %202 : vector<16x128xf32>
    %204 = math.tanh %203 : vector<16x128xf32>
    %205 = arith.mulf %200, %204 : vector<16x128xf32>
    %206 = arith.addf %168, %205 : vector<16x128xf32>
    %c5_i32 = arith.constant 5 : i32
    %c2_i32_72 = arith.constant 2 : i32
    %207 = arith.muli %c2_i32_72, %c5_i32 : i32
    %c7_i32_73 = arith.constant 7 : i32
    %208 = arith.subi %c7_i32_73, %207 : i32
    %209 = arith.muli %arg0, %208 : i32
    %210 = arith.addi %c5_i32, %209 : i32
    %211 = arith.index_cast %210 : i32 to index
    %c0_74 = arith.constant 0 : index
    %c0_75 = arith.constant 0 : index
    %212 = vector.load %arg7[%211, %c0_74, %c0_75] : memref<8x16x512xf32, #tpu.memory_space<vmem>>, vector<1x16x512xf32>
    %213 = vector.shape_cast %212 : vector<1x16x512xf32> to vector<16x512xf32>
    %214 = arith.truncf %205 : vector<16x128xf32> to vector<16x128xbf16>
    %c0_76 = arith.constant 0 : index
    %c0_77 = arith.constant 0 : index
    %c0_78 = arith.constant 0 : index
    %215 = vector.load %arg5[%c0_76, %c0_77, %c0_78] : memref<1x128x512xbf16, #tpu.memory_space<vmem>>, vector<1x128x512xbf16>
    %216 = vector.shape_cast %215 : vector<1x128x512xbf16> to vector<128x512xbf16>
    %cst_79 = arith.constant dense<0.000000e+00> : vector<16x512xf32>
    %217 = tpu.matmul %214, %216, %cst_79 {dimension_numbers = #tpu.dot_dimension_numbers<[1], [0], [0], [1], [0, 0, 1, 1], [], []>} : vector<16x128xbf16>, vector<128x512xbf16>, vector<16x512xf32> -> vector<16x512xf32>
    %218 = arith.addf %213, %217 : vector<16x512xf32>
    %219 = vector.extract_strided_slice %218 {offsets = [0, 0], sizes = [16, 128], strides = [1, 1]} : vector<16x512xf32> to vector<16x128xf32>
    %220 = arith.negf %219 : vector<16x128xf32>
    %221 = math.exp %220 : vector<16x128xf32>
    %cst_80 = arith.constant 1.000000e+00 : f32
    %222 = vector.broadcast %cst_80 : f32 to vector<16x128xf32>
    %223 = arith.addf %222, %221 : vector<16x128xf32>
    %224 = arith.divf %222, %223 : vector<16x128xf32>
    %225 = vector.extract_strided_slice %218 {offsets = [0, 128], sizes = [16, 128], strides = [1, 1]} : vector<16x512xf32> to vector<16x128xf32>
    %226 = arith.negf %225 : vector<16x128xf32>
    %227 = math.exp %226 : vector<16x128xf32>
    %cst_81 = arith.constant 1.000000e+00 : f32
    %228 = vector.broadcast %cst_81 : f32 to vector<16x128xf32>
    %229 = arith.addf %228, %227 : vector<16x128xf32>
    %230 = arith.divf %228, %229 : vector<16x128xf32>
    %231 = vector.extract_strided_slice %218 {offsets = [0, 256], sizes = [16, 128], strides = [1, 1]} : vector<16x512xf32> to vector<16x128xf32>
    %232 = math.tanh %231 : vector<16x128xf32>
    %233 = vector.extract_strided_slice %218 {offsets = [0, 384], sizes = [16, 128], strides = [1, 1]} : vector<16x512xf32> to vector<16x128xf32>
    %234 = arith.negf %233 : vector<16x128xf32>
    %235 = math.exp %234 : vector<16x128xf32>
    %cst_82 = arith.constant 1.000000e+00 : f32
    %236 = vector.broadcast %cst_82 : f32 to vector<16x128xf32>
    %237 = arith.addf %236, %235 : vector<16x128xf32>
    %238 = arith.divf %236, %237 : vector<16x128xf32>
    %239 = arith.mulf %230, %203 : vector<16x128xf32>
    %240 = arith.mulf %224, %232 : vector<16x128xf32>
    %241 = arith.addf %239, %240 : vector<16x128xf32>
    %242 = math.tanh %241 : vector<16x128xf32>
    %243 = arith.mulf %238, %242 : vector<16x128xf32>
    %244 = arith.addf %206, %243 : vector<16x128xf32>
    %c6_i32 = arith.constant 6 : i32
    %c2_i32_83 = arith.constant 2 : i32
    %245 = arith.muli %c2_i32_83, %c6_i32 : i32
    %c7_i32_84 = arith.constant 7 : i32
    %246 = arith.subi %c7_i32_84, %245 : i32
    %247 = arith.muli %arg0, %246 : i32
    %248 = arith.addi %c6_i32, %247 : i32
    %249 = arith.index_cast %248 : i32 to index
    %c0_85 = arith.constant 0 : index
    %c0_86 = arith.constant 0 : index
    %250 = vector.load %arg7[%249, %c0_85, %c0_86] : memref<8x16x512xf32, #tpu.memory_space<vmem>>, vector<1x16x512xf32>
    %251 = vector.shape_cast %250 : vector<1x16x512xf32> to vector<16x512xf32>
    %252 = arith.truncf %243 : vector<16x128xf32> to vector<16x128xbf16>
    %c0_87 = arith.constant 0 : index
    %c0_88 = arith.constant 0 : index
    %c0_89 = arith.constant 0 : index
    %253 = vector.load %arg5[%c0_87, %c0_88, %c0_89] : memref<1x128x512xbf16, #tpu.memory_space<vmem>>, vector<1x128x512xbf16>
    %254 = vector.shape_cast %253 : vector<1x128x512xbf16> to vector<128x512xbf16>
    %cst_90 = arith.constant dense<0.000000e+00> : vector<16x512xf32>
    %255 = tpu.matmul %252, %254, %cst_90 {dimension_numbers = #tpu.dot_dimension_numbers<[1], [0], [0], [1], [0, 0, 1, 1], [], []>} : vector<16x128xbf16>, vector<128x512xbf16>, vector<16x512xf32> -> vector<16x512xf32>
    %256 = arith.addf %251, %255 : vector<16x512xf32>
    %257 = vector.extract_strided_slice %256 {offsets = [0, 0], sizes = [16, 128], strides = [1, 1]} : vector<16x512xf32> to vector<16x128xf32>
    %258 = arith.negf %257 : vector<16x128xf32>
    %259 = math.exp %258 : vector<16x128xf32>
    %cst_91 = arith.constant 1.000000e+00 : f32
    %260 = vector.broadcast %cst_91 : f32 to vector<16x128xf32>
    %261 = arith.addf %260, %259 : vector<16x128xf32>
    %262 = arith.divf %260, %261 : vector<16x128xf32>
    %263 = vector.extract_strided_slice %256 {offsets = [0, 128], sizes = [16, 128], strides = [1, 1]} : vector<16x512xf32> to vector<16x128xf32>
    %264 = arith.negf %263 : vector<16x128xf32>
    %265 = math.exp %264 : vector<16x128xf32>
    %cst_92 = arith.constant 1.000000e+00 : f32
    %266 = vector.broadcast %cst_92 : f32 to vector<16x128xf32>
    %267 = arith.addf %266, %265 : vector<16x128xf32>
    %268 = arith.divf %266, %267 : vector<16x128xf32>
    %269 = vector.extract_strided_slice %256 {offsets = [0, 256], sizes = [16, 128], strides = [1, 1]} : vector<16x512xf32> to vector<16x128xf32>
    %270 = math.tanh %269 : vector<16x128xf32>
    %271 = vector.extract_strided_slice %256 {offsets = [0, 384], sizes = [16, 128], strides = [1, 1]} : vector<16x512xf32> to vector<16x128xf32>
    %272 = arith.negf %271 : vector<16x128xf32>
    %273 = math.exp %272 : vector<16x128xf32>
    %cst_93 = arith.constant 1.000000e+00 : f32
    %274 = vector.broadcast %cst_93 : f32 to vector<16x128xf32>
    %275 = arith.addf %274, %273 : vector<16x128xf32>
    %276 = arith.divf %274, %275 : vector<16x128xf32>
    %277 = arith.mulf %268, %241 : vector<16x128xf32>
    %278 = arith.mulf %262, %270 : vector<16x128xf32>
    %279 = arith.addf %277, %278 : vector<16x128xf32>
    %280 = math.tanh %279 : vector<16x128xf32>
    %281 = arith.mulf %276, %280 : vector<16x128xf32>
    %282 = arith.addf %244, %281 : vector<16x128xf32>
    %c7_i32_94 = arith.constant 7 : i32
    %c2_i32_95 = arith.constant 2 : i32
    %283 = arith.muli %c2_i32_95, %c7_i32_94 : i32
    %c7_i32_96 = arith.constant 7 : i32
    %284 = arith.subi %c7_i32_96, %283 : i32
    %285 = arith.muli %arg0, %284 : i32
    %286 = arith.addi %c7_i32_94, %285 : i32
    %287 = arith.index_cast %286 : i32 to index
    %c0_97 = arith.constant 0 : index
    %c0_98 = arith.constant 0 : index
    %288 = vector.load %arg7[%287, %c0_97, %c0_98] : memref<8x16x512xf32, #tpu.memory_space<vmem>>, vector<1x16x512xf32>
    %289 = vector.shape_cast %288 : vector<1x16x512xf32> to vector<16x512xf32>
    %290 = arith.truncf %281 : vector<16x128xf32> to vector<16x128xbf16>
    %c0_99 = arith.constant 0 : index
    %c0_100 = arith.constant 0 : index
    %c0_101 = arith.constant 0 : index
    %291 = vector.load %arg5[%c0_99, %c0_100, %c0_101] : memref<1x128x512xbf16, #tpu.memory_space<vmem>>, vector<1x128x512xbf16>
    %292 = vector.shape_cast %291 : vector<1x128x512xbf16> to vector<128x512xbf16>
    %cst_102 = arith.constant dense<0.000000e+00> : vector<16x512xf32>
    %293 = tpu.matmul %290, %292, %cst_102 {dimension_numbers = #tpu.dot_dimension_numbers<[1], [0], [0], [1], [0, 0, 1, 1], [], []>} : vector<16x128xbf16>, vector<128x512xbf16>, vector<16x512xf32> -> vector<16x512xf32>
    %294 = arith.addf %289, %293 : vector<16x512xf32>
    %295 = vector.extract_strided_slice %294 {offsets = [0, 0], sizes = [16, 128], strides = [1, 1]} : vector<16x512xf32> to vector<16x128xf32>
    %296 = arith.negf %295 : vector<16x128xf32>
    %297 = math.exp %296 : vector<16x128xf32>
    %cst_103 = arith.constant 1.000000e+00 : f32
    %298 = vector.broadcast %cst_103 : f32 to vector<16x128xf32>
    %299 = arith.addf %298, %297 : vector<16x128xf32>
    %300 = arith.divf %298, %299 : vector<16x128xf32>
    %301 = vector.extract_strided_slice %294 {offsets = [0, 128], sizes = [16, 128], strides = [1, 1]} : vector<16x512xf32> to vector<16x128xf32>
    %302 = arith.negf %301 : vector<16x128xf32>
    %303 = math.exp %302 : vector<16x128xf32>
    %cst_104 = arith.constant 1.000000e+00 : f32
    %304 = vector.broadcast %cst_104 : f32 to vector<16x128xf32>
    %305 = arith.addf %304, %303 : vector<16x128xf32>
    %306 = arith.divf %304, %305 : vector<16x128xf32>
    %307 = vector.extract_strided_slice %294 {offsets = [0, 256], sizes = [16, 128], strides = [1, 1]} : vector<16x512xf32> to vector<16x128xf32>
    %308 = math.tanh %307 : vector<16x128xf32>
    %309 = vector.extract_strided_slice %294 {offsets = [0, 384], sizes = [16, 128], strides = [1, 1]} : vector<16x512xf32> to vector<16x128xf32>
    %310 = arith.negf %309 : vector<16x128xf32>
    %311 = math.exp %310 : vector<16x128xf32>
    %cst_105 = arith.constant 1.000000e+00 : f32
    %312 = vector.broadcast %cst_105 : f32 to vector<16x128xf32>
    %313 = arith.addf %312, %311 : vector<16x128xf32>
    %314 = arith.divf %312, %313 : vector<16x128xf32>
    %315 = arith.mulf %306, %279 : vector<16x128xf32>
    %316 = arith.mulf %300, %308 : vector<16x128xf32>
    %317 = arith.addf %315, %316 : vector<16x128xf32>
    %318 = math.tanh %317 : vector<16x128xf32>
    %319 = arith.mulf %314, %318 : vector<16x128xf32>
    %320 = arith.addf %282, %319 : vector<16x128xf32>
    %c8_i32 = arith.constant 8 : i32
    %c0_106 = arith.constant 0 : index
    %c0_107 = arith.constant 0 : index
    %321 = vector.load %arg8[%c0_106, %c0_107] : memref<16x128xf32, #tpu.memory_space<vmem>>, vector<16x128xf32>
    tpu.vector_store %arg8[%c0_106, %c0_107], %319 {strides = array<i32>} : memref<16x128xf32, #tpu.memory_space<vmem>>, vector<16x128xf32>,
    %c0_108 = arith.constant 0 : index
    %c0_109 = arith.constant 0 : index
    %322 = vector.load %arg9[%c0_108, %c0_109] : memref<16x128xf32, #tpu.memory_space<vmem>>, vector<16x128xf32>
    tpu.vector_store %arg9[%c0_108, %c0_109], %317 {strides = array<i32>} : memref<16x128xf32, #tpu.memory_space<vmem>>, vector<16x128xf32>,
    %c0_110 = arith.constant 0 : index
    %c0_111 = arith.constant 0 : index
    %c0_112 = arith.constant 0 : index
    %323 = vector.load %arg6[%c0_110, %c0_111, %c0_112] : memref<1x16x128xf32, #tpu.memory_space<vmem>>, vector<1x16x128xf32>
    %324 = vector.shape_cast %323 : vector<1x16x128xf32> to vector<16x128xf32>
    %325 = arith.addf %324, %320 : vector<16x128xf32>
    %c0_113 = arith.constant 0 : index
    %c0_114 = arith.constant 0 : index
    %c0_115 = arith.constant 0 : index
    %326 = vector.load %arg6[%c0_113, %c0_114, %c0_115] : memref<1x16x128xf32, #tpu.memory_space<vmem>>, vector<1x16x128xf32>
    %327 = vector.shape_cast %326 : vector<1x16x128xf32> to vector<16x128xf32>
    %328 = vector.shape_cast %325 : vector<16x128xf32> to vector<1x16x128xf32>
    tpu.vector_store %arg6[%c0_113, %c0_114, %c0_115], %328 {strides = array<i32>} : memref<1x16x128xf32, #tpu.memory_space<vmem>>, vector<1x16x128xf32>,
    return
  }
  func.func @transform_0(%arg0: i32, %arg1: i32) -> (i32, i32, i32) {
    %c2_i32 = arith.constant 2 : i32
    %0 = arith.muli %c2_i32, %arg1 : i32
    %c0_i32 = arith.constant 0 : i32
    %1 = arith.subi %c0_i32, %0 : i32
    %2 = arith.muli %arg0, %1 : i32
    %3 = arith.addi %arg1, %2 : i32
    %c0_i32_0 = arith.constant 0 : i32
    %c0_i32_1 = arith.constant 0 : i32
    %c0_i32_2 = arith.constant 0 : i32
    return %3, %c0_i32_0, %c0_i32_1 : i32, i32, i32
  }
  func.func @transform_1(%arg0: i32, %arg1: i32) -> (i32, i32, i32) {
    %c0_i32 = arith.constant 0 : i32
    %c0_i32_0 = arith.constant 0 : i32
    %c0_i32_1 = arith.constant 0 : i32
    return %arg0, %c0_i32, %c0_i32_0 : i32, i32, i32
  }
  func.func @transform_2(%arg0: i32, %arg1: i32) -> (i32, i32, i32) {
    %c0_i32 = arith.constant 0 : i32
    %c0_i32_0 = arith.constant 0 : i32
    %c0_i32_1 = arith.constant 0 : i32
    return %arg0, %c0_i32, %c0_i32_0 : i32, i32, i32
  }
  func.func @transform_3(%arg0: i32, %arg1: i32) -> (i32, i32, i32) {
    %c0_i32 = arith.constant 0 : i32
    %c0_i32_0 = arith.constant 0 : i32
    %c0_i32_1 = arith.constant 0 : i32
    return %arg0, %c0_i32, %c0_i32_0 : i32, i32, i32
  }
  func.func @transform_4(%arg0: i32, %arg1: i32) -> (i32, i32, i32) {
    %c0_i32 = arith.constant 0 : i32
    %c0_i32_0 = arith.constant 0 : i32
    %c0_i32_1 = arith.constant 0 : i32
    return %arg0, %c0_i32, %c0_i32_0 : i32, i32, i32
  }
}

module attributes {stable_mosaic.version = 11 : i64} {
  func.func @_head_kernel(%arg0: memref<2x16x128xf32, #tpu.memory_space<vmem>>, %arg1: memref<2x128x5xbf16, #tpu.memory_space<vmem>>, %arg2: memref<1x5xf32, #tpu.memory_space<vmem>>, %arg3: memref<16x5xf32, #tpu.memory_space<vmem>>) attributes {dimension_semantics = [], scalar_prefetch = 0 : i64, scratch_operands = 0 : i64, tpu.core_type = #tpu.core_type<tc>} {
    %c0 = arith.constant 0 : index
    %c0_0 = arith.constant 0 : index
    %c0_1 = arith.constant 0 : index
    %0 = vector.load %arg0[%c0, %c0_0, %c0_1] : memref<2x16x128xf32, #tpu.memory_space<vmem>>, vector<1x16x128xf32>
    %1 = vector.shape_cast %0 : vector<1x16x128xf32> to vector<16x128xf32>
    %cst = arith.constant 1.250000e-01 : f32
    %2 = vector.broadcast %cst : f32 to vector<16x128xf32>
    %3 = arith.mulf %1, %2 : vector<16x128xf32>
    %4 = arith.truncf %3 : vector<16x128xf32> to vector<16x128xbf16>
    %c1 = arith.constant 1 : index
    %c0_2 = arith.constant 0 : index
    %c0_3 = arith.constant 0 : index
    %5 = vector.load %arg0[%c1, %c0_2, %c0_3] : memref<2x16x128xf32, #tpu.memory_space<vmem>>, vector<1x16x128xf32>
    %6 = vector.shape_cast %5 : vector<1x16x128xf32> to vector<16x128xf32>
    %cst_4 = arith.constant 1.250000e-01 : f32
    %7 = vector.broadcast %cst_4 : f32 to vector<16x128xf32>
    %8 = arith.mulf %6, %7 : vector<16x128xf32>
    %9 = arith.truncf %8 : vector<16x128xf32> to vector<16x128xbf16>
    %c0_5 = arith.constant 0 : index
    %c0_6 = arith.constant 0 : index
    %c0_7 = arith.constant 0 : index
    %10 = vector.load %arg1[%c0_5, %c0_6, %c0_7] : memref<2x128x5xbf16, #tpu.memory_space<vmem>>, vector<1x128x5xbf16>
    %11 = vector.shape_cast %10 : vector<1x128x5xbf16> to vector<128x5xbf16>
    %cst_8 = arith.constant dense<0.000000e+00> : vector<16x5xf32>
    %12 = tpu.matmul %4, %11, %cst_8 {dimension_numbers = #tpu.dot_dimension_numbers<[1], [0], [0], [1], [0, 0, 1, 1], [], []>} : vector<16x128xbf16>, vector<128x5xbf16>, vector<16x5xf32> -> vector<16x5xf32>
    %c1_9 = arith.constant 1 : index
    %c0_10 = arith.constant 0 : index
    %c0_11 = arith.constant 0 : index
    %13 = vector.load %arg1[%c1_9, %c0_10, %c0_11] : memref<2x128x5xbf16, #tpu.memory_space<vmem>>, vector<1x128x5xbf16>
    %14 = vector.shape_cast %13 : vector<1x128x5xbf16> to vector<128x5xbf16>
    %cst_12 = arith.constant dense<0.000000e+00> : vector<16x5xf32>
    %15 = tpu.matmul %9, %14, %cst_12 {dimension_numbers = #tpu.dot_dimension_numbers<[1], [0], [0], [1], [0, 0, 1, 1], [], []>} : vector<16x128xbf16>, vector<128x5xbf16>, vector<16x5xf32> -> vector<16x5xf32>
    %16 = arith.addf %12, %15 : vector<16x5xf32>
    %c0_13 = arith.constant 0 : index
    %c0_14 = arith.constant 0 : index
    %17 = vector.load %arg2[%c0_13, %c0_14] : memref<1x5xf32, #tpu.memory_space<vmem>>, vector<1x5xf32>
    %18 = vector.broadcast %17 : vector<1x5xf32> to vector<16x5xf32>
    %19 = arith.addf %16, %18 : vector<16x5xf32>
    %c0_15 = arith.constant 0 : index
    %c0_16 = arith.constant 0 : index
    %20 = vector.load %arg3[%c0_15, %c0_16] : memref<16x5xf32, #tpu.memory_space<vmem>>, vector<16x5xf32>
    tpu.vector_store %arg3[%c0_15, %c0_16], %19 {strides = array<i32>} : memref<16x5xf32, #tpu.memory_space<vmem>>, vector<16x5xf32>,
    return
  }
}

</mosaic_0001>

<llo_original>
// kernel: document_classifier_forward.5
$region0: #{document_classifier_forward.5}
  #allocation0 [shape = 'u32[]', space=smem, size = 0x4, offset = 0x4, fixed_abs, tag = 'smem constant byte address 0x4 - core index']
  #allocation1 [shape = 'u32[144,128]{1,0:T(1,128)}', space=vmem, size = 0x12000, scoped, tag = 'internal scratch']
  %s0 = inlined_call_operand.vmem [shape: f32[2,16,128], index: 0, kind: input, shape index: {}]
  %s1 = inlined_call_operand.vmem [shape: bf16[2,128,5], index: 1, kind: input, shape index: {}]
  %s2 = inlined_call_operand.vmem [shape: f32[1,5], index: 2, kind: input, shape index: {}]
  %s3 = inlined_call_operand.vmem [shape: f32[16,5], index: 3, kind: output, shape index: {}]
  %s4 = sld [smem:[#allocation0]]
  $region22: #{document_classifier_forward.5} parent=0
    _
  %s6 = ssub.s32 1, %s4
  %s7 = scalar_select 0, %s6, %s4
  // Predicated region
  $region2: #{document_classifier_forward.5} parent=0 // pred_check
    _
  $region3: #{document_classifier_forward.5} parent=0 // pred_check_branch
    %9 = sbr.rel (0) target = $region5
  $region4: #{document_classifier_forward.5} parent=0 // pred_region
    _
  $region5: #{document_classifier_forward.5} parent=0 // pred_fallthru
    _
  // Predicated region
  $region6: #{document_classifier_forward.5} parent=0 // pred_check
    _
  $region7: #{document_classifier_forward.5} parent=0 // pred_check_branch
    %11 = sbr.rel (0) target = $region9
  $region8: #{document_classifier_forward.5} parent=0 // pred_region
    _
  $region9: #{document_classifier_forward.5} parent=0 // pred_fallthru
    _
  // Predicated region
  $region10: #{document_classifier_forward.5} parent=0 // pred_check
    _
  $region11: #{document_classifier_forward.5} parent=0 // pred_check_branch
    %13 = sbr.rel (0) target = $region13
  $region12: #{document_classifier_forward.5} parent=0 // pred_region
    _
  $region13: #{document_classifier_forward.5} parent=0 // pred_fallthru
    _
  %v15 = vld [vmem:[%s0] sm:$0xff]
  %v16 = vld [vmem:[%s0 + $0x8] sm:$0xff]
  %v17 = vmul.f32 %v15, 0.125
  %v18 = vmul.f32 %v16, 0.125
  %v19 = vpack.c.bf16 %v18, %v17
  %s20 = scalar_lea.vmem %s0, 16
  %v21 = vld [vmem:[%s20] sm:$0xff]
  %v22 = vld [vmem:[%s20 + $0x8] sm:$0xff]
  %v23 = vmul.f32 %v21, 0.125
  %v24 = vmul.f32 %v22, 0.125
  %v25 = vpack.c.bf16 %v24, %v23
  %v26 = vld [vmem:[%s1] sm:$0xf]
  %v27 = vld [vmem:[%s1 + $0x4] sm:$0xf]
  %v28 = vld [vmem:[%s1 + $0x8] sm:$0xf]
  %v29 = vld [vmem:[%s1 + $0xc] sm:$0xf]
  %v30 = vld [vmem:[%s1 + $0x10] sm:$0xf]
  %v31 = vld [vmem:[%s1 + $0x14] sm:$0xf]
  %v32 = vld [vmem:[%s1 + $0x18] sm:$0xf]
  %v33 = vld [vmem:[%s1 + $0x1c] sm:$0xf]
  %v34 = vld [vmem:[%s1 + $0x20] sm:$0xf]
  %v35 = vld [vmem:[%s1 + $0x24] sm:$0xf]
  %v36 = vld [vmem:[%s1 + $0x28] sm:$0xf]
  %v37 = vld [vmem:[%s1 + $0x2c] sm:$0xf]
  %v38 = vld [vmem:[%s1 + $0x30] sm:$0xf]
  %v39 = vld [vmem:[%s1 + $0x34] sm:$0xf]
  %v40 = vld [vmem:[%s1 + $0x38] sm:$0xf]
  %v41 = vld [vmem:[%s1 + $0x3c] sm:$0xf]
  %s42 = scalar_lea.vmem %s1, 64
  %v43 = vld [vmem:[%s42] sm:$0xf]
  %v44 = vld [vmem:[%s42 + $0x4] sm:$0xf]
  %v45 = vld [vmem:[%s42 + $0x8] sm:$0xf]
  %v46 = vld [vmem:[%s42 + $0xc] sm:$0xf]
  %v47 = vld [vmem:[%s42 + $0x10] sm:$0xf]
  %v48 = vld [vmem:[%s42 + $0x14] sm:$0xf]
  %v49 = vld [vmem:[%s42 + $0x18] sm:$0xf]
  %v50 = vld [vmem:[%s42 + $0x1c] sm:$0xf]
  %v51 = vld [vmem:[%s42 + $0x20] sm:$0xf]
  %v52 = vld [vmem:[%s42 + $0x24] sm:$0xf]
  %v53 = vld [vmem:[%s42 + $0x28] sm:$0xf]
  %v54 = vld [vmem:[%s42 + $0x2c] sm:$0xf]
  %v55 = vld [vmem:[%s42 + $0x30] sm:$0xf]
  %v56 = vld [vmem:[%s42 + $0x34] sm:$0xf]
  %v57 = vld [vmem:[%s42 + $0x38] sm:$0xf]
  %v58 = vld [vmem:[%s42 + $0x3c] sm:$0xf]
  %v75 = vunpack.c.l.b16 %v43
  %v76 = vunpack.c.l.b16 %v44
  %v77 = vunpack.c.l.b16 %v45
  %v78 = vunpack.c.l.b16 %v46
  %v79 = vunpack.c.l.b16 %v47
  %v80 = vunpack.c.l.b16 %v48
  %v81 = vunpack.c.l.b16 %v49
  %v82 = vunpack.c.l.b16 %v50
  %v83 = vunpack.c.l.b16 %v51
  %v84 = vunpack.c.l.b16 %v52
  %v85 = vunpack.c.l.b16 %v53
  %v86 = vunpack.c.l.b16 %v54
  %v87 = vunpack.c.l.b16 %v55
  %v88 = vunpack.c.l.b16 %v56
  %v89 = vunpack.c.l.b16 %v57
  %v90 = vunpack.c.l.b16 %v58
  %v91 = vpack.c.b16 %v76, %v75
  %v92 = vpack.c.b16 %v78, %v77
  %v93 = vpack.c.b16 %v80, %v79
  %v94 = vpack.c.b16 %v82, %v81
  %v95 = vpack.c.b16 %v84, %v83
  %v96 = vpack.c.b16 %v86, %v85
  %v97 = vpack.c.b16 %v88, %v87
  %v98 = vpack.c.b16 %v90, %v89
  %107 = vmatprep.subr.bf16.mxu0 0
  %108 = vmatpush1.bf16.msra.mxu0 %v98
  %109 = vmatprep.subr.bf16.mxu0 0
  %110 = vmatpush1.bf16.msra.mxu0 %v97
  %111 = vmatprep.subr.bf16.mxu0 0
  %112 = vmatpush1.bf16.msra.mxu0 %v96
  %113 = vmatprep.subr.bf16.mxu0 0
  %114 = vmatpush1.bf16.msra.mxu0 %v95
  %115 = vmatprep.subr.bf16.mxu0 0
  %116 = vmatpush1.bf16.msra.mxu0 %v94
  %117 = vmatprep.subr.bf16.mxu0 0
  %118 = vmatpush1.bf16.msra.mxu0 %v93
  %119 = vmatprep.subr.bf16.mxu0 0
  %120 = vmatpush1.bf16.msra.mxu0 %v92
  %121 = vmatprep.subr.bf16.mxu0 0
  %122 = vmatpush1.bf16.msra.mxu0 %v91
  %123 = vmatprep.subr.bf16.mxu0 0
  %124 = vmatpush2.bf16.msra.mxu0 0
  %125 = vmatprep.subr.bf16.mxu0 0
  %126 = vmatpush2.bf16.msra.mxu0 0
  %127 = vmatprep.subr.bf16.mxu0 0
  %128 = vmatpush2.bf16.msra.mxu0 0
  %129 = vmatprep.subr.bf16.mxu0 0
  %130 = vmatpush2.bf16.msra.mxu0 0
  %131 = vmatprep.subr.bf16.mxu0 0
  %132 = vmatpush2.bf16.msra.mxu0 0
  %133 = vmatprep.subr.bf16.mxu0 0
  %134 = vmatpush2.bf16.msra.mxu0 0
  %135 = vmatprep.subr.bf16.mxu0 0
  %136 = vmatpush2.bf16.msra.mxu0 0
  %137 = vmatprep.subr.bf16.mxu0 0
  %138 = vmatpush2.bf16.msra.mxu0 0
  %139 = vmatprep.mubr.bf16.mxu0 0
  %140 = vmatmul.mubr.bf16.gmra.mxu0 %v25
  %v141 = vpop.f32.mrf.mxu0
  %v142 = vadd.f32 0.0, %v141
  %v143 = vpop.f32.mrf.mxu0
  %v144 = vpop.f32.mrf.mxu0
  %v145 = vadd.f32 0.0, %v144
  %v146 = vpop.f32.mrf.mxu0
  %147 = vdwg.mxu0
  %v164 = vunpack.c.l.b16 %v26
  %v165 = vunpack.c.l.b16 %v27
  %v166 = vunpack.c.l.b16 %v28
  %v167 = vunpack.c.l.b16 %v29
  %v168 = vunpack.c.l.b16 %v30
  %v169 = vunpack.c.l.b16 %v31
  %v170 = vunpack.c.l.b16 %v32
  %v171 = vunpack.c.l.b16 %v33
  %v172 = vunpack.c.l.b16 %v34
  %v173 = vunpack.c.l.b16 %v35
  %v174 = vunpack.c.l.b16 %v36
  %v175 = vunpack.c.l.b16 %v37
  %v176 = vunpack.c.l.b16 %v38
  %v177 = vunpack.c.l.b16 %v39
  %v178 = vunpack.c.l.b16 %v40
  %v179 = vunpack.c.l.b16 %v41
  %v180 = vpack.c.b16 %v165, %v164
  %v181 = vpack.c.b16 %v167, %v166
  %v182 = vpack.c.b16 %v169, %v168
  %v183 = vpack.c.b16 %v171, %v170
  %v184 = vpack.c.b16 %v173, %v172
  %v185 = vpack.c.b16 %v175, %v174
  %v186 = vpack.c.b16 %v177, %v176
  %v187 = vpack.c.b16 %v179, %v178
  %196 = vmatprep.subr.bf16.mxu0 0
  %197 = vmatpush1.bf16.msra.mxu0 %v187
  %198 = vmatprep.subr.bf16.mxu0 0
  %199 = vmatpush1.bf16.msra.mxu0 %v186
  %200 = vmatprep.subr.bf16.mxu0 0
  %201 = vmatpush1.bf16.msra.mxu0 %v185
  %202 = vmatprep.subr.bf16.mxu0 0
  %203 = vmatpush1.bf16.msra.mxu0 %v184
  %204 = vmatprep.subr.bf16.mxu0 0
  %205 = vmatpush1.bf16.msra.mxu0 %v183
  %206 = vmatprep.subr.bf16.mxu0 0
  %207 = vmatpush1.bf16.msra.mxu0 %v182
  %208 = vmatprep.subr.bf16.mxu0 0
  %209 = vmatpush1.bf16.msra.mxu0 %v181
  %210 = vmatprep.subr.bf16.mxu0 0
  %211 = vmatpush1.bf16.msra.mxu0 %v180
  %212 = vmatprep.subr.bf16.mxu0 0
  %213 = vmatpush2.bf16.msra.mxu0 0
  %214 = vmatprep.subr.bf16.mxu0 0
  %215 = vmatpush2.bf16.msra.mxu0 0
  %216 = vmatprep.subr.bf16.mxu0 0
  %217 = vmatpush2.bf16.msra.mxu0 0
  %218 = vmatprep.subr.bf16.mxu0 0
  %219 = vmatpush2.bf16.msra.mxu0 0
  %220 = vmatprep.subr.bf16.mxu0 0
  %221 = vmatpush2.bf16.msra.mxu0 0
  %222 = vmatprep.subr.bf16.mxu0 0
  %223 = vmatpush2.bf16.msra.mxu0 0
  %224 = vmatprep.subr.bf16.mxu0 0
  %225 = vmatpush2.bf16.msra.mxu0 0
  %226 = vmatprep.subr.bf16.mxu0 0
  %227 = vmatpush2.bf16.msra.mxu0 0
  %228 = vmatprep.mubr.bf16.mxu0 0
  %229 = vmatmul.mubr.bf16.gmra.mxu0 %v19
  %v230 = vpop.f32.mrf.mxu0
  %v231 = vadd.f32 %v142, %v230
  %v232 = vpop.f32.mrf.mxu0
  %v233 = vpop.f32.mrf.mxu0
  %v234 = vadd.f32 %v145, %v233
  %v235 = vpop.f32.mrf.mxu0
  %236 = vdwg.mxu0
  %v237 = vld [vmem:[%s2] sm:$0x1]
  %v239 = vlaneseq
  %v240 = vshrl.u32 %v239, 7
  %v241 = vsub.s32 0, %v240
  %v242 = vrot.slane %v237, %v241
  %v244 = vadd.f32 %v231, %v242
  %v245 = vadd.f32 %v234, %v242
  %vm246 = vcmask 39936
  %247 = vst.msk [vmem:[%s3] sm:$0xff] %vm246, %v244
  %248 = vst.msk [vmem:[%s3 + $0x8] sm:$0xff] %vm246, %v245
  // Predicated region
  $region14: #{document_classifier_forward.5} parent=0 // pred_check
    _
  $region15: #{document_classifier_forward.5} parent=0 // pred_check_branch
    %250 = sbr.rel (0) target = $region17
  $region16: #{document_classifier_forward.5} parent=0 // pred_region
    _
  $region17: #{document_classifier_forward.5} parent=0 // pred_fallthru
    _
  // Predicated region
  $region18: #{document_classifier_forward.5} parent=0 // pred_check
    _
  $region19: #{document_classifier_forward.5} parent=0 // pred_check_branch
    %252 = sbr.rel (0) target = $region21
  $region20: #{document_classifier_forward.5} parent=0 // pred_region
    _
  $region21: #{document_classifier_forward.5} parent=0 // pred_fallthru
    _

// kernel: document_classifier_forward.4
$region0: #{document_classifier_forward.4}
  #allocation0 [shape = 'u32[]', space=smem, size = 0x4, offset = 0x4, fixed_abs, tag = 'smem constant byte address 0x4 - core index']
  #allocation1 [shape = 'u32[144,128]{1,0:T(1,128)}', space=vmem, size = 0x12000, scoped, tag = 'internal scratch']
  #allocation2 [shape = 'f32[8,16,512]{2,1,0:T(8,128)}', space=vmem, size = 0x40000, scoped, tag = 'scratch operand']
  #allocation3 [shape = 'f32[16,128]{1,0:T(8,128)}', space=vmem, size = 0x2000, scoped, tag = 'scratch operand']
  #allocation4 [shape = 'f32[16,128]{1,0:T(8,128)}', space=vmem, size = 0x2000, scoped, tag = 'scratch operand']
  %s0 = inlined_call_operand.vmem [shape: bf16[8,16,256], index: 0, kind: input, shape index: {}]
  %s1 = inlined_call_operand.vmem [shape: bf16[2,256,512], index: 1, kind: input, shape index: {}]
  %s2 = inlined_call_operand.vmem [shape: f32[2,1,512], index: 2, kind: input, shape index: {}]
  %s3 = inlined_call_operand.vmem [shape: bf16[2,128,512], index: 3, kind: input, shape index: {}]
  %s4 = inlined_call_operand.vmem [shape: f32[2,16,128], index: 4, kind: output, shape index: {}]
  %s5 = sld [smem:[#allocation0]]
  $region53: #{document_classifier_forward.4} parent=0
    _
  %s7 = ssub.s32 1, %s5
  %s8 = scalar_select 0, %s7, %s5
  loop: start=0, step=1, limit=4
  $region2: #{document_classifier_forward.4} parent=0 // loop_pre_header
    _
  $region3: #{document_classifier_forward.4} parent=0 // loop_header
    %s10 = sphi 0, %s14
    %p11 = scmp.ge.s32.totalorder %s10, 4
    %s17 = sphi 0, %s29
    %s18 = sphi 0, %s25
    %s19 = sphi 0, %s17
    %s20 = sphi 0, %s18
    %s21 = sphi 0, %s19
    %s22 = sphi 0, %s20
    %s40 = sphi 0, %s42
    %s43 = sphi 0, %s40
    %s44 = sphi 0, %s43
    %s60 = sphi 0, %s44
    %s66 = sphi 0, %s68
    %s69 = sphi 0, %s66
    %s70 = sphi 0, %s69
    %s86 = sphi 0, %s70
    %s92 = sphi 0, %s94
    %s95 = sphi 0, %s92
    %s96 = sphi 0, %s95
    %s112 = sphi 0, %s96
    %s118 = sphi 0, %s120
    %s121 = sphi 0, %s118
    %s122 = sphi 0, %s121
    %s138 = sphi 0, %s122
    %s144 = sphi 0, %s146
    %s147 = sphi 0, %s144
    %s148 = sphi 0, %s147
    %s164 = sphi 0, %s148
  $region4: #{document_classifier_forward.4} parent=0 // loop_header_branch
    %13 = sbr.rel (%p11) target = $region8
  $region5: #{document_classifier_forward.4} parent=0 // loop_body
    %s15 = ssub.s32 %s10, 1
    %s16 = ssub.s32 %s10, 2
    %s23 = sadd.s32 1, %s18
    %p24 = scmp.ge.s32.totalorder %s23, 1
    %s25 = scalar_select %p24, 0, %s23
    %s26 = sadd.s32 1, %s17
    %s27 = scalar_select %p24, %s26, %s17
    %p28 = scmp.ge.s32.totalorder %s27, 2
    %s29 = scalar_select %p28, 0, %s27
    %s30 = smul.u32 %s18, 2
    %s31 = ssub.s32 0, %s30
    %s32 = smul.u32 %s17, %s31
    %s33 = sadd.s32 %s18, %s32
    %s34 = smul.u32 %s25, 2
    %s35 = ssub.s32 0, %s34
    %s36 = smul.u32 %s29, %s35
    %s37 = sadd.s32 %s25, %s36
    %s38 = ssub.s32 %s33, %s37
    %p39 = scmp.eq.s32.totalorder %s38, 0
    %s41 = sadd.s32 %s40, 1
    %s42 = scalar_select %p39, %s40, %s41
    %p45 = pneg %p39
    %p46 = scmp.eq.s32.totalorder %s10, 1
    %p47 = por %p45, %p46
    %p48 = scmp.ne.s32.totalorder %s40, %s43
    %p49 = scmp.eq.s32.totalorder %s10, 0
    %p50 = por %p48, %p49
    %p51 = scmp.ne.s32.totalorder %s40, %s43
    %p52 = scmp.eq.s32.totalorder %s15, 1
    %p53 = por %p51, %p52
    %p54 = scmp.ne.s32.totalorder %s43, %s44
    %p55 = scmp.eq.s32.totalorder %s15, 0
    %p56 = por %p54, %p55
    %p57 = scmp.ne.s32.totalorder %s43, %s44
    %p58 = scmp.eq.s32.totalorder %s16, 1
    %p59 = por %p57, %p58
    %p61 = scmp.ne.s32.totalorder %s44, %s60
    %p62 = scmp.eq.s32.totalorder %s16, 0
    %p63 = por %p61, %p62
    %s64 = ssub.s32 %s17, %s29
    %p65 = scmp.eq.s32.totalorder %s64, 0
    %s67 = sadd.s32 %s66, 1
    %s68 = scalar_select %p65, %s66, %s67
    %p71 = pneg %p65
    %p72 = scmp.eq.s32.totalorder %s10, 1
    %p73 = por %p71, %p72
    %p74 = scmp.ne.s32.totalorder %s66, %s69
    %p75 = scmp.eq.s32.totalorder %s10, 0
    %p76 = por %p74, %p75
    %p77 = scmp.ne.s32.totalorder %s66, %s69
    %p78 = scmp.eq.s32.totalorder %s15, 1
    %p79 = por %p77, %p78
    %p80 = scmp.ne.s32.totalorder %s69, %s70
    %p81 = scmp.eq.s32.totalorder %s15, 0
    %p82 = por %p80, %p81
    %p83 = scmp.ne.s32.totalorder %s69, %s70
    %p84 = scmp.eq.s32.totalorder %s16, 1
    %p85 = por %p83, %p84
    %p87 = scmp.ne.s32.totalorder %s70, %s86
    %p88 = scmp.eq.s32.totalorder %s16, 0
    %p89 = por %p87, %p88
    %s90 = ssub.s32 %s17, %s29
    %p91 = scmp.eq.s32.totalorder %s90, 0
    %s93 = sadd.s32 %s92, 1
    %s94 = scalar_select %p91, %s92, %s93
    %p97 = pneg %p91
    %p98 = scmp.eq.s32.totalorder %s10, 1
    %p99 = por %p97, %p98
    %p100 = scmp.ne.s32.totalorder %s92, %s95
    %p101 = scmp.eq.s32.totalorder %s10, 0
    %p102 = por %p100, %p101
    %p103 = scmp.ne.s32.totalorder %s92, %s95
    %p104 = scmp.eq.s32.totalorder %s15, 1
    %p105 = por %p103, %p104
    %p106 = scmp.ne.s32.totalorder %s95, %s96
    %p107 = scmp.eq.s32.totalorder %s15, 0
    %p108 = por %p106, %p107
    %p109 = scmp.ne.s32.totalorder %s95, %s96
    %p110 = scmp.eq.s32.totalorder %s16, 1
    %p111 = por %p109, %p110
    %p113 = scmp.ne.s32.totalorder %s96, %s112
    %p114 = scmp.eq.s32.totalorder %s16, 0
    %p115 = por %p113, %p114
    %s116 = ssub.s32 %s17, %s29
    %p117 = scmp.eq.s32.totalorder %s116, 0
    %s119 = sadd.s32 %s118, 1
    %s120 = scalar_select %p117, %s118, %s119
    %p123 = pneg %p117
    %p124 = scmp.eq.s32.totalorder %s10, 1
    %p125 = por %p123, %p124
    %p126 = scmp.ne.s32.totalorder %s118, %s121
    %p127 = scmp.eq.s32.totalorder %s10, 0
    %p128 = por %p126, %p127
    %p129 = scmp.ne.s32.totalorder %s118, %s121
    %p130 = scmp.eq.s32.totalorder %s15, 1
    %p131 = por %p129, %p130
    %p132 = scmp.ne.s32.totalorder %s121, %s122
    %p133 = scmp.eq.s32.totalorder %s15, 0
    %p134 = por %p132, %p133
    %p135 = scmp.ne.s32.totalorder %s121, %s122
    %p136 = scmp.eq.s32.totalorder %s16, 1
    %p137 = por %p135, %p136
    %p139 = scmp.ne.s32.totalorder %s122, %s138
    %p140 = scmp.eq.s32.totalorder %s16, 0
    %p141 = por %p139, %p140
    %s142 = ssub.s32 %s17, %s29
    %p143 = scmp.eq.s32.totalorder %s142, 0
    %s145 = sadd.s32 %s144, 1
    %s146 = scalar_select %p143, %s144, %s145
    %p149 = pneg %p143
    %p150 = scmp.eq.s32.totalorder %s10, 1
    %p151 = por %p149, %p150
    %p152 = scmp.ne.s32.totalorder %s144, %s147
    %p153 = scmp.eq.s32.totalorder %s10, 0
    %p154 = por %p152, %p153
    %p155 = scmp.ne.s32.totalorder %s144, %s147
    %p156 = scmp.eq.s32.totalorder %s15, 1
    %p157 = por %p155, %p156
    %p158 = scmp.ne.s32.totalorder %s147, %s148
    %p159 = scmp.eq.s32.totalorder %s15, 0
    %p160 = por %p158, %p159
    %p161 = scmp.ne.s32.totalorder %s147, %s148
    %p162 = scmp.eq.s32.totalorder %s16, 1
    %p163 = por %p161, %p162
    %p165 = scmp.ne.s32.totalorder %s148, %s164
    %p166 = scmp.eq.s32.totalorder %s16, 0
    %p167 = por %p165, %p166
    %p168 = scmp.le.s32.totalorder 1, %s10
    %p169 = scmp.lt.s32.totalorder %s10, 3
    %p170 = pnand %p168, %p169
    %p171 = pneg %p170
    // Predicated region
    $region9: #{document_classifier_forward.4} parent=5 // pred_check
      _
    $region10: #{document_classifier_forward.4} parent=5 // pred_check_branch
      %173 = sbr.rel (%p170) target = $region12
    $region11: #{document_classifier_forward.4} parent=5 // pred_region
      %s174 = ssub.s32 %s10, 1
    $region12: #{document_classifier_forward.4} parent=5 // pred_fallthru
      _
    %p175 = scmp.lt.s32.totalorder %s10, 2
    // Predicated region
    $region13: #{document_classifier_forward.4} parent=5 // pred_check
      %p176 = pneg %p175
    $region14: #{document_classifier_forward.4} parent=5 // pred_check_branch
      %178 = sbr.rel (%p176) target = $region16
    $region15: #{document_classifier_forward.4} parent=5 // pred_region
      // Predicated region
      $region17: #{document_classifier_forward.4} parent=15 // pred_check
        %p179 = pneg %p50
      $region18: #{document_classifier_forward.4} parent=15 // pred_check_branch
        %181 = sbr.rel (%p179) target = $region20
      $region19: #{document_classifier_forward.4} parent=15 // pred_region
        %s182 = smul.u32 %s18, 2
        %s183 = ssub.s32 0, %s182
        %s184 = smul.u32 %s17, %s183
        %s185 = sadd.s32 %s18, %s184
        %s186 = smul.u32 8, %s185
        %p187 = scmp.lt.s32.totalorder %s186, 7
        %s188 = scalar_select %p187, %s186, 7
        %s189 = smul.addr %s188, 4
        %s190 = smul.addr %s189, 4
        %s191 = scalar_lea.vmem %s0, %s190
        %s192 = smul.u32 %s18, 2
        %s193 = ssub.s32 0, %s192
        %s194 = smul.u32 %s17, %s193
        %s195 = sadd.s32 %s18, %s194
        %s196 = smul.u32 8, %s195
      $region20: #{document_classifier_forward.4} parent=15 // pred_fallthru
        _
      // Predicated region
      $region21: #{document_classifier_forward.4} parent=15 // pred_check
        %p197 = pneg %p76
      $region22: #{document_classifier_forward.4} parent=15 // pred_check_branch
        %199 = sbr.rel (%p197) target = $region24
      $region23: #{document_classifier_forward.4} parent=15 // pred_region
        %p200 = scmp.lt.s32.totalorder %s17, 1
        %s201 = scalar_select %p200, %s17, 1
        %s202 = smul.addr %s201, 128
        %s203 = smul.addr %s202, 4
        %s204 = scalar_lea.vmem %s1, %s203
      $region24: #{document_classifier_forward.4} parent=15 // pred_fallthru
        _
      // Predicated region
      $region25: #{document_classifier_forward.4} parent=15 // pred_check
        %p205 = pneg %p102
      $region26: #{document_classifier_forward.4} parent=15 // pred_check_branch
        %207 = sbr.rel (%p205) target = $region28
      $region27: #{document_classifier_forward.4} parent=15 // pred_region
        %p208 = scmp.lt.s32.totalorder %s17, 1
        %s209 = scalar_select %p208, %s17, 1
        %s210 = smul.addr %s209, 4
        %s211 = scalar_lea.vmem %s2, %s210
      $region28: #{document_classifier_forward.4} parent=15 // pred_fallthru
        _
      // Predicated region
      $region29: #{document_classifier_forward.4} parent=15 // pred_check
        %p212 = pneg %p128
      $region30: #{document_classifier_forward.4} parent=15 // pred_check_branch
        %214 = sbr.rel (%p212) target = $region32
      $region31: #{document_classifier_forward.4} parent=15 // pred_region
        %p215 = scmp.lt.s32.totalorder %s17, 1
        %s216 = scalar_select %p215, %s17, 1
        %s217 = smul.addr %s216, 64
        %s218 = smul.addr %s217, 4
        %s219 = scalar_lea.vmem %s3, %s218
      $region32: #{document_classifier_forward.4} parent=15 // pred_fallthru
        _
    $region16: #{document_classifier_forward.4} parent=5 // pred_fallthru
      _
    %p220 = scmp.le.s32.totalorder 1, %s10
    %p221 = scmp.lt.s32.totalorder %s10, 3
    %p222 = pnand %p220, %p221
    %p223 = pneg %p222
    // Predicated region
    $region33: #{document_classifier_forward.4} parent=5 // pred_check
      _
    $region34: #{document_classifier_forward.4} parent=5 // pred_check_branch
      %225 = sbr.rel (%p222) target = $region36
    $region35: #{document_classifier_forward.4} parent=5 // pred_region
      %s226 = ssub.s32 %s10, 1
      %s227 = smul.u32 %s20, 2
      %s228 = ssub.s32 0, %s227
      %s229 = smul.u32 %s19, %s228
      %s230 = sadd.s32 %s20, %s229
      %s231 = smul.u32 8, %s230
      %p232 = scmp.lt.s32.totalorder %s231, 7
      %s233 = scalar_select %p232, %s231, 7
      %s234 = smul.addr %s233, 4
      %s235 = smul.addr %s234, 4
      %s236 = scalar_lea.vmem %s0, %s235
      %p237 = pneg %p56
      %p238 = pneg %p53
      %p239 = scmp.lt.s32.totalorder %s19, 1
      %s240 = scalar_select %p239, %s19, 1
      %s241 = smul.addr %s240, 128
      %s242 = smul.addr %s241, 4
      %s243 = scalar_lea.vmem %s1, %s242
      %p244 = pneg %p82
      %p245 = pneg %p79
      %p246 = scmp.lt.s32.totalorder %s19, 1
      %s247 = scalar_select %p246, %s19, 1
      %s248 = smul.addr %s247, 4
      %s249 = scalar_lea.vmem %s2, %s248
      %p250 = pneg %p108
      %p251 = pneg %p105
      %p252 = scmp.lt.s32.totalorder %s19, 1
      %s253 = scalar_select %p252, %s19, 1
      %s254 = smul.addr %s253, 64
      %s255 = smul.addr %s254, 4
      %s256 = scalar_lea.vmem %s3, %s255
      %p257 = pneg %p134
      %p258 = pneg %p131
      %p259 = pneg %p160
      %p260 = pneg %p157
      %p261 = scmp.lt.s32.totalorder %s19, 1
      %s262 = scalar_select %p261, %s19, 1
      %s263 = smul.addr %s262, 2
      %s264 = smul.addr %s263, 8
      %s265 = scalar_lea.vmem %s4, %s264
      %s266 = smul.u32 %s20, 2
      %s267 = ssub.s32 0, %s266
      %s268 = smul.u32 %s19, %s267
      %s269 = sadd.s32 %s20, %s268
      %s270 = smul.u32 8, %s269
      %p271 = scmp.lt.s32.totalorder %s270, 7
      %s272 = scalar_select %p271, %s270, 7
      %s273 = smul.addr %s272, 4
      %s274 = smul.addr %s273, 4
      %s275 = scalar_lea.vmem %s0, %s274
      %s276 = smul.u32 %s20, 2
      %s277 = ssub.s32 0, %s276
      %s278 = smul.u32 %s19, %s277
      %s279 = sadd.s32 %s20, %s278
      %s280 = smul.u32 8, %s279
      %p281 = scmp.lt.s32.totalorder %s19, 1
      %s282 = scalar_select %p281, %s19, 1
      %s283 = smul.addr %s282, 128
      %s284 = smul.addr %s283, 4
      %s285 = scalar_lea.vmem %s1, %s284
      %p286 = scmp.lt.s32.totalorder %s19, 1
      %s287 = scalar_select %p286, %s19, 1
      %s288 = smul.addr %s287, 4
      %s289 = scalar_lea.vmem %s2, %s288
      %p290 = scmp.lt.s32.totalorder %s19, 1
      %s291 = scalar_select %p290, %s19, 1
      %s292 = smul.addr %s291, 64
      %s293 = smul.addr %s292, 4
      %s294 = scalar_lea.vmem %s3, %s293
      %p295 = scmp.lt.s32.totalorder %s19, 1
      %s296 = scalar_select %p295, %s19, 1
      %s297 = smul.addr %s296, 2
      %s298 = smul.addr %s297, 8
      %s299 = scalar_lea.vmem %s4, %s298
      %p301 = scmp.eq.s32.totalorder %s20, 0
      // Predicated region
      $region37: #{document_classifier_forward.4} parent=35 // pred_check
        %p302 = pneg %p301
      $region38: #{document_classifier_forward.4} parent=35 // pred_check_branch
        %304 = sbr.rel (%p302) target = $region40
      $region39: #{document_classifier_forward.4} parent=35 // pred_region
        %305 = vst [vmem:[#allocation3] sm:$0xff] 0.0
        %306 = vst [vmem:[#allocation3 + $0x8] sm:$0xff] 0.0
        %307 = vst [vmem:[#allocation4] sm:$0xff] 0.0
        %308 = vst [vmem:[#allocation4 + $0x8] sm:$0xff] 0.0
        %309 = vst [vmem:[%s299] sm:$0xff] 0.0
        %310 = vst [vmem:[%s299 + $0x8] sm:$0xff] 0.0
      $region40: #{document_classifier_forward.4} parent=35 // pred_fallthru
        _
      %v311 = vld [vmem:[%s275] sm:$0xff]
      %v312 = vld [vmem:[%s275 + $0x8] sm:$0xff]
      %v313 = vld [vmem:[%s275 + $0x10] sm:$0xff]
      %v314 = vld [vmem:[%s275 + $0x18] sm:$0xff]
      %v315 = vld [vmem:[%s275 + $0x20] sm:$0xff]
      %v316 = vld [vmem:[%s275 + $0x28] sm:$0xff]
      %v317 = vld [vmem:[%s275 + $0x30] sm:$0xff]
      %v318 = vld [vmem:[%s275 + $0x38] sm:$0xff]
      %v319 = vld [vmem:[%s275 + $0x40] sm:$0xff]
      %v320 = vld [vmem:[%s275 + $0x48] sm:$0xff]
      %v321 = vld [vmem:[%s275 + $0x50] sm:$0xff]
      %v322 = vld [vmem:[%s275 + $0x58] sm:$0xff]
      %v323 = vld [vmem:[%s275 + $0x60] sm:$0xff]
      %v324 = vld [vmem:[%s275 + $0x68] sm:$0xff]
      %v325 = vld [vmem:[%s275 + $0x70] sm:$0xff]
      %v326 = vld [vmem:[%s275 + $0x78] sm:$0xff]
      %v327 = vld [vmem:[%s285] sm:$0xff]
      %v328 = vld [vmem:[%s285 + $0x8] sm:$0xff]
      %v329 = vld [vmem:[%s285 + $0x10] sm:$0xff]
      %v330 = vld [vmem:[%s285 + $0x18] sm:$0xff]
      %v331 = vld [vmem:[%s285 + $0x20] sm:$0xff]
      %v332 = vld [vmem:[%s285 + $0x28] sm:$0xff]
      %v333 = vld [vmem:[%s285 + $0x30] sm:$0xff]
      %v334 = vld [vmem:[%s285 + $0x38] sm:$0xff]
      %v335 = vld [vmem:[%s285 + $0x40] sm:$0xff]
      %v336 = vld [vmem:[%s285 + $0x48] sm:$0xff]
      %v337 = vld [vmem:[%s285 + $0x50] sm:$0xff]
      %v338 = vld [vmem:[%s285 + $0x58] sm:$0xff]
      %v339 = vld [vmem:[%s285 + $0x60] sm:$0xff]
      %v340 = vld [vmem:[%s285 + $0x68] sm:$0xff]
      %v341 = vld [vmem:[%s285 + $0x70] sm:$0xff]
      %v342 = vld [vmem:[%s285 + $0x78] sm:$0xff]
      %v343 = vld [vmem:[%s285 + $0x80] sm:$0xff]
      %v344 = vld [vmem:[%s285 + $0x88] sm:$0xff]
      %v345 = vld [vmem:[%s285 + $0x90] sm:$0xff]
      %v346 = vld [vmem:[%s285 + $0x98] sm:$0xff]
      %v347 = vld [vmem:[%s285 + $0xa0] sm:$0xff]
      %v348 = vld [vmem:[%s285 + $0xa8] sm:$0xff]
      %v349 = vld [vmem:[%s285 + $0xb0] sm:$0xff]
      %v350 = vld [vmem:[%s285 + $0xb8] sm:$0xff]
      %v351 = vld [vmem:[%s285 + $0xc0] sm:$0xff]
      %v352 = vld [vmem:[%s285 + $0xc8] sm:$0xff]
      %v353 = vld [vmem:[%s285 + $0xd0] sm:$0xff]
      %v354 = vld [vmem:[%s285 + $0xd8] sm:$0xff]
      %v355 = vld [vmem:[%s285 + $0xe0] sm:$0xff]
      %v356 = vld [vmem:[%s285 + $0xe8] sm:$0xff]
      %v357 = vld [vmem:[%s285 + $0xf0] sm:$0xff]
      %v358 = vld [vmem:[%s285 + $0xf8] sm:$0xff]
      %v359 = vld [vmem:[%s285 + $0x100] sm:$0xff]
      %v360 = vld [vmem:[%s285 + $0x108] sm:$0xff]
      %v361 = vld [vmem:[%s285 + $0x110] sm:$0xff]
      %v362 = vld [vmem:[%s285 + $0x118] sm:$0xff]
      %v363 = vld [vmem:[%s285 + $0x120] sm:$0xff]
      %v364 = vld [vmem:[%s285 + $0x128] sm:$0xff]
      %v365 = vld [vmem:[%s285 + $0x130] sm:$0xff]
      %v366 = vld [vmem:[%s285 + $0x138] sm:$0xff]
      %v367 = vld [vmem:[%s285 + $0x140] sm:$0xff]
      %v368 = vld [vmem:[%s285 + $0x148] sm:$0xff]
      %v369 = vld [vmem:[%s285 + $0x150] sm:$0xff]
      %v370 = vld [vmem:[%s285 + $0x158] sm:$0xff]
      %v371 = vld [vmem:[%s285 + $0x160] sm:$0xff]
      %v372 = vld [vmem:[%s285 + $0x168] sm:$0xff]
      %v373 = vld [vmem:[%s285 + $0x170] sm:$0xff]
      %v374 = vld [vmem:[%s285 + $0x178] sm:$0xff]
      %v375 = vld [vmem:[%s285 + $0x180] sm:$0xff]
      %v376 = vld [vmem:[%s285 + $0x188] sm:$0xff]
      %v377 = vld [vmem:[%s285 + $0x190] sm:$0xff]
      %v378 = vld [vmem:[%s285 + $0x198] sm:$0xff]
      %v379 = vld [vmem:[%s285 + $0x1a0] sm:$0xff]
      %v380 = vld [vmem:[%s285 + $0x1a8] sm:$0xff]
      %v381 = vld [vmem:[%s285 + $0x1b0] sm:$0xff]
      %v382 = vld [vmem:[%s285 + $0x1b8] sm:$0xff]
      %v383 = vld [vmem:[%s285 + $0x1c0] sm:$0xff]
      %v384 = vld [vmem:[%s285 + $0x1c8] sm:$0xff]
      %v385 = vld [vmem:[%s285 + $0x1d0] sm:$0xff]
      %v386 = vld [vmem:[%s285 + $0x1d8] sm:$0xff]
      %v387 = vld [vmem:[%s285 + $0x1e0] sm:$0xff]
      %v388 = vld [vmem:[%s285 + $0x1e8] sm:$0xff]
      %v389 = vld [vmem:[%s285 + $0x1f0] sm:$0xff]
      %v390 = vld [vmem:[%s285 + $0x1f8] sm:$0xff]
      %v391 = vld [vmem:[%s289] sm:$0xf]
      %v393 = vlaneseq
      %v394 = vshrl.u32 %v393, 7
      %v395 = vsub.s32 0, %v394
      %v396 = vrot.slane %v391, %v395
      %v397 = vlaneseq
      %v398 = vshrl.u32 %v397, 7
      %v399 = vsub.s32 1, %v398
      %v400 = vrot.slane %v391, %v399
      %v401 = vlaneseq
      %v402 = vshrl.u32 %v401, 7
      %v403 = vsub.s32 2, %v402
      %v404 = vrot.slane %v391, %v403
      %v405 = vlaneseq
      %v406 = vshrl.u32 %v405, 7
      %v407 = vsub.s32 3, %v406
      %v408 = vrot.slane %v391, %v407
      %v429 = vunpack.c.l.b16 %v311
      %v430 = vunpack.c.h.b16 %v311
      %v431 = vunpack.c.l.b16 %v312
      %v432 = vunpack.c.h.b16 %v312
      %v433 = vunpack.c.l.b16 %v313
      %v434 = vunpack.c.h.b16 %v313
      %v435 = vunpack.c.l.b16 %v314
      %v436 = vunpack.c.h.b16 %v314
      %v437 = vunpack.c.l.b16 %v315
      %v438 = vunpack.c.h.b16 %v315
      %v439 = vunpack.c.l.b16 %v316
      %v440 = vunpack.c.h.b16 %v316
      %v441 = vunpack.c.l.b16 %v317
      %v442 = vunpack.c.h.b16 %v317
      %v443 = vunpack.c.l.b16 %v318
      %v444 = vunpack.c.h.b16 %v318
      %v445 = vunpack.c.l.b16 %v319
      %v446 = vunpack.c.h.b16 %v319
      %v447 = vunpack.c.l.b16 %v320
      %v448 = vunpack.c.h.b16 %v320
      %v449 = vunpack.c.l.b16 %v321
      %v450 = vunpack.c.h.b16 %v321
      %v451 = vunpack.c.l.b16 %v322
      %v452 = vunpack.c.h.b16 %v322
      %v453 = vunpack.c.l.b16 %v323
      %v454 = vunpack.c.h.b16 %v323
      %v455 = vunpack.c.l.b16 %v324
      %v456 = vunpack.c.h.b16 %v324
      %v457 = vunpack.c.l.b16 %v325
      %v458 = vunpack.c.h.b16 %v325
      %v459 = vunpack.c.l.b16 %v326
      %v460 = vunpack.c.h.b16 %v326
      %v461 = vpack.c.b16 %v431, %v429
      %v462 = vpack.c.b16 %v432, %v430
      %v463 = vpack.c.b16 %v435, %v433
      %v464 = vpack.c.b16 %v436, %v434
      %v465 = vpack.c.b16 %v439, %v437
      %v466 = vpack.c.b16 %v440, %v438
      %v467 = vpack.c.b16 %v443, %v441
      %v468 = vpack.c.b16 %v444, %v442
      %v469 = vpack.c.b16 %v447, %v445
      %v470 = vpack.c.b16 %v448, %v446
      %v471 = vpack.c.b16 %v451, %v449
      %v472 = vpack.c.b16 %v452, %v450
      %v473 = vpack.c.b16 %v455, %v453
      %v474 = vpack.c.b16 %v456, %v454
      %v475 = vpack.c.b16 %v459, %v457
      %v476 = vpack.c.b16 %v460, %v458
      %v557 = vunpack.c.l.b16 %v327
      %v558 = vunpack.c.h.b16 %v327
      %v559 = vunpack.c.l.b16 %v328
      %v560 = vunpack.c.h.b16 %v328
      %v561 = vunpack.c.l.b16 %v329
      %v562 = vunpack.c.h.b16 %v329
      %v563 = vunpack.c.l.b16 %v330
      %v564 = vunpack.c.h.b16 %v330
      %v565 = vunpack.c.l.b16 %v331
      %v566 = vunpack.c.h.b16 %v331
      %v567 = vunpack.c.l.b16 %v332
      %v568 = vunpack.c.h.b16 %v332
      %v569 = vunpack.c.l.b16 %v333
      %v570 = vunpack.c.h.b16 %v333
      %v571 = vunpack.c.l.b16 %v334
      %v572 = vunpack.c.h.b16 %v334
      %v573 = vunpack.c.l.b16 %v335
      %v574 = vunpack.c.h.b16 %v335
      %v575 = vunpack.c.l.b16 %v336
      %v576 = vunpack.c.h.b16 %v336
      %v577 = vunpack.c.l.b16 %v337
      %v578 = vunpack.c.h.b16 %v337
      %v579 = vunpack.c.l.b16 %v338
      %v580 = vunpack.c.h.b16 %v338
      %v581 = vunpack.c.l.b16 %v339
      %v582 = vunpack.c.h.b16 %v339
      %v583 = vunpack.c.l.b16 %v340
      %v584 = vunpack.c.h.b16 %v340
      %v585 = vunpack.c.l.b16 %v341
      %v586 = vunpack.c.h.b16 %v341
      %v587 = vunpack.c.l.b16 %v342
      %v588 = vunpack.c.h.b16 %v342
      %v589 = vunpack.c.l.b16 %v343
      %v590 = vunpack.c.h.b16 %v343
      %v591 = vunpack.c.l.b16 %v344
      %v592 = vunpack.c.h.b16 %v344
      %v593 = vunpack.c.l.b16 %v345
      %v594 = vunpack.c.h.b16 %v345
      %v595 = vunpack.c.l.b16 %v346
      %v596 = vunpack.c.h.b16 %v346
      %v597 = vunpack.c.l.b16 %v347
      %v598 = vunpack.c.h.b16 %v347
      %v599 = vunpack.c.l.b16 %v348
      %v600 = vunpack.c.h.b16 %v348
      %v601 = vunpack.c.l.b16 %v349
      %v602 = vunpack.c.h.b16 %v349
      %v603 = vunpack.c.l.b16 %v350
      %v604 = vunpack.c.h.b16 %v350
      %v605 = vunpack.c.l.b16 %v351
      %v606 = vunpack.c.h.b16 %v351
      %v607 = vunpack.c.l.b16 %v352
      %v608 = vunpack.c.h.b16 %v352
      %v609 = vunpack.c.l.b16 %v353
      %v610 = vunpack.c.h.b16 %v353
      %v611 = vunpack.c.l.b16 %v354
      %v612 = vunpack.c.h.b16 %v354
      %v613 = vunpack.c.l.b16 %v355
      %v614 = vunpack.c.h.b16 %v355
      %v615 = vunpack.c.l.b16 %v356
      %v616 = vunpack.c.h.b16 %v356
      %v617 = vunpack.c.l.b16 %v357
      %v618 = vunpack.c.h.b16 %v357
      %v619 = vunpack.c.l.b16 %v358
      %v620 = vunpack.c.h.b16 %v358
      %v621 = vunpack.c.l.b16 %v359
      %v622 = vunpack.c.h.b16 %v359
      %v623 = vunpack.c.l.b16 %v360
      %v624 = vunpack.c.h.b16 %v360
      %v625 = vunpack.c.l.b16 %v361
      %v626 = vunpack.c.h.b16 %v361
      %v627 = vunpack.c.l.b16 %v362
      %v628 = vunpack.c.h.b16 %v362
      %v629 = vunpack.c.l.b16 %v363
      %v630 = vunpack.c.h.b16 %v363
      %v631 = vunpack.c.l.b16 %v364
      %v632 = vunpack.c.h.b16 %v364
      %v633 = vunpack.c.l.b16 %v365
      %v634 = vunpack.c.h.b16 %v365
      %v635 = vunpack.c.l.b16 %v366
      %v636 = vunpack.c.h.b16 %v366
      %v637 = vunpack.c.l.b16 %v367
      %v638 = vunpack.c.h.b16 %v367
      %v639 = vunpack.c.l.b16 %v368
      %v640 = vunpack.c.h.b16 %v368
      %v641 = vunpack.c.l.b16 %v369
      %v642 = vunpack.c.h.b16 %v369
      %v643 = vunpack.c.l.b16 %v370
      %v644 = vunpack.c.h.b16 %v370
      %v645 = vunpack.c.l.b16 %v371
      %v646 = vunpack.c.h.b16 %v371
      %v647 = vunpack.c.l.b16 %v372
      %v648 = vunpack.c.h.b16 %v372
      %v649 = vunpack.c.l.b16 %v373
      %v650 = vunpack.c.h.b16 %v373
      %v651 = vunpack.c.l.b16 %v374
      %v652 = vunpack.c.h.b16 %v374
      %v653 = vunpack.c.l.b16 %v375
      %v654 = vunpack.c.h.b16 %v375
      %v655 = vunpack.c.l.b16 %v376
      %v656 = vunpack.c.h.b16 %v376
      %v657 = vunpack.c.l.b16 %v377
      %v658 = vunpack.c.h.b16 %v377
      %v659 = vunpack.c.l.b16 %v378
      %v660 = vunpack.c.h.b16 %v378
      %v661 = vunpack.c.l.b16 %v379
      %v662 = vunpack.c.h.b16 %v379
      %v663 = vunpack.c.l.b16 %v380
      %v664 = vunpack.c.h.b16 %v380
      %v665 = vunpack.c.l.b16 %v381
      %v666 = vunpack.c.h.b16 %v381
      %v667 = vunpack.c.l.b16 %v382
      %v668 = vunpack.c.h.b16 %v382
      %v669 = vunpack.c.l.b16 %v383
      %v670 = vunpack.c.h.b16 %v383
      %v671 = vunpack.c.l.b16 %v384
      %v672 = vunpack.c.h.b16 %v384
      %v673 = vunpack.c.l.b16 %v385
      %v674 = vunpack.c.h.b16 %v385
      %v675 = vunpack.c.l.b16 %v386
      %v676 = vunpack.c.h.b16 %v386
      %v677 = vunpack.c.l.b16 %v387
      %v678 = vunpack.c.h.b16 %v387
      %v679 = vunpack.c.l.b16 %v388
      %v680 = vunpack.c.h.b16 %v388
      %v681 = vunpack.c.l.b16 %v389
      %v682 = vunpack.c.h.b16 %v389
      %v683 = vunpack.c.l.b16 %v390
      %v684 = vunpack.c.h.b16 %v390
      %v685 = vpack.c.b16 %v561, %v557
      %v686 = vpack.c.b16 %v562, %v558
      %v687 = vpack.c.b16 %v563, %v559
      %v688 = vpack.c.b16 %v564, %v560
      %v689 = vpack.c.b16 %v569, %v565
      %v690 = vpack.c.b16 %v570, %v566
      %v691 = vpack.c.b16 %v571, %v567
      %v692 = vpack.c.b16 %v572, %v568
      %v693 = vpack.c.b16 %v577, %v573
      %v694 = vpack.c.b16 %v578, %v574
      %v695 = vpack.c.b16 %v579, %v575
      %v696 = vpack.c.b16 %v580, %v576
      %v697 = vpack.c.b16 %v585, %v581
      %v698 = vpack.c.b16 %v586, %v582
      %v699 = vpack.c.b16 %v587, %v583
      %v700 = vpack.c.b16 %v588, %v584
      %v701 = vpack.c.b16 %v593, %v589
      %v702 = vpack.c.b16 %v594, %v590
      %v703 = vpack.c.b16 %v595, %v591
      %v704 = vpack.c.b16 %v596, %v592
      %v705 = vpack.c.b16 %v601, %v597
      %v706 = vpack.c.b16 %v602, %v598
      %v707 = vpack.c.b16 %v603, %v599
      %v708 = vpack.c.b16 %v604, %v600
      %v709 = vpack.c.b16 %v609, %v605
      %v710 = vpack.c.b16 %v610, %v606
      %v711 = vpack.c.b16 %v611, %v607
      %v712 = vpack.c.b16 %v612, %v608
      %v713 = vpack.c.b16 %v617, %v613
      %v714 = vpack.c.b16 %v618, %v614
      %v715 = vpack.c.b16 %v619, %v615
      %v716 = vpack.c.b16 %v620, %v616
      %v717 = vpack.c.b16 %v625, %v621
      %v718 = vpack.c.b16 %v626, %v622
      %v719 = vpack.c.b16 %v627, %v623
      %v720 = vpack.c.b16 %v628, %v624
      %v721 = vpack.c.b16 %v633, %v629
      %v722 = vpack.c.b16 %v634, %v630
      %v723 = vpack.c.b16 %v635, %v631
      %v724 = vpack.c.b16 %v636, %v632
      %v725 = vpack.c.b16 %v641, %v637
      %v726 = vpack.c.b16 %v642, %v638
      %v727 = vpack.c.b16 %v643, %v639
      %v728 = vpack.c.b16 %v644, %v640
      %v729 = vpack.c.b16 %v649, %v645
      %v730 = vpack.c.b16 %v650, %v646
      %v731 = vpack.c.b16 %v651, %v647
      %v732 = vpack.c.b16 %v652, %v648
      %v733 = vpack.c.b16 %v657, %v653
      %v734 = vpack.c.b16 %v658, %v654
      %v735 = vpack.c.b16 %v659, %v655
      %v736 = vpack.c.b16 %v660, %v656
      %v737 = vpack.c.b16 %v665, %v661
      %v738 = vpack.c.b16 %v666, %v662
      %v739 = vpack.c.b16 %v667, %v663
      %v740 = vpack.c.b16 %v668, %v664
      %v741 = vpack.c.b16 %v673, %v669
      %v742 = vpack.c.b16 %v674, %v670
      %v743 = vpack.c.b16 %v675, %v671
      %v744 = vpack.c.b16 %v676, %v672
      %v745 = vpack.c.b16 %v681, %v677
      %v746 = vpack.c.b16 %v682, %v678
      %v747 = vpack.c.b16 %v683, %v679
      %v748 = vpack.c.b16 %v684, %v680
      %813 = vmatprep.subr.bf16.mxu0 %v714
      %814 = vmatpush1.bf16.msra.mxu0 %v713
      %815 = vmatprep.subr.bf16.mxu0 %v710
      %816 = vmatpush1.bf16.msra.mxu0 %v709
      %817 = vmatprep.subr.bf16.mxu0 %v706
      %818 = vmatpush1.bf16.msra.mxu0 %v705
      %819 = vmatprep.subr.bf16.mxu0 %v702
      %820 = vmatpush1.bf16.msra.mxu0 %v701
      %821 = vmatprep.subr.bf16.mxu0 %v698
      %822 = vmatpush1.bf16.msra.mxu0 %v697
      %823 = vmatprep.subr.bf16.mxu0 %v694
      %824 = vmatpush1.bf16.msra.mxu0 %v693
      %825 = vmatprep.subr.bf16.mxu0 %v690
      %826 = vmatpush1.bf16.msra.mxu0 %v689
      %827 = vmatprep.subr.bf16.mxu0 %v686
      %828 = vmatpush1.bf16.msra.mxu0 %v685
      %829 = vmatprep.subr.bf16.mxu0 %v746
      %830 = vmatpush2.bf16.msra.mxu0 %v745
      %831 = vmatprep.subr.bf16.mxu0 %v742
      %832 = vmatpush2.bf16.msra.mxu0 %v741
      %833 = vmatprep.subr.bf16.mxu0 %v738
      %834 = vmatpush2.bf16.msra.mxu0 %v737
      %835 = vmatprep.subr.bf16.mxu0 %v734
      %836 = vmatpush2.bf16.msra.mxu0 %v733
      %837 = vmatprep.subr.bf16.mxu0 %v730
      %838 = vmatpush2.bf16.msra.mxu0 %v729
      %839 = vmatprep.subr.bf16.mxu0 %v726
      %840 = vmatpush2.bf16.msra.mxu0 %v725
      %841 = vmatprep.subr.bf16.mxu0 %v722
      %842 = vmatpush2.bf16.msra.mxu0 %v721
      %843 = vmatprep.subr.bf16.mxu0 %v718
      %844 = vmatpush2.bf16.msra.mxu0 %v717
      %845 = vmatprep.mubr.bf16.mxu0 %v462
      %846 = vmatmul.mubr.bf16.gmra.mxu0 %v461
      %v847 = vpop.f32.mrf.mxu0
      %v848 = vadd.f32 %v396, %v847
      %v849 = vpop.f32.mrf.mxu0
      %v850 = vadd.f32 %v400, %v849
      %v851 = vpop.f32.mrf.mxu0
      %v852 = vadd.f32 %v396, %v851
      %v853 = vpop.f32.mrf.mxu0
      %v854 = vadd.f32 %v400, %v853
      %855 = vmatprep.mubr.bf16.mxu0 %v464
      %856 = vmatmul.mubr.bf16.gmra.mxu0 %v463
      %v857 = vpop.f32.mrf.mxu0
      %v858 = vadd.f32 %v396, %v857
      %v859 = vpop.f32.mrf.mxu0
      %v860 = vadd.f32 %v400, %v859
      %v861 = vpop.f32.mrf.mxu0
      %v862 = vadd.f32 %v396, %v861
      %v863 = vpop.f32.mrf.mxu0
      %v864 = vadd.f32 %v400, %v863
      %865 = vmatprep.mubr.bf16.mxu0 %v466
      %866 = vmatmul.mubr.bf16.gmra.mxu0 %v465
      %v867 = vpop.f32.mrf.mxu0
      %v868 = vadd.f32 %v396, %v867
      %v869 = vpop.f32.mrf.mxu0
      %v870 = vadd.f32 %v400, %v869
      %v871 = vpop.f32.mrf.mxu0
      %v872 = vadd.f32 %v396, %v871
      %v873 = vpop.f32.mrf.mxu0
      %v874 = vadd.f32 %v400, %v873
      %875 = vmatprep.mubr.bf16.mxu0 %v468
      %876 = vmatmul.mubr.bf16.gmra.mxu0 %v467
      %v877 = vpop.f32.mrf.mxu0
      %v878 = vadd.f32 %v396, %v877
      %v879 = vpop.f32.mrf.mxu0
      %v880 = vadd.f32 %v400, %v879
      %v881 = vpop.f32.mrf.mxu0
      %v882 = vadd.f32 %v396, %v881
      %v883 = vpop.f32.mrf.mxu0
      %v884 = vadd.f32 %v400, %v883
      %885 = vmatprep.mubr.bf16.mxu0 %v470
      %886 = vmatmul.mubr.bf16.gmra.mxu0 %v469
      %v887 = vpop.f32.mrf.mxu0
      %v888 = vadd.f32 %v396, %v887
      %v889 = vpop.f32.mrf.mxu0
      %v890 = vadd.f32 %v400, %v889
      %v891 = vpop.f32.mrf.mxu0
      %v892 = vadd.f32 %v396, %v891
      %v893 = vpop.f32.mrf.mxu0
      %v894 = vadd.f32 %v400, %v893
      %895 = vmatprep.mubr.bf16.mxu0 %v472
      %896 = vmatmul.mubr.bf16.gmra.mxu0 %v471
      %v897 = vpop.f32.mrf.mxu0
      %v898 = vadd.f32 %v396, %v897
      %v899 = vpop.f32.mrf.mxu0
      %v900 = vadd.f32 %v400, %v899
      %v901 = vpop.f32.mrf.mxu0
      %v902 = vadd.f32 %v396, %v901
      %v903 = vpop.f32.mrf.mxu0
      %v904 = vadd.f32 %v400, %v903
      %905 = vmatprep.mubr.bf16.mxu0 %v474
      %906 = vmatmul.mubr.bf16.gmra.mxu0 %v473
      %v907 = vpop.f32.mrf.mxu0
      %v908 = vadd.f32 %v396, %v907
      %v909 = vpop.f32.mrf.mxu0
      %v910 = vadd.f32 %v400, %v909
      %v911 = vpop.f32.mrf.mxu0
      %v912 = vadd.f32 %v396, %v911
      %v913 = vpop.f32.mrf.mxu0
      %v914 = vadd.f32 %v400, %v913
      %915 = vmatprep.mubr.bf16.mxu0 %v476
      %916 = vmatmul.mubr.bf16.gmra.mxu0 %v475
      %v917 = vpop.f32.mrf.mxu0
      %v918 = vadd.f32 %v396, %v917
      %v919 = vpop.f32.mrf.mxu0
      %v920 = vadd.f32 %v400, %v919
      %v921 = vpop.f32.mrf.mxu0
      %v922 = vadd.f32 %v396, %v921
      %v923 = vpop.f32.mrf.mxu0
      %v924 = vadd.f32 %v400, %v923
      %925 = vdwg.mxu0
      %926 = vmatprep.subr.bf16.mxu0 %v716
      %927 = vmatpush1.bf16.msra.mxu0 %v715
      %928 = vmatprep.subr.bf16.mxu0 %v712
      %929 = vmatpush1.bf16.msra.mxu0 %v711
      %930 = vmatprep.subr.bf16.mxu0 %v708
      %931 = vmatpush1.bf16.msra.mxu0 %v707
      %932 = vmatprep.subr.bf16.mxu0 %v704
      %933 = vmatpush1.bf16.msra.mxu0 %v703
      %934 = vmatprep.subr.bf16.mxu0 %v700
      %935 = vmatpush1.bf16.msra.mxu0 %v699
      %936 = vmatprep.subr.bf16.mxu0 %v696
      %937 = vmatpush1.bf16.msra.mxu0 %v695
      %938 = vmatprep.subr.bf16.mxu0 %v692
      %939 = vmatpush1.bf16.msra.mxu0 %v691
      %940 = vmatprep.subr.bf16.mxu0 %v688
      %941 = vmatpush1.bf16.msra.mxu0 %v687
      %942 = vmatprep.subr.bf16.mxu0 %v748
      %943 = vmatpush2.bf16.msra.mxu0 %v747
      %944 = vmatprep.subr.bf16.mxu0 %v744
      %945 = vmatpush2.bf16.msra.mxu0 %v743
      %946 = vmatprep.subr.bf16.mxu0 %v740
      %947 = vmatpush2.bf16.msra.mxu0 %v739
      %948 = vmatprep.subr.bf16.mxu0 %v736
      %949 = vmatpush2.bf16.msra.mxu0 %v735
      %950 = vmatprep.subr.bf16.mxu0 %v732
      %951 = vmatpush2.bf16.msra.mxu0 %v731
      %952 = vmatprep.subr.bf16.mxu0 %v728
      %953 = vmatpush2.bf16.msra.mxu0 %v727
      %954 = vmatprep.subr.bf16.mxu0 %v724
      %955 = vmatpush2.bf16.msra.mxu0 %v723
      %956 = vmatprep.subr.bf16.mxu0 %v720
      %957 = vmatpush2.bf16.msra.mxu0 %v719
      %958 = vmatprep.mubr.bf16.mxu0 %v462
      %959 = vmatmul.mubr.bf16.gmra.mxu0 %v461
      %v960 = vpop.f32.mrf.mxu0
      %v961 = vadd.f32 %v404, %v960
      %v962 = vpop.f32.mrf.mxu0
      %v963 = vadd.f32 %v408, %v962
      %v964 = vpop.f32.mrf.mxu0
      %v965 = vadd.f32 %v404, %v964
      %v966 = vpop.f32.mrf.mxu0
      %v967 = vadd.f32 %v408, %v966
      %968 = vmatprep.mubr.bf16.mxu0 %v464
      %969 = vmatmul.mubr.bf16.gmra.mxu0 %v463
      %v970 = vpop.f32.mrf.mxu0
      %v971 = vadd.f32 %v404, %v970
      %v972 = vpop.f32.mrf.mxu0
      %v973 = vadd.f32 %v408, %v972
      %v974 = vpop.f32.mrf.mxu0
      %v975 = vadd.f32 %v404, %v974
      %v976 = vpop.f32.mrf.mxu0
      %v977 = vadd.f32 %v408, %v976
      %978 = vmatprep.mubr.bf16.mxu0 %v466
      %979 = vmatmul.mubr.bf16.gmra.mxu0 %v465
      %v980 = vpop.f32.mrf.mxu0
      %v981 = vadd.f32 %v404, %v980
      %v982 = vpop.f32.mrf.mxu0
      %v983 = vadd.f32 %v408, %v982
      %v984 = vpop.f32.mrf.mxu0
      %v985 = vadd.f32 %v404, %v984
      %v986 = vpop.f32.mrf.mxu0
      %v987 = vadd.f32 %v408, %v986
      %988 = vmatprep.mubr.bf16.mxu0 %v468
      %989 = vmatmul.mubr.bf16.gmra.mxu0 %v467
      %v990 = vpop.f32.mrf.mxu0
      %v991 = vadd.f32 %v404, %v990
      %v992 = vpop.f32.mrf.mxu0
      %v993 = vadd.f32 %v408, %v992
      %v994 = vpop.f32.mrf.mxu0
      %v995 = vadd.f32 %v404, %v994
      %v996 = vpop.f32.mrf.mxu0
      %v997 = vadd.f32 %v408, %v996
      %998 = vmatprep.mubr.bf16.mxu0 %v470
      %999 = vmatmul.mubr.bf16.gmra.mxu0 %v469
      %v1000 = vpop.f32.mrf.mxu0
      %v1001 = vadd.f32 %v404, %v1000
      %v1002 = vpop.f32.mrf.mxu0
      %v1003 = vadd.f32 %v408, %v1002
      %v1004 = vpop.f32.mrf.mxu0
      %v1005 = vadd.f32 %v404, %v1004
      %v1006 = vpop.f32.mrf.mxu0
      %v1007 = vadd.f32 %v408, %v1006
      %1008 = vmatprep.mubr.bf16.mxu0 %v472
      %1009 = vmatmul.mubr.bf16.gmra.mxu0 %v471
      %v1010 = vpop.f32.mrf.mxu0
      %v1011 = vadd.f32 %v404, %v1010
      %v1012 = vpop.f32.mrf.mxu0
      %v1013 = vadd.f32 %v408, %v1012
      %v1014 = vpop.f32.mrf.mxu0
      %v1015 = vadd.f32 %v404, %v1014
      %v1016 = vpop.f32.mrf.mxu0
      %v1017 = vadd.f32 %v408, %v1016
      %1018 = vmatprep.mubr.bf16.mxu0 %v474
      %1019 = vmatmul.mubr.bf16.gmra.mxu0 %v473
      %v1020 = vpop.f32.mrf.mxu0
      %v1021 = vadd.f32 %v404, %v1020
      %v1022 = vpop.f32.mrf.mxu0
      %v1023 = vadd.f32 %v408, %v1022
      %v1024 = vpop.f32.mrf.mxu0
      %v1025 = vadd.f32 %v404, %v1024
      %v1026 = vpop.f32.mrf.mxu0
      %v1027 = vadd.f32 %v408, %v1026
      %1028 = vmatprep.mubr.bf16.mxu0 %v476
      %1029 = vmatmul.mubr.bf16.gmra.mxu0 %v475
      %v1030 = vpop.f32.mrf.mxu0
      %v1031 = vadd.f32 %v404, %v1030
      %v1032 = vpop.f32.mrf.mxu0
      %v1033 = vadd.f32 %v408, %v1032
      %v1034 = vpop.f32.mrf.mxu0
      %v1035 = vadd.f32 %v404, %v1034
      %v1036 = vpop.f32.mrf.mxu0
      %v1037 = vadd.f32 %v408, %v1036
      %1038 = vdwg.mxu0
      %1039 = vst [vmem:[#allocation2] sm:$0xff] %v848
      %1040 = vst [vmem:[#allocation2 + $0x8] sm:$0xff] %v850
      %1041 = vst [vmem:[#allocation2 + $0x10] sm:$0xff] %v961
      %1042 = vst [vmem:[#allocation2 + $0x18] sm:$0xff] %v963
      %1043 = vst [vmem:[#allocation2 + $0x20] sm:$0xff] %v852
      %1044 = vst [vmem:[#allocation2 + $0x28] sm:$0xff] %v854
      %1045 = vst [vmem:[#allocation2 + $0x30] sm:$0xff] %v965
      %1046 = vst [vmem:[#allocation2 + $0x38] sm:$0xff] %v967
      %1047 = vst [vmem:[#allocation2 + $0x40] sm:$0xff] %v858
      %1048 = vst [vmem:[#allocation2 + $0x48] sm:$0xff] %v860
      %1049 = vst [vmem:[#allocation2 + $0x50] sm:$0xff] %v971
      %1050 = vst [vmem:[#allocation2 + $0x58] sm:$0xff] %v973
      %1051 = vst [vmem:[#allocation2 + $0x60] sm:$0xff] %v862
      %1052 = vst [vmem:[#allocation2 + $0x68] sm:$0xff] %v864
      %1053 = vst [vmem:[#allocation2 + $0x70] sm:$0xff] %v975
      %1054 = vst [vmem:[#allocation2 + $0x78] sm:$0xff] %v977
      %1055 = vst [vmem:[#allocation2 + $0x80] sm:$0xff] %v868
      %1056 = vst [vmem:[#allocation2 + $0x88] sm:$0xff] %v870
      %1057 = vst [vmem:[#allocation2 + $0x90] sm:$0xff] %v981
      %1058 = vst [vmem:[#allocation2 + $0x98] sm:$0xff] %v983
      %1059 = vst [vmem:[#allocation2 + $0xa0] sm:$0xff] %v872
      %1060 = vst [vmem:[#allocation2 + $0xa8] sm:$0xff] %v874
      %1061 = vst [vmem:[#allocation2 + $0xb0] sm:$0xff] %v985
      %1062 = vst [vmem:[#allocation2 + $0xb8] sm:$0xff] %v987
      %1063 = vst [vmem:[#allocation2 + $0xc0] sm:$0xff] %v878
      %1064 = vst [vmem:[#allocation2 + $0xc8] sm:$0xff] %v880
      %1065 = vst [vmem:[#allocation2 + $0xd0] sm:$0xff] %v991
      %1066 = vst [vmem:[#allocation2 + $0xd8] sm:$0xff] %v993
      %1067 = vst [vmem:[#allocation2 + $0xe0] sm:$0xff] %v882
      %1068 = vst [vmem:[#allocation2 + $0xe8] sm:$0xff] %v884
      %1069 = vst [vmem:[#allocation2 + $0xf0] sm:$0xff] %v995
      %1070 = vst [vmem:[#allocation2 + $0xf8] sm:$0xff] %v997
      %1071 = vst [vmem:[#allocation2 + $0x100] sm:$0xff] %v888
      %1072 = vst [vmem:[#allocation2 + $0x108] sm:$0xff] %v890
      %1073 = vst [vmem:[#allocation2 + $0x110] sm:$0xff] %v1001
      %1074 = vst [vmem:[#allocation2 + $0x118] sm:$0xff] %v1003
      %1075 = vst [vmem:[#allocation2 + $0x120] sm:$0xff] %v892
      %1076 = vst [vmem:[#allocation2 + $0x128] sm:$0xff] %v894
      %1077 = vst [vmem:[#allocation2 + $0x130] sm:$0xff] %v1005
      %1078 = vst [vmem:[#allocation2 + $0x138] sm:$0xff] %v1007
      %1079 = vst [vmem:[#allocation2 + $0x140] sm:$0xff] %v898
      %1080 = vst [vmem:[#allocation2 + $0x148] sm:$0xff] %v900
      %1081 = vst [vmem:[#allocation2 + $0x150] sm:$0xff] %v1011
      %1082 = vst [vmem:[#allocation2 + $0x158] sm:$0xff] %v1013
      %1083 = vst [vmem:[#allocation2 + $0x160] sm:$0xff] %v902
      %1084 = vst [vmem:[#allocation2 + $0x168] sm:$0xff] %v904
      %1085 = vst [vmem:[#allocation2 + $0x170] sm:$0xff] %v1015
      %1086 = vst [vmem:[#allocation2 + $0x178] sm:$0xff] %v1017
      %1087 = vst [vmem:[#allocation2 + $0x180] sm:$0xff] %v908
      %1088 = vst [vmem:[#allocation2 + $0x188] sm:$0xff] %v910
      %1089 = vst [vmem:[#allocation2 + $0x190] sm:$0xff] %v1021
      %1090 = vst [vmem:[#allocation2 + $0x198] sm:$0xff] %v1023
      %1091 = vst [vmem:[#allocation2 + $0x1a0] sm:$0xff] %v912
      %1092 = vst [vmem:[#allocation2 + $0x1a8] sm:$0xff] %v914
      %1093 = vst [vmem:[#allocation2 + $0x1b0] sm:$0xff] %v1025
      %1094 = vst [vmem:[#allocation2 + $0x1b8] sm:$0xff] %v1027
      %1095 = vst [vmem:[#allocation2 + $0x1c0] sm:$0xff] %v918
      %1096 = vst [vmem:[#allocation2 + $0x1c8] sm:$0xff] %v920
      %1097 = vst [vmem:[#allocation2 + $0x1d0] sm:$0xff] %v1031
      %1098 = vst [vmem:[#allocation2 + $0x1d8] sm:$0xff] %v1033
      %1099 = vst [vmem:[#allocation2 + $0x1e0] sm:$0xff] %v922
      %1100 = vst [vmem:[#allocation2 + $0x1e8] sm:$0xff] %v924
      %1101 = vst [vmem:[#allocation2 + $0x1f0] sm:$0xff] %v1035
      %1102 = vst [vmem:[#allocation2 + $0x1f8] sm:$0xff] %v1037
      %v1103 = vld [vmem:[#allocation3] sm:$0xff]
      %v1104 = vld [vmem:[#allocation3 + $0x8] sm:$0xff]
      %v1105 = vld [vmem:[#allocation4] sm:$0xff]
      %v1106 = vld [vmem:[#allocation4 + $0x8] sm:$0xff]
      %s1107 = smul.u32 %s19, 7
      %s1108 = smul.u32 %s1107, 8
      %s1109 = smul.addr %s1108, 8
      %s1110 = scalar_lea.vmem [#allocation2], %s1109
      %v1111 = vld [vmem:[%s1110] sm:$0xff]
      %v1112 = vld [vmem:[%s1110 + $0x8] sm:$0xff]
      %v1113 = vld [vmem:[%s1110 + $0x10] sm:$0xff]
      %v1114 = vld [vmem:[%s1110 + $0x18] sm:$0xff]
      %v1115 = vld [vmem:[%s1110 + $0x20] sm:$0xff]
      %v1116 = vld [vmem:[%s1110 + $0x28] sm:$0xff]
      %v1117 = vld [vmem:[%s1110 + $0x30] sm:$0xff]
      %v1118 = vld [vmem:[%s1110 + $0x38] sm:$0xff]
      %v1119 = vpack.c.bf16 %v1104, %v1103
      %v1120 = vld [vmem:[%s294] sm:$0xff]
      %v1121 = vld [vmem:[%s294 + $0x8] sm:$0xff]
      %v1122 = vld [vmem:[%s294 + $0x10] sm:$0xff]
      %v1123 = vld [vmem:[%s294 + $0x18] sm:$0xff]
      %v1124 = vld [vmem:[%s294 + $0x20] sm:$0xff]
      %v1125 = vld [vmem:[%s294 + $0x28] sm:$0xff]
      %v1126 = vld [vmem:[%s294 + $0x30] sm:$0xff]
      %v1127 = vld [vmem:[%s294 + $0x38] sm:$0xff]
      %v1128 = vld [vmem:[%s294 + $0x40] sm:$0xff]
      %v1129 = vld [vmem:[%s294 + $0x48] sm:$0xff]
      %v1130 = vld [vmem:[%s294 + $0x50] sm:$0xff]
      %v1131 = vld [vmem:[%s294 + $0x58] sm:$0xff]
      %v1132 = vld [vmem:[%s294 + $0x60] sm:$0xff]
      %v1133 = vld [vmem:[%s294 + $0x68] sm:$0xff]
      %v1134 = vld [vmem:[%s294 + $0x70] sm:$0xff]
      %v1135 = vld [vmem:[%s294 + $0x78] sm:$0xff]
      %v1136 = vld [vmem:[%s294 + $0x80] sm:$0xff]
      %v1137 = vld [vmem:[%s294 + $0x88] sm:$0xff]
      %v1138 = vld [vmem:[%s294 + $0x90] sm:$0xff]
      %v1139 = vld [vmem:[%s294 + $0x98] sm:$0xff]
      %v1140 = vld [vmem:[%s294 + $0xa0] sm:$0xff]
      %v1141 = vld [vmem:[%s294 + $0xa8] sm:$0xff]
      %v1142 = vld [vmem:[%s294 + $0xb0] sm:$0xff]
      %v1143 = vld [vmem:[%s294 + $0xb8] sm:$0xff]
      %v1144 = vld [vmem:[%s294 + $0xc0] sm:$0xff]
      %v1145 = vld [vmem:[%s294 + $0xc8] sm:$0xff]
      %v1146 = vld [vmem:[%s294 + $0xd0] sm:$0xff]
      %v1147 = vld [vmem:[%s294 + $0xd8] sm:$0xff]
      %v1148 = vld [vmem:[%s294 + $0xe0] sm:$0xff]
      %v1149 = vld [vmem:[%s294 + $0xe8] sm:$0xff]
      %v1150 = vld [vmem:[%s294 + $0xf0] sm:$0xff]
      %v1151 = vld [vmem:[%s294 + $0xf8] sm:$0xff]
      %v1184 = vunpack.c.l.b16 %v1120
      %v1185 = vunpack.c.h.b16 %v1120
      %v1186 = vunpack.c.l.b16 %v1121
      %v1187 = vunpack.c.h.b16 %v1121
      %v1188 = vunpack.c.l.b16 %v1122
      %v1189 = vunpack.c.h.b16 %v1122
      %v1190 = vunpack.c.l.b16 %v1123
      %v1191 = vunpack.c.h.b16 %v1123
      %v1192 = vunpack.c.l.b16 %v1124
      %v1193 = vunpack.c.h.b16 %v1124
      %v1194 = vunpack.c.l.b16 %v1125
      %v1195 = vunpack.c.h.b16 %v1125
      %v1196 = vunpack.c.l.b16 %v1126
      %v1197 = vunpack.c.h.b16 %v1126
      %v1198 = vunpack.c.l.b16 %v1127
      %v1199 = vunpack.c.h.b16 %v1127
      %v1200 = vunpack.c.l.b16 %v1128
      %v1201 = vunpack.c.h.b16 %v1128
      %v1202 = vunpack.c.l.b16 %v1129
      %v1203 = vunpack.c.h.b16 %v1129
      %v1204 = vunpack.c.l.b16 %v1130
      %v1205 = vunpack.c.h.b16 %v1130
      %v1206 = vunpack.c.l.b16 %v1131
      %v1207 = vunpack.c.h.b16 %v1131
      %v1208 = vunpack.c.l.b16 %v1132
      %v1209 = vunpack.c.h.b16 %v1132
      %v1210 = vunpack.c.l.b16 %v1133
      %v1211 = vunpack.c.h.b16 %v1133
      %v1212 = vunpack.c.l.b16 %v1134
      %v1213 = vunpack.c.h.b16 %v1134
      %v1214 = vunpack.c.l.b16 %v1135
      %v1215 = vunpack.c.h.b16 %v1135
      %v1216 = vunpack.c.l.b16 %v1136
      %v1217 = vunpack.c.h.b16 %v1136
      %v1218 = vunpack.c.l.b16 %v1137
      %v1219 = vunpack.c.h.b16 %v1137
      %v1220 = vunpack.c.l.b16 %v1138
      %v1221 = vunpack.c.h.b16 %v1138
      %v1222 = vunpack.c.l.b16 %v1139
      %v1223 = vunpack.c.h.b16 %v1139
      %v1224 = vunpack.c.l.b16 %v1140
      %v1225 = vunpack.c.h.b16 %v1140
      %v1226 = vunpack.c.l.b16 %v1141
      %v1227 = vunpack.c.h.b16 %v1141
      %v1228 = vunpack.c.l.b16 %v1142
      %v1229 = vunpack.c.h.b16 %v1142
      %v1230 = vunpack.c.l.b16 %v1143
      %v1231 = vunpack.c.h.b16 %v1143
      %v1232 = vunpack.c.l.b16 %v1144
      %v1233 = vunpack.c.h.b16 %v1144
      %v1234 = vunpack.c.l.b16 %v1145
      %v1235 = vunpack.c.h.b16 %v1145
      %v1236 = vunpack.c.l.b16 %v1146
      %v1237 = vunpack.c.h.b16 %v1146
      %v1238 = vunpack.c.l.b16 %v1147
      %v1239 = vunpack.c.h.b16 %v1147
      %v1240 = vunpack.c.l.b16 %v1148
      %v1241 = vunpack.c.h.b16 %v1148
      %v1242 = vunpack.c.l.b16 %v1149
      %v1243 = vunpack.c.h.b16 %v1149
      %v1244 = vunpack.c.l.b16 %v1150
      %v1245 = vunpack.c.h.b16 %v1150
      %v1246 = vunpack.c.l.b16 %v1151
      %v1247 = vunpack.c.h.b16 %v1151
      %v1248 = vpack.c.b16 %v1188, %v1184
      %v1249 = vpack.c.b16 %v1189, %v1185
      %v1250 = vpack.c.b16 %v1190, %v1186
      %v1251 = vpack.c.b16 %v1191, %v1187
      %v1252 = vpack.c.b16 %v1196, %v1192
      %v1253 = vpack.c.b16 %v1197, %v1193
      %v1254 = vpack.c.b16 %v1198, %v1194
      %v1255 = vpack.c.b16 %v1199, %v1195
      %v1256 = vpack.c.b16 %v1204, %v1200
      %v1257 = vpack.c.b16 %v1205, %v1201
      %v1258 = vpack.c.b16 %v1206, %v1202
      %v1259 = vpack.c.b16 %v1207, %v1203
      %v1260 = vpack.c.b16 %v1212, %v1208
      %v1261 = vpack.c.b16 %v1213, %v1209
      %v1262 = vpack.c.b16 %v1214, %v1210
      %v1263 = vpack.c.b16 %v1215, %v1211
      %v1264 = vpack.c.b16 %v1220, %v1216
      %v1265 = vpack.c.b16 %v1221, %v1217
      %v1266 = vpack.c.b16 %v1222, %v1218
      %v1267 = vpack.c.b16 %v1223, %v1219
      %v1268 = vpack.c.b16 %v1228, %v1224
      %v1269 = vpack.c.b16 %v1229, %v1225
      %v1270 = vpack.c.b16 %v1230, %v1226
      %v1271 = vpack.c.b16 %v1231, %v1227
      %v1272 = vpack.c.b16 %v1236, %v1232
      %v1273 = vpack.c.b16 %v1237, %v1233
      %v1274 = vpack.c.b16 %v1238, %v1234
      %v1275 = vpack.c.b16 %v1239, %v1235
      %v1276 = vpack.c.b16 %v1244, %v1240
      %v1277 = vpack.c.b16 %v1245, %v1241
      %v1278 = vpack.c.b16 %v1246, %v1242
      %v1279 = vpack.c.b16 %v1247, %v1243
      %1312 = vmatprep.subr.bf16.mxu0 %v1277
      %1313 = vmatpush1.bf16.msra.mxu0 %v1276
      %1314 = vmatprep.subr.bf16.mxu0 %v1273
      %1315 = vmatpush1.bf16.msra.mxu0 %v1272
      %1316 = vmatprep.subr.bf16.mxu0 %v1269
      %1317 = vmatpush1.bf16.msra.mxu0 %v1268
      %1318 = vmatprep.subr.bf16.mxu0 %v1265
      %1319 = vmatpush1.bf16.msra.mxu0 %v1264
      %1320 = vmatprep.subr.bf16.mxu0 %v1261
      %1321 = vmatpush1.bf16.msra.mxu0 %v1260
      %1322 = vmatprep.subr.bf16.mxu0 %v1257
      %1323 = vmatpush1.bf16.msra.mxu0 %v1256
      %1324 = vmatprep.subr.bf16.mxu0 %v1253
      %1325 = vmatpush1.bf16.msra.mxu0 %v1252
      %1326 = vmatprep.subr.bf16.mxu0 %v1249
      %1327 = vmatpush1.bf16.msra.mxu0 %v1248
      %1328 = vmatprep.subr.bf16.mxu0 0
      %1329 = vmatpush2.bf16.msra.mxu0 0
      %1330 = vmatprep.subr.bf16.mxu0 0
      %1331 = vmatpush2.bf16.msra.mxu0 0
      %1332 = vmatprep.subr.bf16.mxu0 0
      %1333 = vmatpush2.bf16.msra.mxu0 0
      %1334 = vmatprep.subr.bf16.mxu0 0
      %1335 = vmatpush2.bf16.msra.mxu0 0
      %1336 = vmatprep.subr.bf16.mxu0 0
      %1337 = vmatpush2.bf16.msra.mxu0 0
      %1338 = vmatprep.subr.bf16.mxu0 0
      %1339 = vmatpush2.bf16.msra.mxu0 0
      %1340 = vmatprep.subr.bf16.mxu0 0
      %1341 = vmatpush2.bf16.msra.mxu0 0
      %1342 = vmatprep.subr.bf16.mxu0 0
      %1343 = vmatpush2.bf16.msra.mxu0 0
      %1344 = vmatprep.mubr.bf16.mxu0 0
      %1345 = vmatmul.mubr.bf16.gmra.mxu0 %v1119
      %v1346 = vpop.f32.mrf.mxu0
      %v1347 = vadd.f32 0.0, %v1346
      %v1348 = vpop.f32.mrf.mxu0
      %v1349 = vadd.f32 0.0, %v1348
      %v1350 = vpop.f32.mrf.mxu0
      %v1351 = vadd.f32 0.0, %v1350
      %v1352 = vpop.f32.mrf.mxu0
      %v1353 = vadd.f32 0.0, %v1352
      %1354 = vdwg.mxu0
      %1355 = vmatprep.subr.bf16.mxu0 %v1279
      %1356 = vmatpush1.bf16.msra.mxu0 %v1278
      %1357 = vmatprep.subr.bf16.mxu0 %v1275
      %1358 = vmatpush1.bf16.msra.mxu0 %v1274
      %1359 = vmatprep.subr.bf16.mxu0 %v1271
      %1360 = vmatpush1.bf16.msra.mxu0 %v1270
      %1361 = vmatprep.subr.bf16.mxu0 %v1267
      %1362 = vmatpush1.bf16.msra.mxu0 %v1266
      %1363 = vmatprep.subr.bf16.mxu0 %v1263
      %1364 = vmatpush1.bf16.msra.mxu0 %v1262
      %1365 = vmatprep.subr.bf16.mxu0 %v1259
      %1366 = vmatpush1.bf16.msra.mxu0 %v1258
      %1367 = vmatprep.subr.bf16.mxu0 %v1255
      %1368 = vmatpush1.bf16.msra.mxu0 %v1254
      %1369 = vmatprep.subr.bf16.mxu0 %v1251
      %1370 = vmatpush1.bf16.msra.mxu0 %v1250
      %1371 = vmatprep.subr.bf16.mxu0 0
      %1372 = vmatpush2.bf16.msra.mxu0 0
      %1373 = vmatprep.subr.bf16.mxu0 0
      %1374 = vmatpush2.bf16.msra.mxu0 0
      %1375 = vmatprep.subr.bf16.mxu0 0
      %1376 = vmatpush2.bf16.msra.mxu0 0
      %1377 = vmatprep.subr.bf16.mxu0 0
      %1378 = vmatpush2.bf16.msra.mxu0 0
      %1379 = vmatprep.subr.bf16.mxu0 0
      %1380 = vmatpush2.bf16.msra.mxu0 0
      %1381 = vmatprep.subr.bf16.mxu0 0
      %1382 = vmatpush2.bf16.msra.mxu0 0
      %1383 = vmatprep.subr.bf16.mxu0 0
      %1384 = vmatpush2.bf16.msra.mxu0 0
      %1385 = vmatprep.subr.bf16.mxu0 0
      %1386 = vmatpush2.bf16.msra.mxu0 0
      %1387 = vmatprep.mubr.bf16.mxu0 0
      %1388 = vmatmul.mubr.bf16.gmra.mxu0 %v1119
      %v1389 = vpop.f32.mrf.mxu0
      %v1390 = vadd.f32 0.0, %v1389
      %v1391 = vpop.f32.mrf.mxu0
      %v1392 = vadd.f32 0.0, %v1391
      %v1393 = vpop.f32.mrf.mxu0
      %v1394 = vadd.f32 0.0, %v1393
      %v1395 = vpop.f32.mrf.mxu0
      %v1396 = vadd.f32 0.0, %v1395
      %1397 = vdwg.mxu0
      %v1398 = vadd.f32 %v1111, %v1347
      %v1399 = vadd.f32 %v1112, %v1349
      %v1400 = vadd.f32 %v1113, %v1390
      %v1401 = vadd.f32 %v1114, %v1392
      %v1402 = vadd.f32 %v1115, %v1351
      %v1403 = vadd.f32 %v1116, %v1353
      %v1404 = vadd.f32 %v1117, %v1394
      %v1405 = vadd.f32 %v1118, %v1396
      %v1406 = vxor.u32 %v1398, 2147483648
      %v1407 = vxor.u32 %v1402, 2147483648
      %v1408 = vmul.f32 %v1406, 1.442695
      %v1409 = vpow.pop %v1408
      %v1410 = vmul.f32 %v1407, 1.442695
      %v1411 = vpow.pop %v1410
      %v1412 = vadd.f32 %v1409, 1.0
      %v1413 = vadd.f32 %v1411, 1.0
      %v1414 = vrcp.pop %v1412
      %v1415 = vmul.f32 1.0, %v1414
      %v1416 = vrcp.pop %v1413
      %v1417 = vmul.f32 1.0, %v1416
      %v1418 = vxor.u32 %v1399, 2147483648
      %v1419 = vxor.u32 %v1403, 2147483648
      %v1420 = vmul.f32 %v1418, 1.442695
      %v1421 = vpow.pop %v1420
      %v1422 = vmul.f32 %v1419, 1.442695
      %v1423 = vpow.pop %v1422
      %v1424 = vadd.f32 %v1421, 1.0
      %v1425 = vadd.f32 %v1423, 1.0
      %v1426 = vrcp.pop %v1424
      %v1427 = vmul.f32 1.0, %v1426
      %v1428 = vrcp.pop %v1425
      %v1429 = vmul.f32 1.0, %v1428
      %v1430 = vtanh.pop %v1400
      %v1431 = vtanh.pop %v1404
      %v1432 = vxor.u32 %v1401, 2147483648
      %v1433 = vxor.u32 %v1405, 2147483648
      %v1434 = vmul.f32 %v1432, 1.442695
      %v1435 = vpow.pop %v1434
      %v1436 = vmul.f32 %v1433, 1.442695
      %v1437 = vpow.pop %v1436
      %v1438 = vadd.f32 %v1435, 1.0
      %v1439 = vadd.f32 %v1437, 1.0
      %v1440 = vrcp.pop %v1438
      %v1441 = vmul.f32 1.0, %v1440
      %v1442 = vrcp.pop %v1439
      %v1443 = vmul.f32 1.0, %v1442
      %v1444 = vmul.f32 %v1427, %v1105
      %v1445 = vmul.f32 %v1429, %v1106
      %v1446 = vmul.f32 %v1415, %v1430
      %v1447 = vmul.f32 %v1417, %v1431
      %v1448 = vadd.f32 %v1444, %v1446
      %v1449 = vadd.f32 %v1445, %v1447
      %v1450 = vtanh.pop %v1448
      %v1451 = vtanh.pop %v1449
      %v1452 = vmul.f32 %v1441, %v1450
      %v1453 = vmul.f32 %v1443, %v1451
      %v1454 = vadd.f32 %v1452, 0.0
      %v1455 = vadd.f32 %v1453, 0.0
      %s1456 = smul.u32 %s19, 5
      %s1457 = sadd.s32 %s1456, 1
      %s1458 = smul.u32 %s1457, 8
      %s1459 = smul.addr %s1458, 8
      %s1460 = scalar_lea.vmem [#allocation2], %s1459
      %v1461 = vld [vmem:[%s1460] sm:$0xff]
      %v1462 = vld [vmem:[%s1460 + $0x8] sm:$0xff]
      %v1463 = vld [vmem:[%s1460 + $0x10] sm:$0xff]
      %v1464 = vld [vmem:[%s1460 + $0x18] sm:$0xff]
      %v1465 = vld [vmem:[%s1460 + $0x20] sm:$0xff]
      %v1466 = vld [vmem:[%s1460 + $0x28] sm:$0xff]
      %v1467 = vld [vmem:[%s1460 + $0x30] sm:$0xff]
      %v1468 = vld [vmem:[%s1460 + $0x38] sm:$0xff]
      %v1469 = vpack.c.bf16 %v1453, %v1452
      %1470 = vmatprep.subr.bf16.mxu0 %v1277
      %1471 = vmatpush1.bf16.msra.mxu0 %v1276
      %1472 = vmatprep.subr.bf16.mxu0 %v1273
      %1473 = vmatpush1.bf16.msra.mxu0 %v1272
      %1474 = vmatprep.subr.bf16.mxu0 %v1269
      %1475 = vmatpush1.bf16.msra.mxu0 %v1268
      %1476 = vmatprep.subr.bf16.mxu0 %v1265
      %1477 = vmatpush1.bf16.msra.mxu0 %v1264
      %1478 = vmatprep.subr.bf16.mxu0 %v1261
      %1479 = vmatpush1.bf16.msra.mxu0 %v1260
      %1480 = vmatprep.subr.bf16.mxu0 %v1257
      %1481 = vmatpush1.bf16.msra.mxu0 %v1256
      %1482 = vmatprep.subr.bf16.mxu0 %v1253
      %1483 = vmatpush1.bf16.msra.mxu0 %v1252
      %1484 = vmatprep.subr.bf16.mxu0 %v1249
      %1485 = vmatpush1.bf16.msra.mxu0 %v1248
      %1486 = vmatprep.subr.bf16.mxu0 0
      %1487 = vmatpush2.bf16.msra.mxu0 0
      %1488 = vmatprep.subr.bf16.mxu0 0
      %1489 = vmatpush2.bf16.msra.mxu0 0
      %1490 = vmatprep.subr.bf16.mxu0 0
      %1491 = vmatpush2.bf16.msra.mxu0 0
      %1492 = vmatprep.subr.bf16.mxu0 0
      %1493 = vmatpush2.bf16.msra.mxu0 0
      %1494 = vmatprep.subr.bf16.mxu0 0
      %1495 = vmatpush2.bf16.msra.mxu0 0
      %1496 = vmatprep.subr.bf16.mxu0 0
      %1497 = vmatpush2.bf16.msra.mxu0 0
      %1498 = vmatprep.subr.bf16.mxu0 0
      %1499 = vmatpush2.bf16.msra.mxu0 0
      %1500 = vmatprep.subr.bf16.mxu0 0
      %1501 = vmatpush2.bf16.msra.mxu0 0
      %1502 = vmatprep.mubr.bf16.mxu0 0
      %1503 = vmatmul.mubr.bf16.gmra.mxu0 %v1469
      %v1504 = vpop.f32.mrf.mxu0
      %v1505 = vadd.f32 0.0, %v1504
      %v1506 = vpop.f32.mrf.mxu0
      %v1507 = vadd.f32 0.0, %v1506
      %v1508 = vpop.f32.mrf.mxu0
      %v1509 = vadd.f32 0.0, %v1508
      %v1510 = vpop.f32.mrf.mxu0
      %v1511 = vadd.f32 0.0, %v1510
      %1512 = vdwg.mxu0
      %1513 = vmatprep.subr.bf16.mxu0 %v1279
      %1514 = vmatpush1.bf16.msra.mxu0 %v1278
      %1515 = vmatprep.subr.bf16.mxu0 %v1275
      %1516 = vmatpush1.bf16.msra.mxu0 %v1274
      %1517 = vmatprep.subr.bf16.mxu0 %v1271
      %1518 = vmatpush1.bf16.msra.mxu0 %v1270
      %1519 = vmatprep.subr.bf16.mxu0 %v1267
      %1520 = vmatpush1.bf16.msra.mxu0 %v1266
      %1521 = vmatprep.subr.bf16.mxu0 %v1263
      %1522 = vmatpush1.bf16.msra.mxu0 %v1262
      %1523 = vmatprep.subr.bf16.mxu0 %v1259
      %1524 = vmatpush1.bf16.msra.mxu0 %v1258
      %1525 = vmatprep.subr.bf16.mxu0 %v1255
      %1526 = vmatpush1.bf16.msra.mxu0 %v1254
      %1527 = vmatprep.subr.bf16.mxu0 %v1251
      %1528 = vmatpush1.bf16.msra.mxu0 %v1250
      %1529 = vmatprep.subr.bf16.mxu0 0
      %1530 = vmatpush2.bf16.msra.mxu0 0
      %1531 = vmatprep.subr.bf16.mxu0 0
      %1532 = vmatpush2.bf16.msra.mxu0 0
      %1533 = vmatprep.subr.bf16.mxu0 0
      %1534 = vmatpush2.bf16.msra.mxu0 0
      %1535 = vmatprep.subr.bf16.mxu0 0
      %1536 = vmatpush2.bf16.msra.mxu0 0
      %1537 = vmatprep.subr.bf16.mxu0 0
      %1538 = vmatpush2.bf16.msra.mxu0 0
      %1539 = vmatprep.subr.bf16.mxu0 0
      %1540 = vmatpush2.bf16.msra.mxu0 0
      %1541 = vmatprep.subr.bf16.mxu0 0
      %1542 = vmatpush2.bf16.msra.mxu0 0
      %1543 = vmatprep.subr.bf16.mxu0 0
      %1544 = vmatpush2.bf16.msra.mxu0 0
      %1545 = vmatprep.mubr.bf16.mxu0 0
      %1546 = vmatmul.mubr.bf16.gmra.mxu0 %v1469
      %v1547 = vpop.f32.mrf.mxu0
      %v1548 = vadd.f32 0.0, %v1547
      %v1549 = vpop.f32.mrf.mxu0
      %v1550 = vadd.f32 0.0, %v1549
      %v1551 = vpop.f32.mrf.mxu0
      %v1552 = vadd.f32 0.0, %v1551
      %v1553 = vpop.f32.mrf.mxu0
      %v1554 = vadd.f32 0.0, %v1553
      %1555 = vdwg.mxu0
      %v1556 = vadd.f32 %v1461, %v1505
      %v1557 = vadd.f32 %v1462, %v1507
      %v1558 = vadd.f32 %v1463, %v1548
      %v1559 = vadd.f32 %v1464, %v1550
      %v1560 = vadd.f32 %v1465, %v1509
      %v1561 = vadd.f32 %v1466, %v1511
      %v1562 = vadd.f32 %v1467, %v1552
      %v1563 = vadd.f32 %v1468, %v1554
      %v1564 = vxor.u32 %v1556, 2147483648
      %v1565 = vxor.u32 %v1560, 2147483648
      %v1566 = vmul.f32 %v1564, 1.442695
      %v1567 = vpow.pop %v1566
      %v1568 = vmul.f32 %v1565, 1.442695
      %v1569 = vpow.pop %v1568
      %v1570 = vadd.f32 %v1567, 1.0
      %v1571 = vadd.f32 %v1569, 1.0
      %v1572 = vrcp.pop %v1570
      %v1573 = vmul.f32 1.0, %v1572
      %v1574 = vrcp.pop %v1571
      %v1575 = vmul.f32 1.0, %v1574
      %v1576 = vxor.u32 %v1557, 2147483648
      %v1577 = vxor.u32 %v1561, 2147483648
      %v1578 = vmul.f32 %v1576, 1.442695
      %v1579 = vpow.pop %v1578
      %v1580 = vmul.f32 %v1577, 1.442695
      %v1581 = vpow.pop %v1580
      %v1582 = vadd.f32 %v1579, 1.0
      %v1583 = vadd.f32 %v1581, 1.0
      %v1584 = vrcp.pop %v1582
      %v1585 = vmul.f32 1.0, %v1584
      %v1586 = vrcp.pop %v1583
      %v1587 = vmul.f32 1.0, %v1586
      %v1588 = vtanh.pop %v1558
      %v1589 = vtanh.pop %v1562
      %v1590 = vxor.u32 %v1559, 2147483648
      %v1591 = vxor.u32 %v1563, 2147483648
      %v1592 = vmul.f32 %v1590, 1.442695
      %v1593 = vpow.pop %v1592
      %v1594 = vmul.f32 %v1591, 1.442695
      %v1595 = vpow.pop %v1594
      %v1596 = vadd.f32 %v1593, 1.0
      %v1597 = vadd.f32 %v1595, 1.0
      %v1598 = vrcp.pop %v1596
      %v1599 = vmul.f32 1.0, %v1598
      %v1600 = vrcp.pop %v1597
      %v1601 = vmul.f32 1.0, %v1600
      %v1602 = vmul.f32 %v1585, %v1448
      %v1603 = vmul.f32 %v1587, %v1449
      %v1604 = vmul.f32 %v1573, %v1588
      %v1605 = vmul.f32 %v1575, %v1589
      %v1606 = vadd.f32 %v1602, %v1604
      %v1607 = vadd.f32 %v1603, %v1605
      %v1608 = vtanh.pop %v1606
      %v1609 = vtanh.pop %v1607
      %v1610 = vmul.f32 %v1599, %v1608
      %v1611 = vmul.f32 %v1601, %v1609
      %v1612 = vadd.f32 %v1454, %v1610
      %v1613 = vadd.f32 %v1455, %v1611
      %s1614 = smul.u32 %s19, 3
      %s1615 = sadd.s32 %s1614, 2
      %s1616 = smul.u32 %s1615, 8
      %s1617 = smul.addr %s1616, 8
      %s1618 = scalar_lea.vmem [#allocation2], %s1617
      %v1619 = vld [vmem:[%s1618] sm:$0xff]
      %v1620 = vld [vmem:[%s1618 + $0x8] sm:$0xff]
      %v1621 = vld [vmem:[%s1618 + $0x10] sm:$0xff]
      %v1622 = vld [vmem:[%s1618 + $0x18] sm:$0xff]
      %v1623 = vld [vmem:[%s1618 + $0x20] sm:$0xff]
      %v1624 = vld [vmem:[%s1618 + $0x28] sm:$0xff]
      %v1625 = vld [vmem:[%s1618 + $0x30] sm:$0xff]
      %v1626 = vld [vmem:[%s1618 + $0x38] sm:$0xff]
      %v1627 = vpack.c.bf16 %v1611, %v1610
      %1628 = vmatprep.subr.bf16.mxu0 %v1277
      %1629 = vmatpush1.bf16.msra.mxu0 %v1276
      %1630 = vmatprep.subr.bf16.mxu0 %v1273
      %1631 = vmatpush1.bf16.msra.mxu0 %v1272
      %1632 = vmatprep.subr.bf16.mxu0 %v1269
      %1633 = vmatpush1.bf16.msra.mxu0 %v1268
      %1634 = vmatprep.subr.bf16.mxu0 %v1265
      %1635 = vmatpush1.bf16.msra.mxu0 %v1264
      %1636 = vmatprep.subr.bf16.mxu0 %v1261
      %1637 = vmatpush1.bf16.msra.mxu0 %v1260
      %1638 = vmatprep.subr.bf16.mxu0 %v1257
      %1639 = vmatpush1.bf16.msra.mxu0 %v1256
      %1640 = vmatprep.subr.bf16.mxu0 %v1253
      %1641 = vmatpush1.bf16.msra.mxu0 %v1252
      %1642 = vmatprep.subr.bf16.mxu0 %v1249
      %1643 = vmatpush1.bf16.msra.mxu0 %v1248
      %1644 = vmatprep.subr.bf16.mxu0 0
      %1645 = vmatpush2.bf16.msra.mxu0 0
      %1646 = vmatprep.subr.bf16.mxu0 0
      %1647 = vmatpush2.bf16.msra.mxu0 0
      %1648 = vmatprep.subr.bf16.mxu0 0
      %1649 = vmatpush2.bf16.msra.mxu0 0
      %1650 = vmatprep.subr.bf16.mxu0 0
      %1651 = vmatpush2.bf16.msra.mxu0 0
      %1652 = vmatprep.subr.bf16.mxu0 0
      %1653 = vmatpush2.bf16.msra.mxu0 0
      %1654 = vmatprep.subr.bf16.mxu0 0
      %1655 = vmatpush2.bf16.msra.mxu0 0
      %1656 = vmatprep.subr.bf16.mxu0 0
      %1657 = vmatpush2.bf16.msra.mxu0 0
      %1658 = vmatprep.subr.bf16.mxu0 0
      %1659 = vmatpush2.bf16.msra.mxu0 0
      %1660 = vmatprep.mubr.bf16.mxu0 0
      %1661 = vmatmul.mubr.bf16.gmra.mxu0 %v1627
      %v1662 = vpop.f32.mrf.mxu0
      %v1663 = vadd.f32 0.0, %v1662
      %v1664 = vpop.f32.mrf.mxu0
      %v1665 = vadd.f32 0.0, %v1664
      %v1666 = vpop.f32.mrf.mxu0
      %v1667 = vadd.f32 0.0, %v1666
      %v1668 = vpop.f32.mrf.mxu0
      %v1669 = vadd.f32 0.0, %v1668
      %1670 = vdwg.mxu0
      %1671 = vmatprep.subr.bf16.mxu0 %v1279
      %1672 = vmatpush1.bf16.msra.mxu0 %v1278
      %1673 = vmatprep.subr.bf16.mxu0 %v1275
      %1674 = vmatpush1.bf16.msra.mxu0 %v1274
      %1675 = vmatprep.subr.bf16.mxu0 %v1271
      %1676 = vmatpush1.bf16.msra.mxu0 %v1270
      %1677 = vmatprep.subr.bf16.mxu0 %v1267
      %1678 = vmatpush1.bf16.msra.mxu0 %v1266
      %1679 = vmatprep.subr.bf16.mxu0 %v1263
      %1680 = vmatpush1.bf16.msra.mxu0 %v1262
      %1681 = vmatprep.subr.bf16.mxu0 %v1259
      %1682 = vmatpush1.bf16.msra.mxu0 %v1258
      %1683 = vmatprep.subr.bf16.mxu0 %v1255
      %1684 = vmatpush1.bf16.msra.mxu0 %v1254
      %1685 = vmatprep.subr.bf16.mxu0 %v1251
      %1686 = vmatpush1.bf16.msra.mxu0 %v1250
      %1687 = vmatprep.subr.bf16.mxu0 0
      %1688 = vmatpush2.bf16.msra.mxu0 0
      %1689 = vmatprep.subr.bf16.mxu0 0
      %1690 = vmatpush2.bf16.msra.mxu0 0
      %1691 = vmatprep.subr.bf16.mxu0 0
      %1692 = vmatpush2.bf16.msra.mxu0 0
      %1693 = vmatprep.subr.bf16.mxu0 0
      %1694 = vmatpush2.bf16.msra.mxu0 0
      %1695 = vmatprep.subr.bf16.mxu0 0
      %1696 = vmatpush2.bf16.msra.mxu0 0
      %1697 = vmatprep.subr.bf16.mxu0 0
      %1698 = vmatpush2.bf16.msra.mxu0 0
      %1699 = vmatprep.subr.bf16.mxu0 0
      %1700 = vmatpush2.bf16.msra.mxu0 0
      %1701 = vmatprep.subr.bf16.mxu0 0
      %1702 = vmatpush2.bf16.msra.mxu0 0
      %1703 = vmatprep.mubr.bf16.mxu0 0
      %1704 = vmatmul.mubr.bf16.gmra.mxu0 %v1627
      %v1705 = vpop.f32.mrf.mxu0
      %v1706 = vadd.f32 0.0, %v1705
      %v1707 = vpop.f32.mrf.mxu0
      %v1708 = vadd.f32 0.0, %v1707
      %v1709 = vpop.f32.mrf.mxu0
      %v1710 = vadd.f32 0.0, %v1709
      %v1711 = vpop.f32.mrf.mxu0
      %v1712 = vadd.f32 0.0, %v1711
      %1713 = vdwg.mxu0
      %v1714 = vadd.f32 %v1619, %v1663
      %v1715 = vadd.f32 %v1620, %v1665
      %v1716 = vadd.f32 %v1621, %v1706
      %v1717 = vadd.f32 %v1622, %v1708
      %v1718 = vadd.f32 %v1623, %v1667
      %v1719 = vadd.f32 %v1624, %v1669
      %v1720 = vadd.f32 %v1625, %v1710
      %v1721 = vadd.f32 %v1626, %v1712
      %v1722 = vxor.u32 %v1714, 2147483648
      %v1723 = vxor.u32 %v1718, 2147483648
      %v1724 = vmul.f32 %v1722, 1.442695
      %v1725 = vpow.pop %v1724
      %v1726 = vmul.f32 %v1723, 1.442695
      %v1727 = vpow.pop %v1726
      %v1728 = vadd.f32 %v1725, 1.0
      %v1729 = vadd.f32 %v1727, 1.0
      %v1730 = vrcp.pop %v1728
      %v1731 = vmul.f32 1.0, %v1730
      %v1732 = vrcp.pop %v1729
      %v1733 = vmul.f32 1.0, %v1732
      %v1734 = vxor.u32 %v1715, 2147483648
      %v1735 = vxor.u32 %v1719, 2147483648
      %v1736 = vmul.f32 %v1734, 1.442695
      %v1737 = vpow.pop %v1736
      %v1738 = vmul.f32 %v1735, 1.442695
      %v1739 = vpow.pop %v1738
      %v1740 = vadd.f32 %v1737, 1.0
      %v1741 = vadd.f32 %v1739, 1.0
      %v1742 = vrcp.pop %v1740
      %v1743 = vmul.f32 1.0, %v1742
      %v1744 = vrcp.pop %v1741
      %v1745 = vmul.f32 1.0, %v1744
      %v1746 = vtanh.pop %v1716
      %v1747 = vtanh.pop %v1720
      %v1748 = vxor.u32 %v1717, 2147483648
      %v1749 = vxor.u32 %v1721, 2147483648
      %v1750 = vmul.f32 %v1748, 1.442695
      %v1751 = vpow.pop %v1750
      %v1752 = vmul.f32 %v1749, 1.442695
      %v1753 = vpow.pop %v1752
      %v1754 = vadd.f32 %v1751, 1.0
      %v1755 = vadd.f32 %v1753, 1.0
      %v1756 = vrcp.pop %v1754
      %v1757 = vmul.f32 1.0, %v1756
      %v1758 = vrcp.pop %v1755
      %v1759 = vmul.f32 1.0, %v1758
      %v1760 = vmul.f32 %v1743, %v1606
      %v1761 = vmul.f32 %v1745, %v1607
      %v1762 = vmul.f32 %v1731, %v1746
      %v1763 = vmul.f32 %v1733, %v1747
      %v1764 = vadd.f32 %v1760, %v1762
      %v1765 = vadd.f32 %v1761, %v1763
      %v1766 = vtanh.pop %v1764
      %v1767 = vtanh.pop %v1765
      %v1768 = vmul.f32 %v1757, %v1766
      %v1769 = vmul.f32 %v1759, %v1767
      %v1770 = vadd.f32 %v1612, %v1768
      %v1771 = vadd.f32 %v1613, %v1769
      %s1772 = sadd.s32 %s19, 3
      %s1773 = smul.u32 %s1772, 8
      %s1774 = smul.addr %s1773, 8
      %s1775 = scalar_lea.vmem [#allocation2], %s1774
      %v1776 = vld [vmem:[%s1775] sm:$0xff]
      %v1777 = vld [vmem:[%s1775 + $0x8] sm:$0xff]
      %v1778 = vld [vmem:[%s1775 + $0x10] sm:$0xff]
      %v1779 = vld [vmem:[%s1775 + $0x18] sm:$0xff]
      %v1780 = vld [vmem:[%s1775 + $0x20] sm:$0xff]
      %v1781 = vld [vmem:[%s1775 + $0x28] sm:$0xff]
      %v1782 = vld [vmem:[%s1775 + $0x30] sm:$0xff]
      %v1783 = vld [vmem:[%s1775 + $0x38] sm:$0xff]
      %v1784 = vpack.c.bf16 %v1769, %v1768
      %1785 = vmatprep.subr.bf16.mxu0 %v1277
      %1786 = vmatpush1.bf16.msra.mxu0 %v1276
      %1787 = vmatprep.subr.bf16.mxu0 %v1273
      %1788 = vmatpush1.bf16.msra.mxu0 %v1272
      %1789 = vmatprep.subr.bf16.mxu0 %v1269
      %1790 = vmatpush1.bf16.msra.mxu0 %v1268
      %1791 = vmatprep.subr.bf16.mxu0 %v1265
      %1792 = vmatpush1.bf16.msra.mxu0 %v1264
      %1793 = vmatprep.subr.bf16.mxu0 %v1261
      %1794 = vmatpush1.bf16.msra.mxu0 %v1260
      %1795 = vmatprep.subr.bf16.mxu0 %v1257
      %1796 = vmatpush1.bf16.msra.mxu0 %v1256
      %1797 = vmatprep.subr.bf16.mxu0 %v1253
      %1798 = vmatpush1.bf16.msra.mxu0 %v1252
      %1799 = vmatprep.subr.bf16.mxu0 %v1249
      %1800 = vmatpush1.bf16.msra.mxu0 %v1248
      %1801 = vmatprep.subr.bf16.mxu0 0
      %1802 = vmatpush2.bf16.msra.mxu0 0
      %1803 = vmatprep.subr.bf16.mxu0 0
      %1804 = vmatpush2.bf16.msra.mxu0 0
      %1805 = vmatprep.subr.bf16.mxu0 0
      %1806 = vmatpush2.bf16.msra.mxu0 0
      %1807 = vmatprep.subr.bf16.mxu0 0
      %1808 = vmatpush2.bf16.msra.mxu0 0
      %1809 = vmatprep.subr.bf16.mxu0 0
      %1810 = vmatpush2.bf16.msra.mxu0 0
      %1811 = vmatprep.subr.bf16.mxu0 0
      %1812 = vmatpush2.bf16.msra.mxu0 0
      %1813 = vmatprep.subr.bf16.mxu0 0
      %1814 = vmatpush2.bf16.msra.mxu0 0
      %1815 = vmatprep.subr.bf16.mxu0 0
      %1816 = vmatpush2.bf16.msra.mxu0 0
      %1817 = vmatprep.mubr.bf16.mxu0 0
      %1818 = vmatmul.mubr.bf16.gmra.mxu0 %v1784
      %v1819 = vpop.f32.mrf.mxu0
      %v1820 = vadd.f32 0.0, %v1819
      %v1821 = vpop.f32.mrf.mxu0
      %v1822 = vadd.f32 0.0, %v1821
      %v1823 = vpop.f32.mrf.mxu0
      %v1824 = vadd.f32 0.0, %v1823
      %v1825 = vpop.f32.mrf.mxu0
      %v1826 = vadd.f32 0.0, %v1825
      %1827 = vdwg.mxu0
      %1828 = vmatprep.subr.bf16.mxu0 %v1279
      %1829 = vmatpush1.bf16.msra.mxu0 %v1278
      %1830 = vmatprep.subr.bf16.mxu0 %v1275
      %1831 = vmatpush1.bf16.msra.mxu0 %v1274
      %1832 = vmatprep.subr.bf16.mxu0 %v1271
      %1833 = vmatpush1.bf16.msra.mxu0 %v1270
      %1834 = vmatprep.subr.bf16.mxu0 %v1267
      %1835 = vmatpush1.bf16.msra.mxu0 %v1266
      %1836 = vmatprep.subr.bf16.mxu0 %v1263
      %1837 = vmatpush1.bf16.msra.mxu0 %v1262
      %1838 = vmatprep.subr.bf16.mxu0 %v1259
      %1839 = vmatpush1.bf16.msra.mxu0 %v1258
      %1840 = vmatprep.subr.bf16.mxu0 %v1255
      %1841 = vmatpush1.bf16.msra.mxu0 %v1254
      %1842 = vmatprep.subr.bf16.mxu0 %v1251
      %1843 = vmatpush1.bf16.msra.mxu0 %v1250
      %1844 = vmatprep.subr.bf16.mxu0 0
      %1845 = vmatpush2.bf16.msra.mxu0 0
      %1846 = vmatprep.subr.bf16.mxu0 0
      %1847 = vmatpush2.bf16.msra.mxu0 0
      %1848 = vmatprep.subr.bf16.mxu0 0
      %1849 = vmatpush2.bf16.msra.mxu0 0
      %1850 = vmatprep.subr.bf16.mxu0 0
      %1851 = vmatpush2.bf16.msra.mxu0 0
      %1852 = vmatprep.subr.bf16.mxu0 0
      %1853 = vmatpush2.bf16.msra.mxu0 0
      %1854 = vmatprep.subr.bf16.mxu0 0
      %1855 = vmatpush2.bf16.msra.mxu0 0
      %1856 = vmatprep.subr.bf16.mxu0 0
      %1857 = vmatpush2.bf16.msra.mxu0 0
      %1858 = vmatprep.subr.bf16.mxu0 0
      %1859 = vmatpush2.bf16.msra.mxu0 0
      %1860 = vmatprep.mubr.bf16.mxu0 0
      %1861 = vmatmul.mubr.bf16.gmra.mxu0 %v1784
      %v1862 = vpop.f32.mrf.mxu0
      %v1863 = vadd.f32 0.0, %v1862
      %v1864 = vpop.f32.mrf.mxu0
      %v1865 = vadd.f32 0.0, %v1864
      %v1866 = vpop.f32.mrf.mxu0
      %v1867 = vadd.f32 0.0, %v1866
      %v1868 = vpop.f32.mrf.mxu0
      %v1869 = vadd.f32 0.0, %v1868
      %1870 = vdwg.mxu0
      %v1871 = vadd.f32 %v1776, %v1820
      %v1872 = vadd.f32 %v1777, %v1822
      %v1873 = vadd.f32 %v1778, %v1863
      %v1874 = vadd.f32 %v1779, %v1865
      %v1875 = vadd.f32 %v1780, %v1824
      %v1876 = vadd.f32 %v1781, %v1826
      %v1877 = vadd.f32 %v1782, %v1867
      %v1878 = vadd.f32 %v1783, %v1869
      %v1879 = vxor.u32 %v1871, 2147483648
      %v1880 = vxor.u32 %v1875, 2147483648
      %v1881 = vmul.f32 %v1879, 1.442695
      %v1882 = vpow.pop %v1881
      %v1883 = vmul.f32 %v1880, 1.442695
      %v1884 = vpow.pop %v1883
      %v1885 = vadd.f32 %v1882, 1.0
      %v1886 = vadd.f32 %v1884, 1.0
      %v1887 = vrcp.pop %v1885
      %v1888 = vmul.f32 1.0, %v1887
      %v1889 = vrcp.pop %v1886
      %v1890 = vmul.f32 1.0, %v1889
      %v1891 = vxor.u32 %v1872, 2147483648
      %v1892 = vxor.u32 %v1876, 2147483648
      %v1893 = vmul.f32 %v1891, 1.442695
      %v1894 = vpow.pop %v1893
      %v1895 = vmul.f32 %v1892, 1.442695
      %v1896 = vpow.pop %v1895
      %v1897 = vadd.f32 %v1894, 1.0
      %v1898 = vadd.f32 %v1896, 1.0
      %v1899 = vrcp.pop %v1897
      %v1900 = vmul.f32 1.0, %v1899
      %v1901 = vrcp.pop %v1898
      %v1902 = vmul.f32 1.0, %v1901
      %v1903 = vtanh.pop %v1873
      %v1904 = vtanh.pop %v1877
      %v1905 = vxor.u32 %v1874, 2147483648
      %v1906 = vxor.u32 %v1878, 2147483648
      %v1907 = vmul.f32 %v1905, 1.442695
      %v1908 = vpow.pop %v1907
      %v1909 = vmul.f32 %v1906, 1.442695
      %v1910 = vpow.pop %v1909
      %v1911 = vadd.f32 %v1908, 1.0
      %v1912 = vadd.f32 %v1910, 1.0
      %v1913 = vrcp.pop %v1911
      %v1914 = vmul.f32 1.0, %v1913
      %v1915 = vrcp.pop %v1912
      %v1916 = vmul.f32 1.0, %v1915
      %v1917 = vmul.f32 %v1900, %v1764
      %v1918 = vmul.f32 %v1902, %v1765
      %v1919 = vmul.f32 %v1888, %v1903
      %v1920 = vmul.f32 %v1890, %v1904
      %v1921 = vadd.f32 %v1917, %v1919
      %v1922 = vadd.f32 %v1918, %v1920
      %v1923 = vtanh.pop %v1921
      %v1924 = vtanh.pop %v1922
      %v1925 = vmul.f32 %v1914, %v1923
      %v1926 = vmul.f32 %v1916, %v1924
      %v1927 = vadd.f32 %v1770, %v1925
      %v1928 = vadd.f32 %v1771, %v1926
      %s1929 = ssub.s32 4, %s19
      %s1930 = smul.u32 %s1929, 8
      %s1931 = smul.addr %s1930, 8
      %s1932 = scalar_lea.vmem [#allocation2], %s1931
      %v1933 = vld [vmem:[%s1932] sm:$0xff]
      %v1934 = vld [vmem:[%s1932 + $0x8] sm:$0xff]
      %v1935 = vld [vmem:[%s1932 + $0x10] sm:$0xff]
      %v1936 = vld [vmem:[%s1932 + $0x18] sm:$0xff]
      %v1937 = vld [vmem:[%s1932 + $0x20] sm:$0xff]
      %v1938 = vld [vmem:[%s1932 + $0x28] sm:$0xff]
      %v1939 = vld [vmem:[%s1932 + $0x30] sm:$0xff]
      %v1940 = vld [vmem:[%s1932 + $0x38] sm:$0xff]
      %v1941 = vpack.c.bf16 %v1926, %v1925
      %1942 = vmatprep.subr.bf16.mxu0 %v1277
      %1943 = vmatpush1.bf16.msra.mxu0 %v1276
      %1944 = vmatprep.subr.bf16.mxu0 %v1273
      %1945 = vmatpush1.bf16.msra.mxu0 %v1272
      %1946 = vmatprep.subr.bf16.mxu0 %v1269
      %1947 = vmatpush1.bf16.msra.mxu0 %v1268
      %1948 = vmatprep.subr.bf16.mxu0 %v1265
      %1949 = vmatpush1.bf16.msra.mxu0 %v1264
      %1950 = vmatprep.subr.bf16.mxu0 %v1261
      %1951 = vmatpush1.bf16.msra.mxu0 %v1260
      %1952 = vmatprep.subr.bf16.mxu0 %v1257
      %1953 = vmatpush1.bf16.msra.mxu0 %v1256
      %1954 = vmatprep.subr.bf16.mxu0 %v1253
      %1955 = vmatpush1.bf16.msra.mxu0 %v1252
      %1956 = vmatprep.subr.bf16.mxu0 %v1249
      %1957 = vmatpush1.bf16.msra.mxu0 %v1248
      %1958 = vmatprep.subr.bf16.mxu0 0
      %1959 = vmatpush2.bf16.msra.mxu0 0
      %1960 = vmatprep.subr.bf16.mxu0 0
      %1961 = vmatpush2.bf16.msra.mxu0 0
      %1962 = vmatprep.subr.bf16.mxu0 0
      %1963 = vmatpush2.bf16.msra.mxu0 0
      %1964 = vmatprep.subr.bf16.mxu0 0
      %1965 = vmatpush2.bf16.msra.mxu0 0
      %1966 = vmatprep.subr.bf16.mxu0 0
      %1967 = vmatpush2.bf16.msra.mxu0 0
      %1968 = vmatprep.subr.bf16.mxu0 0
      %1969 = vmatpush2.bf16.msra.mxu0 0
      %1970 = vmatprep.subr.bf16.mxu0 0
      %1971 = vmatpush2.bf16.msra.mxu0 0
      %1972 = vmatprep.subr.bf16.mxu0 0
      %1973 = vmatpush2.bf16.msra.mxu0 0
      %1974 = vmatprep.mubr.bf16.mxu0 0
      %1975 = vmatmul.mubr.bf16.gmra.mxu0 %v1941
      %v1976 = vpop.f32.mrf.mxu0
      %v1977 = vadd.f32 0.0, %v1976
      %v1978 = vpop.f32.mrf.mxu0
      %v1979 = vadd.f32 0.0, %v1978
      %v1980 = vpop.f32.mrf.mxu0
      %v1981 = vadd.f32 0.0, %v1980
      %v1982 = vpop.f32.mrf.mxu0
      %v1983 = vadd.f32 0.0, %v1982
      %1984 = vdwg.mxu0
      %1985 = vmatprep.subr.bf16.mxu0 %v1279
      %1986 = vmatpush1.bf16.msra.mxu0 %v1278
      %1987 = vmatprep.subr.bf16.mxu0 %v1275
      %1988 = vmatpush1.bf16.msra.mxu0 %v1274
      %1989 = vmatprep.subr.bf16.mxu0 %v1271
      %1990 = vmatpush1.bf16.msra.mxu0 %v1270
      %1991 = vmatprep.subr.bf16.mxu0 %v1267
      %1992 = vmatpush1.bf16.msra.mxu0 %v1266
      %1993 = vmatprep.subr.bf16.mxu0 %v1263
      %1994 = vmatpush1.bf16.msra.mxu0 %v1262
      %1995 = vmatprep.subr.bf16.mxu0 %v1259
      %1996 = vmatpush1.bf16.msra.mxu0 %v1258
      %1997 = vmatprep.subr.bf16.mxu0 %v1255
      %1998 = vmatpush1.bf16.msra.mxu0 %v1254
      %1999 = vmatprep.subr.bf16.mxu0 %v1251
      %2000 = vmatpush1.bf16.msra.mxu0 %v1250
      %2001 = vmatprep.subr.bf16.mxu0 0
      %2002 = vmatpush2.bf16.msra.mxu0 0
      %2003 = vmatprep.subr.bf16.mxu0 0
      %2004 = vmatpush2.bf16.msra.mxu0 0
      %2005 = vmatprep.subr.bf16.mxu0 0
      %2006 = vmatpush2.bf16.msra.mxu0 0
      %2007 = vmatprep.subr.bf16.mxu0 0
      %2008 = vmatpush2.bf16.msra.mxu0 0
      %2009 = vmatprep.subr.bf16.mxu0 0
      %2010 = vmatpush2.bf16.msra.mxu0 0
      %2011 = vmatprep.subr.bf16.mxu0 0
      %2012 = vmatpush2.bf16.msra.mxu0 0
      %2013 = vmatprep.subr.bf16.mxu0 0
      %2014 = vmatpush2.bf16.msra.mxu0 0
      %2015 = vmatprep.subr.bf16.mxu0 0
      %2016 = vmatpush2.bf16.msra.mxu0 0
      %2017 = vmatprep.mubr.bf16.mxu0 0
      %2018 = vmatmul.mubr.bf16.gmra.mxu0 %v1941
      %v2019 = vpop.f32.mrf.mxu0
      %v2020 = vadd.f32 0.0, %v2019
      %v2021 = vpop.f32.mrf.mxu0
      %v2022 = vadd.f32 0.0, %v2021
      %v2023 = vpop.f32.mrf.mxu0
      %v2024 = vadd.f32 0.0, %v2023
      %v2025 = vpop.f32.mrf.mxu0
      %v2026 = vadd.f32 0.0, %v2025
      %2027 = vdwg.mxu0
      %v2028 = vadd.f32 %v1933, %v1977
      %v2029 = vadd.f32 %v1934, %v1979
      %v2030 = vadd.f32 %v1935, %v2020
      %v2031 = vadd.f32 %v1936, %v2022
      %v2032 = vadd.f32 %v1937, %v1981
      %v2033 = vadd.f32 %v1938, %v1983
      %v2034 = vadd.f32 %v1939, %v2024
      %v2035 = vadd.f32 %v1940, %v2026
      %v2036 = vxor.u32 %v2028, 2147483648
      %v2037 = vxor.u32 %v2032, 2147483648
      %v2038 = vmul.f32 %v2036, 1.442695
      %v2039 = vpow.pop %v2038
      %v2040 = vmul.f32 %v2037, 1.442695
      %v2041 = vpow.pop %v2040
      %v2042 = vadd.f32 %v2039, 1.0
      %v2043 = vadd.f32 %v2041, 1.0
      %v2044 = vrcp.pop %v2042
      %v2045 = vmul.f32 1.0, %v2044
      %v2046 = vrcp.pop %v2043
      %v2047 = vmul.f32 1.0, %v2046
      %v2048 = vxor.u32 %v2029, 2147483648
      %v2049 = vxor.u32 %v2033, 2147483648
      %v2050 = vmul.f32 %v2048, 1.442695
      %v2051 = vpow.pop %v2050
      %v2052 = vmul.f32 %v2049, 1.442695
      %v2053 = vpow.pop %v2052
      %v2054 = vadd.f32 %v2051, 1.0
      %v2055 = vadd.f32 %v2053, 1.0
      %v2056 = vrcp.pop %v2054
      %v2057 = vmul.f32 1.0, %v2056
      %v2058 = vrcp.pop %v2055
      %v2059 = vmul.f32 1.0, %v2058
      %v2060 = vtanh.pop %v2030
      %v2061 = vtanh.pop %v2034
      %v2062 = vxor.u32 %v2031, 2147483648
      %v2063 = vxor.u32 %v2035, 2147483648
      %v2064 = vmul.f32 %v2062, 1.442695
      %v2065 = vpow.pop %v2064
      %v2066 = vmul.f32 %v2063, 1.442695
      %v2067 = vpow.pop %v2066
      %v2068 = vadd.f32 %v2065, 1.0
      %v2069 = vadd.f32 %v2067, 1.0
      %v2070 = vrcp.pop %v2068
      %v2071 = vmul.f32 1.0, %v2070
      %v2072 = vrcp.pop %v2069
      %v2073 = vmul.f32 1.0, %v2072
      %v2074 = vmul.f32 %v2057, %v1921
      %v2075 = vmul.f32 %v2059, %v1922
      %v2076 = vmul.f32 %v2045, %v2060
      %v2077 = vmul.f32 %v2047, %v2061
      %v2078 = vadd.f32 %v2074, %v2076
      %v2079 = vadd.f32 %v2075, %v2077
      %v2080 = vtanh.pop %v2078
      %v2081 = vtanh.pop %v2079
      %v2082 = vmul.f32 %v2071, %v2080
      %v2083 = vmul.f32 %v2073, %v2081
      %v2084 = vadd.f32 %v1927, %v2082
      %v2085 = vadd.f32 %v1928, %v2083
      %s2086 = smul.u32 %s19, 4294967293
      %s2087 = sadd.s32 %s2086, 5
      %s2088 = smul.u32 %s2087, 8
      %s2089 = smul.addr %s2088, 8
      %s2090 = scalar_lea.vmem [#allocation2], %s2089
      %v2091 = vld [vmem:[%s2090] sm:$0xff]
      %v2092 = vld [vmem:[%s2090 + $0x8] sm:$0xff]
      %v2093 = vld [vmem:[%s2090 + $0x10] sm:$0xff]
      %v2094 = vld [vmem:[%s2090 + $0x18] sm:$0xff]
      %v2095 = vld [vmem:[%s2090 + $0x20] sm:$0xff]
      %v2096 = vld [vmem:[%s2090 + $0x28] sm:$0xff]
      %v2097 = vld [vmem:[%s2090 + $0x30] sm:$0xff]
      %v2098 = vld [vmem:[%s2090 + $0x38] sm:$0xff]
      %v2099 = vpack.c.bf16 %v2083, %v2082
      %2100 = vmatprep.subr.bf16.mxu0 %v1277
      %2101 = vmatpush1.bf16.msra.mxu0 %v1276
      %2102 = vmatprep.subr.bf16.mxu0 %v1273
      %2103 = vmatpush1.bf16.msra.mxu0 %v1272
      %2104 = vmatprep.subr.bf16.mxu0 %v1269
      %2105 = vmatpush1.bf16.msra.mxu0 %v1268
      %2106 = vmatprep.subr.bf16.mxu0 %v1265
      %2107 = vmatpush1.bf16.msra.mxu0 %v1264
      %2108 = vmatprep.subr.bf16.mxu0 %v1261
      %2109 = vmatpush1.bf16.msra.mxu0 %v1260
      %2110 = vmatprep.subr.bf16.mxu0 %v1257
      %2111 = vmatpush1.bf16.msra.mxu0 %v1256
      %2112 = vmatprep.subr.bf16.mxu0 %v1253
      %2113 = vmatpush1.bf16.msra.mxu0 %v1252
      %2114 = vmatprep.subr.bf16.mxu0 %v1249
      %2115 = vmatpush1.bf16.msra.mxu0 %v1248
      %2116 = vmatprep.subr.bf16.mxu0 0
      %2117 = vmatpush2.bf16.msra.mxu0 0
      %2118 = vmatprep.subr.bf16.mxu0 0
      %2119 = vmatpush2.bf16.msra.mxu0 0
      %2120 = vmatprep.subr.bf16.mxu0 0
      %2121 = vmatpush2.bf16.msra.mxu0 0
      %2122 = vmatprep.subr.bf16.mxu0 0
      %2123 = vmatpush2.bf16.msra.mxu0 0
      %2124 = vmatprep.subr.bf16.mxu0 0
      %2125 = vmatpush2.bf16.msra.mxu0 0
      %2126 = vmatprep.subr.bf16.mxu0 0
      %2127 = vmatpush2.bf16.msra.mxu0 0
      %2128 = vmatprep.subr.bf16.mxu0 0
      %2129 = vmatpush2.bf16.msra.mxu0 0
      %2130 = vmatprep.subr.bf16.mxu0 0
      %2131 = vmatpush2.bf16.msra.mxu0 0
      %2132 = vmatprep.mubr.bf16.mxu0 0
      %2133 = vmatmul.mubr.bf16.gmra.mxu0 %v2099
      %v2134 = vpop.f32.mrf.mxu0
      %v2135 = vadd.f32 0.0, %v2134
      %v2136 = vpop.f32.mrf.mxu0
      %v2137 = vadd.f32 0.0, %v2136
      %v2138 = vpop.f32.mrf.mxu0
      %v2139 = vadd.f32 0.0, %v2138
      %v2140 = vpop.f32.mrf.mxu0
      %v2141 = vadd.f32 0.0, %v2140
      %2142 = vdwg.mxu0
      %2143 = vmatprep.subr.bf16.mxu0 %v1279
      %2144 = vmatpush1.bf16.msra.mxu0 %v1278
      %2145 = vmatprep.subr.bf16.mxu0 %v1275
      %2146 = vmatpush1.bf16.msra.mxu0 %v1274
      %2147 = vmatprep.subr.bf16.mxu0 %v1271
      %2148 = vmatpush1.bf16.msra.mxu0 %v1270
      %2149 = vmatprep.subr.bf16.mxu0 %v1267
      %2150 = vmatpush1.bf16.msra.mxu0 %v1266
      %2151 = vmatprep.subr.bf16.mxu0 %v1263
      %2152 = vmatpush1.bf16.msra.mxu0 %v1262
      %2153 = vmatprep.subr.bf16.mxu0 %v1259
      %2154 = vmatpush1.bf16.msra.mxu0 %v1258
      %2155 = vmatprep.subr.bf16.mxu0 %v1255
      %2156 = vmatpush1.bf16.msra.mxu0 %v1254
      %2157 = vmatprep.subr.bf16.mxu0 %v1251
      %2158 = vmatpush1.bf16.msra.mxu0 %v1250
      %2159 = vmatprep.subr.bf16.mxu0 0
      %2160 = vmatpush2.bf16.msra.mxu0 0
      %2161 = vmatprep.subr.bf16.mxu0 0
      %2162 = vmatpush2.bf16.msra.mxu0 0
      %2163 = vmatprep.subr.bf16.mxu0 0
      %2164 = vmatpush2.bf16.msra.mxu0 0
      %2165 = vmatprep.subr.bf16.mxu0 0
      %2166 = vmatpush2.bf16.msra.mxu0 0
      %2167 = vmatprep.subr.bf16.mxu0 0
      %2168 = vmatpush2.bf16.msra.mxu0 0
      %2169 = vmatprep.subr.bf16.mxu0 0
      %2170 = vmatpush2.bf16.msra.mxu0 0
      %2171 = vmatprep.subr.bf16.mxu0 0
      %2172 = vmatpush2.bf16.msra.mxu0 0
      %2173 = vmatprep.subr.bf16.mxu0 0
      %2174 = vmatpush2.bf16.msra.mxu0 0
      %2175 = vmatprep.mubr.bf16.mxu0 0
      %2176 = vmatmul.mubr.bf16.gmra.mxu0 %v2099
      %v2177 = vpop.f32.mrf.mxu0
      %v2178 = vadd.f32 0.0, %v2177
      %v2179 = vpop.f32.mrf.mxu0
      %v2180 = vadd.f32 0.0, %v2179
      %v2181 = vpop.f32.mrf.mxu0
      %v2182 = vadd.f32 0.0, %v2181
      %v2183 = vpop.f32.mrf.mxu0
      %v2184 = vadd.f32 0.0, %v2183
      %2185 = vdwg.mxu0
      %v2186 = vadd.f32 %v2091, %v2135
      %v2187 = vadd.f32 %v2092, %v2137
      %v2188 = vadd.f32 %v2093, %v2178
      %v2189 = vadd.f32 %v2094, %v2180
      %v2190 = vadd.f32 %v2095, %v2139
      %v2191 = vadd.f32 %v2096, %v2141
      %v2192 = vadd.f32 %v2097, %v2182
      %v2193 = vadd.f32 %v2098, %v2184
      %v2194 = vxor.u32 %v2186, 2147483648
      %v2195 = vxor.u32 %v2190, 2147483648
      %v2196 = vmul.f32 %v2194, 1.442695
      %v2197 = vpow.pop %v2196
      %v2198 = vmul.f32 %v2195, 1.442695
      %v2199 = vpow.pop %v2198
      %v2200 = vadd.f32 %v2197, 1.0
      %v2201 = vadd.f32 %v2199, 1.0
      %v2202 = vrcp.pop %v2200
      %v2203 = vmul.f32 1.0, %v2202
      %v2204 = vrcp.pop %v2201
      %v2205 = vmul.f32 1.0, %v2204
      %v2206 = vxor.u32 %v2187, 2147483648
      %v2207 = vxor.u32 %v2191, 2147483648
      %v2208 = vmul.f32 %v2206, 1.442695
      %v2209 = vpow.pop %v2208
      %v2210 = vmul.f32 %v2207, 1.442695
      %v2211 = vpow.pop %v2210
      %v2212 = vadd.f32 %v2209, 1.0
      %v2213 = vadd.f32 %v2211, 1.0
      %v2214 = vrcp.pop %v2212
      %v2215 = vmul.f32 1.0, %v2214
      %v2216 = vrcp.pop %v2213
      %v2217 = vmul.f32 1.0, %v2216
      %v2218 = vtanh.pop %v2188
      %v2219 = vtanh.pop %v2192
      %v2220 = vxor.u32 %v2189, 2147483648
      %v2221 = vxor.u32 %v2193, 2147483648
      %v2222 = vmul.f32 %v2220, 1.442695
      %v2223 = vpow.pop %v2222
      %v2224 = vmul.f32 %v2221, 1.442695
      %v2225 = vpow.pop %v2224
      %v2226 = vadd.f32 %v2223, 1.0
      %v2227 = vadd.f32 %v2225, 1.0
      %v2228 = vrcp.pop %v2226
      %v2229 = vmul.f32 1.0, %v2228
      %v2230 = vrcp.pop %v2227
      %v2231 = vmul.f32 1.0, %v2230
      %v2232 = vmul.f32 %v2215, %v2078
      %v2233 = vmul.f32 %v2217, %v2079
      %v2234 = vmul.f32 %v2203, %v2218
      %v2235 = vmul.f32 %v2205, %v2219
      %v2236 = vadd.f32 %v2232, %v2234
      %v2237 = vadd.f32 %v2233, %v2235
      %v2238 = vtanh.pop %v2236
      %v2239 = vtanh.pop %v2237
      %v2240 = vmul.f32 %v2229, %v2238
      %v2241 = vmul.f32 %v2231, %v2239
      %v2242 = vadd.f32 %v2084, %v2240
      %v2243 = vadd.f32 %v2085, %v2241
      %s2244 = smul.u32 %s19, 4294967291
      %s2245 = sadd.s32 %s2244, 6
      %s2246 = smul.u32 %s2245, 8
      %s2247 = smul.addr %s2246, 8
      %s2248 = scalar_lea.vmem [#allocation2], %s2247
      %v2249 = vld [vmem:[%s2248] sm:$0xff]
      %v2250 = vld [vmem:[%s2248 + $0x8] sm:$0xff]
      %v2251 = vld [vmem:[%s2248 + $0x10] sm:$0xff]
      %v2252 = vld [vmem:[%s2248 + $0x18] sm:$0xff]
      %v2253 = vld [vmem:[%s2248 + $0x20] sm:$0xff]
      %v2254 = vld [vmem:[%s2248 + $0x28] sm:$0xff]
      %v2255 = vld [vmem:[%s2248 + $0x30] sm:$0xff]
      %v2256 = vld [vmem:[%s2248 + $0x38] sm:$0xff]
      %v2257 = vpack.c.bf16 %v2241, %v2240
      %2258 = vmatprep.subr.bf16.mxu0 %v1277
      %2259 = vmatpush1.bf16.msra.mxu0 %v1276
      %2260 = vmatprep.subr.bf16.mxu0 %v1273
      %2261 = vmatpush1.bf16.msra.mxu0 %v1272
      %2262 = vmatprep.subr.bf16.mxu0 %v1269
      %2263 = vmatpush1.bf16.msra.mxu0 %v1268
      %2264 = vmatprep.subr.bf16.mxu0 %v1265
      %2265 = vmatpush1.bf16.msra.mxu0 %v1264
      %2266 = vmatprep.subr.bf16.mxu0 %v1261
      %2267 = vmatpush1.bf16.msra.mxu0 %v1260
      %2268 = vmatprep.subr.bf16.mxu0 %v1257
      %2269 = vmatpush1.bf16.msra.mxu0 %v1256
      %2270 = vmatprep.subr.bf16.mxu0 %v1253
      %2271 = vmatpush1.bf16.msra.mxu0 %v1252
      %2272 = vmatprep.subr.bf16.mxu0 %v1249
      %2273 = vmatpush1.bf16.msra.mxu0 %v1248
      %2274 = vmatprep.subr.bf16.mxu0 0
      %2275 = vmatpush2.bf16.msra.mxu0 0
      %2276 = vmatprep.subr.bf16.mxu0 0
      %2277 = vmatpush2.bf16.msra.mxu0 0
      %2278 = vmatprep.subr.bf16.mxu0 0
      %2279 = vmatpush2.bf16.msra.mxu0 0
      %2280 = vmatprep.subr.bf16.mxu0 0
      %2281 = vmatpush2.bf16.msra.mxu0 0
      %2282 = vmatprep.subr.bf16.mxu0 0
      %2283 = vmatpush2.bf16.msra.mxu0 0
      %2284 = vmatprep.subr.bf16.mxu0 0
      %2285 = vmatpush2.bf16.msra.mxu0 0
      %2286 = vmatprep.subr.bf16.mxu0 0
      %2287 = vmatpush2.bf16.msra.mxu0 0
      %2288 = vmatprep.subr.bf16.mxu0 0
      %2289 = vmatpush2.bf16.msra.mxu0 0
      %2290 = vmatprep.mubr.bf16.mxu0 0
      %2291 = vmatmul.mubr.bf16.gmra.mxu0 %v2257
      %v2292 = vpop.f32.mrf.mxu0
      %v2293 = vadd.f32 0.0, %v2292
      %v2294 = vpop.f32.mrf.mxu0
      %v2295 = vadd.f32 0.0, %v2294
      %v2296 = vpop.f32.mrf.mxu0
      %v2297 = vadd.f32 0.0, %v2296
      %v2298 = vpop.f32.mrf.mxu0
      %v2299 = vadd.f32 0.0, %v2298
      %2300 = vdwg.mxu0
      %2301 = vmatprep.subr.bf16.mxu0 %v1279
      %2302 = vmatpush1.bf16.msra.mxu0 %v1278
      %2303 = vmatprep.subr.bf16.mxu0 %v1275
      %2304 = vmatpush1.bf16.msra.mxu0 %v1274
      %2305 = vmatprep.subr.bf16.mxu0 %v1271
      %2306 = vmatpush1.bf16.msra.mxu0 %v1270
      %2307 = vmatprep.subr.bf16.mxu0 %v1267
      %2308 = vmatpush1.bf16.msra.mxu0 %v1266
      %2309 = vmatprep.subr.bf16.mxu0 %v1263
      %2310 = vmatpush1.bf16.msra.mxu0 %v1262
      %2311 = vmatprep.subr.bf16.mxu0 %v1259
      %2312 = vmatpush1.bf16.msra.mxu0 %v1258
      %2313 = vmatprep.subr.bf16.mxu0 %v1255
      %2314 = vmatpush1.bf16.msra.mxu0 %v1254
      %2315 = vmatprep.subr.bf16.mxu0 %v1251
      %2316 = vmatpush1.bf16.msra.mxu0 %v1250
      %2317 = vmatprep.subr.bf16.mxu0 0
      %2318 = vmatpush2.bf16.msra.mxu0 0
      %2319 = vmatprep.subr.bf16.mxu0 0
      %2320 = vmatpush2.bf16.msra.mxu0 0
      %2321 = vmatprep.subr.bf16.mxu0 0
      %2322 = vmatpush2.bf16.msra.mxu0 0
      %2323 = vmatprep.subr.bf16.mxu0 0
      %2324 = vmatpush2.bf16.msra.mxu0 0
      %2325 = vmatprep.subr.bf16.mxu0 0
      %2326 = vmatpush2.bf16.msra.mxu0 0
      %2327 = vmatprep.subr.bf16.mxu0 0
      %2328 = vmatpush2.bf16.msra.mxu0 0
      %2329 = vmatprep.subr.bf16.mxu0 0
      %2330 = vmatpush2.bf16.msra.mxu0 0
      %2331 = vmatprep.subr.bf16.mxu0 0
      %2332 = vmatpush2.bf16.msra.mxu0 0
      %2333 = vmatprep.mubr.bf16.mxu0 0
      %2334 = vmatmul.mubr.bf16.gmra.mxu0 %v2257
      %v2335 = vpop.f32.mrf.mxu0
      %v2336 = vadd.f32 0.0, %v2335
      %v2337 = vpop.f32.mrf.mxu0
      %v2338 = vadd.f32 0.0, %v2337
      %v2339 = vpop.f32.mrf.mxu0
      %v2340 = vadd.f32 0.0, %v2339
      %v2341 = vpop.f32.mrf.mxu0
      %v2342 = vadd.f32 0.0, %v2341
      %2343 = vdwg.mxu0
      %v2344 = vadd.f32 %v2249, %v2293
      %v2345 = vadd.f32 %v2250, %v2295
      %v2346 = vadd.f32 %v2251, %v2336
      %v2347 = vadd.f32 %v2252, %v2338
      %v2348 = vadd.f32 %v2253, %v2297
      %v2349 = vadd.f32 %v2254, %v2299
      %v2350 = vadd.f32 %v2255, %v2340
      %v2351 = vadd.f32 %v2256, %v2342
      %v2352 = vxor.u32 %v2344, 2147483648
      %v2353 = vxor.u32 %v2348, 2147483648
      %v2354 = vmul.f32 %v2352, 1.442695
      %v2355 = vpow.pop %v2354
      %v2356 = vmul.f32 %v2353, 1.442695
      %v2357 = vpow.pop %v2356
      %v2358 = vadd.f32 %v2355, 1.0
      %v2359 = vadd.f32 %v2357, 1.0
      %v2360 = vrcp.pop %v2358
      %v2361 = vmul.f32 1.0, %v2360
      %v2362 = vrcp.pop %v2359
      %v2363 = vmul.f32 1.0, %v2362
      %v2364 = vxor.u32 %v2345, 2147483648
      %v2365 = vxor.u32 %v2349, 2147483648
      %v2366 = vmul.f32 %v2364, 1.442695
      %v2367 = vpow.pop %v2366
      %v2368 = vmul.f32 %v2365, 1.442695
      %v2369 = vpow.pop %v2368
      %v2370 = vadd.f32 %v2367, 1.0
      %v2371 = vadd.f32 %v2369, 1.0
      %v2372 = vrcp.pop %v2370
      %v2373 = vmul.f32 1.0, %v2372
      %v2374 = vrcp.pop %v2371
      %v2375 = vmul.f32 1.0, %v2374
      %v2376 = vtanh.pop %v2346
      %v2377 = vtanh.pop %v2350
      %v2378 = vxor.u32 %v2347, 2147483648
      %v2379 = vxor.u32 %v2351, 2147483648
      %v2380 = vmul.f32 %v2378, 1.442695
      %v2381 = vpow.pop %v2380
      %v2382 = vmul.f32 %v2379, 1.442695
      %v2383 = vpow.pop %v2382
      %v2384 = vadd.f32 %v2381, 1.0
      %v2385 = vadd.f32 %v2383, 1.0
      %v2386 = vrcp.pop %v2384
      %v2387 = vmul.f32 1.0, %v2386
      %v2388 = vrcp.pop %v2385
      %v2389 = vmul.f32 1.0, %v2388
      %v2390 = vmul.f32 %v2373, %v2236
      %v2391 = vmul.f32 %v2375, %v2237
      %v2392 = vmul.f32 %v2361, %v2376
      %v2393 = vmul.f32 %v2363, %v2377
      %v2394 = vadd.f32 %v2390, %v2392
      %v2395 = vadd.f32 %v2391, %v2393
      %v2396 = vtanh.pop %v2394
      %v2397 = vtanh.pop %v2395
      %v2398 = vmul.f32 %v2387, %v2396
      %v2399 = vmul.f32 %v2389, %v2397
      %v2400 = vadd.f32 %v2242, %v2398
      %v2401 = vadd.f32 %v2243, %v2399
      %s2402 = smul.u32 %s19, 4294967289
      %s2403 = sadd.s32 %s2402, 7
      %s2404 = smul.u32 %s2403, 8
      %s2405 = smul.addr %s2404, 8
      %s2406 = scalar_lea.vmem [#allocation2], %s2405
      %v2407 = vld [vmem:[%s2406] sm:$0xff]
      %v2408 = vld [vmem:[%s2406 + $0x8] sm:$0xff]
      %v2409 = vld [vmem:[%s2406 + $0x10] sm:$0xff]
      %v2410 = vld [vmem:[%s2406 + $0x18] sm:$0xff]
      %v2411 = vld [vmem:[%s2406 + $0x20] sm:$0xff]
      %v2412 = vld [vmem:[%s2406 + $0x28] sm:$0xff]
      %v2413 = vld [vmem:[%s2406 + $0x30] sm:$0xff]
      %v2414 = vld [vmem:[%s2406 + $0x38] sm:$0xff]
      %v2415 = vpack.c.bf16 %v2399, %v2398
      %2416 = vmatprep.subr.bf16.mxu0 %v1277
      %2417 = vmatpush1.bf16.msra.mxu0 %v1276
      %2418 = vmatprep.subr.bf16.mxu0 %v1273
      %2419 = vmatpush1.bf16.msra.mxu0 %v1272
      %2420 = vmatprep.subr.bf16.mxu0 %v1269
      %2421 = vmatpush1.bf16.msra.mxu0 %v1268
      %2422 = vmatprep.subr.bf16.mxu0 %v1265
      %2423 = vmatpush1.bf16.msra.mxu0 %v1264
      %2424 = vmatprep.subr.bf16.mxu0 %v1261
      %2425 = vmatpush1.bf16.msra.mxu0 %v1260
      %2426 = vmatprep.subr.bf16.mxu0 %v1257
      %2427 = vmatpush1.bf16.msra.mxu0 %v1256
      %2428 = vmatprep.subr.bf16.mxu0 %v1253
      %2429 = vmatpush1.bf16.msra.mxu0 %v1252
      %2430 = vmatprep.subr.bf16.mxu0 %v1249
      %2431 = vmatpush1.bf16.msra.mxu0 %v1248
      %2432 = vmatprep.subr.bf16.mxu0 0
      %2433 = vmatpush2.bf16.msra.mxu0 0
      %2434 = vmatprep.subr.bf16.mxu0 0
      %2435 = vmatpush2.bf16.msra.mxu0 0
      %2436 = vmatprep.subr.bf16.mxu0 0
      %2437 = vmatpush2.bf16.msra.mxu0 0
      %2438 = vmatprep.subr.bf16.mxu0 0
      %2439 = vmatpush2.bf16.msra.mxu0 0
      %2440 = vmatprep.subr.bf16.mxu0 0
      %2441 = vmatpush2.bf16.msra.mxu0 0
      %2442 = vmatprep.subr.bf16.mxu0 0
      %2443 = vmatpush2.bf16.msra.mxu0 0
      %2444 = vmatprep.subr.bf16.mxu0 0
      %2445 = vmatpush2.bf16.msra.mxu0 0
      %2446 = vmatprep.subr.bf16.mxu0 0
      %2447 = vmatpush2.bf16.msra.mxu0 0
      %2448 = vmatprep.mubr.bf16.mxu0 0
      %2449 = vmatmul.mubr.bf16.gmra.mxu0 %v2415
      %v2450 = vpop.f32.mrf.mxu0
      %v2451 = vadd.f32 0.0, %v2450
      %v2452 = vpop.f32.mrf.mxu0
      %v2453 = vadd.f32 0.0, %v2452
      %v2454 = vpop.f32.mrf.mxu0
      %v2455 = vadd.f32 0.0, %v2454
      %v2456 = vpop.f32.mrf.mxu0
      %v2457 = vadd.f32 0.0, %v2456
      %2458 = vdwg.mxu0
      %2459 = vmatprep.subr.bf16.mxu0 %v1279
      %2460 = vmatpush1.bf16.msra.mxu0 %v1278
      %2461 = vmatprep.subr.bf16.mxu0 %v1275
      %2462 = vmatpush1.bf16.msra.mxu0 %v1274
      %2463 = vmatprep.subr.bf16.mxu0 %v1271
      %2464 = vmatpush1.bf16.msra.mxu0 %v1270
      %2465 = vmatprep.subr.bf16.mxu0 %v1267
      %2466 = vmatpush1.bf16.msra.mxu0 %v1266
      %2467 = vmatprep.subr.bf16.mxu0 %v1263
      %2468 = vmatpush1.bf16.msra.mxu0 %v1262
      %2469 = vmatprep.subr.bf16.mxu0 %v1259
      %2470 = vmatpush1.bf16.msra.mxu0 %v1258
      %2471 = vmatprep.subr.bf16.mxu0 %v1255
      %2472 = vmatpush1.bf16.msra.mxu0 %v1254
      %2473 = vmatprep.subr.bf16.mxu0 %v1251
      %2474 = vmatpush1.bf16.msra.mxu0 %v1250
      %2475 = vmatprep.subr.bf16.mxu0 0
      %2476 = vmatpush2.bf16.msra.mxu0 0
      %2477 = vmatprep.subr.bf16.mxu0 0
      %2478 = vmatpush2.bf16.msra.mxu0 0
      %2479 = vmatprep.subr.bf16.mxu0 0
      %2480 = vmatpush2.bf16.msra.mxu0 0
      %2481 = vmatprep.subr.bf16.mxu0 0
      %2482 = vmatpush2.bf16.msra.mxu0 0
      %2483 = vmatprep.subr.bf16.mxu0 0
      %2484 = vmatpush2.bf16.msra.mxu0 0
      %2485 = vmatprep.subr.bf16.mxu0 0
      %2486 = vmatpush2.bf16.msra.mxu0 0
      %2487 = vmatprep.subr.bf16.mxu0 0
      %2488 = vmatpush2.bf16.msra.mxu0 0
      %2489 = vmatprep.subr.bf16.mxu0 0
      %2490 = vmatpush2.bf16.msra.mxu0 0
      %2491 = vmatprep.mubr.bf16.mxu0 0
      %2492 = vmatmul.mubr.bf16.gmra.mxu0 %v2415
      %v2493 = vpop.f32.mrf.mxu0
      %v2494 = vadd.f32 0.0, %v2493
      %v2495 = vpop.f32.mrf.mxu0
      %v2496 = vadd.f32 0.0, %v2495
      %v2497 = vpop.f32.mrf.mxu0
      %v2498 = vadd.f32 0.0, %v2497
      %v2499 = vpop.f32.mrf.mxu0
      %v2500 = vadd.f32 0.0, %v2499
      %2501 = vdwg.mxu0
      %v2502 = vadd.f32 %v2407, %v2451
      %v2503 = vadd.f32 %v2408, %v2453
      %v2504 = vadd.f32 %v2409, %v2494
      %v2505 = vadd.f32 %v2410, %v2496
      %v2506 = vadd.f32 %v2411, %v2455
      %v2507 = vadd.f32 %v2412, %v2457
      %v2508 = vadd.f32 %v2413, %v2498
      %v2509 = vadd.f32 %v2414, %v2500
      %v2510 = vxor.u32 %v2502, 2147483648
      %v2511 = vxor.u32 %v2506, 2147483648
      %v2512 = vmul.f32 %v2510, 1.442695
      %v2513 = vpow.pop %v2512
      %v2514 = vmul.f32 %v2511, 1.442695
      %v2515 = vpow.pop %v2514
      %v2516 = vadd.f32 %v2513, 1.0
      %v2517 = vadd.f32 %v2515, 1.0
      %v2518 = vrcp.pop %v2516
      %v2519 = vmul.f32 1.0, %v2518
      %v2520 = vrcp.pop %v2517
      %v2521 = vmul.f32 1.0, %v2520
      %v2522 = vxor.u32 %v2503, 2147483648
      %v2523 = vxor.u32 %v2507, 2147483648
      %v2524 = vmul.f32 %v2522, 1.442695
      %v2525 = vpow.pop %v2524
      %v2526 = vmul.f32 %v2523, 1.442695
      %v2527 = vpow.pop %v2526
      %v2528 = vadd.f32 %v2525, 1.0
      %v2529 = vadd.f32 %v2527, 1.0
      %v2530 = vrcp.pop %v2528
      %v2531 = vmul.f32 1.0, %v2530
      %v2532 = vrcp.pop %v2529
      %v2533 = vmul.f32 1.0, %v2532
      %v2534 = vtanh.pop %v2504
      %v2535 = vtanh.pop %v2508
      %v2536 = vxor.u32 %v2505, 2147483648
      %v2537 = vxor.u32 %v2509, 2147483648
      %v2538 = vmul.f32 %v2536, 1.442695
      %v2539 = vpow.pop %v2538
      %v2540 = vmul.f32 %v2537, 1.442695
      %v2541 = vpow.pop %v2540
      %v2542 = vadd.f32 %v2539, 1.0
      %v2543 = vadd.f32 %v2541, 1.0
      %v2544 = vrcp.pop %v2542
      %v2545 = vmul.f32 1.0, %v2544
      %v2546 = vrcp.pop %v2543
      %v2547 = vmul.f32 1.0, %v2546
      %v2548 = vmul.f32 %v2531, %v2394
      %v2549 = vmul.f32 %v2533, %v2395
      %v2550 = vmul.f32 %v2519, %v2534
      %v2551 = vmul.f32 %v2521, %v2535
      %v2552 = vadd.f32 %v2548, %v2550
      %v2553 = vadd.f32 %v2549, %v2551
      %v2554 = vtanh.pop %v2552
      %v2555 = vtanh.pop %v2553
      %v2556 = vmul.f32 %v2545, %v2554
      %v2557 = vmul.f32 %v2547, %v2555
      %v2558 = vadd.f32 %v2400, %v2556
      %v2559 = vadd.f32 %v2401, %v2557
      %2560 = vst [vmem:[#allocation3] sm:$0xff] %v2556
      %2561 = vst [vmem:[#allocation3 + $0x8] sm:$0xff] %v2557
      %2562 = vst [vmem:[#allocation4] sm:$0xff] %v2552
      %2563 = vst [vmem:[#allocation4 + $0x8] sm:$0xff] %v2553
      %v2564 = vld [vmem:[%s299] sm:$0xff]
      %v2565 = vld [vmem:[%s299 + $0x8] sm:$0xff]
      %v2566 = vadd.f32 %v2564, %v2558
      %v2567 = vadd.f32 %v2565, %v2559
      %2568 = vst [vmem:[%s299] sm:$0xff] %v2566
      %2569 = vst [vmem:[%s299 + $0x8] sm:$0xff] %v2567
      %p2570 = scmp.lt.s32.totalorder %s19, 1
      %s2571 = scalar_select %p2570, %s19, 1
      %s2572 = smul.addr %s2571, 2
      %s2573 = smul.addr %s2572, 8
      %s2574 = scalar_lea.vmem %s4, %s2573
      // Predicated region
      $region41: #{document_classifier_forward.4} parent=35 // pred_check
        %p2575 = pneg %p157
      $region42: #{document_classifier_forward.4} parent=35 // pred_check_branch
        %2577 = sbr.rel (%p2575) target = $region44
      $region43: #{document_classifier_forward.4} parent=35 // pred_region
        _
      $region44: #{document_classifier_forward.4} parent=35 // pred_fallthru
        _
    $region36: #{document_classifier_forward.4} parent=5 // pred_fallthru
      _
    %p2578 = scmp.le.s32.totalorder 2, %s10
    // Predicated region
    $region45: #{document_classifier_forward.4} parent=5 // pred_check
      %p2579 = pneg %p2578
    $region46: #{document_classifier_forward.4} parent=5 // pred_check_branch
      %2581 = sbr.rel (%p2579) target = $region48
    $region47: #{document_classifier_forward.4} parent=5 // pred_region
      %s2582 = ssub.s32 %s10, 2
      // Predicated region
      $region49: #{document_classifier_forward.4} parent=47 // pred_check
        %p2583 = pneg %p163
      $region50: #{document_classifier_forward.4} parent=47 // pred_check_branch
        %2585 = sbr.rel (%p2583) target = $region52
      $region51: #{document_classifier_forward.4} parent=47 // pred_region
        %p2586 = scmp.lt.s32.totalorder %s21, 1
        %s2587 = scalar_select %p2586, %s21, 1
        %s2588 = smul.addr %s2587, 2
        %s2589 = smul.addr %s2588, 8
        %s2590 = scalar_lea.vmem %s4, %s2589
      $region52: #{document_classifier_forward.4} parent=47 // pred_fallthru
        _
    $region48: #{document_classifier_forward.4} parent=5 // pred_fallthru
      _
  $region6: #{document_classifier_forward.4} parent=0 // loop_footer
    %s14 = sadd.s32 1, %s10
  $region7: #{document_classifier_forward.4} parent=0 // loop_footer_branch
    %9 = sbr.rel target = $region3
  $region8: #{document_classifier_forward.4} parent=0 // loop_exit
    _

// kernel: document_classifier_forward.3
$region0: #{document_classifier_forward.3}
  #allocation0 [shape = 'u32[]', space=smem, size = 0x4, offset = 0x4, fixed_abs, tag = 'smem constant byte address 0x4 - core index']
  #allocation1 [shape = 'u32[144,128]{1,0:T(1,128)}', space=vmem, size = 0x12000, scoped, tag = 'internal scratch']
  #allocation2 [shape = 'f32[8,16,512]{2,1,0:T(8,128)}', space=vmem, size = 0x40000, scoped, tag = 'scratch operand']
  #allocation3 [shape = 'f32[16,128]{1,0:T(8,128)}', space=vmem, size = 0x2000, scoped, tag = 'scratch operand']
  #allocation4 [shape = 'f32[16,128]{1,0:T(8,128)}', space=vmem, size = 0x2000, scoped, tag = 'scratch operand']
  %s0 = inlined_call_operand.vmem [shape: bf16[8,16,32], index: 0, kind: input, shape index: {}]
  %s1 = inlined_call_operand.hbm [shape: bf16[2,32,512], index: 1, kind: input, shape index: {}]
  %s2 = inlined_call_operand.hbm [shape: f32[2,1,512], index: 2, kind: input, shape index: {}]
  %s3 = inlined_call_operand.hbm [shape: bf16[2,128,512], index: 3, kind: input, shape index: {}]
  %s4 = inlined_call_operand.vmem [shape: bf16[8,16,256], index: 4, kind: output, shape index: {0}]
  %s5 = inlined_call_operand.hbm [shape: f32[2,16,128], index: 5, kind: output, shape index: {1}]
  %6 = xla_tuple %s4, %s5
  %s7 = sld [smem:[#allocation0]]
  $region110: #{document_classifier_forward.3} parent=0
    _
  %s9 = ssub.s32 1, %s7
  %s10 = scalar_select 0, %s9, %s7
  $region1: #{document_classifier_forward.3} parent=0
    #allocation5 [shape = 'u8[65536]{0}', space=vmem, size = 0x10000, scoped, tag = 'input window, operand 1']
    #allocation6 [shape = 's32[2]{0}', space=sflag, size = 0x8, scoped, tag = 'scoped memory for document_classifier_forward.3']
    #allocation7 [shape = 's32[2]{0}', space=sflag, size = 0x8, scoped, tag = 'scoped memory for document_classifier_forward.3']
    #allocation8 [shape = 'u8[4096]{0}', space=vmem, size = 0x1000, scoped, tag = 'input window, operand 2']
    #allocation9 [shape = 's32[2]{0}', space=sflag, size = 0x8, scoped, tag = 'scoped memory for document_classifier_forward.3']
    #allocation10 [shape = 'u8[262144]{0}', space=vmem, size = 0x40000, scoped, tag = 'input window, operand 3']
    #allocation11 [shape = 'u8[65536]{0}', space=vmem, size = 0x10000, scoped, tag = 'output window, operand 0']
    #allocation12 [shape = 'u8[16384]{0}', space=vmem, size = 0x4000, scoped, tag = 'output window, operand 1']
    %11 = vsyncpa [#allocation6], 0
    %s12 = scalar_lea.sflag [#allocation6], 1
    %13 = vsyncpa %s12, 0
    %14 = vsyncpa [#allocation9], 0
    %s15 = scalar_lea.sflag [#allocation9], 1
    %16 = vsyncpa %s15, 0
    %17 = vsyncpa [#allocation7], 0
    %s18 = scalar_lea.sflag [#allocation7], 1
    %19 = vsyncpa %s18, 0
    loop: start=0, step=1, limit=4
    $region2: #{document_classifier_forward.3} parent=1 // loop_pre_header
      _
    $region3: #{document_classifier_forward.3} parent=1 // loop_header
      %s21 = sphi 0, %s25
      %p22 = scmp.ge.s32.totalorder %s21, 4
      %s28 = sphi 0, %s40
      %s29 = sphi 0, %s36
      %s30 = sphi 0, %s28
      %s31 = sphi 0, %s29
      %s32 = sphi 0, %s30
      %s33 = sphi 0, %s31
      %s51 = sphi 0, %s53
      %s54 = sphi 0, %s51
      %s55 = sphi 0, %s54
      %s71 = sphi 0, %s55
      %s77 = sphi 0, %s79
      %s80 = sphi 0, %s77
      %s81 = sphi 0, %s80
      %s97 = sphi 0, %s81
      %s103 = sphi 0, %s105
      %s106 = sphi 0, %s103
      %s107 = sphi 0, %s106
      %s123 = sphi 0, %s107
      %s129 = sphi 0, %s131
      %s132 = sphi 0, %s129
      %s133 = sphi 0, %s132
      %s149 = sphi 0, %s133
      %s165 = sphi 0, %s167
      %s168 = sphi 0, %s165
      %s169 = sphi 0, %s168
      %s185 = sphi 0, %s169
      %s191 = sphi 0, %s193
      %s194 = sphi 0, %s191
      %s195 = sphi 0, %s194
      %s211 = sphi 0, %s195
    $region4: #{document_classifier_forward.3} parent=1 // loop_header_branch
      %24 = sbr.rel (%p22) target = $region8
    $region5: #{document_classifier_forward.3} parent=1 // loop_body
      %s26 = ssub.s32 %s21, 1
      %s27 = ssub.s32 %s21, 2
      %s34 = sadd.s32 1, %s29
      %p35 = scmp.ge.s32.totalorder %s34, 1
      %s36 = scalar_select %p35, 0, %s34
      %s37 = sadd.s32 1, %s28
      %s38 = scalar_select %p35, %s37, %s28
      %p39 = scmp.ge.s32.totalorder %s38, 2
      %s40 = scalar_select %p39, 0, %s38
      %s41 = smul.u32 %s29, 2
      %s42 = ssub.s32 0, %s41
      %s43 = smul.u32 %s28, %s42
      %s44 = sadd.s32 %s29, %s43
      %s45 = smul.u32 %s36, 2
      %s46 = ssub.s32 0, %s45
      %s47 = smul.u32 %s40, %s46
      %s48 = sadd.s32 %s36, %s47
      %s49 = ssub.s32 %s44, %s48
      %p50 = scmp.eq.s32.totalorder %s49, 0
      %s52 = sadd.s32 %s51, 1
      %s53 = scalar_select %p50, %s51, %s52
      %p56 = pneg %p50
      %p57 = scmp.eq.s32.totalorder %s21, 1
      %p58 = por %p56, %p57
      %p59 = scmp.ne.s32.totalorder %s51, %s54
      %p60 = scmp.eq.s32.totalorder %s21, 0
      %p61 = por %p59, %p60
      %p62 = scmp.ne.s32.totalorder %s51, %s54
      %p63 = scmp.eq.s32.totalorder %s26, 1
      %p64 = por %p62, %p63
      %p65 = scmp.ne.s32.totalorder %s54, %s55
      %p66 = scmp.eq.s32.totalorder %s26, 0
      %p67 = por %p65, %p66
      %p68 = scmp.ne.s32.totalorder %s54, %s55
      %p69 = scmp.eq.s32.totalorder %s27, 1
      %p70 = por %p68, %p69
      %p72 = scmp.ne.s32.totalorder %s55, %s71
      %p73 = scmp.eq.s32.totalorder %s27, 0
      %p74 = por %p72, %p73
      %s75 = ssub.s32 %s28, %s40
      %p76 = scmp.eq.s32.totalorder %s75, 0
      %s78 = sadd.s32 %s77, 1
      %s79 = scalar_select %p76, %s77, %s78
      %p82 = pneg %p76
      %p83 = scmp.eq.s32.totalorder %s21, 1
      %p84 = por %p82, %p83
      %p85 = scmp.ne.s32.totalorder %s77, %s80
      %p86 = scmp.eq.s32.totalorder %s21, 0
      %p87 = por %p85, %p86
      %p88 = scmp.ne.s32.totalorder %s77, %s80
      %p89 = scmp.eq.s32.totalorder %s26, 1
      %p90 = por %p88, %p89
      %p91 = scmp.ne.s32.totalorder %s80, %s81
      %p92 = scmp.eq.s32.totalorder %s26, 0
      %p93 = por %p91, %p92
      %p94 = scmp.ne.s32.totalorder %s80, %s81
      %p95 = scmp.eq.s32.totalorder %s27, 1
      %p96 = por %p94, %p95
      %p98 = scmp.ne.s32.totalorder %s81, %s97
      %p99 = scmp.eq.s32.totalorder %s27, 0
      %p100 = por %p98, %p99
      %s101 = ssub.s32 %s28, %s40
      %p102 = scmp.eq.s32.totalorder %s101, 0
      %s104 = sadd.s32 %s103, 1
      %s105 = scalar_select %p102, %s103, %s104
      %p108 = pneg %p102
      %p109 = scmp.eq.s32.totalorder %s21, 1
      %p110 = por %p108, %p109
      %p111 = scmp.ne.s32.totalorder %s103, %s106
      %p112 = scmp.eq.s32.totalorder %s21, 0
      %p113 = por %p111, %p112
      %p114 = scmp.ne.s32.totalorder %s103, %s106
      %p115 = scmp.eq.s32.totalorder %s26, 1
      %p116 = por %p114, %p115
      %p117 = scmp.ne.s32.totalorder %s106, %s107
      %p118 = scmp.eq.s32.totalorder %s26, 0
      %p119 = por %p117, %p118
      %p120 = scmp.ne.s32.totalorder %s106, %s107
      %p121 = scmp.eq.s32.totalorder %s27, 1
      %p122 = por %p120, %p121
      %p124 = scmp.ne.s32.totalorder %s107, %s123
      %p125 = scmp.eq.s32.totalorder %s27, 0
      %p126 = por %p124, %p125
      %s127 = ssub.s32 %s28, %s40
      %p128 = scmp.eq.s32.totalorder %s127, 0
      %s130 = sadd.s32 %s129, 1
      %s131 = scalar_select %p128, %s129, %s130
      %p134 = pneg %p128
      %p135 = scmp.eq.s32.totalorder %s21, 1
      %p136 = por %p134, %p135
      %p137 = scmp.ne.s32.totalorder %s129, %s132
      %p138 = scmp.eq.s32.totalorder %s21, 0
      %p139 = por %p137, %p138
      %p140 = scmp.ne.s32.totalorder %s129, %s132
      %p141 = scmp.eq.s32.totalorder %s26, 1
      %p142 = por %p140, %p141
      %p143 = scmp.ne.s32.totalorder %s132, %s133
      %p144 = scmp.eq.s32.totalorder %s26, 0
      %p145 = por %p143, %p144
      %p146 = scmp.ne.s32.totalorder %s132, %s133
      %p147 = scmp.eq.s32.totalorder %s27, 1
      %p148 = por %p146, %p147
      %p150 = scmp.ne.s32.totalorder %s133, %s149
      %p151 = scmp.eq.s32.totalorder %s27, 0
      %p152 = por %p150, %p151
      %s153 = smul.u32 %s29, 2
      %s154 = ssub.s32 0, %s153
      %s155 = smul.u32 %s28, %s154
      %s156 = sadd.s32 %s29, %s155
      %s157 = smul.u32 %s36, 2
      %s158 = ssub.s32 0, %s157
      %s159 = smul.u32 %s40, %s158
      %s160 = sadd.s32 %s36, %s159
      %s161 = ssub.s32 %s156, %s160
      %s162 = ssub.s32 %s28, %s40
      %s163 = sor.u32 %s161, %s162
      %p164 = scmp.eq.s32.totalorder %s163, 0
      %s166 = sadd.s32 %s165, 1
      %s167 = scalar_select %p164, %s165, %s166
      %p170 = pneg %p164
      %p171 = scmp.eq.s32.totalorder %s21, 1
      %p172 = por %p170, %p171
      %p173 = scmp.ne.s32.totalorder %s165, %s168
      %p174 = scmp.eq.s32.totalorder %s21, 0
      %p175 = por %p173, %p174
      %p176 = scmp.ne.s32.totalorder %s165, %s168
      %p177 = scmp.eq.s32.totalorder %s26, 1
      %p178 = por %p176, %p177
      %p179 = scmp.ne.s32.totalorder %s168, %s169
      %p180 = scmp.eq.s32.totalorder %s26, 0
      %p181 = por %p179, %p180
      %p182 = scmp.ne.s32.totalorder %s168, %s169
      %p183 = scmp.eq.s32.totalorder %s27, 1
      %p184 = por %p182, %p183
      %p186 = scmp.ne.s32.totalorder %s169, %s185
      %p187 = scmp.eq.s32.totalorder %s27, 0
      %p188 = por %p186, %p187
      %s189 = ssub.s32 %s28, %s40
      %p190 = scmp.eq.s32.totalorder %s189, 0
      %s192 = sadd.s32 %s191, 1
      %s193 = scalar_select %p190, %s191, %s192
      %p196 = pneg %p190
      %p197 = scmp.eq.s32.totalorder %s21, 1
      %p198 = por %p196, %p197
      %p199 = scmp.ne.s32.totalorder %s191, %s194
      %p200 = scmp.eq.s32.totalorder %s21, 0
      %p201 = por %p199, %p200
      %p202 = scmp.ne.s32.totalorder %s191, %s194
      %p203 = scmp.eq.s32.totalorder %s26, 1
      %p204 = por %p202, %p203
      %p205 = scmp.ne.s32.totalorder %s194, %s195
      %p206 = scmp.eq.s32.totalorder %s26, 0
      %p207 = por %p205, %p206
      %p208 = scmp.ne.s32.totalorder %s194, %s195
      %p209 = scmp.eq.s32.totalorder %s27, 1
      %p210 = por %p208, %p209
      %p212 = scmp.ne.s32.totalorder %s195, %s211
      %p213 = scmp.eq.s32.totalorder %s27, 0
      %p214 = por %p212, %p213
      %p215 = scmp.le.s32.totalorder 1, %s21
      %p216 = scmp.lt.s32.totalorder %s21, 3
      %p217 = pnand %p215, %p216
      %p218 = pneg %p217
      // Predicated region
      $region9: #{document_classifier_forward.3} parent=5 // pred_check
        _
      $region10: #{document_classifier_forward.3} parent=5 // pred_check_branch
        %220 = sbr.rel (%p217) target = $region12
      $region11: #{document_classifier_forward.3} parent=5 // pred_region
        %s221 = ssub.s32 %s21, 1
      $region12: #{document_classifier_forward.3} parent=5 // pred_fallthru
        _
      %p222 = scmp.lt.s32.totalorder %s21, 2
      // Predicated region
      $region13: #{document_classifier_forward.3} parent=5 // pred_check
        %p223 = pneg %p222
      $region14: #{document_classifier_forward.3} parent=5 // pred_check_branch
        %225 = sbr.rel (%p223) target = $region16
      $region15: #{document_classifier_forward.3} parent=5 // pred_region
        // Predicated region
        $region17: #{document_classifier_forward.3} parent=15 // pred_check
          %p226 = pneg %p61
        $region18: #{document_classifier_forward.3} parent=15 // pred_check_branch
          %228 = sbr.rel (%p226) target = $region20
        $region19: #{document_classifier_forward.3} parent=15 // pred_region
          %s229 = smul.u32 %s29, 2
          %s230 = ssub.s32 0, %s229
          %s231 = smul.u32 %s28, %s230
          %s232 = sadd.s32 %s29, %s231
          %s233 = smul.u32 8, %s232
          %p234 = scmp.lt.s32.totalorder %s233, 7
          %s235 = scalar_select %p234, %s233, 7
          %s236 = smul.addr %s235, 2
          %s237 = smul.addr %s236, 4
          %s238 = scalar_lea.vmem %s0, %s237
          %s239 = smul.u32 %s29, 2
          %s240 = ssub.s32 0, %s239
          %s241 = smul.u32 %s28, %s240
          %s242 = sadd.s32 %s29, %s241
          %s243 = smul.u32 8, %s242
        $region20: #{document_classifier_forward.3} parent=15 // pred_fallthru
          _
        // Predicated region
        $region21: #{document_classifier_forward.3} parent=15 // pred_check
          %p244 = pneg %p87
        $region22: #{document_classifier_forward.3} parent=15 // pred_check_branch
          %246 = sbr.rel (%p244) target = $region24
        $region23: #{document_classifier_forward.3} parent=15 // pred_region
          %s247 = sand.u32 %s77, 1
          %s248 = scalar_lea.sflag [#allocation6], %s247
          %s249 = sand.u32 %s77, 1
          %s250 = smul.addr %s249, 64
          %s251 = scalar_lea.vmem [#allocation5], %s250
          %s253 = ssub.s32 1024, 1024
          %254 = vsyncadd %s248, %s253
          %s255 = smul.addr %s28, 16
          %s256 = smul.addr %s255, 64
          %s257 = scalar_lea.hbm %s1, %s256
          %s258 = sshll.u32 %s251, 4
          %s259 = int_to_ptr.vmem [resolvable:$true] %s258
          %264 = dma.hbm_to_vmem [thread:$0]  %s257, 1024, %s259, %s248, 256, 256, 16
        $region24: #{document_classifier_forward.3} parent=15 // pred_fallthru
          _
        // Predicated region
        $region25: #{document_classifier_forward.3} parent=15 // pred_check
          %p265 = pneg %p113
        $region26: #{document_classifier_forward.3} parent=15 // pred_check_branch
          %267 = sbr.rel (%p265) target = $region28
        $region27: #{document_classifier_forward.3} parent=15 // pred_region
          %s268 = sand.u32 %s21, 1
          %s269 = scalar_lea.sflag [#allocation9], %s268
          %s270 = sand.u32 %s103, 1
          %s271 = smul.addr %s270, 4
          %s272 = scalar_lea.vmem [#allocation8], %s271
          %s274 = ssub.s32 64, 64
          %275 = vsyncadd %s269, %s274
          %s276 = smul.addr %s28, 4
          %s277 = smul.addr %s276, 16
          %s278 = scalar_lea.hbm %s2, %s277
          %s280 = sshll.u32 %s272, 4
          %s281 = int_to_ptr.vmem [resolvable:$true] %s280
          %283 = dma.hbm_to_vmem [thread:$0]  %s278, 64, %s281, %s269
        $region28: #{document_classifier_forward.3} parent=15 // pred_fallthru
          _
        // Predicated region
        $region29: #{document_classifier_forward.3} parent=15 // pred_check
          %p284 = pneg %p139
        $region30: #{document_classifier_forward.3} parent=15 // pred_check_branch
          %286 = sbr.rel (%p284) target = $region32
        $region31: #{document_classifier_forward.3} parent=15 // pred_region
          %s287 = sand.u32 %s21, 1
          %s288 = scalar_lea.sflag [#allocation9], %s287
          %s289 = sand.u32 %s129, 1
          %s290 = smul.addr %s289, 256
          %s291 = scalar_lea.vmem [#allocation10], %s290
          %s293 = ssub.s32 4096, 4096
          %294 = vsyncadd %s288, %s293
          %s295 = smul.addr %s28, 64
          %s296 = smul.addr %s295, 64
          %s297 = scalar_lea.hbm %s3, %s296
          %s298 = sshll.u32 %s291, 4
          %s299 = int_to_ptr.vmem [resolvable:$true] %s298
          %304 = dma.hbm_to_vmem [thread:$0]  %s297, 4096, %s299, %s288, 256, 256, 16
        $region32: #{document_classifier_forward.3} parent=15 // pred_fallthru
          _
      $region16: #{document_classifier_forward.3} parent=5 // pred_fallthru
        _
      %p305 = scmp.le.s32.totalorder 1, %s21
      %p306 = scmp.lt.s32.totalorder %s21, 3
      %p307 = pnand %p305, %p306
      %p308 = pneg %p307
      // Predicated region
      $region33: #{document_classifier_forward.3} parent=5 // pred_check
        _
      $region34: #{document_classifier_forward.3} parent=5 // pred_check_branch
        %310 = sbr.rel (%p307) target = $region36
      $region35: #{document_classifier_forward.3} parent=5 // pred_region
        %s311 = ssub.s32 %s21, 1
        %s312 = sand.u32 %s80, 1
        %s313 = scalar_lea.sflag [#allocation6], %s312
        %s314 = sand.u32 %s80, 1
        %s315 = smul.addr %s314, 64
        %s316 = scalar_lea.vmem [#allocation5], %s315
        // Predicated region
        $region37: #{document_classifier_forward.3} parent=35 // pred_check
          %p317 = pneg %p93
        $region38: #{document_classifier_forward.3} parent=35 // pred_check_branch
          %319 = sbr.rel (%p317) target = $region40
        $region39: #{document_classifier_forward.3} parent=35 // pred_region
          %320 = dma.done %s313, 1024
        $region40: #{document_classifier_forward.3} parent=35 // pred_fallthru
          _
        %s321 = sand.u32 %s26, 1
        %s322 = scalar_lea.sflag [#allocation9], %s321
        %s323 = sand.u32 %s106, 1
        %s324 = smul.addr %s323, 4
        %s325 = scalar_lea.vmem [#allocation8], %s324
        // Predicated region
        $region41: #{document_classifier_forward.3} parent=35 // pred_check
          %p326 = pneg %p119
        $region42: #{document_classifier_forward.3} parent=35 // pred_check_branch
          %328 = sbr.rel (%p326) target = $region44
        $region43: #{document_classifier_forward.3} parent=35 // pred_region
          %329 = dma.done %s322, 64
        $region44: #{document_classifier_forward.3} parent=35 // pred_fallthru
          _
        %s330 = sand.u32 %s26, 1
        %s331 = scalar_lea.sflag [#allocation9], %s330
        %s332 = sand.u32 %s132, 1
        %s333 = smul.addr %s332, 256
        %s334 = scalar_lea.vmem [#allocation10], %s333
        // Predicated region
        $region45: #{document_classifier_forward.3} parent=35 // pred_check
          %p335 = pneg %p145
        $region46: #{document_classifier_forward.3} parent=35 // pred_check_branch
          %337 = sbr.rel (%p335) target = $region48
        $region47: #{document_classifier_forward.3} parent=35 // pred_region
          %338 = dma.done %s331, 4096
        $region48: #{document_classifier_forward.3} parent=35 // pred_fallthru
          _
        %s339 = smul.u32 %s31, 2
        %s340 = ssub.s32 0, %s339
        %s341 = smul.u32 %s30, %s340
        %s342 = sadd.s32 %s31, %s341
        %s343 = smul.u32 8, %s342
        %p344 = scmp.lt.s32.totalorder %s343, 7
        %s345 = scalar_select %p344, %s343, 7
        %s346 = smul.addr %s345, 2
        %s347 = smul.addr %s346, 4
        %s348 = scalar_lea.vmem %s0, %s347
        %p349 = pneg %p67
        %p350 = pneg %p64
        %s351 = sand.u32 %s80, 1
        %s352 = scalar_lea.sflag [#allocation6], %s351
        %s353 = sand.u32 %s80, 1
        %s354 = smul.addr %s353, 64
        %s355 = scalar_lea.vmem [#allocation5], %s354
        %p356 = pneg %p93
        %p357 = pneg %p90
        %s358 = sand.u32 %s26, 1
        %s359 = scalar_lea.sflag [#allocation9], %s358
        %s360 = sand.u32 %s106, 1
        %s361 = smul.addr %s360, 4
        %s362 = scalar_lea.vmem [#allocation8], %s361
        %p363 = pneg %p119
        %p364 = pneg %p116
        %s365 = sand.u32 %s26, 1
        %s366 = scalar_lea.sflag [#allocation9], %s365
        %s367 = sand.u32 %s132, 1
        %s368 = smul.addr %s367, 256
        %s369 = scalar_lea.vmem [#allocation10], %s368
        %p370 = pneg %p145
        %p371 = pneg %p142
        %p372 = pneg %p181
        %p373 = pneg %p178
        %s374 = sand.u32 %s168, 1
        %s375 = sand.u32 %s168, 1
        %s376 = smul.addr %s375, 64
        %s377 = scalar_lea.vmem [#allocation11], %s376
        %p378 = pneg %p207
        %p379 = pneg %p204
        %s380 = sand.u32 %s194, 1
        %s381 = scalar_lea.sflag [#allocation7], %s380
        %s382 = sand.u32 %s194, 1
        %s383 = smul.addr %s382, 16
        %s384 = scalar_lea.vmem [#allocation12], %s383
        %s385 = smul.u32 %s31, 2
        %s386 = ssub.s32 0, %s385
        %s387 = smul.u32 %s30, %s386
        %s388 = sadd.s32 %s31, %s387
        %s389 = smul.u32 8, %s388
        %p390 = scmp.lt.s32.totalorder %s389, 7
        %s391 = scalar_select %p390, %s389, 7
        %s392 = smul.addr %s391, 2
        %s393 = smul.addr %s392, 4
        %s394 = scalar_lea.vmem %s0, %s393
        %s395 = smul.u32 %s31, 2
        %s396 = ssub.s32 0, %s395
        %s397 = smul.u32 %s30, %s396
        %s398 = sadd.s32 %s31, %s397
        %s399 = smul.u32 8, %s398
        %s400 = smul.u32 %s31, 2
        %s401 = ssub.s32 0, %s400
        %s402 = smul.u32 %s30, %s401
        %s403 = sadd.s32 %s31, %s402
        %s404 = smul.u32 8, %s403
        %p406 = scmp.eq.s32.totalorder %s31, 0
        // Predicated region
        $region49: #{document_classifier_forward.3} parent=35 // pred_check
          %p407 = pneg %p406
        $region50: #{document_classifier_forward.3} parent=35 // pred_check_branch
          %409 = sbr.rel (%p407) target = $region52
        $region51: #{document_classifier_forward.3} parent=35 // pred_region
          %410 = vst [vmem:[#allocation3] sm:$0xff] 0.0
          %411 = vst [vmem:[#allocation3 + $0x8] sm:$0xff] 0.0
          %412 = vst [vmem:[#allocation4] sm:$0xff] 0.0
          %413 = vst [vmem:[#allocation4 + $0x8] sm:$0xff] 0.0
          %414 = vst [vmem:[%s384] sm:$0xff] 0.0
          %415 = vst [vmem:[%s384 + $0x8] sm:$0xff] 0.0
        $region52: #{document_classifier_forward.3} parent=35 // pred_fallthru
          _
        %v416 = vld [vmem:[%s394] sm:$0xf]
        %v417 = vld [vmem:[%s394 + $0x4] sm:$0xf]
        %v418 = vld [vmem:[%s394 + $0x8] sm:$0xf]
        %v419 = vld [vmem:[%s394 + $0xc] sm:$0xf]
        %v420 = vld [vmem:[%s394 + $0x10] sm:$0xf]
        %v421 = vld [vmem:[%s394 + $0x14] sm:$0xf]
        %v422 = vld [vmem:[%s394 + $0x18] sm:$0xf]
        %v423 = vld [vmem:[%s394 + $0x1c] sm:$0xf]
        %v424 = vld [vmem:[%s394 + $0x20] sm:$0xf]
        %v425 = vld [vmem:[%s394 + $0x24] sm:$0xf]
        %v426 = vld [vmem:[%s394 + $0x28] sm:$0xf]
        %v427 = vld [vmem:[%s394 + $0x2c] sm:$0xf]
        %v428 = vld [vmem:[%s394 + $0x30] sm:$0xf]
        %v429 = vld [vmem:[%s394 + $0x34] sm:$0xf]
        %v430 = vld [vmem:[%s394 + $0x38] sm:$0xf]
        %v431 = vld [vmem:[%s394 + $0x3c] sm:$0xf]
        %v432 = vld [vmem:[%s316] sm:$0xff]
        %v433 = vld [vmem:[%s316 + $0x8] sm:$0xff]
        %v434 = vld [vmem:[%s316 + $0x10] sm:$0xff]
        %v435 = vld [vmem:[%s316 + $0x18] sm:$0xff]
        %v436 = vld [vmem:[%s316 + $0x20] sm:$0xff]
        %v437 = vld [vmem:[%s316 + $0x28] sm:$0xff]
        %v438 = vld [vmem:[%s316 + $0x30] sm:$0xff]
        %v439 = vld [vmem:[%s316 + $0x38] sm:$0xff]
        %v440 = vld [vmem:[%s325] sm:$0xf]
        %v442 = vlaneseq
        %v443 = vshrl.u32 %v442, 7
        %v444 = vsub.s32 0, %v443
        %v445 = vrot.slane %v440, %v444
        %v446 = vlaneseq
        %v447 = vshrl.u32 %v446, 7
        %v448 = vsub.s32 1, %v447
        %v449 = vrot.slane %v440, %v448
        %v450 = vlaneseq
        %v451 = vshrl.u32 %v450, 7
        %v452 = vsub.s32 2, %v451
        %v453 = vrot.slane %v440, %v452
        %v454 = vlaneseq
        %v455 = vshrl.u32 %v454, 7
        %v456 = vsub.s32 3, %v455
        %v457 = vrot.slane %v440, %v456
        %v478 = vunpack.c.l.b16 %v416
        %v479 = vunpack.c.l.b16 %v417
        %v480 = vunpack.c.l.b16 %v418
        %v481 = vunpack.c.l.b16 %v419
        %v482 = vunpack.c.l.b16 %v420
        %v483 = vunpack.c.l.b16 %v421
        %v484 = vunpack.c.l.b16 %v422
        %v485 = vunpack.c.l.b16 %v423
        %v486 = vunpack.c.l.b16 %v424
        %v487 = vunpack.c.l.b16 %v425
        %v488 = vunpack.c.l.b16 %v426
        %v489 = vunpack.c.l.b16 %v427
        %v490 = vunpack.c.l.b16 %v428
        %v491 = vunpack.c.l.b16 %v429
        %v492 = vunpack.c.l.b16 %v430
        %v493 = vunpack.c.l.b16 %v431
        %v494 = vpack.c.b16 %v479, %v478
        %v495 = vpack.c.b16 %v481, %v480
        %v496 = vpack.c.b16 %v483, %v482
        %v497 = vpack.c.b16 %v485, %v484
        %v498 = vpack.c.b16 %v487, %v486
        %v499 = vpack.c.b16 %v489, %v488
        %v500 = vpack.c.b16 %v491, %v490
        %v501 = vpack.c.b16 %v493, %v492
        %v510 = vunpack.c.l.b16 %v432
        %v511 = vunpack.c.h.b16 %v432
        %v512 = vunpack.c.l.b16 %v433
        %v513 = vunpack.c.h.b16 %v433
        %v514 = vunpack.c.l.b16 %v434
        %v515 = vunpack.c.h.b16 %v434
        %v516 = vunpack.c.l.b16 %v435
        %v517 = vunpack.c.h.b16 %v435
        %v518 = vunpack.c.l.b16 %v436
        %v519 = vunpack.c.h.b16 %v436
        %v520 = vunpack.c.l.b16 %v437
        %v521 = vunpack.c.h.b16 %v437
        %v522 = vunpack.c.l.b16 %v438
        %v523 = vunpack.c.h.b16 %v438
        %v524 = vunpack.c.l.b16 %v439
        %v525 = vunpack.c.h.b16 %v439
        %v526 = vpack.c.b16 %v514, %v510
        %v527 = vpack.c.b16 %v515, %v511
        %v528 = vpack.c.b16 %v516, %v512
        %v529 = vpack.c.b16 %v517, %v513
        %v530 = vpack.c.b16 %v522, %v518
        %v531 = vpack.c.b16 %v523, %v519
        %v532 = vpack.c.b16 %v524, %v520
        %v533 = vpack.c.b16 %v525, %v521
        %vm542 = vcmask 261120
        %v544 = vsel %vm542, %v494, 0
        %v547 = vsel %vm542, %v495, 0
        %v550 = vsel %vm542, %v496, 0
        %v553 = vsel %vm542, %v497, 0
        %v556 = vsel %vm542, %v498, 0
        %v559 = vsel %vm542, %v499, 0
        %v562 = vsel %vm542, %v500, 0
        %v565 = vsel %vm542, %v501, 0
        %567 = vmatprep.subr.bf16.mxu0 0
        %568 = vmatpush1.bf16.msra.mxu0 0
        %569 = vmatprep.subr.bf16.mxu0 0
        %570 = vmatpush1.bf16.msra.mxu0 0
        %571 = vmatprep.subr.bf16.mxu0 0
        %572 = vmatpush1.bf16.msra.mxu0 0
        %573 = vmatprep.subr.bf16.mxu0 0
        %574 = vmatpush1.bf16.msra.mxu0 0
        %575 = vmatprep.subr.bf16.mxu0 0
        %576 = vmatpush1.bf16.msra.mxu0 0
        %577 = vmatprep.subr.bf16.mxu0 0
        %578 = vmatpush1.bf16.msra.mxu0 0
        %579 = vmatprep.subr.bf16.mxu0 %v531
        %580 = vmatpush1.bf16.msra.mxu0 %v530
        %581 = vmatprep.subr.bf16.mxu0 %v527
        %582 = vmatpush1.bf16.msra.mxu0 %v526
        %583 = vmatprep.subr.bf16.mxu0 0
        %584 = vmatpush2.bf16.msra.mxu0 0
        %585 = vmatprep.subr.bf16.mxu0 0
        %586 = vmatpush2.bf16.msra.mxu0 0
        %587 = vmatprep.subr.bf16.mxu0 0
        %588 = vmatpush2.bf16.msra.mxu0 0
        %589 = vmatprep.subr.bf16.mxu0 0
        %590 = vmatpush2.bf16.msra.mxu0 0
        %591 = vmatprep.subr.bf16.mxu0 0
        %592 = vmatpush2.bf16.msra.mxu0 0
        %593 = vmatprep.subr.bf16.mxu0 0
        %594 = vmatpush2.bf16.msra.mxu0 0
        %595 = vmatprep.subr.bf16.mxu0 0
        %596 = vmatpush2.bf16.msra.mxu0 0
        %597 = vmatprep.subr.bf16.mxu0 0
        %598 = vmatpush2.bf16.msra.mxu0 0
        %599 = vmatprep.mubr.bf16.mxu0 0
        %600 = vmatmul.mubr.bf16.gmra.mxu0 %v544
        %v601 = vpop.f32.mrf.mxu0
        %v602 = vadd.f32 %v445, %v601
        %v603 = vpop.f32.mrf.mxu0
        %v604 = vadd.f32 %v449, %v603
        %v605 = vpop.f32.mrf.mxu0
        %v606 = vadd.f32 %v445, %v605
        %v607 = vpop.f32.mrf.mxu0
        %v608 = vadd.f32 %v449, %v607
        %609 = vmatprep.mubr.bf16.mxu0 0
        %610 = vmatmul.mubr.bf16.gmra.mxu0 %v547
        %v611 = vpop.f32.mrf.mxu0
        %v612 = vadd.f32 %v445, %v611
        %v613 = vpop.f32.mrf.mxu0
        %v614 = vadd.f32 %v449, %v613
        %v615 = vpop.f32.mrf.mxu0
        %v616 = vadd.f32 %v445, %v615
        %v617 = vpop.f32.mrf.mxu0
        %v618 = vadd.f32 %v449, %v617
        %619 = vmatprep.mubr.bf16.mxu0 0
        %620 = vmatmul.mubr.bf16.gmra.mxu0 %v550
        %v621 = vpop.f32.mrf.mxu0
        %v622 = vadd.f32 %v445, %v621
        %v623 = vpop.f32.mrf.mxu0
        %v624 = vadd.f32 %v449, %v623
        %v625 = vpop.f32.mrf.mxu0
        %v626 = vadd.f32 %v445, %v625
        %v627 = vpop.f32.mrf.mxu0
        %v628 = vadd.f32 %v449, %v627
        %629 = vmatprep.mubr.bf16.mxu0 0
        %630 = vmatmul.mubr.bf16.gmra.mxu0 %v553
        %v631 = vpop.f32.mrf.mxu0
        %v632 = vadd.f32 %v445, %v631
        %v633 = vpop.f32.mrf.mxu0
        %v634 = vadd.f32 %v449, %v633
        %v635 = vpop.f32.mrf.mxu0
        %v636 = vadd.f32 %v445, %v635
        %v637 = vpop.f32.mrf.mxu0
        %v638 = vadd.f32 %v449, %v637
        %639 = vmatprep.mubr.bf16.mxu0 0
        %640 = vmatmul.mubr.bf16.gmra.mxu0 %v556
        %v641 = vpop.f32.mrf.mxu0
        %v642 = vadd.f32 %v445, %v641
        %v643 = vpop.f32.mrf.mxu0
        %v644 = vadd.f32 %v449, %v643
        %v645 = vpop.f32.mrf.mxu0
        %v646 = vadd.f32 %v445, %v645
        %v647 = vpop.f32.mrf.mxu0
        %v648 = vadd.f32 %v449, %v647
        %649 = vmatprep.mubr.bf16.mxu0 0
        %650 = vmatmul.mubr.bf16.gmra.mxu0 %v559
        %v651 = vpop.f32.mrf.mxu0
        %v652 = vadd.f32 %v445, %v651
        %v653 = vpop.f32.mrf.mxu0
        %v654 = vadd.f32 %v449, %v653
        %v655 = vpop.f32.mrf.mxu0
        %v656 = vadd.f32 %v445, %v655
        %v657 = vpop.f32.mrf.mxu0
        %v658 = vadd.f32 %v449, %v657
        %659 = vmatprep.mubr.bf16.mxu0 0
        %660 = vmatmul.mubr.bf16.gmra.mxu0 %v562
        %v661 = vpop.f32.mrf.mxu0
        %v662 = vadd.f32 %v445, %v661
        %v663 = vpop.f32.mrf.mxu0
        %v664 = vadd.f32 %v449, %v663
        %v665 = vpop.f32.mrf.mxu0
        %v666 = vadd.f32 %v445, %v665
        %v667 = vpop.f32.mrf.mxu0
        %v668 = vadd.f32 %v449, %v667
        %669 = vmatprep.mubr.bf16.mxu0 0
        %670 = vmatmul.mubr.bf16.gmra.mxu0 %v565
        %v671 = vpop.f32.mrf.mxu0
        %v672 = vadd.f32 %v445, %v671
        %v673 = vpop.f32.mrf.mxu0
        %v674 = vadd.f32 %v449, %v673
        %v675 = vpop.f32.mrf.mxu0
        %v676 = vadd.f32 %v445, %v675
        %v677 = vpop.f32.mrf.mxu0
        %v678 = vadd.f32 %v449, %v677
        %679 = vdwg.mxu0
        %680 = vmatprep.subr.bf16.mxu0 0
        %681 = vmatpush1.bf16.msra.mxu0 0
        %682 = vmatprep.subr.bf16.mxu0 0
        %683 = vmatpush1.bf16.msra.mxu0 0
        %684 = vmatprep.subr.bf16.mxu0 0
        %685 = vmatpush1.bf16.msra.mxu0 0
        %686 = vmatprep.subr.bf16.mxu0 0
        %687 = vmatpush1.bf16.msra.mxu0 0
        %688 = vmatprep.subr.bf16.mxu0 0
        %689 = vmatpush1.bf16.msra.mxu0 0
        %690 = vmatprep.subr.bf16.mxu0 0
        %691 = vmatpush1.bf16.msra.mxu0 0
        %692 = vmatprep.subr.bf16.mxu0 %v533
        %693 = vmatpush1.bf16.msra.mxu0 %v532
        %694 = vmatprep.subr.bf16.mxu0 %v529
        %695 = vmatpush1.bf16.msra.mxu0 %v528
        %696 = vmatprep.subr.bf16.mxu0 0
        %697 = vmatpush2.bf16.msra.mxu0 0
        %698 = vmatprep.subr.bf16.mxu0 0
        %699 = vmatpush2.bf16.msra.mxu0 0
        %700 = vmatprep.subr.bf16.mxu0 0
        %701 = vmatpush2.bf16.msra.mxu0 0
        %702 = vmatprep.subr.bf16.mxu0 0
        %703 = vmatpush2.bf16.msra.mxu0 0
        %704 = vmatprep.subr.bf16.mxu0 0
        %705 = vmatpush2.bf16.msra.mxu0 0
        %706 = vmatprep.subr.bf16.mxu0 0
        %707 = vmatpush2.bf16.msra.mxu0 0
        %708 = vmatprep.subr.bf16.mxu0 0
        %709 = vmatpush2.bf16.msra.mxu0 0
        %710 = vmatprep.subr.bf16.mxu0 0
        %711 = vmatpush2.bf16.msra.mxu0 0
        %712 = vmatprep.mubr.bf16.mxu0 0
        %713 = vmatmul.mubr.bf16.gmra.mxu0 %v544
        %v714 = vpop.f32.mrf.mxu0
        %v715 = vadd.f32 %v453, %v714
        %v716 = vpop.f32.mrf.mxu0
        %v717 = vadd.f32 %v457, %v716
        %v718 = vpop.f32.mrf.mxu0
        %v719 = vadd.f32 %v453, %v718
        %v720 = vpop.f32.mrf.mxu0
        %v721 = vadd.f32 %v457, %v720
        %722 = vmatprep.mubr.bf16.mxu0 0
        %723 = vmatmul.mubr.bf16.gmra.mxu0 %v547
        %v724 = vpop.f32.mrf.mxu0
        %v725 = vadd.f32 %v453, %v724
        %v726 = vpop.f32.mrf.mxu0
        %v727 = vadd.f32 %v457, %v726
        %v728 = vpop.f32.mrf.mxu0
        %v729 = vadd.f32 %v453, %v728
        %v730 = vpop.f32.mrf.mxu0
        %v731 = vadd.f32 %v457, %v730
        %732 = vmatprep.mubr.bf16.mxu0 0
        %733 = vmatmul.mubr.bf16.gmra.mxu0 %v550
        %v734 = vpop.f32.mrf.mxu0
        %v735 = vadd.f32 %v453, %v734
        %v736 = vpop.f32.mrf.mxu0
        %v737 = vadd.f32 %v457, %v736
        %v738 = vpop.f32.mrf.mxu0
        %v739 = vadd.f32 %v453, %v738
        %v740 = vpop.f32.mrf.mxu0
        %v741 = vadd.f32 %v457, %v740
        %742 = vmatprep.mubr.bf16.mxu0 0
        %743 = vmatmul.mubr.bf16.gmra.mxu0 %v553
        %v744 = vpop.f32.mrf.mxu0
        %v745 = vadd.f32 %v453, %v744
        %v746 = vpop.f32.mrf.mxu0
        %v747 = vadd.f32 %v457, %v746
        %v748 = vpop.f32.mrf.mxu0
        %v749 = vadd.f32 %v453, %v748
        %v750 = vpop.f32.mrf.mxu0
        %v751 = vadd.f32 %v457, %v750
        %752 = vmatprep.mubr.bf16.mxu0 0
        %753 = vmatmul.mubr.bf16.gmra.mxu0 %v556
        %v754 = vpop.f32.mrf.mxu0
        %v755 = vadd.f32 %v453, %v754
        %v756 = vpop.f32.mrf.mxu0
        %v757 = vadd.f32 %v457, %v756
        %v758 = vpop.f32.mrf.mxu0
        %v759 = vadd.f32 %v453, %v758
        %v760 = vpop.f32.mrf.mxu0
        %v761 = vadd.f32 %v457, %v760
        %762 = vmatprep.mubr.bf16.mxu0 0
        %763 = vmatmul.mubr.bf16.gmra.mxu0 %v559
        %v764 = vpop.f32.mrf.mxu0
        %v765 = vadd.f32 %v453, %v764
        %v766 = vpop.f32.mrf.mxu0
        %v767 = vadd.f32 %v457, %v766
        %v768 = vpop.f32.mrf.mxu0
        %v769 = vadd.f32 %v453, %v768
        %v770 = vpop.f32.mrf.mxu0
        %v771 = vadd.f32 %v457, %v770
        %772 = vmatprep.mubr.bf16.mxu0 0
        %773 = vmatmul.mubr.bf16.gmra.mxu0 %v562
        %v774 = vpop.f32.mrf.mxu0
        %v775 = vadd.f32 %v453, %v774
        %v776 = vpop.f32.mrf.mxu0
        %v777 = vadd.f32 %v457, %v776
        %v778 = vpop.f32.mrf.mxu0
        %v779 = vadd.f32 %v453, %v778
        %v780 = vpop.f32.mrf.mxu0
        %v781 = vadd.f32 %v457, %v780
        %782 = vmatprep.mubr.bf16.mxu0 0
        %783 = vmatmul.mubr.bf16.gmra.mxu0 %v565
        %v784 = vpop.f32.mrf.mxu0
        %v785 = vadd.f32 %v453, %v784
        %v786 = vpop.f32.mrf.mxu0
        %v787 = vadd.f32 %v457, %v786
        %v788 = vpop.f32.mrf.mxu0
        %v789 = vadd.f32 %v453, %v788
        %v790 = vpop.f32.mrf.mxu0
        %v791 = vadd.f32 %v457, %v790
        %792 = vdwg.mxu0
        %793 = vst [vmem:[#allocation2] sm:$0xff] %v602
        %794 = vst [vmem:[#allocation2 + $0x8] sm:$0xff] %v604
        %795 = vst [vmem:[#allocation2 + $0x10] sm:$0xff] %v715
        %796 = vst [vmem:[#allocation2 + $0x18] sm:$0xff] %v717
        %797 = vst [vmem:[#allocation2 + $0x20] sm:$0xff] %v606
        %798 = vst [vmem:[#allocation2 + $0x28] sm:$0xff] %v608
        %799 = vst [vmem:[#allocation2 + $0x30] sm:$0xff] %v719
        %800 = vst [vmem:[#allocation2 + $0x38] sm:$0xff] %v721
        %801 = vst [vmem:[#allocation2 + $0x40] sm:$0xff] %v612
        %802 = vst [vmem:[#allocation2 + $0x48] sm:$0xff] %v614
        %803 = vst [vmem:[#allocation2 + $0x50] sm:$0xff] %v725
        %804 = vst [vmem:[#allocation2 + $0x58] sm:$0xff] %v727
        %805 = vst [vmem:[#allocation2 + $0x60] sm:$0xff] %v616
        %806 = vst [vmem:[#allocation2 + $0x68] sm:$0xff] %v618
        %807 = vst [vmem:[#allocation2 + $0x70] sm:$0xff] %v729
        %808 = vst [vmem:[#allocation2 + $0x78] sm:$0xff] %v731
        %809 = vst [vmem:[#allocation2 + $0x80] sm:$0xff] %v622
        %810 = vst [vmem:[#allocation2 + $0x88] sm:$0xff] %v624
        %811 = vst [vmem:[#allocation2 + $0x90] sm:$0xff] %v735
        %812 = vst [vmem:[#allocation2 + $0x98] sm:$0xff] %v737
        %813 = vst [vmem:[#allocation2 + $0xa0] sm:$0xff] %v626
        %814 = vst [vmem:[#allocation2 + $0xa8] sm:$0xff] %v628
        %815 = vst [vmem:[#allocation2 + $0xb0] sm:$0xff] %v739
        %816 = vst [vmem:[#allocation2 + $0xb8] sm:$0xff] %v741
        %817 = vst [vmem:[#allocation2 + $0xc0] sm:$0xff] %v632
        %818 = vst [vmem:[#allocation2 + $0xc8] sm:$0xff] %v634
        %819 = vst [vmem:[#allocation2 + $0xd0] sm:$0xff] %v745
        %820 = vst [vmem:[#allocation2 + $0xd8] sm:$0xff] %v747
        %821 = vst [vmem:[#allocation2 + $0xe0] sm:$0xff] %v636
        %822 = vst [vmem:[#allocation2 + $0xe8] sm:$0xff] %v638
        %823 = vst [vmem:[#allocation2 + $0xf0] sm:$0xff] %v749
        %824 = vst [vmem:[#allocation2 + $0xf8] sm:$0xff] %v751
        %825 = vst [vmem:[#allocation2 + $0x100] sm:$0xff] %v642
        %826 = vst [vmem:[#allocation2 + $0x108] sm:$0xff] %v644
        %827 = vst [vmem:[#allocation2 + $0x110] sm:$0xff] %v755
        %828 = vst [vmem:[#allocation2 + $0x118] sm:$0xff] %v757
        %829 = vst [vmem:[#allocation2 + $0x120] sm:$0xff] %v646
        %830 = vst [vmem:[#allocation2 + $0x128] sm:$0xff] %v648
        %831 = vst [vmem:[#allocation2 + $0x130] sm:$0xff] %v759
        %832 = vst [vmem:[#allocation2 + $0x138] sm:$0xff] %v761
        %833 = vst [vmem:[#allocation2 + $0x140] sm:$0xff] %v652
        %834 = vst [vmem:[#allocation2 + $0x148] sm:$0xff] %v654
        %835 = vst [vmem:[#allocation2 + $0x150] sm:$0xff] %v765
        %836 = vst [vmem:[#allocation2 + $0x158] sm:$0xff] %v767
        %837 = vst [vmem:[#allocation2 + $0x160] sm:$0xff] %v656
        %838 = vst [vmem:[#allocation2 + $0x168] sm:$0xff] %v658
        %839 = vst [vmem:[#allocation2 + $0x170] sm:$0xff] %v769
        %840 = vst [vmem:[#allocation2 + $0x178] sm:$0xff] %v771
        %841 = vst [vmem:[#allocation2 + $0x180] sm:$0xff] %v662
        %842 = vst [vmem:[#allocation2 + $0x188] sm:$0xff] %v664
        %843 = vst [vmem:[#allocation2 + $0x190] sm:$0xff] %v775
        %844 = vst [vmem:[#allocation2 + $0x198] sm:$0xff] %v777
        %845 = vst [vmem:[#allocation2 + $0x1a0] sm:$0xff] %v666
        %846 = vst [vmem:[#allocation2 + $0x1a8] sm:$0xff] %v668
        %847 = vst [vmem:[#allocation2 + $0x1b0] sm:$0xff] %v779
        %848 = vst [vmem:[#allocation2 + $0x1b8] sm:$0xff] %v781
        %849 = vst [vmem:[#allocation2 + $0x1c0] sm:$0xff] %v672
        %850 = vst [vmem:[#allocation2 + $0x1c8] sm:$0xff] %v674
        %851 = vst [vmem:[#allocation2 + $0x1d0] sm:$0xff] %v785
        %852 = vst [vmem:[#allocation2 + $0x1d8] sm:$0xff] %v787
        %853 = vst [vmem:[#allocation2 + $0x1e0] sm:$0xff] %v676
        %854 = vst [vmem:[#allocation2 + $0x1e8] sm:$0xff] %v678
        %855 = vst [vmem:[#allocation2 + $0x1f0] sm:$0xff] %v789
        %856 = vst [vmem:[#allocation2 + $0x1f8] sm:$0xff] %v791
        %v857 = vld [vmem:[#allocation3] sm:$0xff]
        %v858 = vld [vmem:[#allocation3 + $0x8] sm:$0xff]
        %v859 = vld [vmem:[#allocation4] sm:$0xff]
        %v860 = vld [vmem:[#allocation4 + $0x8] sm:$0xff]
        %s861 = smul.u32 %s30, 7
        %s862 = smul.u32 %s861, 8
        %s863 = smul.addr %s862, 8
        %s864 = scalar_lea.vmem [#allocation2], %s863
        %v865 = vld [vmem:[%s864] sm:$0xff]
        %v866 = vld [vmem:[%s864 + $0x8] sm:$0xff]
        %v867 = vld [vmem:[%s864 + $0x10] sm:$0xff]
        %v868 = vld [vmem:[%s864 + $0x18] sm:$0xff]
        %v869 = vld [vmem:[%s864 + $0x20] sm:$0xff]
        %v870 = vld [vmem:[%s864 + $0x28] sm:$0xff]
        %v871 = vld [vmem:[%s864 + $0x30] sm:$0xff]
        %v872 = vld [vmem:[%s864 + $0x38] sm:$0xff]
        %v873 = vpack.c.bf16 %v858, %v857
        %v874 = vld [vmem:[%s334] sm:$0xff]
        %v875 = vld [vmem:[%s334 + $0x8] sm:$0xff]
        %v876 = vld [vmem:[%s334 + $0x10] sm:$0xff]
        %v877 = vld [vmem:[%s334 + $0x18] sm:$0xff]
        %v878 = vld [vmem:[%s334 + $0x20] sm:$0xff]
        %v879 = vld [vmem:[%s334 + $0x28] sm:$0xff]
        %v880 = vld [vmem:[%s334 + $0x30] sm:$0xff]
        %v881 = vld [vmem:[%s334 + $0x38] sm:$0xff]
        %v882 = vld [vmem:[%s334 + $0x40] sm:$0xff]
        %v883 = vld [vmem:[%s334 + $0x48] sm:$0xff]
        %v884 = vld [vmem:[%s334 + $0x50] sm:$0xff]
        %v885 = vld [vmem:[%s334 + $0x58] sm:$0xff]
        %v886 = vld [vmem:[%s334 + $0x60] sm:$0xff]
        %v887 = vld [vmem:[%s334 + $0x68] sm:$0xff]
        %v888 = vld [vmem:[%s334 + $0x70] sm:$0xff]
        %v889 = vld [vmem:[%s334 + $0x78] sm:$0xff]
        %v890 = vld [vmem:[%s334 + $0x80] sm:$0xff]
        %v891 = vld [vmem:[%s334 + $0x88] sm:$0xff]
        %v892 = vld [vmem:[%s334 + $0x90] sm:$0xff]
        %v893 = vld [vmem:[%s334 + $0x98] sm:$0xff]
        %v894 = vld [vmem:[%s334 + $0xa0] sm:$0xff]
        %v895 = vld [vmem:[%s334 + $0xa8] sm:$0xff]
        %v896 = vld [vmem:[%s334 + $0xb0] sm:$0xff]
        %v897 = vld [vmem:[%s334 + $0xb8] sm:$0xff]
        %v898 = vld [vmem:[%s334 + $0xc0] sm:$0xff]
        %v899 = vld [vmem:[%s334 + $0xc8] sm:$0xff]
        %v900 = vld [vmem:[%s334 + $0xd0] sm:$0xff]
        %v901 = vld [vmem:[%s334 + $0xd8] sm:$0xff]
        %v902 = vld [vmem:[%s334 + $0xe0] sm:$0xff]
        %v903 = vld [vmem:[%s334 + $0xe8] sm:$0xff]
        %v904 = vld [vmem:[%s334 + $0xf0] sm:$0xff]
        %v905 = vld [vmem:[%s334 + $0xf8] sm:$0xff]
        %v938 = vunpack.c.l.b16 %v874
        %v939 = vunpack.c.h.b16 %v874
        %v940 = vunpack.c.l.b16 %v875
        %v941 = vunpack.c.h.b16 %v875
        %v942 = vunpack.c.l.b16 %v876
        %v943 = vunpack.c.h.b16 %v876
        %v944 = vunpack.c.l.b16 %v877
        %v945 = vunpack.c.h.b16 %v877
        %v946 = vunpack.c.l.b16 %v878
        %v947 = vunpack.c.h.b16 %v878
        %v948 = vunpack.c.l.b16 %v879
        %v949 = vunpack.c.h.b16 %v879
        %v950 = vunpack.c.l.b16 %v880
        %v951 = vunpack.c.h.b16 %v880
        %v952 = vunpack.c.l.b16 %v881
        %v953 = vunpack.c.h.b16 %v881
        %v954 = vunpack.c.l.b16 %v882
        %v955 = vunpack.c.h.b16 %v882
        %v956 = vunpack.c.l.b16 %v883
        %v957 = vunpack.c.h.b16 %v883
        %v958 = vunpack.c.l.b16 %v884
        %v959 = vunpack.c.h.b16 %v884
        %v960 = vunpack.c.l.b16 %v885
        %v961 = vunpack.c.h.b16 %v885
        %v962 = vunpack.c.l.b16 %v886
        %v963 = vunpack.c.h.b16 %v886
        %v964 = vunpack.c.l.b16 %v887
        %v965 = vunpack.c.h.b16 %v887
        %v966 = vunpack.c.l.b16 %v888
        %v967 = vunpack.c.h.b16 %v888
        %v968 = vunpack.c.l.b16 %v889
        %v969 = vunpack.c.h.b16 %v889
        %v970 = vunpack.c.l.b16 %v890
        %v971 = vunpack.c.h.b16 %v890
        %v972 = vunpack.c.l.b16 %v891
        %v973 = vunpack.c.h.b16 %v891
        %v974 = vunpack.c.l.b16 %v892
        %v975 = vunpack.c.h.b16 %v892
        %v976 = vunpack.c.l.b16 %v893
        %v977 = vunpack.c.h.b16 %v893
        %v978 = vunpack.c.l.b16 %v894
        %v979 = vunpack.c.h.b16 %v894
        %v980 = vunpack.c.l.b16 %v895
        %v981 = vunpack.c.h.b16 %v895
        %v982 = vunpack.c.l.b16 %v896
        %v983 = vunpack.c.h.b16 %v896
        %v984 = vunpack.c.l.b16 %v897
        %v985 = vunpack.c.h.b16 %v897
        %v986 = vunpack.c.l.b16 %v898
        %v987 = vunpack.c.h.b16 %v898
        %v988 = vunpack.c.l.b16 %v899
        %v989 = vunpack.c.h.b16 %v899
        %v990 = vunpack.c.l.b16 %v900
        %v991 = vunpack.c.h.b16 %v900
        %v992 = vunpack.c.l.b16 %v901
        %v993 = vunpack.c.h.b16 %v901
        %v994 = vunpack.c.l.b16 %v902
        %v995 = vunpack.c.h.b16 %v902
        %v996 = vunpack.c.l.b16 %v903
        %v997 = vunpack.c.h.b16 %v903
        %v998 = vunpack.c.l.b16 %v904
        %v999 = vunpack.c.h.b16 %v904
        %v1000 = vunpack.c.l.b16 %v905
        %v1001 = vunpack.c.h.b16 %v905
        %v1002 = vpack.c.b16 %v942, %v938
        %v1003 = vpack.c.b16 %v943, %v939
        %v1004 = vpack.c.b16 %v944, %v940
        %v1005 = vpack.c.b16 %v945, %v941
        %v1006 = vpack.c.b16 %v950, %v946
        %v1007 = vpack.c.b16 %v951, %v947
        %v1008 = vpack.c.b16 %v952, %v948
        %v1009 = vpack.c.b16 %v953, %v949
        %v1010 = vpack.c.b16 %v958, %v954
        %v1011 = vpack.c.b16 %v959, %v955
        %v1012 = vpack.c.b16 %v960, %v956
        %v1013 = vpack.c.b16 %v961, %v957
        %v1014 = vpack.c.b16 %v966, %v962
        %v1015 = vpack.c.b16 %v967, %v963
        %v1016 = vpack.c.b16 %v968, %v964
        %v1017 = vpack.c.b16 %v969, %v965
        %v1018 = vpack.c.b16 %v974, %v970
        %v1019 = vpack.c.b16 %v975, %v971
        %v1020 = vpack.c.b16 %v976, %v972
        %v1021 = vpack.c.b16 %v977, %v973
        %v1022 = vpack.c.b16 %v982, %v978
        %v1023 = vpack.c.b16 %v983, %v979
        %v1024 = vpack.c.b16 %v984, %v980
        %v1025 = vpack.c.b16 %v985, %v981
        %v1026 = vpack.c.b16 %v990, %v986
        %v1027 = vpack.c.b16 %v991, %v987
        %v1028 = vpack.c.b16 %v992, %v988
        %v1029 = vpack.c.b16 %v993, %v989
        %v1030 = vpack.c.b16 %v998, %v994
        %v1031 = vpack.c.b16 %v999, %v995
        %v1032 = vpack.c.b16 %v1000, %v996
        %v1033 = vpack.c.b16 %v1001, %v997
        %1066 = vmatprep.subr.bf16.mxu0 %v1031
        %1067 = vmatpush1.bf16.msra.mxu0 %v1030
        %1068 = vmatprep.subr.bf16.mxu0 %v1027
        %1069 = vmatpush1.bf16.msra.mxu0 %v1026
        %1070 = vmatprep.subr.bf16.mxu0 %v1023
        %1071 = vmatpush1.bf16.msra.mxu0 %v1022
        %1072 = vmatprep.subr.bf16.mxu0 %v1019
        %1073 = vmatpush1.bf16.msra.mxu0 %v1018
        %1074 = vmatprep.subr.bf16.mxu0 %v1015
        %1075 = vmatpush1.bf16.msra.mxu0 %v1014
        %1076 = vmatprep.subr.bf16.mxu0 %v1011
        %1077 = vmatpush1.bf16.msra.mxu0 %v1010
        %1078 = vmatprep.subr.bf16.mxu0 %v1007
        %1079 = vmatpush1.bf16.msra.mxu0 %v1006
        %1080 = vmatprep.subr.bf16.mxu0 %v1003
        %1081 = vmatpush1.bf16.msra.mxu0 %v1002
        %1082 = vmatprep.subr.bf16.mxu0 0
        %1083 = vmatpush2.bf16.msra.mxu0 0
        %1084 = vmatprep.subr.bf16.mxu0 0
        %1085 = vmatpush2.bf16.msra.mxu0 0
        %1086 = vmatprep.subr.bf16.mxu0 0
        %1087 = vmatpush2.bf16.msra.mxu0 0
        %1088 = vmatprep.subr.bf16.mxu0 0
        %1089 = vmatpush2.bf16.msra.mxu0 0
        %1090 = vmatprep.subr.bf16.mxu0 0
        %1091 = vmatpush2.bf16.msra.mxu0 0
        %1092 = vmatprep.subr.bf16.mxu0 0
        %1093 = vmatpush2.bf16.msra.mxu0 0
        %1094 = vmatprep.subr.bf16.mxu0 0
        %1095 = vmatpush2.bf16.msra.mxu0 0
        %1096 = vmatprep.subr.bf16.mxu0 0
        %1097 = vmatpush2.bf16.msra.mxu0 0
        %1098 = vmatprep.mubr.bf16.mxu0 0
        %1099 = vmatmul.mubr.bf16.gmra.mxu0 %v873
        %v1100 = vpop.f32.mrf.mxu0
        %v1101 = vadd.f32 0.0, %v1100
        %v1102 = vpop.f32.mrf.mxu0
        %v1103 = vadd.f32 0.0, %v1102
        %v1104 = vpop.f32.mrf.mxu0
        %v1105 = vadd.f32 0.0, %v1104
        %v1106 = vpop.f32.mrf.mxu0
        %v1107 = vadd.f32 0.0, %v1106
        %1108 = vdwg.mxu0
        %1109 = vmatprep.subr.bf16.mxu0 %v1033
        %1110 = vmatpush1.bf16.msra.mxu0 %v1032
        %1111 = vmatprep.subr.bf16.mxu0 %v1029
        %1112 = vmatpush1.bf16.msra.mxu0 %v1028
        %1113 = vmatprep.subr.bf16.mxu0 %v1025
        %1114 = vmatpush1.bf16.msra.mxu0 %v1024
        %1115 = vmatprep.subr.bf16.mxu0 %v1021
        %1116 = vmatpush1.bf16.msra.mxu0 %v1020
        %1117 = vmatprep.subr.bf16.mxu0 %v1017
        %1118 = vmatpush1.bf16.msra.mxu0 %v1016
        %1119 = vmatprep.subr.bf16.mxu0 %v1013
        %1120 = vmatpush1.bf16.msra.mxu0 %v1012
        %1121 = vmatprep.subr.bf16.mxu0 %v1009
        %1122 = vmatpush1.bf16.msra.mxu0 %v1008
        %1123 = vmatprep.subr.bf16.mxu0 %v1005
        %1124 = vmatpush1.bf16.msra.mxu0 %v1004
        %1125 = vmatprep.subr.bf16.mxu0 0
        %1126 = vmatpush2.bf16.msra.mxu0 0
        %1127 = vmatprep.subr.bf16.mxu0 0
        %1128 = vmatpush2.bf16.msra.mxu0 0
        %1129 = vmatprep.subr.bf16.mxu0 0
        %1130 = vmatpush2.bf16.msra.mxu0 0
        %1131 = vmatprep.subr.bf16.mxu0 0
        %1132 = vmatpush2.bf16.msra.mxu0 0
        %1133 = vmatprep.subr.bf16.mxu0 0
        %1134 = vmatpush2.bf16.msra.mxu0 0
        %1135 = vmatprep.subr.bf16.mxu0 0
        %1136 = vmatpush2.bf16.msra.mxu0 0
        %1137 = vmatprep.subr.bf16.mxu0 0
        %1138 = vmatpush2.bf16.msra.mxu0 0
        %1139 = vmatprep.subr.bf16.mxu0 0
        %1140 = vmatpush2.bf16.msra.mxu0 0
        %1141 = vmatprep.mubr.bf16.mxu0 0
        %1142 = vmatmul.mubr.bf16.gmra.mxu0 %v873
        %v1143 = vpop.f32.mrf.mxu0
        %v1144 = vadd.f32 0.0, %v1143
        %v1145 = vpop.f32.mrf.mxu0
        %v1146 = vadd.f32 0.0, %v1145
        %v1147 = vpop.f32.mrf.mxu0
        %v1148 = vadd.f32 0.0, %v1147
        %v1149 = vpop.f32.mrf.mxu0
        %v1150 = vadd.f32 0.0, %v1149
        %1151 = vdwg.mxu0
        %v1152 = vadd.f32 %v865, %v1101
        %v1153 = vadd.f32 %v866, %v1103
        %v1154 = vadd.f32 %v867, %v1144
        %v1155 = vadd.f32 %v868, %v1146
        %v1156 = vadd.f32 %v869, %v1105
        %v1157 = vadd.f32 %v870, %v1107
        %v1158 = vadd.f32 %v871, %v1148
        %v1159 = vadd.f32 %v872, %v1150
        %v1160 = vxor.u32 %v1152, 2147483648
        %v1161 = vxor.u32 %v1156, 2147483648
        %v1162 = vmul.f32 %v1160, 1.442695
        %v1163 = vpow.pop %v1162
        %v1164 = vmul.f32 %v1161, 1.442695
        %v1165 = vpow.pop %v1164
        %v1166 = vadd.f32 %v1163, 1.0
        %v1167 = vadd.f32 %v1165, 1.0
        %v1168 = vrcp.pop %v1166
        %v1169 = vmul.f32 1.0, %v1168
        %v1170 = vrcp.pop %v1167
        %v1171 = vmul.f32 1.0, %v1170
        %v1172 = vxor.u32 %v1153, 2147483648
        %v1173 = vxor.u32 %v1157, 2147483648
        %v1174 = vmul.f32 %v1172, 1.442695
        %v1175 = vpow.pop %v1174
        %v1176 = vmul.f32 %v1173, 1.442695
        %v1177 = vpow.pop %v1176
        %v1178 = vadd.f32 %v1175, 1.0
        %v1179 = vadd.f32 %v1177, 1.0
        %v1180 = vrcp.pop %v1178
        %v1181 = vmul.f32 1.0, %v1180
        %v1182 = vrcp.pop %v1179
        %v1183 = vmul.f32 1.0, %v1182
        %v1184 = vtanh.pop %v1154
        %v1185 = vtanh.pop %v1158
        %v1186 = vxor.u32 %v1155, 2147483648
        %v1187 = vxor.u32 %v1159, 2147483648
        %v1188 = vmul.f32 %v1186, 1.442695
        %v1189 = vpow.pop %v1188
        %v1190 = vmul.f32 %v1187, 1.442695
        %v1191 = vpow.pop %v1190
        %v1192 = vadd.f32 %v1189, 1.0
        %v1193 = vadd.f32 %v1191, 1.0
        %v1194 = vrcp.pop %v1192
        %v1195 = vmul.f32 1.0, %v1194
        %v1196 = vrcp.pop %v1193
        %v1197 = vmul.f32 1.0, %v1196
        %v1198 = vmul.f32 %v1181, %v859
        %v1199 = vmul.f32 %v1183, %v860
        %v1200 = vmul.f32 %v1169, %v1184
        %v1201 = vmul.f32 %v1171, %v1185
        %v1202 = vadd.f32 %v1198, %v1200
        %v1203 = vadd.f32 %v1199, %v1201
        %v1204 = vtanh.pop %v1202
        %v1205 = vtanh.pop %v1203
        %v1206 = vmul.f32 %v1195, %v1204
        %v1207 = vmul.f32 %v1197, %v1205
        %v1208 = vadd.f32 %v1206, 0.0
        %v1209 = vadd.f32 %v1207, 0.0
        %v1210 = vpack.c.bf16 %v1207, %v1206
        %v1212 = vunpack.c.l.b16 %v1210
        %v1213 = vunpack.c.h.b16 %v1210
        %v1214 = vpack.c.b16 %v1212, %v1212
        %v1215 = vpack.c.b16 %v1213, %v1213
        %s1218 = smul.u32 %s861, 2
        %s1219 = smul.addr %s1218, 4
        %s1220 = scalar_lea.vmem %s377, %s1219 [#allocation11]
        %1221 = vst [vmem:[%s1220] sm:$0xf] %v1214
        %1222 = vst [vmem:[%s1220 + $0x4] sm:$0xf] %v1215
        %s1223 = smul.u32 %s30, 5
        %s1224 = sadd.s32 %s1223, 1
        %s1225 = smul.u32 %s1224, 8
        %s1226 = smul.addr %s1225, 8
        %s1227 = scalar_lea.vmem [#allocation2], %s1226
        %v1228 = vld [vmem:[%s1227] sm:$0xff]
        %v1229 = vld [vmem:[%s1227 + $0x8] sm:$0xff]
        %v1230 = vld [vmem:[%s1227 + $0x10] sm:$0xff]
        %v1231 = vld [vmem:[%s1227 + $0x18] sm:$0xff]
        %v1232 = vld [vmem:[%s1227 + $0x20] sm:$0xff]
        %v1233 = vld [vmem:[%s1227 + $0x28] sm:$0xff]
        %v1234 = vld [vmem:[%s1227 + $0x30] sm:$0xff]
        %v1235 = vld [vmem:[%s1227 + $0x38] sm:$0xff]
        %v1236 = vld [vmem:[%s334] sm:$0xff]
        %v1237 = vld [vmem:[%s334 + $0x8] sm:$0xff]
        %v1238 = vld [vmem:[%s334 + $0x10] sm:$0xff]
        %v1239 = vld [vmem:[%s334 + $0x18] sm:$0xff]
        %v1240 = vld [vmem:[%s334 + $0x20] sm:$0xff]
        %v1241 = vld [vmem:[%s334 + $0x28] sm:$0xff]
        %v1242 = vld [vmem:[%s334 + $0x30] sm:$0xff]
        %v1243 = vld [vmem:[%s334 + $0x38] sm:$0xff]
        %v1244 = vld [vmem:[%s334 + $0x40] sm:$0xff]
        %v1245 = vld [vmem:[%s334 + $0x48] sm:$0xff]
        %v1246 = vld [vmem:[%s334 + $0x50] sm:$0xff]
        %v1247 = vld [vmem:[%s334 + $0x58] sm:$0xff]
        %v1248 = vld [vmem:[%s334 + $0x60] sm:$0xff]
        %v1249 = vld [vmem:[%s334 + $0x68] sm:$0xff]
        %v1250 = vld [vmem:[%s334 + $0x70] sm:$0xff]
        %v1251 = vld [vmem:[%s334 + $0x78] sm:$0xff]
        %v1252 = vld [vmem:[%s334 + $0x80] sm:$0xff]
        %v1253 = vld [vmem:[%s334 + $0x88] sm:$0xff]
        %v1254 = vld [vmem:[%s334 + $0x90] sm:$0xff]
        %v1255 = vld [vmem:[%s334 + $0x98] sm:$0xff]
        %v1256 = vld [vmem:[%s334 + $0xa0] sm:$0xff]
        %v1257 = vld [vmem:[%s334 + $0xa8] sm:$0xff]
        %v1258 = vld [vmem:[%s334 + $0xb0] sm:$0xff]
        %v1259 = vld [vmem:[%s334 + $0xb8] sm:$0xff]
        %v1260 = vld [vmem:[%s334 + $0xc0] sm:$0xff]
        %v1261 = vld [vmem:[%s334 + $0xc8] sm:$0xff]
        %v1262 = vld [vmem:[%s334 + $0xd0] sm:$0xff]
        %v1263 = vld [vmem:[%s334 + $0xd8] sm:$0xff]
        %v1264 = vld [vmem:[%s334 + $0xe0] sm:$0xff]
        %v1265 = vld [vmem:[%s334 + $0xe8] sm:$0xff]
        %v1266 = vld [vmem:[%s334 + $0xf0] sm:$0xff]
        %v1267 = vld [vmem:[%s334 + $0xf8] sm:$0xff]
        %v1300 = vunpack.c.l.b16 %v1236
        %v1301 = vunpack.c.h.b16 %v1236
        %v1302 = vunpack.c.l.b16 %v1237
        %v1303 = vunpack.c.h.b16 %v1237
        %v1304 = vunpack.c.l.b16 %v1238
        %v1305 = vunpack.c.h.b16 %v1238
        %v1306 = vunpack.c.l.b16 %v1239
        %v1307 = vunpack.c.h.b16 %v1239
        %v1308 = vunpack.c.l.b16 %v1240
        %v1309 = vunpack.c.h.b16 %v1240
        %v1310 = vunpack.c.l.b16 %v1241
        %v1311 = vunpack.c.h.b16 %v1241
        %v1312 = vunpack.c.l.b16 %v1242
        %v1313 = vunpack.c.h.b16 %v1242
        %v1314 = vunpack.c.l.b16 %v1243
        %v1315 = vunpack.c.h.b16 %v1243
        %v1316 = vunpack.c.l.b16 %v1244
        %v1317 = vunpack.c.h.b16 %v1244
        %v1318 = vunpack.c.l.b16 %v1245
        %v1319 = vunpack.c.h.b16 %v1245
        %v1320 = vunpack.c.l.b16 %v1246
        %v1321 = vunpack.c.h.b16 %v1246
        %v1322 = vunpack.c.l.b16 %v1247
        %v1323 = vunpack.c.h.b16 %v1247
        %v1324 = vunpack.c.l.b16 %v1248
        %v1325 = vunpack.c.h.b16 %v1248
        %v1326 = vunpack.c.l.b16 %v1249
        %v1327 = vunpack.c.h.b16 %v1249
        %v1328 = vunpack.c.l.b16 %v1250
        %v1329 = vunpack.c.h.b16 %v1250
        %v1330 = vunpack.c.l.b16 %v1251
        %v1331 = vunpack.c.h.b16 %v1251
        %v1332 = vunpack.c.l.b16 %v1252
        %v1333 = vunpack.c.h.b16 %v1252
        %v1334 = vunpack.c.l.b16 %v1253
        %v1335 = vunpack.c.h.b16 %v1253
        %v1336 = vunpack.c.l.b16 %v1254
        %v1337 = vunpack.c.h.b16 %v1254
        %v1338 = vunpack.c.l.b16 %v1255
        %v1339 = vunpack.c.h.b16 %v1255
        %v1340 = vunpack.c.l.b16 %v1256
        %v1341 = vunpack.c.h.b16 %v1256
        %v1342 = vunpack.c.l.b16 %v1257
        %v1343 = vunpack.c.h.b16 %v1257
        %v1344 = vunpack.c.l.b16 %v1258
        %v1345 = vunpack.c.h.b16 %v1258
        %v1346 = vunpack.c.l.b16 %v1259
        %v1347 = vunpack.c.h.b16 %v1259
        %v1348 = vunpack.c.l.b16 %v1260
        %v1349 = vunpack.c.h.b16 %v1260
        %v1350 = vunpack.c.l.b16 %v1261
        %v1351 = vunpack.c.h.b16 %v1261
        %v1352 = vunpack.c.l.b16 %v1262
        %v1353 = vunpack.c.h.b16 %v1262
        %v1354 = vunpack.c.l.b16 %v1263
        %v1355 = vunpack.c.h.b16 %v1263
        %v1356 = vunpack.c.l.b16 %v1264
        %v1357 = vunpack.c.h.b16 %v1264
        %v1358 = vunpack.c.l.b16 %v1265
        %v1359 = vunpack.c.h.b16 %v1265
        %v1360 = vunpack.c.l.b16 %v1266
        %v1361 = vunpack.c.h.b16 %v1266
        %v1362 = vunpack.c.l.b16 %v1267
        %v1363 = vunpack.c.h.b16 %v1267
        %v1364 = vpack.c.b16 %v1304, %v1300
        %v1365 = vpack.c.b16 %v1305, %v1301
        %v1366 = vpack.c.b16 %v1306, %v1302
        %v1367 = vpack.c.b16 %v1307, %v1303
        %v1368 = vpack.c.b16 %v1312, %v1308
        %v1369 = vpack.c.b16 %v1313, %v1309
        %v1370 = vpack.c.b16 %v1314, %v1310
        %v1371 = vpack.c.b16 %v1315, %v1311
        %v1372 = vpack.c.b16 %v1320, %v1316
        %v1373 = vpack.c.b16 %v1321, %v1317
        %v1374 = vpack.c.b16 %v1322, %v1318
        %v1375 = vpack.c.b16 %v1323, %v1319
        %v1376 = vpack.c.b16 %v1328, %v1324
        %v1377 = vpack.c.b16 %v1329, %v1325
        %v1378 = vpack.c.b16 %v1330, %v1326
        %v1379 = vpack.c.b16 %v1331, %v1327
        %v1380 = vpack.c.b16 %v1336, %v1332
        %v1381 = vpack.c.b16 %v1337, %v1333
        %v1382 = vpack.c.b16 %v1338, %v1334
        %v1383 = vpack.c.b16 %v1339, %v1335
        %v1384 = vpack.c.b16 %v1344, %v1340
        %v1385 = vpack.c.b16 %v1345, %v1341
        %v1386 = vpack.c.b16 %v1346, %v1342
        %v1387 = vpack.c.b16 %v1347, %v1343
        %v1388 = vpack.c.b16 %v1352, %v1348
        %v1389 = vpack.c.b16 %v1353, %v1349
        %v1390 = vpack.c.b16 %v1354, %v1350
        %v1391 = vpack.c.b16 %v1355, %v1351
        %v1392 = vpack.c.b16 %v1360, %v1356
        %v1393 = vpack.c.b16 %v1361, %v1357
        %v1394 = vpack.c.b16 %v1362, %v1358
        %v1395 = vpack.c.b16 %v1363, %v1359
        %1428 = vmatprep.subr.bf16.mxu0 %v1393
        %1429 = vmatpush1.bf16.msra.mxu0 %v1392
        %1430 = vmatprep.subr.bf16.mxu0 %v1389
        %1431 = vmatpush1.bf16.msra.mxu0 %v1388
        %1432 = vmatprep.subr.bf16.mxu0 %v1385
        %1433 = vmatpush1.bf16.msra.mxu0 %v1384
        %1434 = vmatprep.subr.bf16.mxu0 %v1381
        %1435 = vmatpush1.bf16.msra.mxu0 %v1380
        %1436 = vmatprep.subr.bf16.mxu0 %v1377
        %1437 = vmatpush1.bf16.msra.mxu0 %v1376
        %1438 = vmatprep.subr.bf16.mxu0 %v1373
        %1439 = vmatpush1.bf16.msra.mxu0 %v1372
        %1440 = vmatprep.subr.bf16.mxu0 %v1369
        %1441 = vmatpush1.bf16.msra.mxu0 %v1368
        %1442 = vmatprep.subr.bf16.mxu0 %v1365
        %1443 = vmatpush1.bf16.msra.mxu0 %v1364
        %1444 = vmatprep.subr.bf16.mxu0 0
        %1445 = vmatpush2.bf16.msra.mxu0 0
        %1446 = vmatprep.subr.bf16.mxu0 0
        %1447 = vmatpush2.bf16.msra.mxu0 0
        %1448 = vmatprep.subr.bf16.mxu0 0
        %1449 = vmatpush2.bf16.msra.mxu0 0
        %1450 = vmatprep.subr.bf16.mxu0 0
        %1451 = vmatpush2.bf16.msra.mxu0 0
        %1452 = vmatprep.subr.bf16.mxu0 0
        %1453 = vmatpush2.bf16.msra.mxu0 0
        %1454 = vmatprep.subr.bf16.mxu0 0
        %1455 = vmatpush2.bf16.msra.mxu0 0
        %1456 = vmatprep.subr.bf16.mxu0 0
        %1457 = vmatpush2.bf16.msra.mxu0 0
        %1458 = vmatprep.subr.bf16.mxu0 0
        %1459 = vmatpush2.bf16.msra.mxu0 0
        %1460 = vmatprep.mubr.bf16.mxu0 0
        %1461 = vmatmul.mubr.bf16.gmra.mxu0 %v1210
        %v1462 = vpop.f32.mrf.mxu0
        %v1463 = vadd.f32 0.0, %v1462
        %v1464 = vpop.f32.mrf.mxu0
        %v1465 = vadd.f32 0.0, %v1464
        %v1466 = vpop.f32.mrf.mxu0
        %v1467 = vadd.f32 0.0, %v1466
        %v1468 = vpop.f32.mrf.mxu0
        %v1469 = vadd.f32 0.0, %v1468
        %1470 = vdwg.mxu0
        %1471 = vmatprep.subr.bf16.mxu0 %v1395
        %1472 = vmatpush1.bf16.msra.mxu0 %v1394
        %1473 = vmatprep.subr.bf16.mxu0 %v1391
        %1474 = vmatpush1.bf16.msra.mxu0 %v1390
        %1475 = vmatprep.subr.bf16.mxu0 %v1387
        %1476 = vmatpush1.bf16.msra.mxu0 %v1386
        %1477 = vmatprep.subr.bf16.mxu0 %v1383
        %1478 = vmatpush1.bf16.msra.mxu0 %v1382
        %1479 = vmatprep.subr.bf16.mxu0 %v1379
        %1480 = vmatpush1.bf16.msra.mxu0 %v1378
        %1481 = vmatprep.subr.bf16.mxu0 %v1375
        %1482 = vmatpush1.bf16.msra.mxu0 %v1374
        %1483 = vmatprep.subr.bf16.mxu0 %v1371
        %1484 = vmatpush1.bf16.msra.mxu0 %v1370
        %1485 = vmatprep.subr.bf16.mxu0 %v1367
        %1486 = vmatpush1.bf16.msra.mxu0 %v1366
        %1487 = vmatprep.subr.bf16.mxu0 0
        %1488 = vmatpush2.bf16.msra.mxu0 0
        %1489 = vmatprep.subr.bf16.mxu0 0
        %1490 = vmatpush2.bf16.msra.mxu0 0
        %1491 = vmatprep.subr.bf16.mxu0 0
        %1492 = vmatpush2.bf16.msra.mxu0 0
        %1493 = vmatprep.subr.bf16.mxu0 0
        %1494 = vmatpush2.bf16.msra.mxu0 0
        %1495 = vmatprep.subr.bf16.mxu0 0
        %1496 = vmatpush2.bf16.msra.mxu0 0
        %1497 = vmatprep.subr.bf16.mxu0 0
        %1498 = vmatpush2.bf16.msra.mxu0 0
        %1499 = vmatprep.subr.bf16.mxu0 0
        %1500 = vmatpush2.bf16.msra.mxu0 0
        %1501 = vmatprep.subr.bf16.mxu0 0
        %1502 = vmatpush2.bf16.msra.mxu0 0
        %1503 = vmatprep.mubr.bf16.mxu0 0
        %1504 = vmatmul.mubr.bf16.gmra.mxu0 %v1210
        %v1505 = vpop.f32.mrf.mxu0
        %v1506 = vadd.f32 0.0, %v1505
        %v1507 = vpop.f32.mrf.mxu0
        %v1508 = vadd.f32 0.0, %v1507
        %v1509 = vpop.f32.mrf.mxu0
        %v1510 = vadd.f32 0.0, %v1509
        %v1511 = vpop.f32.mrf.mxu0
        %v1512 = vadd.f32 0.0, %v1511
        %1513 = vdwg.mxu0
        %v1514 = vadd.f32 %v1228, %v1463
        %v1515 = vadd.f32 %v1229, %v1465
        %v1516 = vadd.f32 %v1230, %v1506
        %v1517 = vadd.f32 %v1231, %v1508
        %v1518 = vadd.f32 %v1232, %v1467
        %v1519 = vadd.f32 %v1233, %v1469
        %v1520 = vadd.f32 %v1234, %v1510
        %v1521 = vadd.f32 %v1235, %v1512
        %v1522 = vxor.u32 %v1514, 2147483648
        %v1523 = vxor.u32 %v1518, 2147483648
        %v1524 = vmul.f32 %v1522, 1.442695
        %v1525 = vpow.pop %v1524
        %v1526 = vmul.f32 %v1523, 1.442695
        %v1527 = vpow.pop %v1526
        %v1528 = vadd.f32 %v1525, 1.0
        %v1529 = vadd.f32 %v1527, 1.0
        %v1530 = vrcp.pop %v1528
        %v1531 = vmul.f32 1.0, %v1530
        %v1532 = vrcp.pop %v1529
        %v1533 = vmul.f32 1.0, %v1532
        %v1534 = vxor.u32 %v1515, 2147483648
        %v1535 = vxor.u32 %v1519, 2147483648
        %v1536 = vmul.f32 %v1534, 1.442695
        %v1537 = vpow.pop %v1536
        %v1538 = vmul.f32 %v1535, 1.442695
        %v1539 = vpow.pop %v1538
        %v1540 = vadd.f32 %v1537, 1.0
        %v1541 = vadd.f32 %v1539, 1.0
        %v1542 = vrcp.pop %v1540
        %v1543 = vmul.f32 1.0, %v1542
        %v1544 = vrcp.pop %v1541
        %v1545 = vmul.f32 1.0, %v1544
        %v1546 = vtanh.pop %v1516
        %v1547 = vtanh.pop %v1520
        %v1548 = vxor.u32 %v1517, 2147483648
        %v1549 = vxor.u32 %v1521, 2147483648
        %v1550 = vmul.f32 %v1548, 1.442695
        %v1551 = vpow.pop %v1550
        %v1552 = vmul.f32 %v1549, 1.442695
        %v1553 = vpow.pop %v1552
        %v1554 = vadd.f32 %v1551, 1.0
        %v1555 = vadd.f32 %v1553, 1.0
        %v1556 = vrcp.pop %v1554
        %v1557 = vmul.f32 1.0, %v1556
        %v1558 = vrcp.pop %v1555
        %v1559 = vmul.f32 1.0, %v1558
        %v1560 = vmul.f32 %v1543, %v1202
        %v1561 = vmul.f32 %v1545, %v1203
        %v1562 = vmul.f32 %v1531, %v1546
        %v1563 = vmul.f32 %v1533, %v1547
        %v1564 = vadd.f32 %v1560, %v1562
        %v1565 = vadd.f32 %v1561, %v1563
        %v1566 = vtanh.pop %v1564
        %v1567 = vtanh.pop %v1565
        %v1568 = vmul.f32 %v1557, %v1566
        %v1569 = vmul.f32 %v1559, %v1567
        %v1570 = vadd.f32 %v1208, %v1568
        %v1571 = vadd.f32 %v1209, %v1569
        %v1572 = vpack.c.bf16 %v1569, %v1568
        %v1574 = vunpack.c.l.b16 %v1572
        %v1575 = vunpack.c.h.b16 %v1572
        %v1576 = vpack.c.b16 %v1574, %v1574
        %v1577 = vpack.c.b16 %v1575, %v1575
        %s1580 = smul.u32 %s1224, 2
        %s1581 = smul.addr %s1580, 4
        %s1582 = scalar_lea.vmem %s377, %s1581 [#allocation11]
        %1583 = vst [vmem:[%s1582] sm:$0xf] %v1576
        %1584 = vst [vmem:[%s1582 + $0x4] sm:$0xf] %v1577
        %s1585 = smul.u32 %s30, 3
        %s1586 = sadd.s32 %s1585, 2
        %s1587 = smul.u32 %s1586, 8
        %s1588 = smul.addr %s1587, 8
        %s1589 = scalar_lea.vmem [#allocation2], %s1588
        %v1590 = vld [vmem:[%s1589] sm:$0xff]
        %v1591 = vld [vmem:[%s1589 + $0x8] sm:$0xff]
        %v1592 = vld [vmem:[%s1589 + $0x10] sm:$0xff]
        %v1593 = vld [vmem:[%s1589 + $0x18] sm:$0xff]
        %v1594 = vld [vmem:[%s1589 + $0x20] sm:$0xff]
        %v1595 = vld [vmem:[%s1589 + $0x28] sm:$0xff]
        %v1596 = vld [vmem:[%s1589 + $0x30] sm:$0xff]
        %v1597 = vld [vmem:[%s1589 + $0x38] sm:$0xff]
        %v1598 = vld [vmem:[%s334] sm:$0xff]
        %v1599 = vld [vmem:[%s334 + $0x8] sm:$0xff]
        %v1600 = vld [vmem:[%s334 + $0x10] sm:$0xff]
        %v1601 = vld [vmem:[%s334 + $0x18] sm:$0xff]
        %v1602 = vld [vmem:[%s334 + $0x20] sm:$0xff]
        %v1603 = vld [vmem:[%s334 + $0x28] sm:$0xff]
        %v1604 = vld [vmem:[%s334 + $0x30] sm:$0xff]
        %v1605 = vld [vmem:[%s334 + $0x38] sm:$0xff]
        %v1606 = vld [vmem:[%s334 + $0x40] sm:$0xff]
        %v1607 = vld [vmem:[%s334 + $0x48] sm:$0xff]
        %v1608 = vld [vmem:[%s334 + $0x50] sm:$0xff]
        %v1609 = vld [vmem:[%s334 + $0x58] sm:$0xff]
        %v1610 = vld [vmem:[%s334 + $0x60] sm:$0xff]
        %v1611 = vld [vmem:[%s334 + $0x68] sm:$0xff]
        %v1612 = vld [vmem:[%s334 + $0x70] sm:$0xff]
        %v1613 = vld [vmem:[%s334 + $0x78] sm:$0xff]
        %v1614 = vld [vmem:[%s334 + $0x80] sm:$0xff]
        %v1615 = vld [vmem:[%s334 + $0x88] sm:$0xff]
        %v1616 = vld [vmem:[%s334 + $0x90] sm:$0xff]
        %v1617 = vld [vmem:[%s334 + $0x98] sm:$0xff]
        %v1618 = vld [vmem:[%s334 + $0xa0] sm:$0xff]
        %v1619 = vld [vmem:[%s334 + $0xa8] sm:$0xff]
        %v1620 = vld [vmem:[%s334 + $0xb0] sm:$0xff]
        %v1621 = vld [vmem:[%s334 + $0xb8] sm:$0xff]
        %v1622 = vld [vmem:[%s334 + $0xc0] sm:$0xff]
        %v1623 = vld [vmem:[%s334 + $0xc8] sm:$0xff]
        %v1624 = vld [vmem:[%s334 + $0xd0] sm:$0xff]
        %v1625 = vld [vmem:[%s334 + $0xd8] sm:$0xff]
        %v1626 = vld [vmem:[%s334 + $0xe0] sm:$0xff]
        %v1627 = vld [vmem:[%s334 + $0xe8] sm:$0xff]
        %v1628 = vld [vmem:[%s334 + $0xf0] sm:$0xff]
        %v1629 = vld [vmem:[%s334 + $0xf8] sm:$0xff]
        %v1662 = vunpack.c.l.b16 %v1598
        %v1663 = vunpack.c.h.b16 %v1598
        %v1664 = vunpack.c.l.b16 %v1599
        %v1665 = vunpack.c.h.b16 %v1599
        %v1666 = vunpack.c.l.b16 %v1600
        %v1667 = vunpack.c.h.b16 %v1600
        %v1668 = vunpack.c.l.b16 %v1601
        %v1669 = vunpack.c.h.b16 %v1601
        %v1670 = vunpack.c.l.b16 %v1602
        %v1671 = vunpack.c.h.b16 %v1602
        %v1672 = vunpack.c.l.b16 %v1603
        %v1673 = vunpack.c.h.b16 %v1603
        %v1674 = vunpack.c.l.b16 %v1604
        %v1675 = vunpack.c.h.b16 %v1604
        %v1676 = vunpack.c.l.b16 %v1605
        %v1677 = vunpack.c.h.b16 %v1605
        %v1678 = vunpack.c.l.b16 %v1606
        %v1679 = vunpack.c.h.b16 %v1606
        %v1680 = vunpack.c.l.b16 %v1607
        %v1681 = vunpack.c.h.b16 %v1607
        %v1682 = vunpack.c.l.b16 %v1608
        %v1683 = vunpack.c.h.b16 %v1608
        %v1684 = vunpack.c.l.b16 %v1609
        %v1685 = vunpack.c.h.b16 %v1609
        %v1686 = vunpack.c.l.b16 %v1610
        %v1687 = vunpack.c.h.b16 %v1610
        %v1688 = vunpack.c.l.b16 %v1611
        %v1689 = vunpack.c.h.b16 %v1611
        %v1690 = vunpack.c.l.b16 %v1612
        %v1691 = vunpack.c.h.b16 %v1612
        %v1692 = vunpack.c.l.b16 %v1613
        %v1693 = vunpack.c.h.b16 %v1613
        %v1694 = vunpack.c.l.b16 %v1614
        %v1695 = vunpack.c.h.b16 %v1614
        %v1696 = vunpack.c.l.b16 %v1615
        %v1697 = vunpack.c.h.b16 %v1615
        %v1698 = vunpack.c.l.b16 %v1616
        %v1699 = vunpack.c.h.b16 %v1616
        %v1700 = vunpack.c.l.b16 %v1617
        %v1701 = vunpack.c.h.b16 %v1617
        %v1702 = vunpack.c.l.b16 %v1618
        %v1703 = vunpack.c.h.b16 %v1618
        %v1704 = vunpack.c.l.b16 %v1619
        %v1705 = vunpack.c.h.b16 %v1619
        %v1706 = vunpack.c.l.b16 %v1620
        %v1707 = vunpack.c.h.b16 %v1620
        %v1708 = vunpack.c.l.b16 %v1621
        %v1709 = vunpack.c.h.b16 %v1621
        %v1710 = vunpack.c.l.b16 %v1622
        %v1711 = vunpack.c.h.b16 %v1622
        %v1712 = vunpack.c.l.b16 %v1623
        %v1713 = vunpack.c.h.b16 %v1623
        %v1714 = vunpack.c.l.b16 %v1624
        %v1715 = vunpack.c.h.b16 %v1624
        %v1716 = vunpack.c.l.b16 %v1625
        %v1717 = vunpack.c.h.b16 %v1625
        %v1718 = vunpack.c.l.b16 %v1626
        %v1719 = vunpack.c.h.b16 %v1626
        %v1720 = vunpack.c.l.b16 %v1627
        %v1721 = vunpack.c.h.b16 %v1627
        %v1722 = vunpack.c.l.b16 %v1628
        %v1723 = vunpack.c.h.b16 %v1628
        %v1724 = vunpack.c.l.b16 %v1629
        %v1725 = vunpack.c.h.b16 %v1629
        %v1726 = vpack.c.b16 %v1666, %v1662
        %v1727 = vpack.c.b16 %v1667, %v1663
        %v1728 = vpack.c.b16 %v1668, %v1664
        %v1729 = vpack.c.b16 %v1669, %v1665
        %v1730 = vpack.c.b16 %v1674, %v1670
        %v1731 = vpack.c.b16 %v1675, %v1671
        %v1732 = vpack.c.b16 %v1676, %v1672
        %v1733 = vpack.c.b16 %v1677, %v1673
        %v1734 = vpack.c.b16 %v1682, %v1678
        %v1735 = vpack.c.b16 %v1683, %v1679
        %v1736 = vpack.c.b16 %v1684, %v1680
        %v1737 = vpack.c.b16 %v1685, %v1681
        %v1738 = vpack.c.b16 %v1690, %v1686
        %v1739 = vpack.c.b16 %v1691, %v1687
        %v1740 = vpack.c.b16 %v1692, %v1688
        %v1741 = vpack.c.b16 %v1693, %v1689
        %v1742 = vpack.c.b16 %v1698, %v1694
        %v1743 = vpack.c.b16 %v1699, %v1695
        %v1744 = vpack.c.b16 %v1700, %v1696
        %v1745 = vpack.c.b16 %v1701, %v1697
        %v1746 = vpack.c.b16 %v1706, %v1702
        %v1747 = vpack.c.b16 %v1707, %v1703
        %v1748 = vpack.c.b16 %v1708, %v1704
        %v1749 = vpack.c.b16 %v1709, %v1705
        %v1750 = vpack.c.b16 %v1714, %v1710
        %v1751 = vpack.c.b16 %v1715, %v1711
        %v1752 = vpack.c.b16 %v1716, %v1712
        %v1753 = vpack.c.b16 %v1717, %v1713
        %v1754 = vpack.c.b16 %v1722, %v1718
        %v1755 = vpack.c.b16 %v1723, %v1719
        %v1756 = vpack.c.b16 %v1724, %v1720
        %v1757 = vpack.c.b16 %v1725, %v1721
        %1790 = vmatprep.subr.bf16.mxu0 %v1755
        %1791 = vmatpush1.bf16.msra.mxu0 %v1754
        %1792 = vmatprep.subr.bf16.mxu0 %v1751
        %1793 = vmatpush1.bf16.msra.mxu0 %v1750
        %1794 = vmatprep.subr.bf16.mxu0 %v1747
        %1795 = vmatpush1.bf16.msra.mxu0 %v1746
        %1796 = vmatprep.subr.bf16.mxu0 %v1743
        %1797 = vmatpush1.bf16.msra.mxu0 %v1742
        %1798 = vmatprep.subr.bf16.mxu0 %v1739
        %1799 = vmatpush1.bf16.msra.mxu0 %v1738
        %1800 = vmatprep.subr.bf16.mxu0 %v1735
        %1801 = vmatpush1.bf16.msra.mxu0 %v1734
        %1802 = vmatprep.subr.bf16.mxu0 %v1731
        %1803 = vmatpush1.bf16.msra.mxu0 %v1730
        %1804 = vmatprep.subr.bf16.mxu0 %v1727
        %1805 = vmatpush1.bf16.msra.mxu0 %v1726
        %1806 = vmatprep.subr.bf16.mxu0 0
        %1807 = vmatpush2.bf16.msra.mxu0 0
        %1808 = vmatprep.subr.bf16.mxu0 0
        %1809 = vmatpush2.bf16.msra.mxu0 0
        %1810 = vmatprep.subr.bf16.mxu0 0
        %1811 = vmatpush2.bf16.msra.mxu0 0
        %1812 = vmatprep.subr.bf16.mxu0 0
        %1813 = vmatpush2.bf16.msra.mxu0 0
        %1814 = vmatprep.subr.bf16.mxu0 0
        %1815 = vmatpush2.bf16.msra.mxu0 0
        %1816 = vmatprep.subr.bf16.mxu0 0
        %1817 = vmatpush2.bf16.msra.mxu0 0
        %1818 = vmatprep.subr.bf16.mxu0 0
        %1819 = vmatpush2.bf16.msra.mxu0 0
        %1820 = vmatprep.subr.bf16.mxu0 0
        %1821 = vmatpush2.bf16.msra.mxu0 0
        %1822 = vmatprep.mubr.bf16.mxu0 0
        %1823 = vmatmul.mubr.bf16.gmra.mxu0 %v1572
        %v1824 = vpop.f32.mrf.mxu0
        %v1825 = vadd.f32 0.0, %v1824
        %v1826 = vpop.f32.mrf.mxu0
        %v1827 = vadd.f32 0.0, %v1826
        %v1828 = vpop.f32.mrf.mxu0
        %v1829 = vadd.f32 0.0, %v1828
        %v1830 = vpop.f32.mrf.mxu0
        %v1831 = vadd.f32 0.0, %v1830
        %1832 = vdwg.mxu0
        %1833 = vmatprep.subr.bf16.mxu0 %v1757
        %1834 = vmatpush1.bf16.msra.mxu0 %v1756
        %1835 = vmatprep.subr.bf16.mxu0 %v1753
        %1836 = vmatpush1.bf16.msra.mxu0 %v1752
        %1837 = vmatprep.subr.bf16.mxu0 %v1749
        %1838 = vmatpush1.bf16.msra.mxu0 %v1748
        %1839 = vmatprep.subr.bf16.mxu0 %v1745
        %1840 = vmatpush1.bf16.msra.mxu0 %v1744
        %1841 = vmatprep.subr.bf16.mxu0 %v1741
        %1842 = vmatpush1.bf16.msra.mxu0 %v1740
        %1843 = vmatprep.subr.bf16.mxu0 %v1737
        %1844 = vmatpush1.bf16.msra.mxu0 %v1736
        %1845 = vmatprep.subr.bf16.mxu0 %v1733
        %1846 = vmatpush1.bf16.msra.mxu0 %v1732
        %1847 = vmatprep.subr.bf16.mxu0 %v1729
        %1848 = vmatpush1.bf16.msra.mxu0 %v1728
        %1849 = vmatprep.subr.bf16.mxu0 0
        %1850 = vmatpush2.bf16.msra.mxu0 0
        %1851 = vmatprep.subr.bf16.mxu0 0
        %1852 = vmatpush2.bf16.msra.mxu0 0
        %1853 = vmatprep.subr.bf16.mxu0 0
        %1854 = vmatpush2.bf16.msra.mxu0 0
        %1855 = vmatprep.subr.bf16.mxu0 0
        %1856 = vmatpush2.bf16.msra.mxu0 0
        %1857 = vmatprep.subr.bf16.mxu0 0
        %1858 = vmatpush2.bf16.msra.mxu0 0
        %1859 = vmatprep.subr.bf16.mxu0 0
        %1860 = vmatpush2.bf16.msra.mxu0 0
        %1861 = vmatprep.subr.bf16.mxu0 0
        %1862 = vmatpush2.bf16.msra.mxu0 0
        %1863 = vmatprep.subr.bf16.mxu0 0
        %1864 = vmatpush2.bf16.msra.mxu0 0
        %1865 = vmatprep.mubr.bf16.mxu0 0
        %1866 = vmatmul.mubr.bf16.gmra.mxu0 %v1572
        %v1867 = vpop.f32.mrf.mxu0
        %v1868 = vadd.f32 0.0, %v1867
        %v1869 = vpop.f32.mrf.mxu0
        %v1870 = vadd.f32 0.0, %v1869
        %v1871 = vpop.f32.mrf.mxu0
        %v1872 = vadd.f32 0.0, %v1871
        %v1873 = vpop.f32.mrf.mxu0
        %v1874 = vadd.f32 0.0, %v1873
        %1875 = vdwg.mxu0
        %v1876 = vadd.f32 %v1590, %v1825
        %v1877 = vadd.f32 %v1591, %v1827
        %v1878 = vadd.f32 %v1592, %v1868
        %v1879 = vadd.f32 %v1593, %v1870
        %v1880 = vadd.f32 %v1594, %v1829
        %v1881 = vadd.f32 %v1595, %v1831
        %v1882 = vadd.f32 %v1596, %v1872
        %v1883 = vadd.f32 %v1597, %v1874
        %v1884 = vxor.u32 %v1876, 2147483648
        %v1885 = vxor.u32 %v1880, 2147483648
        %v1886 = vmul.f32 %v1884, 1.442695
        %v1887 = vpow.pop %v1886
        %v1888 = vmul.f32 %v1885, 1.442695
        %v1889 = vpow.pop %v1888
        %v1890 = vadd.f32 %v1887, 1.0
        %v1891 = vadd.f32 %v1889, 1.0
        %v1892 = vrcp.pop %v1890
        %v1893 = vmul.f32 1.0, %v1892
        %v1894 = vrcp.pop %v1891
        %v1895 = vmul.f32 1.0, %v1894
        %v1896 = vxor.u32 %v1877, 2147483648
        %v1897 = vxor.u32 %v1881, 2147483648
        %v1898 = vmul.f32 %v1896, 1.442695
        %v1899 = vpow.pop %v1898
        %v1900 = vmul.f32 %v1897, 1.442695
        %v1901 = vpow.pop %v1900
        %v1902 = vadd.f32 %v1899, 1.0
        %v1903 = vadd.f32 %v1901, 1.0
        %v1904 = vrcp.pop %v1902
        %v1905 = vmul.f32 1.0, %v1904
        %v1906 = vrcp.pop %v1903
        %v1907 = vmul.f32 1.0, %v1906
        %v1908 = vtanh.pop %v1878
        %v1909 = vtanh.pop %v1882
        %v1910 = vxor.u32 %v1879, 2147483648
        %v1911 = vxor.u32 %v1883, 2147483648
        %v1912 = vmul.f32 %v1910, 1.442695
        %v1913 = vpow.pop %v1912
        %v1914 = vmul.f32 %v1911, 1.442695
        %v1915 = vpow.pop %v1914
        %v1916 = vadd.f32 %v1913, 1.0
        %v1917 = vadd.f32 %v1915, 1.0
        %v1918 = vrcp.pop %v1916
        %v1919 = vmul.f32 1.0, %v1918
        %v1920 = vrcp.pop %v1917
        %v1921 = vmul.f32 1.0, %v1920
        %v1922 = vmul.f32 %v1905, %v1564
        %v1923 = vmul.f32 %v1907, %v1565
        %v1924 = vmul.f32 %v1893, %v1908
        %v1925 = vmul.f32 %v1895, %v1909
        %v1926 = vadd.f32 %v1922, %v1924
        %v1927 = vadd.f32 %v1923, %v1925
        %v1928 = vtanh.pop %v1926
        %v1929 = vtanh.pop %v1927
        %v1930 = vmul.f32 %v1919, %v1928
        %v1931 = vmul.f32 %v1921, %v1929
        %v1932 = vadd.f32 %v1570, %v1930
        %v1933 = vadd.f32 %v1571, %v1931
        %v1934 = vpack.c.bf16 %v1931, %v1930
        %v1936 = vunpack.c.l.b16 %v1934
        %v1937 = vunpack.c.h.b16 %v1934
        %v1938 = vpack.c.b16 %v1936, %v1936
        %v1939 = vpack.c.b16 %v1937, %v1937
        %s1942 = smul.u32 %s1586, 2
        %s1943 = smul.addr %s1942, 4
        %s1944 = scalar_lea.vmem %s377, %s1943 [#allocation11]
        %1945 = vst [vmem:[%s1944] sm:$0xf] %v1938
        %1946 = vst [vmem:[%s1944 + $0x4] sm:$0xf] %v1939
        %s1947 = sadd.s32 %s30, 3
        %s1948 = smul.u32 %s1947, 8
        %s1949 = smul.addr %s1948, 8
        %s1950 = scalar_lea.vmem [#allocation2], %s1949
        %v1951 = vld [vmem:[%s1950] sm:$0xff]
        %v1952 = vld [vmem:[%s1950 + $0x8] sm:$0xff]
        %v1953 = vld [vmem:[%s1950 + $0x10] sm:$0xff]
        %v1954 = vld [vmem:[%s1950 + $0x18] sm:$0xff]
        %v1955 = vld [vmem:[%s1950 + $0x20] sm:$0xff]
        %v1956 = vld [vmem:[%s1950 + $0x28] sm:$0xff]
        %v1957 = vld [vmem:[%s1950 + $0x30] sm:$0xff]
        %v1958 = vld [vmem:[%s1950 + $0x38] sm:$0xff]
        %v1959 = vld [vmem:[%s334] sm:$0xff]
        %v1960 = vld [vmem:[%s334 + $0x8] sm:$0xff]
        %v1961 = vld [vmem:[%s334 + $0x10] sm:$0xff]
        %v1962 = vld [vmem:[%s334 + $0x18] sm:$0xff]
        %v1963 = vld [vmem:[%s334 + $0x20] sm:$0xff]
        %v1964 = vld [vmem:[%s334 + $0x28] sm:$0xff]
        %v1965 = vld [vmem:[%s334 + $0x30] sm:$0xff]
        %v1966 = vld [vmem:[%s334 + $0x38] sm:$0xff]
        %v1967 = vld [vmem:[%s334 + $0x40] sm:$0xff]
        %v1968 = vld [vmem:[%s334 + $0x48] sm:$0xff]
        %v1969 = vld [vmem:[%s334 + $0x50] sm:$0xff]
        %v1970 = vld [vmem:[%s334 + $0x58] sm:$0xff]
        %v1971 = vld [vmem:[%s334 + $0x60] sm:$0xff]
        %v1972 = vld [vmem:[%s334 + $0x68] sm:$0xff]
        %v1973 = vld [vmem:[%s334 + $0x70] sm:$0xff]
        %v1974 = vld [vmem:[%s334 + $0x78] sm:$0xff]
        %v1975 = vld [vmem:[%s334 + $0x80] sm:$0xff]
        %v1976 = vld [vmem:[%s334 + $0x88] sm:$0xff]
        %v1977 = vld [vmem:[%s334 + $0x90] sm:$0xff]
        %v1978 = vld [vmem:[%s334 + $0x98] sm:$0xff]
        %v1979 = vld [vmem:[%s334 + $0xa0] sm:$0xff]
        %v1980 = vld [vmem:[%s334 + $0xa8] sm:$0xff]
        %v1981 = vld [vmem:[%s334 + $0xb0] sm:$0xff]
        %v1982 = vld [vmem:[%s334 + $0xb8] sm:$0xff]
        %v1983 = vld [vmem:[%s334 + $0xc0] sm:$0xff]
        %v1984 = vld [vmem:[%s334 + $0xc8] sm:$0xff]
        %v1985 = vld [vmem:[%s334 + $0xd0] sm:$0xff]
        %v1986 = vld [vmem:[%s334 + $0xd8] sm:$0xff]
        %v1987 = vld [vmem:[%s334 + $0xe0] sm:$0xff]
        %v1988 = vld [vmem:[%s334 + $0xe8] sm:$0xff]
        %v1989 = vld [vmem:[%s334 + $0xf0] sm:$0xff]
        %v1990 = vld [vmem:[%s334 + $0xf8] sm:$0xff]
        %v2023 = vunpack.c.l.b16 %v1959
        %v2024 = vunpack.c.h.b16 %v1959
        %v2025 = vunpack.c.l.b16 %v1960
        %v2026 = vunpack.c.h.b16 %v1960
        %v2027 = vunpack.c.l.b16 %v1961
        %v2028 = vunpack.c.h.b16 %v1961
        %v2029 = vunpack.c.l.b16 %v1962
        %v2030 = vunpack.c.h.b16 %v1962
        %v2031 = vunpack.c.l.b16 %v1963
        %v2032 = vunpack.c.h.b16 %v1963
        %v2033 = vunpack.c.l.b16 %v1964
        %v2034 = vunpack.c.h.b16 %v1964
        %v2035 = vunpack.c.l.b16 %v1965
        %v2036 = vunpack.c.h.b16 %v1965
        %v2037 = vunpack.c.l.b16 %v1966
        %v2038 = vunpack.c.h.b16 %v1966
        %v2039 = vunpack.c.l.b16 %v1967
        %v2040 = vunpack.c.h.b16 %v1967
        %v2041 = vunpack.c.l.b16 %v1968
        %v2042 = vunpack.c.h.b16 %v1968
        %v2043 = vunpack.c.l.b16 %v1969
        %v2044 = vunpack.c.h.b16 %v1969
        %v2045 = vunpack.c.l.b16 %v1970
        %v2046 = vunpack.c.h.b16 %v1970
        %v2047 = vunpack.c.l.b16 %v1971
        %v2048 = vunpack.c.h.b16 %v1971
        %v2049 = vunpack.c.l.b16 %v1972
        %v2050 = vunpack.c.h.b16 %v1972
        %v2051 = vunpack.c.l.b16 %v1973
        %v2052 = vunpack.c.h.b16 %v1973
        %v2053 = vunpack.c.l.b16 %v1974
        %v2054 = vunpack.c.h.b16 %v1974
        %v2055 = vunpack.c.l.b16 %v1975
        %v2056 = vunpack.c.h.b16 %v1975
        %v2057 = vunpack.c.l.b16 %v1976
        %v2058 = vunpack.c.h.b16 %v1976
        %v2059 = vunpack.c.l.b16 %v1977
        %v2060 = vunpack.c.h.b16 %v1977
        %v2061 = vunpack.c.l.b16 %v1978
        %v2062 = vunpack.c.h.b16 %v1978
        %v2063 = vunpack.c.l.b16 %v1979
        %v2064 = vunpack.c.h.b16 %v1979
        %v2065 = vunpack.c.l.b16 %v1980
        %v2066 = vunpack.c.h.b16 %v1980
        %v2067 = vunpack.c.l.b16 %v1981
        %v2068 = vunpack.c.h.b16 %v1981
        %v2069 = vunpack.c.l.b16 %v1982
        %v2070 = vunpack.c.h.b16 %v1982
        %v2071 = vunpack.c.l.b16 %v1983
        %v2072 = vunpack.c.h.b16 %v1983
        %v2073 = vunpack.c.l.b16 %v1984
        %v2074 = vunpack.c.h.b16 %v1984
        %v2075 = vunpack.c.l.b16 %v1985
        %v2076 = vunpack.c.h.b16 %v1985
        %v2077 = vunpack.c.l.b16 %v1986
        %v2078 = vunpack.c.h.b16 %v1986
        %v2079 = vunpack.c.l.b16 %v1987
        %v2080 = vunpack.c.h.b16 %v1987
        %v2081 = vunpack.c.l.b16 %v1988
        %v2082 = vunpack.c.h.b16 %v1988
        %v2083 = vunpack.c.l.b16 %v1989
        %v2084 = vunpack.c.h.b16 %v1989
        %v2085 = vunpack.c.l.b16 %v1990
        %v2086 = vunpack.c.h.b16 %v1990
        %v2087 = vpack.c.b16 %v2027, %v2023
        %v2088 = vpack.c.b16 %v2028, %v2024
        %v2089 = vpack.c.b16 %v2029, %v2025
        %v2090 = vpack.c.b16 %v2030, %v2026
        %v2091 = vpack.c.b16 %v2035, %v2031
        %v2092 = vpack.c.b16 %v2036, %v2032
        %v2093 = vpack.c.b16 %v2037, %v2033
        %v2094 = vpack.c.b16 %v2038, %v2034
        %v2095 = vpack.c.b16 %v2043, %v2039
        %v2096 = vpack.c.b16 %v2044, %v2040
        %v2097 = vpack.c.b16 %v2045, %v2041
        %v2098 = vpack.c.b16 %v2046, %v2042
        %v2099 = vpack.c.b16 %v2051, %v2047
        %v2100 = vpack.c.b16 %v2052, %v2048
        %v2101 = vpack.c.b16 %v2053, %v2049
        %v2102 = vpack.c.b16 %v2054, %v2050
        %v2103 = vpack.c.b16 %v2059, %v2055
        %v2104 = vpack.c.b16 %v2060, %v2056
        %v2105 = vpack.c.b16 %v2061, %v2057
        %v2106 = vpack.c.b16 %v2062, %v2058
        %v2107 = vpack.c.b16 %v2067, %v2063
        %v2108 = vpack.c.b16 %v2068, %v2064
        %v2109 = vpack.c.b16 %v2069, %v2065
        %v2110 = vpack.c.b16 %v2070, %v2066
        %v2111 = vpack.c.b16 %v2075, %v2071
        %v2112 = vpack.c.b16 %v2076, %v2072
        %v2113 = vpack.c.b16 %v2077, %v2073
        %v2114 = vpack.c.b16 %v2078, %v2074
        %v2115 = vpack.c.b16 %v2083, %v2079
        %v2116 = vpack.c.b16 %v2084, %v2080
        %v2117 = vpack.c.b16 %v2085, %v2081
        %v2118 = vpack.c.b16 %v2086, %v2082
        %2151 = vmatprep.subr.bf16.mxu0 %v2116
        %2152 = vmatpush1.bf16.msra.mxu0 %v2115
        %2153 = vmatprep.subr.bf16.mxu0 %v2112
        %2154 = vmatpush1.bf16.msra.mxu0 %v2111
        %2155 = vmatprep.subr.bf16.mxu0 %v2108
        %2156 = vmatpush1.bf16.msra.mxu0 %v2107
        %2157 = vmatprep.subr.bf16.mxu0 %v2104
        %2158 = vmatpush1.bf16.msra.mxu0 %v2103
        %2159 = vmatprep.subr.bf16.mxu0 %v2100
        %2160 = vmatpush1.bf16.msra.mxu0 %v2099
        %2161 = vmatprep.subr.bf16.mxu0 %v2096
        %2162 = vmatpush1.bf16.msra.mxu0 %v2095
        %2163 = vmatprep.subr.bf16.mxu0 %v2092
        %2164 = vmatpush1.bf16.msra.mxu0 %v2091
        %2165 = vmatprep.subr.bf16.mxu0 %v2088
        %2166 = vmatpush1.bf16.msra.mxu0 %v2087
        %2167 = vmatprep.subr.bf16.mxu0 0
        %2168 = vmatpush2.bf16.msra.mxu0 0
        %2169 = vmatprep.subr.bf16.mxu0 0
        %2170 = vmatpush2.bf16.msra.mxu0 0
        %2171 = vmatprep.subr.bf16.mxu0 0
        %2172 = vmatpush2.bf16.msra.mxu0 0
        %2173 = vmatprep.subr.bf16.mxu0 0
        %2174 = vmatpush2.bf16.msra.mxu0 0
        %2175 = vmatprep.subr.bf16.mxu0 0
        %2176 = vmatpush2.bf16.msra.mxu0 0
        %2177 = vmatprep.subr.bf16.mxu0 0
        %2178 = vmatpush2.bf16.msra.mxu0 0
        %2179 = vmatprep.subr.bf16.mxu0 0
        %2180 = vmatpush2.bf16.msra.mxu0 0
        %2181 = vmatprep.subr.bf16.mxu0 0
        %2182 = vmatpush2.bf16.msra.mxu0 0
        %2183 = vmatprep.mubr.bf16.mxu0 0
        %2184 = vmatmul.mubr.bf16.gmra.mxu0 %v1934
        %v2185 = vpop.f32.mrf.mxu0
        %v2186 = vadd.f32 0.0, %v2185
        %v2187 = vpop.f32.mrf.mxu0
        %v2188 = vadd.f32 0.0, %v2187
        %v2189 = vpop.f32.mrf.mxu0
        %v2190 = vadd.f32 0.0, %v2189
        %v2191 = vpop.f32.mrf.mxu0
        %v2192 = vadd.f32 0.0, %v2191
        %2193 = vdwg.mxu0
        %2194 = vmatprep.subr.bf16.mxu0 %v2118
        %2195 = vmatpush1.bf16.msra.mxu0 %v2117
        %2196 = vmatprep.subr.bf16.mxu0 %v2114
        %2197 = vmatpush1.bf16.msra.mxu0 %v2113
        %2198 = vmatprep.subr.bf16.mxu0 %v2110
        %2199 = vmatpush1.bf16.msra.mxu0 %v2109
        %2200 = vmatprep.subr.bf16.mxu0 %v2106
        %2201 = vmatpush1.bf16.msra.mxu0 %v2105
        %2202 = vmatprep.subr.bf16.mxu0 %v2102
        %2203 = vmatpush1.bf16.msra.mxu0 %v2101
        %2204 = vmatprep.subr.bf16.mxu0 %v2098
        %2205 = vmatpush1.bf16.msra.mxu0 %v2097
        %2206 = vmatprep.subr.bf16.mxu0 %v2094
        %2207 = vmatpush1.bf16.msra.mxu0 %v2093
        %2208 = vmatprep.subr.bf16.mxu0 %v2090
        %2209 = vmatpush1.bf16.msra.mxu0 %v2089
        %2210 = vmatprep.subr.bf16.mxu0 0
        %2211 = vmatpush2.bf16.msra.mxu0 0
        %2212 = vmatprep.subr.bf16.mxu0 0
        %2213 = vmatpush2.bf16.msra.mxu0 0
        %2214 = vmatprep.subr.bf16.mxu0 0
        %2215 = vmatpush2.bf16.msra.mxu0 0
        %2216 = vmatprep.subr.bf16.mxu0 0
        %2217 = vmatpush2.bf16.msra.mxu0 0
        %2218 = vmatprep.subr.bf16.mxu0 0
        %2219 = vmatpush2.bf16.msra.mxu0 0
        %2220 = vmatprep.subr.bf16.mxu0 0
        %2221 = vmatpush2.bf16.msra.mxu0 0
        %2222 = vmatprep.subr.bf16.mxu0 0
        %2223 = vmatpush2.bf16.msra.mxu0 0
        %2224 = vmatprep.subr.bf16.mxu0 0
        %2225 = vmatpush2.bf16.msra.mxu0 0
        %2226 = vmatprep.mubr.bf16.mxu0 0
        %2227 = vmatmul.mubr.bf16.gmra.mxu0 %v1934
        %v2228 = vpop.f32.mrf.mxu0
        %v2229 = vadd.f32 0.0, %v2228
        %v2230 = vpop.f32.mrf.mxu0
        %v2231 = vadd.f32 0.0, %v2230
        %v2232 = vpop.f32.mrf.mxu0
        %v2233 = vadd.f32 0.0, %v2232
        %v2234 = vpop.f32.mrf.mxu0
        %v2235 = vadd.f32 0.0, %v2234
        %2236 = vdwg.mxu0
        %v2237 = vadd.f32 %v1951, %v2186
        %v2238 = vadd.f32 %v1952, %v2188
        %v2239 = vadd.f32 %v1953, %v2229
        %v2240 = vadd.f32 %v1954, %v2231
        %v2241 = vadd.f32 %v1955, %v2190
        %v2242 = vadd.f32 %v1956, %v2192
        %v2243 = vadd.f32 %v1957, %v2233
        %v2244 = vadd.f32 %v1958, %v2235
        %v2245 = vxor.u32 %v2237, 2147483648
        %v2246 = vxor.u32 %v2241, 2147483648
        %v2247 = vmul.f32 %v2245, 1.442695
        %v2248 = vpow.pop %v2247
        %v2249 = vmul.f32 %v2246, 1.442695
        %v2250 = vpow.pop %v2249
        %v2251 = vadd.f32 %v2248, 1.0
        %v2252 = vadd.f32 %v2250, 1.0
        %v2253 = vrcp.pop %v2251
        %v2254 = vmul.f32 1.0, %v2253
        %v2255 = vrcp.pop %v2252
        %v2256 = vmul.f32 1.0, %v2255
        %v2257 = vxor.u32 %v2238, 2147483648
        %v2258 = vxor.u32 %v2242, 2147483648
        %v2259 = vmul.f32 %v2257, 1.442695
        %v2260 = vpow.pop %v2259
        %v2261 = vmul.f32 %v2258, 1.442695
        %v2262 = vpow.pop %v2261
        %v2263 = vadd.f32 %v2260, 1.0
        %v2264 = vadd.f32 %v2262, 1.0
        %v2265 = vrcp.pop %v2263
        %v2266 = vmul.f32 1.0, %v2265
        %v2267 = vrcp.pop %v2264
        %v2268 = vmul.f32 1.0, %v2267
        %v2269 = vtanh.pop %v2239
        %v2270 = vtanh.pop %v2243
        %v2271 = vxor.u32 %v2240, 2147483648
        %v2272 = vxor.u32 %v2244, 2147483648
        %v2273 = vmul.f32 %v2271, 1.442695
        %v2274 = vpow.pop %v2273
        %v2275 = vmul.f32 %v2272, 1.442695
        %v2276 = vpow.pop %v2275
        %v2277 = vadd.f32 %v2274, 1.0
        %v2278 = vadd.f32 %v2276, 1.0
        %v2279 = vrcp.pop %v2277
        %v2280 = vmul.f32 1.0, %v2279
        %v2281 = vrcp.pop %v2278
        %v2282 = vmul.f32 1.0, %v2281
        %v2283 = vmul.f32 %v2266, %v1926
        %v2284 = vmul.f32 %v2268, %v1927
        %v2285 = vmul.f32 %v2254, %v2269
        %v2286 = vmul.f32 %v2256, %v2270
        %v2287 = vadd.f32 %v2283, %v2285
        %v2288 = vadd.f32 %v2284, %v2286
        %v2289 = vtanh.pop %v2287
        %v2290 = vtanh.pop %v2288
        %v2291 = vmul.f32 %v2280, %v2289
        %v2292 = vmul.f32 %v2282, %v2290
        %v2293 = vadd.f32 %v1932, %v2291
        %v2294 = vadd.f32 %v1933, %v2292
        %v2295 = vpack.c.bf16 %v2292, %v2291
        %v2297 = vunpack.c.l.b16 %v2295
        %v2298 = vunpack.c.h.b16 %v2295
        %v2299 = vpack.c.b16 %v2297, %v2297
        %v2300 = vpack.c.b16 %v2298, %v2298
        %s2303 = smul.u32 %s1947, 2
        %s2304 = smul.addr %s2303, 4
        %s2305 = scalar_lea.vmem %s377, %s2304 [#allocation11]
        %2306 = vst [vmem:[%s2305] sm:$0xf] %v2299
        %2307 = vst [vmem:[%s2305 + $0x4] sm:$0xf] %v2300
        %s2308 = ssub.s32 4, %s30
        %s2309 = smul.u32 %s2308, 8
        %s2310 = smul.addr %s2309, 8
        %s2311 = scalar_lea.vmem [#allocation2], %s2310
        %v2312 = vld [vmem:[%s2311] sm:$0xff]
        %v2313 = vld [vmem:[%s2311 + $0x8] sm:$0xff]
        %v2314 = vld [vmem:[%s2311 + $0x10] sm:$0xff]
        %v2315 = vld [vmem:[%s2311 + $0x18] sm:$0xff]
        %v2316 = vld [vmem:[%s2311 + $0x20] sm:$0xff]
        %v2317 = vld [vmem:[%s2311 + $0x28] sm:$0xff]
        %v2318 = vld [vmem:[%s2311 + $0x30] sm:$0xff]
        %v2319 = vld [vmem:[%s2311 + $0x38] sm:$0xff]
        %v2320 = vld [vmem:[%s334] sm:$0xff]
        %v2321 = vld [vmem:[%s334 + $0x8] sm:$0xff]
        %v2322 = vld [vmem:[%s334 + $0x10] sm:$0xff]
        %v2323 = vld [vmem:[%s334 + $0x18] sm:$0xff]
        %v2324 = vld [vmem:[%s334 + $0x20] sm:$0xff]
        %v2325 = vld [vmem:[%s334 + $0x28] sm:$0xff]
        %v2326 = vld [vmem:[%s334 + $0x30] sm:$0xff]
        %v2327 = vld [vmem:[%s334 + $0x38] sm:$0xff]
        %v2328 = vld [vmem:[%s334 + $0x40] sm:$0xff]
        %v2329 = vld [vmem:[%s334 + $0x48] sm:$0xff]
        %v2330 = vld [vmem:[%s334 + $0x50] sm:$0xff]
        %v2331 = vld [vmem:[%s334 + $0x58] sm:$0xff]
        %v2332 = vld [vmem:[%s334 + $0x60] sm:$0xff]
        %v2333 = vld [vmem:[%s334 + $0x68] sm:$0xff]
        %v2334 = vld [vmem:[%s334 + $0x70] sm:$0xff]
        %v2335 = vld [vmem:[%s334 + $0x78] sm:$0xff]
        %v2336 = vld [vmem:[%s334 + $0x80] sm:$0xff]
        %v2337 = vld [vmem:[%s334 + $0x88] sm:$0xff]
        %v2338 = vld [vmem:[%s334 + $0x90] sm:$0xff]
        %v2339 = vld [vmem:[%s334 + $0x98] sm:$0xff]
        %v2340 = vld [vmem:[%s334 + $0xa0] sm:$0xff]
        %v2341 = vld [vmem:[%s334 + $0xa8] sm:$0xff]
        %v2342 = vld [vmem:[%s334 + $0xb0] sm:$0xff]
        %v2343 = vld [vmem:[%s334 + $0xb8] sm:$0xff]
        %v2344 = vld [vmem:[%s334 + $0xc0] sm:$0xff]
        %v2345 = vld [vmem:[%s334 + $0xc8] sm:$0xff]
        %v2346 = vld [vmem:[%s334 + $0xd0] sm:$0xff]
        %v2347 = vld [vmem:[%s334 + $0xd8] sm:$0xff]
        %v2348 = vld [vmem:[%s334 + $0xe0] sm:$0xff]
        %v2349 = vld [vmem:[%s334 + $0xe8] sm:$0xff]
        %v2350 = vld [vmem:[%s334 + $0xf0] sm:$0xff]
        %v2351 = vld [vmem:[%s334 + $0xf8] sm:$0xff]
        %v2384 = vunpack.c.l.b16 %v2320
        %v2385 = vunpack.c.h.b16 %v2320
        %v2386 = vunpack.c.l.b16 %v2321
        %v2387 = vunpack.c.h.b16 %v2321
        %v2388 = vunpack.c.l.b16 %v2322
        %v2389 = vunpack.c.h.b16 %v2322
        %v2390 = vunpack.c.l.b16 %v2323
        %v2391 = vunpack.c.h.b16 %v2323
        %v2392 = vunpack.c.l.b16 %v2324
        %v2393 = vunpack.c.h.b16 %v2324
        %v2394 = vunpack.c.l.b16 %v2325
        %v2395 = vunpack.c.h.b16 %v2325
        %v2396 = vunpack.c.l.b16 %v2326
        %v2397 = vunpack.c.h.b16 %v2326
        %v2398 = vunpack.c.l.b16 %v2327
        %v2399 = vunpack.c.h.b16 %v2327
        %v2400 = vunpack.c.l.b16 %v2328
        %v2401 = vunpack.c.h.b16 %v2328
        %v2402 = vunpack.c.l.b16 %v2329
        %v2403 = vunpack.c.h.b16 %v2329
        %v2404 = vunpack.c.l.b16 %v2330
        %v2405 = vunpack.c.h.b16 %v2330
        %v2406 = vunpack.c.l.b16 %v2331
        %v2407 = vunpack.c.h.b16 %v2331
        %v2408 = vunpack.c.l.b16 %v2332
        %v2409 = vunpack.c.h.b16 %v2332
        %v2410 = vunpack.c.l.b16 %v2333
        %v2411 = vunpack.c.h.b16 %v2333
        %v2412 = vunpack.c.l.b16 %v2334
        %v2413 = vunpack.c.h.b16 %v2334
        %v2414 = vunpack.c.l.b16 %v2335
        %v2415 = vunpack.c.h.b16 %v2335
        %v2416 = vunpack.c.l.b16 %v2336
        %v2417 = vunpack.c.h.b16 %v2336
        %v2418 = vunpack.c.l.b16 %v2337
        %v2419 = vunpack.c.h.b16 %v2337
        %v2420 = vunpack.c.l.b16 %v2338
        %v2421 = vunpack.c.h.b16 %v2338
        %v2422 = vunpack.c.l.b16 %v2339
        %v2423 = vunpack.c.h.b16 %v2339
        %v2424 = vunpack.c.l.b16 %v2340
        %v2425 = vunpack.c.h.b16 %v2340
        %v2426 = vunpack.c.l.b16 %v2341
        %v2427 = vunpack.c.h.b16 %v2341
        %v2428 = vunpack.c.l.b16 %v2342
        %v2429 = vunpack.c.h.b16 %v2342
        %v2430 = vunpack.c.l.b16 %v2343
        %v2431 = vunpack.c.h.b16 %v2343
        %v2432 = vunpack.c.l.b16 %v2344
        %v2433 = vunpack.c.h.b16 %v2344
        %v2434 = vunpack.c.l.b16 %v2345
        %v2435 = vunpack.c.h.b16 %v2345
        %v2436 = vunpack.c.l.b16 %v2346
        %v2437 = vunpack.c.h.b16 %v2346
        %v2438 = vunpack.c.l.b16 %v2347
        %v2439 = vunpack.c.h.b16 %v2347
        %v2440 = vunpack.c.l.b16 %v2348
        %v2441 = vunpack.c.h.b16 %v2348
        %v2442 = vunpack.c.l.b16 %v2349
        %v2443 = vunpack.c.h.b16 %v2349
        %v2444 = vunpack.c.l.b16 %v2350
        %v2445 = vunpack.c.h.b16 %v2350
        %v2446 = vunpack.c.l.b16 %v2351
        %v2447 = vunpack.c.h.b16 %v2351
        %v2448 = vpack.c.b16 %v2388, %v2384
        %v2449 = vpack.c.b16 %v2389, %v2385
        %v2450 = vpack.c.b16 %v2390, %v2386
        %v2451 = vpack.c.b16 %v2391, %v2387
        %v2452 = vpack.c.b16 %v2396, %v2392
        %v2453 = vpack.c.b16 %v2397, %v2393
        %v2454 = vpack.c.b16 %v2398, %v2394
        %v2455 = vpack.c.b16 %v2399, %v2395
        %v2456 = vpack.c.b16 %v2404, %v2400
        %v2457 = vpack.c.b16 %v2405, %v2401
        %v2458 = vpack.c.b16 %v2406, %v2402
        %v2459 = vpack.c.b16 %v2407, %v2403
        %v2460 = vpack.c.b16 %v2412, %v2408
        %v2461 = vpack.c.b16 %v2413, %v2409
        %v2462 = vpack.c.b16 %v2414, %v2410
        %v2463 = vpack.c.b16 %v2415, %v2411
        %v2464 = vpack.c.b16 %v2420, %v2416
        %v2465 = vpack.c.b16 %v2421, %v2417
        %v2466 = vpack.c.b16 %v2422, %v2418
        %v2467 = vpack.c.b16 %v2423, %v2419
        %v2468 = vpack.c.b16 %v2428, %v2424
        %v2469 = vpack.c.b16 %v2429, %v2425
        %v2470 = vpack.c.b16 %v2430, %v2426
        %v2471 = vpack.c.b16 %v2431, %v2427
        %v2472 = vpack.c.b16 %v2436, %v2432
        %v2473 = vpack.c.b16 %v2437, %v2433
        %v2474 = vpack.c.b16 %v2438, %v2434
        %v2475 = vpack.c.b16 %v2439, %v2435
        %v2476 = vpack.c.b16 %v2444, %v2440
        %v2477 = vpack.c.b16 %v2445, %v2441
        %v2478 = vpack.c.b16 %v2446, %v2442
        %v2479 = vpack.c.b16 %v2447, %v2443
        %2512 = vmatprep.subr.bf16.mxu0 %v2477
        %2513 = vmatpush1.bf16.msra.mxu0 %v2476
        %2514 = vmatprep.subr.bf16.mxu0 %v2473
        %2515 = vmatpush1.bf16.msra.mxu0 %v2472
        %2516 = vmatprep.subr.bf16.mxu0 %v2469
        %2517 = vmatpush1.bf16.msra.mxu0 %v2468
        %2518 = vmatprep.subr.bf16.mxu0 %v2465
        %2519 = vmatpush1.bf16.msra.mxu0 %v2464
        %2520 = vmatprep.subr.bf16.mxu0 %v2461
        %2521 = vmatpush1.bf16.msra.mxu0 %v2460
        %2522 = vmatprep.subr.bf16.mxu0 %v2457
        %2523 = vmatpush1.bf16.msra.mxu0 %v2456
        %2524 = vmatprep.subr.bf16.mxu0 %v2453
        %2525 = vmatpush1.bf16.msra.mxu0 %v2452
        %2526 = vmatprep.subr.bf16.mxu0 %v2449
        %2527 = vmatpush1.bf16.msra.mxu0 %v2448
        %2528 = vmatprep.subr.bf16.mxu0 0
        %2529 = vmatpush2.bf16.msra.mxu0 0
        %2530 = vmatprep.subr.bf16.mxu0 0
        %2531 = vmatpush2.bf16.msra.mxu0 0
        %2532 = vmatprep.subr.bf16.mxu0 0
        %2533 = vmatpush2.bf16.msra.mxu0 0
        %2534 = vmatprep.subr.bf16.mxu0 0
        %2535 = vmatpush2.bf16.msra.mxu0 0
        %2536 = vmatprep.subr.bf16.mxu0 0
        %2537 = vmatpush2.bf16.msra.mxu0 0
        %2538 = vmatprep.subr.bf16.mxu0 0
        %2539 = vmatpush2.bf16.msra.mxu0 0
        %2540 = vmatprep.subr.bf16.mxu0 0
        %2541 = vmatpush2.bf16.msra.mxu0 0
        %2542 = vmatprep.subr.bf16.mxu0 0
        %2543 = vmatpush2.bf16.msra.mxu0 0
        %2544 = vmatprep.mubr.bf16.mxu0 0
        %2545 = vmatmul.mubr.bf16.gmra.mxu0 %v2295
        %v2546 = vpop.f32.mrf.mxu0
        %v2547 = vadd.f32 0.0, %v2546
        %v2548 = vpop.f32.mrf.mxu0
        %v2549 = vadd.f32 0.0, %v2548
        %v2550 = vpop.f32.mrf.mxu0
        %v2551 = vadd.f32 0.0, %v2550
        %v2552 = vpop.f32.mrf.mxu0
        %v2553 = vadd.f32 0.0, %v2552
        %2554 = vdwg.mxu0
        %2555 = vmatprep.subr.bf16.mxu0 %v2479
        %2556 = vmatpush1.bf16.msra.mxu0 %v2478
        %2557 = vmatprep.subr.bf16.mxu0 %v2475
        %2558 = vmatpush1.bf16.msra.mxu0 %v2474
        %2559 = vmatprep.subr.bf16.mxu0 %v2471
        %2560 = vmatpush1.bf16.msra.mxu0 %v2470
        %2561 = vmatprep.subr.bf16.mxu0 %v2467
        %2562 = vmatpush1.bf16.msra.mxu0 %v2466
        %2563 = vmatprep.subr.bf16.mxu0 %v2463
        %2564 = vmatpush1.bf16.msra.mxu0 %v2462
        %2565 = vmatprep.subr.bf16.mxu0 %v2459
        %2566 = vmatpush1.bf16.msra.mxu0 %v2458
        %2567 = vmatprep.subr.bf16.mxu0 %v2455
        %2568 = vmatpush1.bf16.msra.mxu0 %v2454
        %2569 = vmatprep.subr.bf16.mxu0 %v2451
        %2570 = vmatpush1.bf16.msra.mxu0 %v2450
        %2571 = vmatprep.subr.bf16.mxu0 0
        %2572 = vmatpush2.bf16.msra.mxu0 0
        %2573 = vmatprep.subr.bf16.mxu0 0
        %2574 = vmatpush2.bf16.msra.mxu0 0
        %2575 = vmatprep.subr.bf16.mxu0 0
        %2576 = vmatpush2.bf16.msra.mxu0 0
        %2577 = vmatprep.subr.bf16.mxu0 0
        %2578 = vmatpush2.bf16.msra.mxu0 0
        %2579 = vmatprep.subr.bf16.mxu0 0
        %2580 = vmatpush2.bf16.msra.mxu0 0
        %2581 = vmatprep.subr.bf16.mxu0 0
        %2582 = vmatpush2.bf16.msra.mxu0 0
        %2583 = vmatprep.subr.bf16.mxu0 0
        %2584 = vmatpush2.bf16.msra.mxu0 0
        %2585 = vmatprep.subr.bf16.mxu0 0
        %2586 = vmatpush2.bf16.msra.mxu0 0
        %2587 = vmatprep.mubr.bf16.mxu0 0
        %2588 = vmatmul.mubr.bf16.gmra.mxu0 %v2295
        %v2589 = vpop.f32.mrf.mxu0
        %v2590 = vadd.f32 0.0, %v2589
        %v2591 = vpop.f32.mrf.mxu0
        %v2592 = vadd.f32 0.0, %v2591
        %v2593 = vpop.f32.mrf.mxu0
        %v2594 = vadd.f32 0.0, %v2593
        %v2595 = vpop.f32.mrf.mxu0
        %v2596 = vadd.f32 0.0, %v2595
        %2597 = vdwg.mxu0
        %v2598 = vadd.f32 %v2312, %v2547
        %v2599 = vadd.f32 %v2313, %v2549
        %v2600 = vadd.f32 %v2314, %v2590
        %v2601 = vadd.f32 %v2315, %v2592
        %v2602 = vadd.f32 %v2316, %v2551
        %v2603 = vadd.f32 %v2317, %v2553
        %v2604 = vadd.f32 %v2318, %v2594
        %v2605 = vadd.f32 %v2319, %v2596
        %v2606 = vxor.u32 %v2598, 2147483648
        %v2607 = vxor.u32 %v2602, 2147483648
        %v2608 = vmul.f32 %v2606, 1.442695
        %v2609 = vpow.pop %v2608
        %v2610 = vmul.f32 %v2607, 1.442695
        %v2611 = vpow.pop %v2610
        %v2612 = vadd.f32 %v2609, 1.0
        %v2613 = vadd.f32 %v2611, 1.0
        %v2614 = vrcp.pop %v2612
        %v2615 = vmul.f32 1.0, %v2614
        %v2616 = vrcp.pop %v2613
        %v2617 = vmul.f32 1.0, %v2616
        %v2618 = vxor.u32 %v2599, 2147483648
        %v2619 = vxor.u32 %v2603, 2147483648
        %v2620 = vmul.f32 %v2618, 1.442695
        %v2621 = vpow.pop %v2620
        %v2622 = vmul.f32 %v2619, 1.442695
        %v2623 = vpow.pop %v2622
        %v2624 = vadd.f32 %v2621, 1.0
        %v2625 = vadd.f32 %v2623, 1.0
        %v2626 = vrcp.pop %v2624
        %v2627 = vmul.f32 1.0, %v2626
        %v2628 = vrcp.pop %v2625
        %v2629 = vmul.f32 1.0, %v2628
        %v2630 = vtanh.pop %v2600
        %v2631 = vtanh.pop %v2604
        %v2632 = vxor.u32 %v2601, 2147483648
        %v2633 = vxor.u32 %v2605, 2147483648
        %v2634 = vmul.f32 %v2632, 1.442695
        %v2635 = vpow.pop %v2634
        %v2636 = vmul.f32 %v2633, 1.442695
        %v2637 = vpow.pop %v2636
        %v2638 = vadd.f32 %v2635, 1.0
        %v2639 = vadd.f32 %v2637, 1.0
        %v2640 = vrcp.pop %v2638
        %v2641 = vmul.f32 1.0, %v2640
        %v2642 = vrcp.pop %v2639
        %v2643 = vmul.f32 1.0, %v2642
        %v2644 = vmul.f32 %v2627, %v2287
        %v2645 = vmul.f32 %v2629, %v2288
        %v2646 = vmul.f32 %v2615, %v2630
        %v2647 = vmul.f32 %v2617, %v2631
        %v2648 = vadd.f32 %v2644, %v2646
        %v2649 = vadd.f32 %v2645, %v2647
        %v2650 = vtanh.pop %v2648
        %v2651 = vtanh.pop %v2649
        %v2652 = vmul.f32 %v2641, %v2650
        %v2653 = vmul.f32 %v2643, %v2651
        %v2654 = vadd.f32 %v2293, %v2652
        %v2655 = vadd.f32 %v2294, %v2653
        %v2656 = vpack.c.bf16 %v2653, %v2652
        %v2658 = vunpack.c.l.b16 %v2656
        %v2659 = vunpack.c.h.b16 %v2656
        %v2660 = vpack.c.b16 %v2658, %v2658
        %v2661 = vpack.c.b16 %v2659, %v2659
        %s2664 = smul.u32 %s2308, 2
        %s2665 = smul.addr %s2664, 4
        %s2666 = scalar_lea.vmem %s377, %s2665 [#allocation11]
        %2667 = vst [vmem:[%s2666] sm:$0xf] %v2660
        %2668 = vst [vmem:[%s2666 + $0x4] sm:$0xf] %v2661
        %s2669 = smul.u32 %s30, 4294967293
        %s2670 = sadd.s32 %s2669, 5
        %s2671 = smul.u32 %s2670, 8
        %s2672 = smul.addr %s2671, 8
        %s2673 = scalar_lea.vmem [#allocation2], %s2672
        %v2674 = vld [vmem:[%s2673] sm:$0xff]
        %v2675 = vld [vmem:[%s2673 + $0x8] sm:$0xff]
        %v2676 = vld [vmem:[%s2673 + $0x10] sm:$0xff]
        %v2677 = vld [vmem:[%s2673 + $0x18] sm:$0xff]
        %v2678 = vld [vmem:[%s2673 + $0x20] sm:$0xff]
        %v2679 = vld [vmem:[%s2673 + $0x28] sm:$0xff]
        %v2680 = vld [vmem:[%s2673 + $0x30] sm:$0xff]
        %v2681 = vld [vmem:[%s2673 + $0x38] sm:$0xff]
        %v2682 = vld [vmem:[%s334] sm:$0xff]
        %v2683 = vld [vmem:[%s334 + $0x8] sm:$0xff]
        %v2684 = vld [vmem:[%s334 + $0x10] sm:$0xff]
        %v2685 = vld [vmem:[%s334 + $0x18] sm:$0xff]
        %v2686 = vld [vmem:[%s334 + $0x20] sm:$0xff]
        %v2687 = vld [vmem:[%s334 + $0x28] sm:$0xff]
        %v2688 = vld [vmem:[%s334 + $0x30] sm:$0xff]
        %v2689 = vld [vmem:[%s334 + $0x38] sm:$0xff]
        %v2690 = vld [vmem:[%s334 + $0x40] sm:$0xff]
        %v2691 = vld [vmem:[%s334 + $0x48] sm:$0xff]
        %v2692 = vld [vmem:[%s334 + $0x50] sm:$0xff]
        %v2693 = vld [vmem:[%s334 + $0x58] sm:$0xff]
        %v2694 = vld [vmem:[%s334 + $0x60] sm:$0xff]
        %v2695 = vld [vmem:[%s334 + $0x68] sm:$0xff]
        %v2696 = vld [vmem:[%s334 + $0x70] sm:$0xff]
        %v2697 = vld [vmem:[%s334 + $0x78] sm:$0xff]
        %v2698 = vld [vmem:[%s334 + $0x80] sm:$0xff]
        %v2699 = vld [vmem:[%s334 + $0x88] sm:$0xff]
        %v2700 = vld [vmem:[%s334 + $0x90] sm:$0xff]
        %v2701 = vld [vmem:[%s334 + $0x98] sm:$0xff]
        %v2702 = vld [vmem:[%s334 + $0xa0] sm:$0xff]
        %v2703 = vld [vmem:[%s334 + $0xa8] sm:$0xff]
        %v2704 = vld [vmem:[%s334 + $0xb0] sm:$0xff]
        %v2705 = vld [vmem:[%s334 + $0xb8] sm:$0xff]
        %v2706 = vld [vmem:[%s334 + $0xc0] sm:$0xff]
        %v2707 = vld [vmem:[%s334 + $0xc8] sm:$0xff]
        %v2708 = vld [vmem:[%s334 + $0xd0] sm:$0xff]
        %v2709 = vld [vmem:[%s334 + $0xd8] sm:$0xff]
        %v2710 = vld [vmem:[%s334 + $0xe0] sm:$0xff]
        %v2711 = vld [vmem:[%s334 + $0xe8] sm:$0xff]
        %v2712 = vld [vmem:[%s334 + $0xf0] sm:$0xff]
        %v2713 = vld [vmem:[%s334 + $0xf8] sm:$0xff]
        %v2746 = vunpack.c.l.b16 %v2682
        %v2747 = vunpack.c.h.b16 %v2682
        %v2748 = vunpack.c.l.b16 %v2683
        %v2749 = vunpack.c.h.b16 %v2683
        %v2750 = vunpack.c.l.b16 %v2684
        %v2751 = vunpack.c.h.b16 %v2684
        %v2752 = vunpack.c.l.b16 %v2685
        %v2753 = vunpack.c.h.b16 %v2685
        %v2754 = vunpack.c.l.b16 %v2686
        %v2755 = vunpack.c.h.b16 %v2686
        %v2756 = vunpack.c.l.b16 %v2687
        %v2757 = vunpack.c.h.b16 %v2687
        %v2758 = vunpack.c.l.b16 %v2688
        %v2759 = vunpack.c.h.b16 %v2688
        %v2760 = vunpack.c.l.b16 %v2689
        %v2761 = vunpack.c.h.b16 %v2689
        %v2762 = vunpack.c.l.b16 %v2690
        %v2763 = vunpack.c.h.b16 %v2690
        %v2764 = vunpack.c.l.b16 %v2691
        %v2765 = vunpack.c.h.b16 %v2691
        %v2766 = vunpack.c.l.b16 %v2692
        %v2767 = vunpack.c.h.b16 %v2692
        %v2768 = vunpack.c.l.b16 %v2693
        %v2769 = vunpack.c.h.b16 %v2693
        %v2770 = vunpack.c.l.b16 %v2694
        %v2771 = vunpack.c.h.b16 %v2694
        %v2772 = vunpack.c.l.b16 %v2695
        %v2773 = vunpack.c.h.b16 %v2695
        %v2774 = vunpack.c.l.b16 %v2696
        %v2775 = vunpack.c.h.b16 %v2696
        %v2776 = vunpack.c.l.b16 %v2697
        %v2777 = vunpack.c.h.b16 %v2697
        %v2778 = vunpack.c.l.b16 %v2698
        %v2779 = vunpack.c.h.b16 %v2698
        %v2780 = vunpack.c.l.b16 %v2699
        %v2781 = vunpack.c.h.b16 %v2699
        %v2782 = vunpack.c.l.b16 %v2700
        %v2783 = vunpack.c.h.b16 %v2700
        %v2784 = vunpack.c.l.b16 %v2701
        %v2785 = vunpack.c.h.b16 %v2701
        %v2786 = vunpack.c.l.b16 %v2702
        %v2787 = vunpack.c.h.b16 %v2702
        %v2788 = vunpack.c.l.b16 %v2703
        %v2789 = vunpack.c.h.b16 %v2703
        %v2790 = vunpack.c.l.b16 %v2704
        %v2791 = vunpack.c.h.b16 %v2704
        %v2792 = vunpack.c.l.b16 %v2705
        %v2793 = vunpack.c.h.b16 %v2705
        %v2794 = vunpack.c.l.b16 %v2706
        %v2795 = vunpack.c.h.b16 %v2706
        %v2796 = vunpack.c.l.b16 %v2707
        %v2797 = vunpack.c.h.b16 %v2707
        %v2798 = vunpack.c.l.b16 %v2708
        %v2799 = vunpack.c.h.b16 %v2708
        %v2800 = vunpack.c.l.b16 %v2709
        %v2801 = vunpack.c.h.b16 %v2709
        %v2802 = vunpack.c.l.b16 %v2710
        %v2803 = vunpack.c.h.b16 %v2710
        %v2804 = vunpack.c.l.b16 %v2711
        %v2805 = vunpack.c.h.b16 %v2711
        %v2806 = vunpack.c.l.b16 %v2712
        %v2807 = vunpack.c.h.b16 %v2712
        %v2808 = vunpack.c.l.b16 %v2713
        %v2809 = vunpack.c.h.b16 %v2713
        %v2810 = vpack.c.b16 %v2750, %v2746
        %v2811 = vpack.c.b16 %v2751, %v2747
        %v2812 = vpack.c.b16 %v2752, %v2748
        %v2813 = vpack.c.b16 %v2753, %v2749
        %v2814 = vpack.c.b16 %v2758, %v2754
        %v2815 = vpack.c.b16 %v2759, %v2755
        %v2816 = vpack.c.b16 %v2760, %v2756
        %v2817 = vpack.c.b16 %v2761, %v2757
        %v2818 = vpack.c.b16 %v2766, %v2762
        %v2819 = vpack.c.b16 %v2767, %v2763
        %v2820 = vpack.c.b16 %v2768, %v2764
        %v2821 = vpack.c.b16 %v2769, %v2765
        %v2822 = vpack.c.b16 %v2774, %v2770
        %v2823 = vpack.c.b16 %v2775, %v2771
        %v2824 = vpack.c.b16 %v2776, %v2772
        %v2825 = vpack.c.b16 %v2777, %v2773
        %v2826 = vpack.c.b16 %v2782, %v2778
        %v2827 = vpack.c.b16 %v2783, %v2779
        %v2828 = vpack.c.b16 %v2784, %v2780
        %v2829 = vpack.c.b16 %v2785, %v2781
        %v2830 = vpack.c.b16 %v2790, %v2786
        %v2831 = vpack.c.b16 %v2791, %v2787
        %v2832 = vpack.c.b16 %v2792, %v2788
        %v2833 = vpack.c.b16 %v2793, %v2789
        %v2834 = vpack.c.b16 %v2798, %v2794
        %v2835 = vpack.c.b16 %v2799, %v2795
        %v2836 = vpack.c.b16 %v2800, %v2796
        %v2837 = vpack.c.b16 %v2801, %v2797
        %v2838 = vpack.c.b16 %v2806, %v2802
        %v2839 = vpack.c.b16 %v2807, %v2803
        %v2840 = vpack.c.b16 %v2808, %v2804
        %v2841 = vpack.c.b16 %v2809, %v2805
        %2874 = vmatprep.subr.bf16.mxu0 %v2839
        %2875 = vmatpush1.bf16.msra.mxu0 %v2838
        %2876 = vmatprep.subr.bf16.mxu0 %v2835
        %2877 = vmatpush1.bf16.msra.mxu0 %v2834
        %2878 = vmatprep.subr.bf16.mxu0 %v2831
        %2879 = vmatpush1.bf16.msra.mxu0 %v2830
        %2880 = vmatprep.subr.bf16.mxu0 %v2827
        %2881 = vmatpush1.bf16.msra.mxu0 %v2826
        %2882 = vmatprep.subr.bf16.mxu0 %v2823
        %2883 = vmatpush1.bf16.msra.mxu0 %v2822
        %2884 = vmatprep.subr.bf16.mxu0 %v2819
        %2885 = vmatpush1.bf16.msra.mxu0 %v2818
        %2886 = vmatprep.subr.bf16.mxu0 %v2815
        %2887 = vmatpush1.bf16.msra.mxu0 %v2814
        %2888 = vmatprep.subr.bf16.mxu0 %v2811
        %2889 = vmatpush1.bf16.msra.mxu0 %v2810
        %2890 = vmatprep.subr.bf16.mxu0 0
        %2891 = vmatpush2.bf16.msra.mxu0 0
        %2892 = vmatprep.subr.bf16.mxu0 0
        %2893 = vmatpush2.bf16.msra.mxu0 0
        %2894 = vmatprep.subr.bf16.mxu0 0
        %2895 = vmatpush2.bf16.msra.mxu0 0
        %2896 = vmatprep.subr.bf16.mxu0 0
        %2897 = vmatpush2.bf16.msra.mxu0 0
        %2898 = vmatprep.subr.bf16.mxu0 0
        %2899 = vmatpush2.bf16.msra.mxu0 0
        %2900 = vmatprep.subr.bf16.mxu0 0
        %2901 = vmatpush2.bf16.msra.mxu0 0
        %2902 = vmatprep.subr.bf16.mxu0 0
        %2903 = vmatpush2.bf16.msra.mxu0 0
        %2904 = vmatprep.subr.bf16.mxu0 0
        %2905 = vmatpush2.bf16.msra.mxu0 0
        %2906 = vmatprep.mubr.bf16.mxu0 0
        %2907 = vmatmul.mubr.bf16.gmra.mxu0 %v2656
        %v2908 = vpop.f32.mrf.mxu0
        %v2909 = vadd.f32 0.0, %v2908
        %v2910 = vpop.f32.mrf.mxu0
        %v2911 = vadd.f32 0.0, %v2910
        %v2912 = vpop.f32.mrf.mxu0
        %v2913 = vadd.f32 0.0, %v2912
        %v2914 = vpop.f32.mrf.mxu0
        %v2915 = vadd.f32 0.0, %v2914
        %2916 = vdwg.mxu0
        %2917 = vmatprep.subr.bf16.mxu0 %v2841
        %2918 = vmatpush1.bf16.msra.mxu0 %v2840
        %2919 = vmatprep.subr.bf16.mxu0 %v2837
        %2920 = vmatpush1.bf16.msra.mxu0 %v2836
        %2921 = vmatprep.subr.bf16.mxu0 %v2833
        %2922 = vmatpush1.bf16.msra.mxu0 %v2832
        %2923 = vmatprep.subr.bf16.mxu0 %v2829
        %2924 = vmatpush1.bf16.msra.mxu0 %v2828
        %2925 = vmatprep.subr.bf16.mxu0 %v2825
        %2926 = vmatpush1.bf16.msra.mxu0 %v2824
        %2927 = vmatprep.subr.bf16.mxu0 %v2821
        %2928 = vmatpush1.bf16.msra.mxu0 %v2820
        %2929 = vmatprep.subr.bf16.mxu0 %v2817
        %2930 = vmatpush1.bf16.msra.mxu0 %v2816
        %2931 = vmatprep.subr.bf16.mxu0 %v2813
        %2932 = vmatpush1.bf16.msra.mxu0 %v2812
        %2933 = vmatprep.subr.bf16.mxu0 0
        %2934 = vmatpush2.bf16.msra.mxu0 0
        %2935 = vmatprep.subr.bf16.mxu0 0
        %2936 = vmatpush2.bf16.msra.mxu0 0
        %2937 = vmatprep.subr.bf16.mxu0 0
        %2938 = vmatpush2.bf16.msra.mxu0 0
        %2939 = vmatprep.subr.bf16.mxu0 0
        %2940 = vmatpush2.bf16.msra.mxu0 0
        %2941 = vmatprep.subr.bf16.mxu0 0
        %2942 = vmatpush2.bf16.msra.mxu0 0
        %2943 = vmatprep.subr.bf16.mxu0 0
        %2944 = vmatpush2.bf16.msra.mxu0 0
        %2945 = vmatprep.subr.bf16.mxu0 0
        %2946 = vmatpush2.bf16.msra.mxu0 0
        %2947 = vmatprep.subr.bf16.mxu0 0
        %2948 = vmatpush2.bf16.msra.mxu0 0
        %2949 = vmatprep.mubr.bf16.mxu0 0
        %2950 = vmatmul.mubr.bf16.gmra.mxu0 %v2656
        %v2951 = vpop.f32.mrf.mxu0
        %v2952 = vadd.f32 0.0, %v2951
        %v2953 = vpop.f32.mrf.mxu0
        %v2954 = vadd.f32 0.0, %v2953
        %v2955 = vpop.f32.mrf.mxu0
        %v2956 = vadd.f32 0.0, %v2955
        %v2957 = vpop.f32.mrf.mxu0
        %v2958 = vadd.f32 0.0, %v2957
        %2959 = vdwg.mxu0
        %v2960 = vadd.f32 %v2674, %v2909
        %v2961 = vadd.f32 %v2675, %v2911
        %v2962 = vadd.f32 %v2676, %v2952
        %v2963 = vadd.f32 %v2677, %v2954
        %v2964 = vadd.f32 %v2678, %v2913
        %v2965 = vadd.f32 %v2679, %v2915
        %v2966 = vadd.f32 %v2680, %v2956
        %v2967 = vadd.f32 %v2681, %v2958
        %v2968 = vxor.u32 %v2960, 2147483648
        %v2969 = vxor.u32 %v2964, 2147483648
        %v2970 = vmul.f32 %v2968, 1.442695
        %v2971 = vpow.pop %v2970
        %v2972 = vmul.f32 %v2969, 1.442695
        %v2973 = vpow.pop %v2972
        %v2974 = vadd.f32 %v2971, 1.0
        %v2975 = vadd.f32 %v2973, 1.0
        %v2976 = vrcp.pop %v2974
        %v2977 = vmul.f32 1.0, %v2976
        %v2978 = vrcp.pop %v2975
        %v2979 = vmul.f32 1.0, %v2978
        %v2980 = vxor.u32 %v2961, 2147483648
        %v2981 = vxor.u32 %v2965, 2147483648
        %v2982 = vmul.f32 %v2980, 1.442695
        %v2983 = vpow.pop %v2982
        %v2984 = vmul.f32 %v2981, 1.442695
        %v2985 = vpow.pop %v2984
        %v2986 = vadd.f32 %v2983, 1.0
        %v2987 = vadd.f32 %v2985, 1.0
        %v2988 = vrcp.pop %v2986
        %v2989 = vmul.f32 1.0, %v2988
        %v2990 = vrcp.pop %v2987
        %v2991 = vmul.f32 1.0, %v2990
        %v2992 = vtanh.pop %v2962
        %v2993 = vtanh.pop %v2966
        %v2994 = vxor.u32 %v2963, 2147483648
        %v2995 = vxor.u32 %v2967, 2147483648
        %v2996 = vmul.f32 %v2994, 1.442695
        %v2997 = vpow.pop %v2996
        %v2998 = vmul.f32 %v2995, 1.442695
        %v2999 = vpow.pop %v2998
        %v3000 = vadd.f32 %v2997, 1.0
        %v3001 = vadd.f32 %v2999, 1.0
        %v3002 = vrcp.pop %v3000
        %v3003 = vmul.f32 1.0, %v3002
        %v3004 = vrcp.pop %v3001
        %v3005 = vmul.f32 1.0, %v3004
        %v3006 = vmul.f32 %v2989, %v2648
        %v3007 = vmul.f32 %v2991, %v2649
        %v3008 = vmul.f32 %v2977, %v2992
        %v3009 = vmul.f32 %v2979, %v2993
        %v3010 = vadd.f32 %v3006, %v3008
        %v3011 = vadd.f32 %v3007, %v3009
        %v3012 = vtanh.pop %v3010
        %v3013 = vtanh.pop %v3011
        %v3014 = vmul.f32 %v3003, %v3012
        %v3015 = vmul.f32 %v3005, %v3013
        %v3016 = vadd.f32 %v2654, %v3014
        %v3017 = vadd.f32 %v2655, %v3015
        %v3018 = vpack.c.bf16 %v3015, %v3014
        %v3020 = vunpack.c.l.b16 %v3018
        %v3021 = vunpack.c.h.b16 %v3018
        %v3022 = vpack.c.b16 %v3020, %v3020
        %v3023 = vpack.c.b16 %v3021, %v3021
        %s3026 = smul.u32 %s2670, 2
        %s3027 = smul.addr %s3026, 4
        %s3028 = scalar_lea.vmem %s377, %s3027 [#allocation11]
        %3029 = vst [vmem:[%s3028] sm:$0xf] %v3022
        %3030 = vst [vmem:[%s3028 + $0x4] sm:$0xf] %v3023
        %s3031 = smul.u32 %s30, 4294967291
        %s3032 = sadd.s32 %s3031, 6
        %s3033 = smul.u32 %s3032, 8
        %s3034 = smul.addr %s3033, 8
        %s3035 = scalar_lea.vmem [#allocation2], %s3034
        %v3036 = vld [vmem:[%s3035] sm:$0xff]
        %v3037 = vld [vmem:[%s3035 + $0x8] sm:$0xff]
        %v3038 = vld [vmem:[%s3035 + $0x10] sm:$0xff]
        %v3039 = vld [vmem:[%s3035 + $0x18] sm:$0xff]
        %v3040 = vld [vmem:[%s3035 + $0x20] sm:$0xff]
        %v3041 = vld [vmem:[%s3035 + $0x28] sm:$0xff]
        %v3042 = vld [vmem:[%s3035 + $0x30] sm:$0xff]
        %v3043 = vld [vmem:[%s3035 + $0x38] sm:$0xff]
        %v3044 = vld [vmem:[%s334] sm:$0xff]
        %v3045 = vld [vmem:[%s334 + $0x8] sm:$0xff]
        %v3046 = vld [vmem:[%s334 + $0x10] sm:$0xff]
        %v3047 = vld [vmem:[%s334 + $0x18] sm:$0xff]
        %v3048 = vld [vmem:[%s334 + $0x20] sm:$0xff]
        %v3049 = vld [vmem:[%s334 + $0x28] sm:$0xff]
        %v3050 = vld [vmem:[%s334 + $0x30] sm:$0xff]
        %v3051 = vld [vmem:[%s334 + $0x38] sm:$0xff]
        %v3052 = vld [vmem:[%s334 + $0x40] sm:$0xff]
        %v3053 = vld [vmem:[%s334 + $0x48] sm:$0xff]
        %v3054 = vld [vmem:[%s334 + $0x50] sm:$0xff]
        %v3055 = vld [vmem:[%s334 + $0x58] sm:$0xff]
        %v3056 = vld [vmem:[%s334 + $0x60] sm:$0xff]
        %v3057 = vld [vmem:[%s334 + $0x68] sm:$0xff]
        %v3058 = vld [vmem:[%s334 + $0x70] sm:$0xff]
        %v3059 = vld [vmem:[%s334 + $0x78] sm:$0xff]
        %v3060 = vld [vmem:[%s334 + $0x80] sm:$0xff]
        %v3061 = vld [vmem:[%s334 + $0x88] sm:$0xff]
        %v3062 = vld [vmem:[%s334 + $0x90] sm:$0xff]
        %v3063 = vld [vmem:[%s334 + $0x98] sm:$0xff]
        %v3064 = vld [vmem:[%s334 + $0xa0] sm:$0xff]
        %v3065 = vld [vmem:[%s334 + $0xa8] sm:$0xff]
        %v3066 = vld [vmem:[%s334 + $0xb0] sm:$0xff]
        %v3067 = vld [vmem:[%s334 + $0xb8] sm:$0xff]
        %v3068 = vld [vmem:[%s334 + $0xc0] sm:$0xff]
        %v3069 = vld [vmem:[%s334 + $0xc8] sm:$0xff]
        %v3070 = vld [vmem:[%s334 + $0xd0] sm:$0xff]
        %v3071 = vld [vmem:[%s334 + $0xd8] sm:$0xff]
        %v3072 = vld [vmem:[%s334 + $0xe0] sm:$0xff]
        %v3073 = vld [vmem:[%s334 + $0xe8] sm:$0xff]
        %v3074 = vld [vmem:[%s334 + $0xf0] sm:$0xff]
        %v3075 = vld [vmem:[%s334 + $0xf8] sm:$0xff]
        %v3108 = vunpack.c.l.b16 %v3044
        %v3109 = vunpack.c.h.b16 %v3044
        %v3110 = vunpack.c.l.b16 %v3045
        %v3111 = vunpack.c.h.b16 %v3045
        %v3112 = vunpack.c.l.b16 %v3046
        %v3113 = vunpack.c.h.b16 %v3046
        %v3114 = vunpack.c.l.b16 %v3047
        %v3115 = vunpack.c.h.b16 %v3047
        %v3116 = vunpack.c.l.b16 %v3048
        %v3117 = vunpack.c.h.b16 %v3048
        %v3118 = vunpack.c.l.b16 %v3049
        %v3119 = vunpack.c.h.b16 %v3049
        %v3120 = vunpack.c.l.b16 %v3050
        %v3121 = vunpack.c.h.b16 %v3050
        %v3122 = vunpack.c.l.b16 %v3051
        %v3123 = vunpack.c.h.b16 %v3051
        %v3124 = vunpack.c.l.b16 %v3052
        %v3125 = vunpack.c.h.b16 %v3052
        %v3126 = vunpack.c.l.b16 %v3053
        %v3127 = vunpack.c.h.b16 %v3053
        %v3128 = vunpack.c.l.b16 %v3054
        %v3129 = vunpack.c.h.b16 %v3054
        %v3130 = vunpack.c.l.b16 %v3055
        %v3131 = vunpack.c.h.b16 %v3055
        %v3132 = vunpack.c.l.b16 %v3056
        %v3133 = vunpack.c.h.b16 %v3056
        %v3134 = vunpack.c.l.b16 %v3057
        %v3135 = vunpack.c.h.b16 %v3057
        %v3136 = vunpack.c.l.b16 %v3058
        %v3137 = vunpack.c.h.b16 %v3058
        %v3138 = vunpack.c.l.b16 %v3059
        %v3139 = vunpack.c.h.b16 %v3059
        %v3140 = vunpack.c.l.b16 %v3060
        %v3141 = vunpack.c.h.b16 %v3060
        %v3142 = vunpack.c.l.b16 %v3061
        %v3143 = vunpack.c.h.b16 %v3061
        %v3144 = vunpack.c.l.b16 %v3062
        %v3145 = vunpack.c.h.b16 %v3062
        %v3146 = vunpack.c.l.b16 %v3063
        %v3147 = vunpack.c.h.b16 %v3063
        %v3148 = vunpack.c.l.b16 %v3064
        %v3149 = vunpack.c.h.b16 %v3064
        %v3150 = vunpack.c.l.b16 %v3065
        %v3151 = vunpack.c.h.b16 %v3065
        %v3152 = vunpack.c.l.b16 %v3066
        %v3153 = vunpack.c.h.b16 %v3066
        %v3154 = vunpack.c.l.b16 %v3067
        %v3155 = vunpack.c.h.b16 %v3067
        %v3156 = vunpack.c.l.b16 %v3068
        %v3157 = vunpack.c.h.b16 %v3068
        %v3158 = vunpack.c.l.b16 %v3069
        %v3159 = vunpack.c.h.b16 %v3069
        %v3160 = vunpack.c.l.b16 %v3070
        %v3161 = vunpack.c.h.b16 %v3070
        %v3162 = vunpack.c.l.b16 %v3071
        %v3163 = vunpack.c.h.b16 %v3071
        %v3164 = vunpack.c.l.b16 %v3072
        %v3165 = vunpack.c.h.b16 %v3072
        %v3166 = vunpack.c.l.b16 %v3073
        %v3167 = vunpack.c.h.b16 %v3073
        %v3168 = vunpack.c.l.b16 %v3074
        %v3169 = vunpack.c.h.b16 %v3074
        %v3170 = vunpack.c.l.b16 %v3075
        %v3171 = vunpack.c.h.b16 %v3075
        %v3172 = vpack.c.b16 %v3112, %v3108
        %v3173 = vpack.c.b16 %v3113, %v3109
        %v3174 = vpack.c.b16 %v3114, %v3110
        %v3175 = vpack.c.b16 %v3115, %v3111
        %v3176 = vpack.c.b16 %v3120, %v3116
        %v3177 = vpack.c.b16 %v3121, %v3117
        %v3178 = vpack.c.b16 %v3122, %v3118
        %v3179 = vpack.c.b16 %v3123, %v3119
        %v3180 = vpack.c.b16 %v3128, %v3124
        %v3181 = vpack.c.b16 %v3129, %v3125
        %v3182 = vpack.c.b16 %v3130, %v3126
        %v3183 = vpack.c.b16 %v3131, %v3127
        %v3184 = vpack.c.b16 %v3136, %v3132
        %v3185 = vpack.c.b16 %v3137, %v3133
        %v3186 = vpack.c.b16 %v3138, %v3134
        %v3187 = vpack.c.b16 %v3139, %v3135
        %v3188 = vpack.c.b16 %v3144, %v3140
        %v3189 = vpack.c.b16 %v3145, %v3141
        %v3190 = vpack.c.b16 %v3146, %v3142
        %v3191 = vpack.c.b16 %v3147, %v3143
        %v3192 = vpack.c.b16 %v3152, %v3148
        %v3193 = vpack.c.b16 %v3153, %v3149
        %v3194 = vpack.c.b16 %v3154, %v3150
        %v3195 = vpack.c.b16 %v3155, %v3151
        %v3196 = vpack.c.b16 %v3160, %v3156
        %v3197 = vpack.c.b16 %v3161, %v3157
        %v3198 = vpack.c.b16 %v3162, %v3158
        %v3199 = vpack.c.b16 %v3163, %v3159
        %v3200 = vpack.c.b16 %v3168, %v3164
        %v3201 = vpack.c.b16 %v3169, %v3165
        %v3202 = vpack.c.b16 %v3170, %v3166
        %v3203 = vpack.c.b16 %v3171, %v3167
        %3236 = vmatprep.subr.bf16.mxu0 %v3201
        %3237 = vmatpush1.bf16.msra.mxu0 %v3200
        %3238 = vmatprep.subr.bf16.mxu0 %v3197
        %3239 = vmatpush1.bf16.msra.mxu0 %v3196
        %3240 = vmatprep.subr.bf16.mxu0 %v3193
        %3241 = vmatpush1.bf16.msra.mxu0 %v3192
        %3242 = vmatprep.subr.bf16.mxu0 %v3189
        %3243 = vmatpush1.bf16.msra.mxu0 %v3188
        %3244 = vmatprep.subr.bf16.mxu0 %v3185
        %3245 = vmatpush1.bf16.msra.mxu0 %v3184
        %3246 = vmatprep.subr.bf16.mxu0 %v3181
        %3247 = vmatpush1.bf16.msra.mxu0 %v3180
        %3248 = vmatprep.subr.bf16.mxu0 %v3177
        %3249 = vmatpush1.bf16.msra.mxu0 %v3176
        %3250 = vmatprep.subr.bf16.mxu0 %v3173
        %3251 = vmatpush1.bf16.msra.mxu0 %v3172
        %3252 = vmatprep.subr.bf16.mxu0 0
        %3253 = vmatpush2.bf16.msra.mxu0 0
        %3254 = vmatprep.subr.bf16.mxu0 0
        %3255 = vmatpush2.bf16.msra.mxu0 0
        %3256 = vmatprep.subr.bf16.mxu0 0
        %3257 = vmatpush2.bf16.msra.mxu0 0
        %3258 = vmatprep.subr.bf16.mxu0 0
        %3259 = vmatpush2.bf16.msra.mxu0 0
        %3260 = vmatprep.subr.bf16.mxu0 0
        %3261 = vmatpush2.bf16.msra.mxu0 0
        %3262 = vmatprep.subr.bf16.mxu0 0
        %3263 = vmatpush2.bf16.msra.mxu0 0
        %3264 = vmatprep.subr.bf16.mxu0 0
        %3265 = vmatpush2.bf16.msra.mxu0 0
        %3266 = vmatprep.subr.bf16.mxu0 0
        %3267 = vmatpush2.bf16.msra.mxu0 0
        %3268 = vmatprep.mubr.bf16.mxu0 0
        %3269 = vmatmul.mubr.bf16.gmra.mxu0 %v3018
        %v3270 = vpop.f32.mrf.mxu0
        %v3271 = vadd.f32 0.0, %v3270
        %v3272 = vpop.f32.mrf.mxu0
        %v3273 = vadd.f32 0.0, %v3272
        %v3274 = vpop.f32.mrf.mxu0
        %v3275 = vadd.f32 0.0, %v3274
        %v3276 = vpop.f32.mrf.mxu0
        %v3277 = vadd.f32 0.0, %v3276
        %3278 = vdwg.mxu0
        %3279 = vmatprep.subr.bf16.mxu0 %v3203
        %3280 = vmatpush1.bf16.msra.mxu0 %v3202
        %3281 = vmatprep.subr.bf16.mxu0 %v3199
        %3282 = vmatpush1.bf16.msra.mxu0 %v3198
        %3283 = vmatprep.subr.bf16.mxu0 %v3195
        %3284 = vmatpush1.bf16.msra.mxu0 %v3194
        %3285 = vmatprep.subr.bf16.mxu0 %v3191
        %3286 = vmatpush1.bf16.msra.mxu0 %v3190
        %3287 = vmatprep.subr.bf16.mxu0 %v3187
        %3288 = vmatpush1.bf16.msra.mxu0 %v3186
        %3289 = vmatprep.subr.bf16.mxu0 %v3183
        %3290 = vmatpush1.bf16.msra.mxu0 %v3182
        %3291 = vmatprep.subr.bf16.mxu0 %v3179
        %3292 = vmatpush1.bf16.msra.mxu0 %v3178
        %3293 = vmatprep.subr.bf16.mxu0 %v3175
        %3294 = vmatpush1.bf16.msra.mxu0 %v3174
        %3295 = vmatprep.subr.bf16.mxu0 0
        %3296 = vmatpush2.bf16.msra.mxu0 0
        %3297 = vmatprep.subr.bf16.mxu0 0
        %3298 = vmatpush2.bf16.msra.mxu0 0
        %3299 = vmatprep.subr.bf16.mxu0 0
        %3300 = vmatpush2.bf16.msra.mxu0 0
        %3301 = vmatprep.subr.bf16.mxu0 0
        %3302 = vmatpush2.bf16.msra.mxu0 0
        %3303 = vmatprep.subr.bf16.mxu0 0
        %3304 = vmatpush2.bf16.msra.mxu0 0
        %3305 = vmatprep.subr.bf16.mxu0 0
        %3306 = vmatpush2.bf16.msra.mxu0 0
        %3307 = vmatprep.subr.bf16.mxu0 0
        %3308 = vmatpush2.bf16.msra.mxu0 0
        %3309 = vmatprep.subr.bf16.mxu0 0
        %3310 = vmatpush2.bf16.msra.mxu0 0
        %3311 = vmatprep.mubr.bf16.mxu0 0
        %3312 = vmatmul.mubr.bf16.gmra.mxu0 %v3018
        %v3313 = vpop.f32.mrf.mxu0
        %v3314 = vadd.f32 0.0, %v3313
        %v3315 = vpop.f32.mrf.mxu0
        %v3316 = vadd.f32 0.0, %v3315
        %v3317 = vpop.f32.mrf.mxu0
        %v3318 = vadd.f32 0.0, %v3317
        %v3319 = vpop.f32.mrf.mxu0
        %v3320 = vadd.f32 0.0, %v3319
        %3321 = vdwg.mxu0
        %v3322 = vadd.f32 %v3036, %v3271
        %v3323 = vadd.f32 %v3037, %v3273
        %v3324 = vadd.f32 %v3038, %v3314
        %v3325 = vadd.f32 %v3039, %v3316
        %v3326 = vadd.f32 %v3040, %v3275
        %v3327 = vadd.f32 %v3041, %v3277
        %v3328 = vadd.f32 %v3042, %v3318
        %v3329 = vadd.f32 %v3043, %v3320
        %v3330 = vxor.u32 %v3322, 2147483648
        %v3331 = vxor.u32 %v3326, 2147483648
        %v3332 = vmul.f32 %v3330, 1.442695
        %v3333 = vpow.pop %v3332
        %v3334 = vmul.f32 %v3331, 1.442695
        %v3335 = vpow.pop %v3334
        %v3336 = vadd.f32 %v3333, 1.0
        %v3337 = vadd.f32 %v3335, 1.0
        %v3338 = vrcp.pop %v3336
        %v3339 = vmul.f32 1.0, %v3338
        %v3340 = vrcp.pop %v3337
        %v3341 = vmul.f32 1.0, %v3340
        %v3342 = vxor.u32 %v3323, 2147483648
        %v3343 = vxor.u32 %v3327, 2147483648
        %v3344 = vmul.f32 %v3342, 1.442695
        %v3345 = vpow.pop %v3344
        %v3346 = vmul.f32 %v3343, 1.442695
        %v3347 = vpow.pop %v3346
        %v3348 = vadd.f32 %v3345, 1.0
        %v3349 = vadd.f32 %v3347, 1.0
        %v3350 = vrcp.pop %v3348
        %v3351 = vmul.f32 1.0, %v3350
        %v3352 = vrcp.pop %v3349
        %v3353 = vmul.f32 1.0, %v3352
        %v3354 = vtanh.pop %v3324
        %v3355 = vtanh.pop %v3328
        %v3356 = vxor.u32 %v3325, 2147483648
        %v3357 = vxor.u32 %v3329, 2147483648
        %v3358 = vmul.f32 %v3356, 1.442695
        %v3359 = vpow.pop %v3358
        %v3360 = vmul.f32 %v3357, 1.442695
        %v3361 = vpow.pop %v3360
        %v3362 = vadd.f32 %v3359, 1.0
        %v3363 = vadd.f32 %v3361, 1.0
        %v3364 = vrcp.pop %v3362
        %v3365 = vmul.f32 1.0, %v3364
        %v3366 = vrcp.pop %v3363
        %v3367 = vmul.f32 1.0, %v3366
        %v3368 = vmul.f32 %v3351, %v3010
        %v3369 = vmul.f32 %v3353, %v3011
        %v3370 = vmul.f32 %v3339, %v3354
        %v3371 = vmul.f32 %v3341, %v3355
        %v3372 = vadd.f32 %v3368, %v3370
        %v3373 = vadd.f32 %v3369, %v3371
        %v3374 = vtanh.pop %v3372
        %v3375 = vtanh.pop %v3373
        %v3376 = vmul.f32 %v3365, %v3374
        %v3377 = vmul.f32 %v3367, %v3375
        %v3378 = vadd.f32 %v3016, %v3376
        %v3379 = vadd.f32 %v3017, %v3377
        %v3380 = vpack.c.bf16 %v3377, %v3376
        %v3382 = vunpack.c.l.b16 %v3380
        %v3383 = vunpack.c.h.b16 %v3380
        %v3384 = vpack.c.b16 %v3382, %v3382
        %v3385 = vpack.c.b16 %v3383, %v3383
        %s3388 = smul.u32 %s3032, 2
        %s3389 = smul.addr %s3388, 4
        %s3390 = scalar_lea.vmem %s377, %s3389 [#allocation11]
        %3391 = vst [vmem:[%s3390] sm:$0xf] %v3384
        %3392 = vst [vmem:[%s3390 + $0x4] sm:$0xf] %v3385
        %s3393 = smul.u32 %s30, 4294967289
        %s3394 = sadd.s32 %s3393, 7
        %s3395 = smul.u32 %s3394, 8
        %s3396 = smul.addr %s3395, 8
        %s3397 = scalar_lea.vmem [#allocation2], %s3396
        %v3398 = vld [vmem:[%s3397] sm:$0xff]
        %v3399 = vld [vmem:[%s3397 + $0x8] sm:$0xff]
        %v3400 = vld [vmem:[%s3397 + $0x10] sm:$0xff]
        %v3401 = vld [vmem:[%s3397 + $0x18] sm:$0xff]
        %v3402 = vld [vmem:[%s3397 + $0x20] sm:$0xff]
        %v3403 = vld [vmem:[%s3397 + $0x28] sm:$0xff]
        %v3404 = vld [vmem:[%s3397 + $0x30] sm:$0xff]
        %v3405 = vld [vmem:[%s3397 + $0x38] sm:$0xff]
        %v3406 = vld [vmem:[%s334] sm:$0xff]
        %v3407 = vld [vmem:[%s334 + $0x8] sm:$0xff]
        %v3408 = vld [vmem:[%s334 + $0x10] sm:$0xff]
        %v3409 = vld [vmem:[%s334 + $0x18] sm:$0xff]
        %v3410 = vld [vmem:[%s334 + $0x20] sm:$0xff]
        %v3411 = vld [vmem:[%s334 + $0x28] sm:$0xff]
        %v3412 = vld [vmem:[%s334 + $0x30] sm:$0xff]
        %v3413 = vld [vmem:[%s334 + $0x38] sm:$0xff]
        %v3414 = vld [vmem:[%s334 + $0x40] sm:$0xff]
        %v3415 = vld [vmem:[%s334 + $0x48] sm:$0xff]
        %v3416 = vld [vmem:[%s334 + $0x50] sm:$0xff]
        %v3417 = vld [vmem:[%s334 + $0x58] sm:$0xff]
        %v3418 = vld [vmem:[%s334 + $0x60] sm:$0xff]
        %v3419 = vld [vmem:[%s334 + $0x68] sm:$0xff]
        %v3420 = vld [vmem:[%s334 + $0x70] sm:$0xff]
        %v3421 = vld [vmem:[%s334 + $0x78] sm:$0xff]
        %v3422 = vld [vmem:[%s334 + $0x80] sm:$0xff]
        %v3423 = vld [vmem:[%s334 + $0x88] sm:$0xff]
        %v3424 = vld [vmem:[%s334 + $0x90] sm:$0xff]
        %v3425 = vld [vmem:[%s334 + $0x98] sm:$0xff]
        %v3426 = vld [vmem:[%s334 + $0xa0] sm:$0xff]
        %v3427 = vld [vmem:[%s334 + $0xa8] sm:$0xff]
        %v3428 = vld [vmem:[%s334 + $0xb0] sm:$0xff]
        %v3429 = vld [vmem:[%s334 + $0xb8] sm:$0xff]
        %v3430 = vld [vmem:[%s334 + $0xc0] sm:$0xff]
        %v3431 = vld [vmem:[%s334 + $0xc8] sm:$0xff]
        %v3432 = vld [vmem:[%s334 + $0xd0] sm:$0xff]
        %v3433 = vld [vmem:[%s334 + $0xd8] sm:$0xff]
        %v3434 = vld [vmem:[%s334 + $0xe0] sm:$0xff]
        %v3435 = vld [vmem:[%s334 + $0xe8] sm:$0xff]
        %v3436 = vld [vmem:[%s334 + $0xf0] sm:$0xff]
        %v3437 = vld [vmem:[%s334 + $0xf8] sm:$0xff]
        %v3470 = vunpack.c.l.b16 %v3406
        %v3471 = vunpack.c.h.b16 %v3406
        %v3472 = vunpack.c.l.b16 %v3407
        %v3473 = vunpack.c.h.b16 %v3407
        %v3474 = vunpack.c.l.b16 %v3408
        %v3475 = vunpack.c.h.b16 %v3408
        %v3476 = vunpack.c.l.b16 %v3409
        %v3477 = vunpack.c.h.b16 %v3409
        %v3478 = vunpack.c.l.b16 %v3410
        %v3479 = vunpack.c.h.b16 %v3410
        %v3480 = vunpack.c.l.b16 %v3411
        %v3481 = vunpack.c.h.b16 %v3411
        %v3482 = vunpack.c.l.b16 %v3412
        %v3483 = vunpack.c.h.b16 %v3412
        %v3484 = vunpack.c.l.b16 %v3413
        %v3485 = vunpack.c.h.b16 %v3413
        %v3486 = vunpack.c.l.b16 %v3414
        %v3487 = vunpack.c.h.b16 %v3414
        %v3488 = vunpack.c.l.b16 %v3415
        %v3489 = vunpack.c.h.b16 %v3415
        %v3490 = vunpack.c.l.b16 %v3416
        %v3491 = vunpack.c.h.b16 %v3416
        %v3492 = vunpack.c.l.b16 %v3417
        %v3493 = vunpack.c.h.b16 %v3417
        %v3494 = vunpack.c.l.b16 %v3418
        %v3495 = vunpack.c.h.b16 %v3418
        %v3496 = vunpack.c.l.b16 %v3419
        %v3497 = vunpack.c.h.b16 %v3419
        %v3498 = vunpack.c.l.b16 %v3420
        %v3499 = vunpack.c.h.b16 %v3420
        %v3500 = vunpack.c.l.b16 %v3421
        %v3501 = vunpack.c.h.b16 %v3421
        %v3502 = vunpack.c.l.b16 %v3422
        %v3503 = vunpack.c.h.b16 %v3422
        %v3504 = vunpack.c.l.b16 %v3423
        %v3505 = vunpack.c.h.b16 %v3423
        %v3506 = vunpack.c.l.b16 %v3424
        %v3507 = vunpack.c.h.b16 %v3424
        %v3508 = vunpack.c.l.b16 %v3425
        %v3509 = vunpack.c.h.b16 %v3425
        %v3510 = vunpack.c.l.b16 %v3426
        %v3511 = vunpack.c.h.b16 %v3426
        %v3512 = vunpack.c.l.b16 %v3427
        %v3513 = vunpack.c.h.b16 %v3427
        %v3514 = vunpack.c.l.b16 %v3428
        %v3515 = vunpack.c.h.b16 %v3428
        %v3516 = vunpack.c.l.b16 %v3429
        %v3517 = vunpack.c.h.b16 %v3429
        %v3518 = vunpack.c.l.b16 %v3430
        %v3519 = vunpack.c.h.b16 %v3430
        %v3520 = vunpack.c.l.b16 %v3431
        %v3521 = vunpack.c.h.b16 %v3431
        %v3522 = vunpack.c.l.b16 %v3432
        %v3523 = vunpack.c.h.b16 %v3432
        %v3524 = vunpack.c.l.b16 %v3433
        %v3525 = vunpack.c.h.b16 %v3433
        %v3526 = vunpack.c.l.b16 %v3434
        %v3527 = vunpack.c.h.b16 %v3434
        %v3528 = vunpack.c.l.b16 %v3435
        %v3529 = vunpack.c.h.b16 %v3435
        %v3530 = vunpack.c.l.b16 %v3436
        %v3531 = vunpack.c.h.b16 %v3436
        %v3532 = vunpack.c.l.b16 %v3437
        %v3533 = vunpack.c.h.b16 %v3437
        %v3534 = vpack.c.b16 %v3474, %v3470
        %v3535 = vpack.c.b16 %v3475, %v3471
        %v3536 = vpack.c.b16 %v3476, %v3472
        %v3537 = vpack.c.b16 %v3477, %v3473
        %v3538 = vpack.c.b16 %v3482, %v3478
        %v3539 = vpack.c.b16 %v3483, %v3479
        %v3540 = vpack.c.b16 %v3484, %v3480
        %v3541 = vpack.c.b16 %v3485, %v3481
        %v3542 = vpack.c.b16 %v3490, %v3486
        %v3543 = vpack.c.b16 %v3491, %v3487
        %v3544 = vpack.c.b16 %v3492, %v3488
        %v3545 = vpack.c.b16 %v3493, %v3489
        %v3546 = vpack.c.b16 %v3498, %v3494
        %v3547 = vpack.c.b16 %v3499, %v3495
        %v3548 = vpack.c.b16 %v3500, %v3496
        %v3549 = vpack.c.b16 %v3501, %v3497
        %v3550 = vpack.c.b16 %v3506, %v3502
        %v3551 = vpack.c.b16 %v3507, %v3503
        %v3552 = vpack.c.b16 %v3508, %v3504
        %v3553 = vpack.c.b16 %v3509, %v3505
        %v3554 = vpack.c.b16 %v3514, %v3510
        %v3555 = vpack.c.b16 %v3515, %v3511
        %v3556 = vpack.c.b16 %v3516, %v3512
        %v3557 = vpack.c.b16 %v3517, %v3513
        %v3558 = vpack.c.b16 %v3522, %v3518
        %v3559 = vpack.c.b16 %v3523, %v3519
        %v3560 = vpack.c.b16 %v3524, %v3520
        %v3561 = vpack.c.b16 %v3525, %v3521
        %v3562 = vpack.c.b16 %v3530, %v3526
        %v3563 = vpack.c.b16 %v3531, %v3527
        %v3564 = vpack.c.b16 %v3532, %v3528
        %v3565 = vpack.c.b16 %v3533, %v3529
        %3598 = vmatprep.subr.bf16.mxu0 %v3563
        %3599 = vmatpush1.bf16.msra.mxu0 %v3562
        %3600 = vmatprep.subr.bf16.mxu0 %v3559
        %3601 = vmatpush1.bf16.msra.mxu0 %v3558
        %3602 = vmatprep.subr.bf16.mxu0 %v3555
        %3603 = vmatpush1.bf16.msra.mxu0 %v3554
        %3604 = vmatprep.subr.bf16.mxu0 %v3551
        %3605 = vmatpush1.bf16.msra.mxu0 %v3550
        %3606 = vmatprep.subr.bf16.mxu0 %v3547
        %3607 = vmatpush1.bf16.msra.mxu0 %v3546
        %3608 = vmatprep.subr.bf16.mxu0 %v3543
        %3609 = vmatpush1.bf16.msra.mxu0 %v3542
        %3610 = vmatprep.subr.bf16.mxu0 %v3539
        %3611 = vmatpush1.bf16.msra.mxu0 %v3538
        %3612 = vmatprep.subr.bf16.mxu0 %v3535
        %3613 = vmatpush1.bf16.msra.mxu0 %v3534
        %3614 = vmatprep.subr.bf16.mxu0 0
        %3615 = vmatpush2.bf16.msra.mxu0 0
        %3616 = vmatprep.subr.bf16.mxu0 0
        %3617 = vmatpush2.bf16.msra.mxu0 0
        %3618 = vmatprep.subr.bf16.mxu0 0
        %3619 = vmatpush2.bf16.msra.mxu0 0
        %3620 = vmatprep.subr.bf16.mxu0 0
        %3621 = vmatpush2.bf16.msra.mxu0 0
        %3622 = vmatprep.subr.bf16.mxu0 0
        %3623 = vmatpush2.bf16.msra.mxu0 0
        %3624 = vmatprep.subr.bf16.mxu0 0
        %3625 = vmatpush2.bf16.msra.mxu0 0
        %3626 = vmatprep.subr.bf16.mxu0 0
        %3627 = vmatpush2.bf16.msra.mxu0 0
        %3628 = vmatprep.subr.bf16.mxu0 0
        %3629 = vmatpush2.bf16.msra.mxu0 0
        %3630 = vmatprep.mubr.bf16.mxu0 0
        %3631 = vmatmul.mubr.bf16.gmra.mxu0 %v3380
        %v3632 = vpop.f32.mrf.mxu0
        %v3633 = vadd.f32 0.0, %v3632
        %v3634 = vpop.f32.mrf.mxu0
        %v3635 = vadd.f32 0.0, %v3634
        %v3636 = vpop.f32.mrf.mxu0
        %v3637 = vadd.f32 0.0, %v3636
        %v3638 = vpop.f32.mrf.mxu0
        %v3639 = vadd.f32 0.0, %v3638
        %3640 = vdwg.mxu0
        %3641 = vmatprep.subr.bf16.mxu0 %v3565
        %3642 = vmatpush1.bf16.msra.mxu0 %v3564
        %3643 = vmatprep.subr.bf16.mxu0 %v3561
        %3644 = vmatpush1.bf16.msra.mxu0 %v3560
        %3645 = vmatprep.subr.bf16.mxu0 %v3557
        %3646 = vmatpush1.bf16.msra.mxu0 %v3556
        %3647 = vmatprep.subr.bf16.mxu0 %v3553
        %3648 = vmatpush1.bf16.msra.mxu0 %v3552
        %3649 = vmatprep.subr.bf16.mxu0 %v3549
        %3650 = vmatpush1.bf16.msra.mxu0 %v3548
        %3651 = vmatprep.subr.bf16.mxu0 %v3545
        %3652 = vmatpush1.bf16.msra.mxu0 %v3544
        %3653 = vmatprep.subr.bf16.mxu0 %v3541
        %3654 = vmatpush1.bf16.msra.mxu0 %v3540
        %3655 = vmatprep.subr.bf16.mxu0 %v3537
        %3656 = vmatpush1.bf16.msra.mxu0 %v3536
        %3657 = vmatprep.subr.bf16.mxu0 0
        %3658 = vmatpush2.bf16.msra.mxu0 0
        %3659 = vmatprep.subr.bf16.mxu0 0
        %3660 = vmatpush2.bf16.msra.mxu0 0
        %3661 = vmatprep.subr.bf16.mxu0 0
        %3662 = vmatpush2.bf16.msra.mxu0 0
        %3663 = vmatprep.subr.bf16.mxu0 0
        %3664 = vmatpush2.bf16.msra.mxu0 0
        %3665 = vmatprep.subr.bf16.mxu0 0
        %3666 = vmatpush2.bf16.msra.mxu0 0
        %3667 = vmatprep.subr.bf16.mxu0 0
        %3668 = vmatpush2.bf16.msra.mxu0 0
        %3669 = vmatprep.subr.bf16.mxu0 0
        %3670 = vmatpush2.bf16.msra.mxu0 0
        %3671 = vmatprep.subr.bf16.mxu0 0
        %3672 = vmatpush2.bf16.msra.mxu0 0
        %3673 = vmatprep.mubr.bf16.mxu0 0
        %3674 = vmatmul.mubr.bf16.gmra.mxu0 %v3380
        %v3675 = vpop.f32.mrf.mxu0
        %v3676 = vadd.f32 0.0, %v3675
        %v3677 = vpop.f32.mrf.mxu0
        %v3678 = vadd.f32 0.0, %v3677
        %v3679 = vpop.f32.mrf.mxu0
        %v3680 = vadd.f32 0.0, %v3679
        %v3681 = vpop.f32.mrf.mxu0
        %v3682 = vadd.f32 0.0, %v3681
        %3683 = vdwg.mxu0
        %v3684 = vadd.f32 %v3398, %v3633
        %v3685 = vadd.f32 %v3399, %v3635
        %v3686 = vadd.f32 %v3400, %v3676
        %v3687 = vadd.f32 %v3401, %v3678
        %v3688 = vadd.f32 %v3402, %v3637
        %v3689 = vadd.f32 %v3403, %v3639
        %v3690 = vadd.f32 %v3404, %v3680
        %v3691 = vadd.f32 %v3405, %v3682
        %v3692 = vxor.u32 %v3684, 2147483648
        %v3693 = vxor.u32 %v3688, 2147483648
        %v3694 = vmul.f32 %v3692, 1.442695
        %v3695 = vpow.pop %v3694
        %v3696 = vmul.f32 %v3693, 1.442695
        %v3697 = vpow.pop %v3696
        %v3698 = vadd.f32 %v3695, 1.0
        %v3699 = vadd.f32 %v3697, 1.0
        %v3700 = vrcp.pop %v3698
        %v3701 = vmul.f32 1.0, %v3700
        %v3702 = vrcp.pop %v3699
        %v3703 = vmul.f32 1.0, %v3702
        %v3704 = vxor.u32 %v3685, 2147483648
        %v3705 = vxor.u32 %v3689, 2147483648
        %v3706 = vmul.f32 %v3704, 1.442695
        %v3707 = vpow.pop %v3706
        %v3708 = vmul.f32 %v3705, 1.442695
        %v3709 = vpow.pop %v3708
        %v3710 = vadd.f32 %v3707, 1.0
        %v3711 = vadd.f32 %v3709, 1.0
        %v3712 = vrcp.pop %v3710
        %v3713 = vmul.f32 1.0, %v3712
        %v3714 = vrcp.pop %v3711
        %v3715 = vmul.f32 1.0, %v3714
        %v3716 = vtanh.pop %v3686
        %v3717 = vtanh.pop %v3690
        %v3718 = vxor.u32 %v3687, 2147483648
        %v3719 = vxor.u32 %v3691, 2147483648
        %v3720 = vmul.f32 %v3718, 1.442695
        %v3721 = vpow.pop %v3720
        %v3722 = vmul.f32 %v3719, 1.442695
        %v3723 = vpow.pop %v3722
        %v3724 = vadd.f32 %v3721, 1.0
        %v3725 = vadd.f32 %v3723, 1.0
        %v3726 = vrcp.pop %v3724
        %v3727 = vmul.f32 1.0, %v3726
        %v3728 = vrcp.pop %v3725
        %v3729 = vmul.f32 1.0, %v3728
        %v3730 = vmul.f32 %v3713, %v3372
        %v3731 = vmul.f32 %v3715, %v3373
        %v3732 = vmul.f32 %v3701, %v3716
        %v3733 = vmul.f32 %v3703, %v3717
        %v3734 = vadd.f32 %v3730, %v3732
        %v3735 = vadd.f32 %v3731, %v3733
        %v3736 = vtanh.pop %v3734
        %v3737 = vtanh.pop %v3735
        %v3738 = vmul.f32 %v3727, %v3736
        %v3739 = vmul.f32 %v3729, %v3737
        %v3740 = vadd.f32 %v3378, %v3738
        %v3741 = vadd.f32 %v3379, %v3739
        %v3742 = vpack.c.bf16 %v3739, %v3738
        %v3744 = vunpack.c.l.b16 %v3742
        %v3745 = vunpack.c.h.b16 %v3742
        %v3746 = vpack.c.b16 %v3744, %v3744
        %v3747 = vpack.c.b16 %v3745, %v3745
        %s3750 = smul.u32 %s3394, 2
        %s3751 = smul.addr %s3750, 4
        %s3752 = scalar_lea.vmem %s377, %s3751 [#allocation11]
        %3753 = vst [vmem:[%s3752] sm:$0xf] %v3746
        %3754 = vst [vmem:[%s3752 + $0x4] sm:$0xf] %v3747
        %3755 = vst [vmem:[#allocation3] sm:$0xff] %v3738
        %3756 = vst [vmem:[#allocation3 + $0x8] sm:$0xff] %v3739
        %3757 = vst [vmem:[#allocation4] sm:$0xff] %v3734
        %3758 = vst [vmem:[#allocation4 + $0x8] sm:$0xff] %v3735
        %v3759 = vld [vmem:[%s384] sm:$0xff]
        %v3760 = vld [vmem:[%s384 + $0x8] sm:$0xff]
        %v3761 = vadd.f32 %v3759, %v3740
        %v3762 = vadd.f32 %v3760, %v3741
        %3763 = vst [vmem:[%s384] sm:$0xff] %v3761
        %3764 = vst [vmem:[%s384 + $0x8] sm:$0xff] %v3762
        %s3765 = sand.u32 %s168, 1
        %s3766 = sand.u32 %s168, 1
        %s3767 = smul.addr %s3766, 64
        %s3768 = scalar_lea.vmem [#allocation11], %s3767
        %s3769 = sand.u32 %s194, 1
        %s3770 = scalar_lea.sflag [#allocation7], %s3769
        %s3771 = sand.u32 %s194, 1
        %s3772 = smul.addr %s3771, 16
        %s3773 = scalar_lea.vmem [#allocation12], %s3772
        // Predicated region
        $region53: #{document_classifier_forward.3} parent=35 // pred_check
          %p3774 = pneg %p178
        $region54: #{document_classifier_forward.3} parent=35 // pred_check_branch
          %3776 = sbr.rel (%p3774) target = $region56
        $region55: #{document_classifier_forward.3} parent=35 // pred_region
          %s3777 = smul.u32 %s31, 2
          %s3778 = ssub.s32 0, %s3777
          %s3779 = smul.u32 %s30, %s3778
          %s3780 = sadd.s32 %s31, %s3779
          %s3781 = smul.u32 8, %s3780
          %s3782 = smul.addr %s3781, 4
          %s3783 = sadd.s32 %s30, %s3782
          %s3784 = smul.addr %s3783, 4
          %s3785 = scalar_lea.vmem %s4, %s3784
          // Predicated region
          $region57: #{document_classifier_forward.3} parent=55 // pred_check
            _
          $region58: #{document_classifier_forward.3} parent=55 // pred_check_branch
            %3787 = sbr.rel (0) target = $region60
          $region59: #{document_classifier_forward.3} parent=55 // pred_region
            // Predicated region
            $region61: #{document_classifier_forward.3} parent=59 // pred_check
              _
            $region62: #{document_classifier_forward.3} parent=59 // pred_check_branch
              %3789 = sbr.rel target = $region64
            $region63: #{document_classifier_forward.3} parent=59 // pred_region
              // Predicated region
              $region76: #{document_classifier_forward.3} parent=63 // pred_check
                _
              $region77: #{document_classifier_forward.3} parent=63 // pred_check_branch
                %3835 = sbr.rel (0) target = $region79
              $region78: #{document_classifier_forward.3} parent=63 // pred_region
                loop: start=0, step=1, limit=1
                $region80: #{document_classifier_forward.3} parent=78 // loop_pre_header
                  _
                $region81: #{document_classifier_forward.3} parent=78 // loop_header
                  %s3837 = sphi 0, %s3841
                  %p3838 = scmp.ge.s32.totalorder %s3837, 1
                  %s3842 = sphi %s3768, %s3768
                  %s3843 = sphi %s3785, %s3785
                $region82: #{document_classifier_forward.3} parent=78 // loop_header_branch
                  %3840 = sbr.rel (%p3838) target = $region86
                $region83: #{document_classifier_forward.3} parent=78 // loop_body
                  _
                $region84: #{document_classifier_forward.3} parent=78 // loop_footer
                  %s3841 = sadd.s32 1, %s3837
                $region85: #{document_classifier_forward.3} parent=78 // loop_footer_branch
                  %3836 = sbr.rel target = $region81
                $region86: #{document_classifier_forward.3} parent=78 // loop_exit
                  _
                %s3845 = ssub.s32 16, 1
                loop: start=0, step=1, limit=1
                $region87: #{document_classifier_forward.3} parent=78 // loop_pre_header
                  _
                $region88: #{document_classifier_forward.3} parent=78 // loop_header
                  %s3847 = sphi 0, %s3851
                  %p3848 = scmp.ge.s32.totalorder %s3847, 1
                  %s3852 = sphi %s3768, %s3768
                  %s3853 = sphi %s3785, %s3785
                $region89: #{document_classifier_forward.3} parent=78 // loop_header_branch
                  %3850 = sbr.rel (%p3848) target = $region93
                $region90: #{document_classifier_forward.3} parent=78 // loop_body
                  %v3854 = vld [vmem:[%s3852] sm:%s3845]
                  %3855 = vst [vmem:[%s3853] sm:%s3845] %v3854
                  %v3856 = vld [vmem:[%s3852 + $0x4] sm:%s3845]
                  %3857 = vst [vmem:[%s3853 + $0x8] sm:%s3845] %v3856
                  %v3858 = vld [vmem:[%s3852 + $0x8] sm:%s3845]
                  %3859 = vst [vmem:[%s3853 + $0x10] sm:%s3845] %v3858
                  %v3860 = vld [vmem:[%s3852 + $0xc] sm:%s3845]
                  %3861 = vst [vmem:[%s3853 + $0x18] sm:%s3845] %v3860
                  %v3862 = vld [vmem:[%s3852 + $0x10] sm:%s3845]
                  %3863 = vst [vmem:[%s3853 + $0x20] sm:%s3845] %v3862
                  %v3864 = vld [vmem:[%s3852 + $0x14] sm:%s3845]
                  %3865 = vst [vmem:[%s3853 + $0x28] sm:%s3845] %v3864
                  %v3866 = vld [vmem:[%s3852 + $0x18] sm:%s3845]
                  %3867 = vst [vmem:[%s3853 + $0x30] sm:%s3845] %v3866
                  %v3868 = vld [vmem:[%s3852 + $0x1c] sm:%s3845]
                  %3869 = vst [vmem:[%s3853 + $0x38] sm:%s3845] %v3868
                  %v3870 = vld [vmem:[%s3852 + $0x20] sm:%s3845]
                  %3871 = vst [vmem:[%s3853 + $0x40] sm:%s3845] %v3870
                  %v3872 = vld [vmem:[%s3852 + $0x24] sm:%s3845]
                  %3873 = vst [vmem:[%s3853 + $0x48] sm:%s3845] %v3872
                  %v3874 = vld [vmem:[%s3852 + $0x28] sm:%s3845]
                  %3875 = vst [vmem:[%s3853 + $0x50] sm:%s3845] %v3874
                  %v3876 = vld [vmem:[%s3852 + $0x2c] sm:%s3845]
                  %3877 = vst [vmem:[%s3853 + $0x58] sm:%s3845] %v3876
                  %v3878 = vld [vmem:[%s3852 + $0x30] sm:%s3845]
                  %3879 = vst [vmem:[%s3853 + $0x60] sm:%s3845] %v3878
                  %v3880 = vld [vmem:[%s3852 + $0x34] sm:%s3845]
                  %3881 = vst [vmem:[%s3853 + $0x68] sm:%s3845] %v3880
                  %v3882 = vld [vmem:[%s3852 + $0x38] sm:%s3845]
                  %3883 = vst [vmem:[%s3853 + $0x70] sm:%s3845] %v3882
                  %v3884 = vld [vmem:[%s3852 + $0x3c] sm:%s3845]
                  %3885 = vst [vmem:[%s3853 + $0x78] sm:%s3845] %v3884
                $region91: #{document_classifier_forward.3} parent=78 // loop_footer
                  %s3851 = sadd.s32 1, %s3847
                $region92: #{document_classifier_forward.3} parent=78 // loop_footer_branch
                  %3846 = sbr.rel target = $region88
                $region93: #{document_classifier_forward.3} parent=78 // loop_exit
                  _
              $region79: #{document_classifier_forward.3} parent=63 // pred_fallthru
                _
            $region64: #{document_classifier_forward.3} parent=59 // pred_fallthru
              _
            // Predicated region
            $region65: #{document_classifier_forward.3} parent=59 // pred_check
              _
            $region66: #{document_classifier_forward.3} parent=59 // pred_check_branch
              %3791 = sbr.rel (0) target = $region68
            $region67: #{document_classifier_forward.3} parent=59 // pred_region
              %s3793 = ssub.s32 16, 1
              loop: start=0, step=1, limit=1
              $region69: #{document_classifier_forward.3} parent=67 // loop_pre_header
                _
              $region70: #{document_classifier_forward.3} parent=67 // loop_header
                %s3795 = sphi 0, %s3799
                %p3796 = scmp.ge.s32.totalorder %s3795, 1
                %s3800 = sphi %s3768, %s3768
                %s3801 = sphi %s3785, %s3785
              $region71: #{document_classifier_forward.3} parent=67 // loop_header_branch
                %3798 = sbr.rel (%p3796) target = $region75
              $region72: #{document_classifier_forward.3} parent=67 // loop_body
                %v3802 = vld [vmem:[%s3800] sm:%s3793]
                %3803 = vst [vmem:[%s3801] sm:%s3793] %v3802
                %v3804 = vld [vmem:[%s3800 + $0x4] sm:%s3793]
                %3805 = vst [vmem:[%s3801 + $0x8] sm:%s3793] %v3804
                %v3806 = vld [vmem:[%s3800 + $0x8] sm:%s3793]
                %3807 = vst [vmem:[%s3801 + $0x10] sm:%s3793] %v3806
                %v3808 = vld [vmem:[%s3800 + $0xc] sm:%s3793]
                %3809 = vst [vmem:[%s3801 + $0x18] sm:%s3793] %v3808
                %v3810 = vld [vmem:[%s3800 + $0x10] sm:%s3793]
                %3811 = vst [vmem:[%s3801 + $0x20] sm:%s3793] %v3810
                %v3812 = vld [vmem:[%s3800 + $0x14] sm:%s3793]
                %3813 = vst [vmem:[%s3801 + $0x28] sm:%s3793] %v3812
                %v3814 = vld [vmem:[%s3800 + $0x18] sm:%s3793]
                %3815 = vst [vmem:[%s3801 + $0x30] sm:%s3793] %v3814
                %v3816 = vld [vmem:[%s3800 + $0x1c] sm:%s3793]
                %3817 = vst [vmem:[%s3801 + $0x38] sm:%s3793] %v3816
                %v3818 = vld [vmem:[%s3800 + $0x20] sm:%s3793]
                %3819 = vst [vmem:[%s3801 + $0x40] sm:%s3793] %v3818
                %v3820 = vld [vmem:[%s3800 + $0x24] sm:%s3793]
                %3821 = vst [vmem:[%s3801 + $0x48] sm:%s3793] %v3820
                %v3822 = vld [vmem:[%s3800 + $0x28] sm:%s3793]
                %3823 = vst [vmem:[%s3801 + $0x50] sm:%s3793] %v3822
                %v3824 = vld [vmem:[%s3800 + $0x2c] sm:%s3793]
                %3825 = vst [vmem:[%s3801 + $0x58] sm:%s3793] %v3824
                %v3826 = vld [vmem:[%s3800 + $0x30] sm:%s3793]
                %3827 = vst [vmem:[%s3801 + $0x60] sm:%s3793] %v3826
                %v3828 = vld [vmem:[%s3800 + $0x34] sm:%s3793]
                %3829 = vst [vmem:[%s3801 + $0x68] sm:%s3793] %v3828
                %v3830 = vld [vmem:[%s3800 + $0x38] sm:%s3793]
                %3831 = vst [vmem:[%s3801 + $0x70] sm:%s3793] %v3830
                %v3832 = vld [vmem:[%s3800 + $0x3c] sm:%s3793]
                %3833 = vst [vmem:[%s3801 + $0x78] sm:%s3793] %v3832
              $region73: #{document_classifier_forward.3} parent=67 // loop_footer
                %s3799 = sadd.s32 1, %s3795
              $region74: #{document_classifier_forward.3} parent=67 // loop_footer_branch
                %3794 = sbr.rel target = $region70
              $region75: #{document_classifier_forward.3} parent=67 // loop_exit
                _
            $region68: #{document_classifier_forward.3} parent=59 // pred_fallthru
              _
          $region60: #{document_classifier_forward.3} parent=55 // pred_fallthru
            _
          %3886 = vnop
        $region56: #{document_classifier_forward.3} parent=35 // pred_fallthru
          _
        // Predicated region
        $region94: #{document_classifier_forward.3} parent=35 // pred_check
          %p3887 = pneg %p204
        $region95: #{document_classifier_forward.3} parent=35 // pred_check_branch
          %3889 = sbr.rel (%p3887) target = $region97
        $region96: #{document_classifier_forward.3} parent=35 // pred_region
          %s3891 = ssub.s32 256, 256
          %3892 = vsyncadd %s3770, %s3891
          %s3893 = smul.addr %s30, 2
          %s3894 = smul.addr %s3893, 128
          %s3895 = scalar_lea.hbm %s5, %s3894
          %s3896 = sshll.u32 %s3773, 4
          %s3897 = int_to_ptr.vmem [resolvable:$true] %s3896
          %3902 = dma.vmem_to_hbm [thread:$0]  %s3897, 256, %s3895, %s3770, 128, 128, 8
        $region97: #{document_classifier_forward.3} parent=35 // pred_fallthru
          _
      $region36: #{document_classifier_forward.3} parent=5 // pred_fallthru
        _
      %p3903 = scmp.le.s32.totalorder 2, %s21
      // Predicated region
      $region98: #{document_classifier_forward.3} parent=5 // pred_check
        %p3904 = pneg %p3903
      $region99: #{document_classifier_forward.3} parent=5 // pred_check_branch
        %3906 = sbr.rel (%p3904) target = $region101
      $region100: #{document_classifier_forward.3} parent=5 // pred_region
        %s3907 = ssub.s32 %s21, 2
        // Predicated region
        $region102: #{document_classifier_forward.3} parent=100 // pred_check
          %p3908 = pneg %p184
        $region103: #{document_classifier_forward.3} parent=100 // pred_check_branch
          %3910 = sbr.rel (%p3908) target = $region105
        $region104: #{document_classifier_forward.3} parent=100 // pred_region
          %s3911 = sand.u32 %s169, 1
          %s3912 = sand.u32 %s169, 1
          %s3913 = smul.addr %s3912, 64
          %s3914 = scalar_lea.vmem [#allocation11], %s3913
        $region105: #{document_classifier_forward.3} parent=100 // pred_fallthru
          _
        // Predicated region
        $region106: #{document_classifier_forward.3} parent=100 // pred_check
          %p3915 = pneg %p210
        $region107: #{document_classifier_forward.3} parent=100 // pred_check_branch
          %3917 = sbr.rel (%p3915) target = $region109
        $region108: #{document_classifier_forward.3} parent=100 // pred_region
          %s3918 = sand.u32 %s195, 1
          %s3919 = scalar_lea.sflag [#allocation7], %s3918
          %s3920 = sand.u32 %s195, 1
          %s3921 = smul.addr %s3920, 16
          %s3922 = scalar_lea.vmem [#allocation12], %s3921
          %3923 = dma.done %s3919, 256
        $region109: #{document_classifier_forward.3} parent=100 // pred_fallthru
          _
      $region101: #{document_classifier_forward.3} parent=5 // pred_fallthru
        _
    $region6: #{document_classifier_forward.3} parent=1 // loop_footer
      %s25 = sadd.s32 1, %s21
    $region7: #{document_classifier_forward.3} parent=1 // loop_footer_branch
      %20 = sbr.rel target = $region3
    $region8: #{document_classifier_forward.3} parent=1 // loop_exit
      _
    %3924 = vsyncpa [#allocation6], 1
    %s3925 = scalar_lea.sflag [#allocation6], 1
    %3926 = vsyncpa %s3925, 1
    %3927 = vsyncpa [#allocation9], 1
    %s3928 = scalar_lea.sflag [#allocation9], 1
    %3929 = vsyncpa %s3928, 1
    %3930 = vsyncpa [#allocation7], 1
    %s3931 = scalar_lea.sflag [#allocation7], 1
    %3932 = vsyncpa %s3931, 1

</llo_original>
